<compile_context>
chip_gen: v5e
topology: v5e:2x2
jax: 0.10.0
libtpu: 0.0.40
codegen_flags: <defaults>
</compile_context>

<pallas_src>
import jax
import jax.numpy as jnp
from jax import lax
from jax.experimental import pallas as pl
from jax.experimental.pallas import tpu as pltpu


def _fused_backbone_kernel(x_ref, w1_ref, b1_ref, w2_ref, b2_ref, o_ref,
                           h1p_ref):
    """conv1(3x3,SAME)+ReLU -> conv2(3x3,SAME)+ReLU -> global average pool.

    x_ref  : (TB, H+2, W+2, Cin) f32   wrapper-padded NHWC images
    w1_ref : (9*Cin, C1)         bf16  conv1 weights, taps folded into K
    b1_ref : (1, C1)             f32
    w2_ref : (9, C1, C2)         bf16  conv2 weights, one (C1,C2) slab per tap
    b2_ref : (1, C2)             f32
    o_ref  : (1, TB, C2)         f32   pooled features for this batch tile
    h1p_ref: (TB, H+2, W+2, C1)  f32   zero-padded conv1-activation scratch
    """
    TB, HP, WP, Cin = x_ref.shape
    H, W = HP - 2, WP - 2
    C1 = w1_ref.shape[1]
    C2 = w2_ref.shape[2]
    M = TB * H * W

    # ---- conv1 + ReLU: one MXU matmul, K = 9*Cin ------------------------
    # Patches come from 9 shifted Ref-window reads of the pre-padded input
    # (no in-kernel zero concat).  K-order = (kh*3 + kw)*Cin + c, matching
    # the row-major reshape of the HWIO weights.
    patches = jnp.concatenate(
        [x_ref[:, kh:kh + H, kw:kw + W, :]
         for kh in range(3) for kw in range(3)], axis=-1)     # (TB,H,W,9Cin)
    patches = patches.reshape(M, 9 * Cin).astype(jnp.bfloat16)
    h1 = jnp.dot(patches, w1_ref[...],
                 preferred_element_type=jnp.float32)          # (M, C1) f32
    h1 = jnp.maximum(h1 + b1_ref[...], 0.0)

    # ---- stage h1 into a zero-padded VMEM scratch ------------------------
    # The (H,W,C1) intermediate never leaves on-chip memory; SAME padding for
    # conv2 is just a Ref store into the interior of a zeroed scratch.
    h1p_ref[...] = jnp.zeros(h1p_ref.shape, h1p_ref.dtype)
    h1p_ref[:, 1:H + 1, 1:W + 1, :] = h1.reshape(TB, H, W, C1)

    # ---- conv2 + ReLU: 9 accumulating matmuls over shifted scratch windows
    def tap_dot(kh, kw):
        win = h1p_ref[:, kh:kh + H, kw:kw + W, :]             # (TB,H,W,C1)
        win = win.reshape(M, C1).astype(jnp.bfloat16)
        return jnp.dot(win, w2_ref[kh * 3 + kw],
                       preferred_element_type=jnp.float32)    # (M, C2) f32

    taps = [(kh, kw) for kh in range(3) for kw in range(3)]
    acc = tap_dot(*taps[0])
    for kh, kw in taps[1:]:
        acc = acc + tap_dot(kh, kw)
    h2 = jnp.maximum(acc + b2_ref[...], 0.0)                  # (M, C2)

    # ---- global average pool per image -> (TB, C2) -----------------------
    pooled = jnp.sum(h2.reshape(TB, H * W, C2), axis=1) * (1.0 / float(H * W))
    o_ref[0] = pooled.astype(o_ref.dtype)


def _default_num_batch_tiles(B):
    """2 parallel grid steps on dual-TensorCore chips (v7x), else 1 step."""
    try:
        kind = jax.devices()[0].device_kind.lower()
    except Exception:
        kind = ""
    if "7" in kind and B >= 2 and B % 2 == 0:   # v7x: keep both TCs busy
        return 2
    return 1                                    # v5e/v6e: one big M, no step overhead


def feature_extractor_forward(x_nchw, params, num_batch_tiles=None):
    """Pallas equivalent of FeatureExtractor.forward: backbone minus the final
    Linear head, then squeeze() -> (B, C2)."""
    w1, b1, w2, b2 = params                     # conv weights in HWIO
    x_nhwc = jnp.transpose(x_nchw, (0, 2, 3, 1)).astype(jnp.float32)
    B, H, W, Cin = x_nhwc.shape
    C1 = w1.shape[-1]
    C2 = w2.shape[-1]

    if num_batch_tiles is None:
        num_batch_tiles = _default_num_batch_tiles(B)
    if B % num_batch_tiles != 0:
        num_batch_tiles = 1
    tile_B = B // num_batch_tiles

    # SAME padding for conv1 done once in the wrapper (a few KiB of HBM), so
    # the kernel only ever reads shifted Ref windows.
    x_pad = jnp.pad(x_nhwc, ((0, 0), (1, 1), (1, 1), (0, 0)))

    # bf16 MXU inputs (native on all generations), f32 accumulation.
    w1_flat = w1.reshape(9 * Cin, C1).astype(jnp.bfloat16)    # (kh,kw,c)-major K
    w2_taps = w2.reshape(9, C1, C2).astype(jnp.bfloat16)      # per-tap slabs
    b1_r = b1.reshape(1, C1).astype(jnp.float32)
    b2_r = b2.reshape(1, C2).astype(jnp.float32)

    out = pl.pallas_call(
        _fused_backbone_kernel,
        out_shape=jax.ShapeDtypeStruct((num_batch_tiles, tile_B, C2),
                                       jnp.float32),
        grid=(num_batch_tiles,),
        in_specs=[
            pl.BlockSpec((tile_B, H + 2, W + 2, Cin), lambda i: (i, 0, 0, 0)),
            pl.BlockSpec((9 * Cin, C1), lambda i: (0, 0)),
            pl.BlockSpec((1, C1), lambda i: (0, 0)),
            pl.BlockSpec((9, C1, C2), lambda i: (0, 0, 0)),
            pl.BlockSpec((1, C2), lambda i: (0, 0)),
        ],
        out_specs=pl.BlockSpec((1, tile_B, C2), lambda i: (i, 0, 0)),
        scratch_shapes=[pltpu.VMEM((tile_B, H + 2, W + 2, C1), jnp.float32)],
        compiler_params=pltpu.CompilerParams(
            dimension_semantics=("parallel",)),
    )(x_pad, w1_flat, b1_r, w2_taps, b2_r)

    return out.reshape(B, C2)                   # == features.squeeze()


def _reference(x_nchw, params):
    w1, b1, w2, b2 = params
    x = jnp.transpose(x_nchw, (0, 2, 3, 1)).astype(jnp.float32)
    dn = ("NHWC", "HWIO", "NHWC")
    h = lax.conv_general_dilated(x, w1, (1, 1), "SAME", dimension_numbers=dn) + b1
    h = jnp.maximum(h, 0.0)
    h = lax.conv_general_dilated(h, w2, (1, 1), "SAME", dimension_numbers=dn) + b2
    h = jnp.maximum(h, 0.0)
    return jnp.mean(h, axis=(1, 2))


if __name__ == "__main__":
    B, Cin, H, W = 2, 4, 16, 16
    C1, C2 = 32, 64

    key = jax.random.PRNGKey(0)
    kx, kw1, kb1, kw2, kb2 = jax.random.split(key, 5)

    x = jax.random.normal(kx, (B, Cin, H, W), dtype=jnp.float32)  # NCHW input

    # PyTorch conv weights are (Cout, Cin, kh, kw); generate in that shape
    # then transpose to the kernel layout (kh, kw, Cin, Cout) = HWIO.
    w1_t = jax.random.normal(kw1, (C1, Cin, 3, 3), dtype=jnp.float32) * 0.1
    b1 = jax.random.normal(kb1, (C1,), dtype=jnp.float32) * 0.1
    w2_t = jax.random.normal(kw2, (C2, C1, 3, 3), dtype=jnp.float32) * 0.05
    b2 = jax.random.normal(kb2, (C2,), dtype=jnp.float32) * 0.1
    w1 = jnp.transpose(w1_t, (2, 3, 1, 0))  # (3, 3, Cin, C1)
    w2 = jnp.transpose(w2_t, (2, 3, 1, 0))  # (3, 3, C1, C2)
    params = (w1, b1, w2, b2)

    fwd = jax.jit(feature_extractor_forward)
    feats = jax.block_until_ready(fwd(x, params))
    assert feats.shape == (B, C2), feats.shape

    ref = jax.block_until_ready(_reference(x, params))
    max_err = float(jnp.max(jnp.abs(feats - ref)))
    # bf16 MXU inputs (f32 accumulate) vs f32 reference -> loosened tolerance.
    assert jnp.allclose(feats, ref, rtol=2e-2, atol=2e-2), max_err

    print("KERNEL_OK")
</pallas_src>

<mosaic_0001>
module attributes {stable_mosaic.version = 11 : i64} {
  func.func @_fused_backbone_kernel(%arg0: i32, %arg1: memref<2x18x18x4xf32, #tpu.memory_space<vmem>>, %arg2: memref<36x32xbf16, #tpu.memory_space<vmem>>, %arg3: memref<1x32xf32, #tpu.memory_space<vmem>>, %arg4: memref<9x32x64xbf16, #tpu.memory_space<vmem>>, %arg5: memref<1x64xf32, #tpu.memory_space<vmem>>, %arg6: memref<1x2x64xf32, #tpu.memory_space<vmem>>, %arg7: memref<2x18x18x32xf32, #tpu.memory_space<vmem>>) attributes {dimension_semantics = [#tpu.dimension_semantics<parallel>], iteration_bounds = array<i64: 1>, scalar_prefetch = 0 : i64, scratch_operands = 1 : i64, tpu.core_type = #tpu.core_type<tc>, window_params = [{transform_indices = @transform_0, window_bounds = array<i64: 2, 18, 18, 4>}, {pipeline_mode = #tpu.pipeline_mode<synchronous>, transform_indices = @transform_1, window_bounds = array<i64: 36, 32>}, {pipeline_mode = #tpu.pipeline_mode<synchronous>, transform_indices = @transform_2, window_bounds = array<i64: 1, 32>}, {pipeline_mode = #tpu.pipeline_mode<synchronous>, transform_indices = @transform_3, window_bounds = array<i64: 9, 32, 64>}, {pipeline_mode = #tpu.pipeline_mode<synchronous>, transform_indices = @transform_4, window_bounds = array<i64: 1, 64>}, {transform_indices = @transform_5, window_bounds = array<i64: 1, 2, 64>}]} {
    %c0 = arith.constant 0 : index
    %c0_0 = arith.constant 0 : index
    %c0_1 = arith.constant 0 : index
    %c0_2 = arith.constant 0 : index
    %0 = vector.load %arg1[%c0, %c0_0, %c0_1, %c0_2] : memref<2x18x18x4xf32, #tpu.memory_space<vmem>>, vector<2x16x16x4xf32>
    %c0_3 = arith.constant 0 : index
    %c0_4 = arith.constant 0 : index
    %c1 = arith.constant 1 : index
    %c0_5 = arith.constant 0 : index
    %1 = vector.load %arg1[%c0_3, %c0_4, %c1, %c0_5] : memref<2x18x18x4xf32, #tpu.memory_space<vmem>>, vector<2x16x16x4xf32>
    %c0_6 = arith.constant 0 : index
    %c0_7 = arith.constant 0 : index
    %c2 = arith.constant 2 : index
    %c0_8 = arith.constant 0 : index
    %2 = vector.load %arg1[%c0_6, %c0_7, %c2, %c0_8] : memref<2x18x18x4xf32, #tpu.memory_space<vmem>>, vector<2x16x16x4xf32>
    %c0_9 = arith.constant 0 : index
    %c1_10 = arith.constant 1 : index
    %c0_11 = arith.constant 0 : index
    %c0_12 = arith.constant 0 : index
    %3 = vector.load %arg1[%c0_9, %c1_10, %c0_11, %c0_12] : memref<2x18x18x4xf32, #tpu.memory_space<vmem>>, vector<2x16x16x4xf32>
    %c0_13 = arith.constant 0 : index
    %c1_14 = arith.constant 1 : index
    %c1_15 = arith.constant 1 : index
    %c0_16 = arith.constant 0 : index
    %4 = vector.load %arg1[%c0_13, %c1_14, %c1_15, %c0_16] : memref<2x18x18x4xf32, #tpu.memory_space<vmem>>, vector<2x16x16x4xf32>
    %c0_17 = arith.constant 0 : index
    %c1_18 = arith.constant 1 : index
    %c2_19 = arith.constant 2 : index
    %c0_20 = arith.constant 0 : index
    %5 = vector.load %arg1[%c0_17, %c1_18, %c2_19, %c0_20] : memref<2x18x18x4xf32, #tpu.memory_space<vmem>>, vector<2x16x16x4xf32>
    %c0_21 = arith.constant 0 : index
    %c2_22 = arith.constant 2 : index
    %c0_23 = arith.constant 0 : index
    %c0_24 = arith.constant 0 : index
    %6 = vector.load %arg1[%c0_21, %c2_22, %c0_23, %c0_24] : memref<2x18x18x4xf32, #tpu.memory_space<vmem>>, vector<2x16x16x4xf32>
    %c0_25 = arith.constant 0 : index
    %c2_26 = arith.constant 2 : index
    %c1_27 = arith.constant 1 : index
    %c0_28 = arith.constant 0 : index
    %7 = vector.load %arg1[%c0_25, %c2_26, %c1_27, %c0_28] : memref<2x18x18x4xf32, #tpu.memory_space<vmem>>, vector<2x16x16x4xf32>
    %c0_29 = arith.constant 0 : index
    %c2_30 = arith.constant 2 : index
    %c2_31 = arith.constant 2 : index
    %c0_32 = arith.constant 0 : index
    %8 = vector.load %arg1[%c0_29, %c2_30, %c2_31, %c0_32] : memref<2x18x18x4xf32, #tpu.memory_space<vmem>>, vector<2x16x16x4xf32>
    %9 = tpu.concatenate %0, %1, %2, %3, %4, %5, %6, %7, %8 in 3 : vector<2x16x16x4xf32>, vector<2x16x16x4xf32>, vector<2x16x16x4xf32>, vector<2x16x16x4xf32>, vector<2x16x16x4xf32>, vector<2x16x16x4xf32>, vector<2x16x16x4xf32>, vector<2x16x16x4xf32>, vector<2x16x16x4xf32> -> vector<2x16x16x36xf32>
    %10 = vector.shape_cast %9 : vector<2x16x16x36xf32> to vector<512x36xf32>
    %11 = arith.truncf %10 : vector<512x36xf32> to vector<512x36xbf16>
    %c0_33 = arith.constant 0 : index
    %c0_34 = arith.constant 0 : index
    %12 = vector.load %arg2[%c0_33, %c0_34] : memref<36x32xbf16, #tpu.memory_space<vmem>>, vector<36x32xbf16>
    %cst = arith.constant dense<0.000000e+00> : vector<512x32xf32>
    %13 = tpu.matmul %11, %12, %cst {dimension_numbers = #tpu.dot_dimension_numbers<[1], [0], [0], [1], [0, 0, 1, 1], [], []>} : vector<512x36xbf16>, vector<36x32xbf16>, vector<512x32xf32> -> vector<512x32xf32>
    %c0_35 = arith.constant 0 : index
    %c0_36 = arith.constant 0 : index
    %14 = vector.load %arg3[%c0_35, %c0_36] : memref<1x32xf32, #tpu.memory_space<vmem>>, vector<1x32xf32>
    %15 = vector.broadcast %14 : vector<1x32xf32> to vector<512x32xf32>
    %16 = arith.addf %13, %15 : vector<512x32xf32>
    %cst_37 = arith.constant 0.000000e+00 : f32
    %17 = vector.broadcast %cst_37 : f32 to vector<512x32xf32>
    %18 = arith.maximumf %16, %17 : vector<512x32xf32>
    %cst_38 = arith.constant 0.000000e+00 : f32
    %19 = vector.broadcast %cst_38 : f32 to vector<2x18x18x32xf32>
    %c0_39 = arith.constant 0 : index
    %c0_40 = arith.constant 0 : index
    %c0_41 = arith.constant 0 : index
    %c0_42 = arith.constant 0 : index
    %20 = vector.load %arg7[%c0_39, %c0_40, %c0_41, %c0_42] : memref<2x18x18x32xf32, #tpu.memory_space<vmem>>, vector<2x18x18x32xf32>
    tpu.vector_store %arg7[%c0_39, %c0_40, %c0_41, %c0_42], %19 {strides = array<i32>} : memref<2x18x18x32xf32, #tpu.memory_space<vmem>>, vector<2x18x18x32xf32>,
    %21 = vector.shape_cast %18 : vector<512x32xf32> to vector<2x16x16x32xf32>
    %c0_43 = arith.constant 0 : index
    %c1_44 = arith.constant 1 : index
    %c1_45 = arith.constant 1 : index
    %c0_46 = arith.constant 0 : index
    %22 = vector.load %arg7[%c0_43, %c1_44, %c1_45, %c0_46] : memref<2x18x18x32xf32, #tpu.memory_space<vmem>>, vector<2x16x16x32xf32>
    tpu.vector_store %arg7[%c0_43, %c1_44, %c1_45, %c0_46], %21 {strides = array<i32>} : memref<2x18x18x32xf32, #tpu.memory_space<vmem>>, vector<2x16x16x32xf32>,
    %c0_47 = arith.constant 0 : index
    %c0_48 = arith.constant 0 : index
    %c0_49 = arith.constant 0 : index
    %c0_50 = arith.constant 0 : index
    %23 = vector.load %arg7[%c0_47, %c0_48, %c0_49, %c0_50] : memref<2x18x18x32xf32, #tpu.memory_space<vmem>>, vector<2x16x16x32xf32>
    %24 = vector.shape_cast %23 : vector<2x16x16x32xf32> to vector<512x32xf32>
    %25 = arith.truncf %24 : vector<512x32xf32> to vector<512x32xbf16>
    %c0_51 = arith.constant 0 : index
    %c0_52 = arith.constant 0 : index
    %c0_53 = arith.constant 0 : index
    %26 = vector.load %arg4[%c0_51, %c0_52, %c0_53] : memref<9x32x64xbf16, #tpu.memory_space<vmem>>, vector<1x32x64xbf16>
    %27 = vector.shape_cast %26 : vector<1x32x64xbf16> to vector<32x64xbf16>
    %cst_54 = arith.constant dense<0.000000e+00> : vector<512x64xf32>
    %28 = tpu.matmul %25, %27, %cst_54 {dimension_numbers = #tpu.dot_dimension_numbers<[1], [0], [0], [1], [0, 0, 1, 1], [], []>} : vector<512x32xbf16>, vector<32x64xbf16>, vector<512x64xf32> -> vector<512x64xf32>
    %c0_55 = arith.constant 0 : index
    %c0_56 = arith.constant 0 : index
    %c1_57 = arith.constant 1 : index
    %c0_58 = arith.constant 0 : index
    %29 = vector.load %arg7[%c0_55, %c0_56, %c1_57, %c0_58] : memref<2x18x18x32xf32, #tpu.memory_space<vmem>>, vector<2x16x16x32xf32>
    %30 = vector.shape_cast %29 : vector<2x16x16x32xf32> to vector<512x32xf32>
    %31 = arith.truncf %30 : vector<512x32xf32> to vector<512x32xbf16>
    %c1_59 = arith.constant 1 : index
    %c0_60 = arith.constant 0 : index
    %c0_61 = arith.constant 0 : index
    %32 = vector.load %arg4[%c1_59, %c0_60, %c0_61] : memref<9x32x64xbf16, #tpu.memory_space<vmem>>, vector<1x32x64xbf16>
    %33 = vector.shape_cast %32 : vector<1x32x64xbf16> to vector<32x64xbf16>
    %cst_62 = arith.constant dense<0.000000e+00> : vector<512x64xf32>
    %34 = tpu.matmul %31, %33, %cst_62 {dimension_numbers = #tpu.dot_dimension_numbers<[1], [0], [0], [1], [0, 0, 1, 1], [], []>} : vector<512x32xbf16>, vector<32x64xbf16>, vector<512x64xf32> -> vector<512x64xf32>
    %35 = arith.addf %28, %34 : vector<512x64xf32>
    %c0_63 = arith.constant 0 : index
    %c0_64 = arith.constant 0 : index
    %c2_65 = arith.constant 2 : index
    %c0_66 = arith.constant 0 : index
    %36 = vector.load %arg7[%c0_63, %c0_64, %c2_65, %c0_66] : memref<2x18x18x32xf32, #tpu.memory_space<vmem>>, vector<2x16x16x32xf32>
    %37 = vector.shape_cast %36 : vector<2x16x16x32xf32> to vector<512x32xf32>
    %38 = arith.truncf %37 : vector<512x32xf32> to vector<512x32xbf16>
    %c2_67 = arith.constant 2 : index
    %c0_68 = arith.constant 0 : index
    %c0_69 = arith.constant 0 : index
    %39 = vector.load %arg4[%c2_67, %c0_68, %c0_69] : memref<9x32x64xbf16, #tpu.memory_space<vmem>>, vector<1x32x64xbf16>
    %40 = vector.shape_cast %39 : vector<1x32x64xbf16> to vector<32x64xbf16>
    %cst_70 = arith.constant dense<0.000000e+00> : vector<512x64xf32>
    %41 = tpu.matmul %38, %40, %cst_70 {dimension_numbers = #tpu.dot_dimension_numbers<[1], [0], [0], [1], [0, 0, 1, 1], [], []>} : vector<512x32xbf16>, vector<32x64xbf16>, vector<512x64xf32> -> vector<512x64xf32>
    %42 = arith.addf %35, %41 : vector<512x64xf32>
    %c0_71 = arith.constant 0 : index
    %c1_72 = arith.constant 1 : index
    %c0_73 = arith.constant 0 : index
    %c0_74 = arith.constant 0 : index
    %43 = vector.load %arg7[%c0_71, %c1_72, %c0_73, %c0_74] : memref<2x18x18x32xf32, #tpu.memory_space<vmem>>, vector<2x16x16x32xf32>
    %44 = vector.shape_cast %43 : vector<2x16x16x32xf32> to vector<512x32xf32>
    %45 = arith.truncf %44 : vector<512x32xf32> to vector<512x32xbf16>
    %c3 = arith.constant 3 : index
    %c0_75 = arith.constant 0 : index
    %c0_76 = arith.constant 0 : index
    %46 = vector.load %arg4[%c3, %c0_75, %c0_76] : memref<9x32x64xbf16, #tpu.memory_space<vmem>>, vector<1x32x64xbf16>
    %47 = vector.shape_cast %46 : vector<1x32x64xbf16> to vector<32x64xbf16>
    %cst_77 = arith.constant dense<0.000000e+00> : vector<512x64xf32>
    %48 = tpu.matmul %45, %47, %cst_77 {dimension_numbers = #tpu.dot_dimension_numbers<[1], [0], [0], [1], [0, 0, 1, 1], [], []>} : vector<512x32xbf16>, vector<32x64xbf16>, vector<512x64xf32> -> vector<512x64xf32>
    %49 = arith.addf %42, %48 : vector<512x64xf32>
    %c0_78 = arith.constant 0 : index
    %c1_79 = arith.constant 1 : index
    %c1_80 = arith.constant 1 : index
    %c0_81 = arith.constant 0 : index
    %50 = vector.load %arg7[%c0_78, %c1_79, %c1_80, %c0_81] : memref<2x18x18x32xf32, #tpu.memory_space<vmem>>, vector<2x16x16x32xf32>
    %51 = vector.shape_cast %50 : vector<2x16x16x32xf32> to vector<512x32xf32>
    %52 = arith.truncf %51 : vector<512x32xf32> to vector<512x32xbf16>
    %c4 = arith.constant 4 : index
    %c0_82 = arith.constant 0 : index
    %c0_83 = arith.constant 0 : index
    %53 = vector.load %arg4[%c4, %c0_82, %c0_83] : memref<9x32x64xbf16, #tpu.memory_space<vmem>>, vector<1x32x64xbf16>
    %54 = vector.shape_cast %53 : vector<1x32x64xbf16> to vector<32x64xbf16>
    %cst_84 = arith.constant dense<0.000000e+00> : vector<512x64xf32>
    %55 = tpu.matmul %52, %54, %cst_84 {dimension_numbers = #tpu.dot_dimension_numbers<[1], [0], [0], [1], [0, 0, 1, 1], [], []>} : vector<512x32xbf16>, vector<32x64xbf16>, vector<512x64xf32> -> vector<512x64xf32>
    %56 = arith.addf %49, %55 : vector<512x64xf32>
    %c0_85 = arith.constant 0 : index
    %c1_86 = arith.constant 1 : index
    %c2_87 = arith.constant 2 : index
    %c0_88 = arith.constant 0 : index
    %57 = vector.load %arg7[%c0_85, %c1_86, %c2_87, %c0_88] : memref<2x18x18x32xf32, #tpu.memory_space<vmem>>, vector<2x16x16x32xf32>
    %58 = vector.shape_cast %57 : vector<2x16x16x32xf32> to vector<512x32xf32>
    %59 = arith.truncf %58 : vector<512x32xf32> to vector<512x32xbf16>
    %c5 = arith.constant 5 : index
    %c0_89 = arith.constant 0 : index
    %c0_90 = arith.constant 0 : index
    %60 = vector.load %arg4[%c5, %c0_89, %c0_90] : memref<9x32x64xbf16, #tpu.memory_space<vmem>>, vector<1x32x64xbf16>
    %61 = vector.shape_cast %60 : vector<1x32x64xbf16> to vector<32x64xbf16>
    %cst_91 = arith.constant dense<0.000000e+00> : vector<512x64xf32>
    %62 = tpu.matmul %59, %61, %cst_91 {dimension_numbers = #tpu.dot_dimension_numbers<[1], [0], [0], [1], [0, 0, 1, 1], [], []>} : vector<512x32xbf16>, vector<32x64xbf16>, vector<512x64xf32> -> vector<512x64xf32>
    %63 = arith.addf %56, %62 : vector<512x64xf32>
    %c0_92 = arith.constant 0 : index
    %c2_93 = arith.constant 2 : index
    %c0_94 = arith.constant 0 : index
    %c0_95 = arith.constant 0 : index
    %64 = vector.load %arg7[%c0_92, %c2_93, %c0_94, %c0_95] : memref<2x18x18x32xf32, #tpu.memory_space<vmem>>, vector<2x16x16x32xf32>
    %65 = vector.shape_cast %64 : vector<2x16x16x32xf32> to vector<512x32xf32>
    %66 = arith.truncf %65 : vector<512x32xf32> to vector<512x32xbf16>
    %c6 = arith.constant 6 : index
    %c0_96 = arith.constant 0 : index
    %c0_97 = arith.constant 0 : index
    %67 = vector.load %arg4[%c6, %c0_96, %c0_97] : memref<9x32x64xbf16, #tpu.memory_space<vmem>>, vector<1x32x64xbf16>
    %68 = vector.shape_cast %67 : vector<1x32x64xbf16> to vector<32x64xbf16>
    %cst_98 = arith.constant dense<0.000000e+00> : vector<512x64xf32>
    %69 = tpu.matmul %66, %68, %cst_98 {dimension_numbers = #tpu.dot_dimension_numbers<[1], [0], [0], [1], [0, 0, 1, 1], [], []>} : vector<512x32xbf16>, vector<32x64xbf16>, vector<512x64xf32> -> vector<512x64xf32>
    %70 = arith.addf %63, %69 : vector<512x64xf32>
    %c0_99 = arith.constant 0 : index
    %c2_100 = arith.constant 2 : index
    %c1_101 = arith.constant 1 : index
    %c0_102 = arith.constant 0 : index
    %71 = vector.load %arg7[%c0_99, %c2_100, %c1_101, %c0_102] : memref<2x18x18x32xf32, #tpu.memory_space<vmem>>, vector<2x16x16x32xf32>
    %72 = vector.shape_cast %71 : vector<2x16x16x32xf32> to vector<512x32xf32>
    %73 = arith.truncf %72 : vector<512x32xf32> to vector<512x32xbf16>
    %c7 = arith.constant 7 : index
    %c0_103 = arith.constant 0 : index
    %c0_104 = arith.constant 0 : index
    %74 = vector.load %arg4[%c7, %c0_103, %c0_104] : memref<9x32x64xbf16, #tpu.memory_space<vmem>>, vector<1x32x64xbf16>
    %75 = vector.shape_cast %74 : vector<1x32x64xbf16> to vector<32x64xbf16>
    %cst_105 = arith.constant dense<0.000000e+00> : vector<512x64xf32>
    %76 = tpu.matmul %73, %75, %cst_105 {dimension_numbers = #tpu.dot_dimension_numbers<[1], [0], [0], [1], [0, 0, 1, 1], [], []>} : vector<512x32xbf16>, vector<32x64xbf16>, vector<512x64xf32> -> vector<512x64xf32>
    %77 = arith.addf %70, %76 : vector<512x64xf32>
    %c0_106 = arith.constant 0 : index
    %c2_107 = arith.constant 2 : index
    %c2_108 = arith.constant 2 : index
    %c0_109 = arith.constant 0 : index
    %78 = vector.load %arg7[%c0_106, %c2_107, %c2_108, %c0_109] : memref<2x18x18x32xf32, #tpu.memory_space<vmem>>, vector<2x16x16x32xf32>
    %79 = vector.shape_cast %78 : vector<2x16x16x32xf32> to vector<512x32xf32>
    %80 = arith.truncf %79 : vector<512x32xf32> to vector<512x32xbf16>
    %c8 = arith.constant 8 : index
    %c0_110 = arith.constant 0 : index
    %c0_111 = arith.constant 0 : index
    %81 = vector.load %arg4[%c8, %c0_110, %c0_111] : memref<9x32x64xbf16, #tpu.memory_space<vmem>>, vector<1x32x64xbf16>
    %82 = vector.shape_cast %81 : vector<1x32x64xbf16> to vector<32x64xbf16>
    %cst_112 = arith.constant dense<0.000000e+00> : vector<512x64xf32>
    %83 = tpu.matmul %80, %82, %cst_112 {dimension_numbers = #tpu.dot_dimension_numbers<[1], [0], [0], [1], [0, 0, 1, 1], [], []>} : vector<512x32xbf16>, vector<32x64xbf16>, vector<512x64xf32> -> vector<512x64xf32>
    %84 = arith.addf %77, %83 : vector<512x64xf32>
    %c0_113 = arith.constant 0 : index
    %c0_114 = arith.constant 0 : index
    %85 = vector.load %arg5[%c0_113, %c0_114] : memref<1x64xf32, #tpu.memory_space<vmem>>, vector<1x64xf32>
    %86 = vector.broadcast %85 : vector<1x64xf32> to vector<512x64xf32>
    %87 = arith.addf %84, %86 : vector<512x64xf32>
    %cst_115 = arith.constant 0.000000e+00 : f32
    %88 = vector.broadcast %cst_115 : f32 to vector<512x64xf32>
    %89 = arith.maximumf %87, %88 : vector<512x64xf32>
    %90 = vector.shape_cast %89 : vector<512x64xf32> to vector<2x256x64xf32>
    %cst_116 = arith.constant dense<0.000000e+00> : vector<2x64xf32>
    %91 = vector.multi_reduction <add>, %90, %cst_116 [1] : vector<2x256x64xf32> to vector<2x64xf32>
    %cst_117 = arith.constant 3.906250e-03 : f32
    %92 = vector.broadcast %cst_117 : f32 to vector<2x64xf32>
    %93 = arith.mulf %91, %92 : vector<2x64xf32>
    %c0_118 = arith.constant 0 : index
    %c0_119 = arith.constant 0 : index
    %c0_120 = arith.constant 0 : index
    %94 = vector.load %arg6[%c0_118, %c0_119, %c0_120] : memref<1x2x64xf32, #tpu.memory_space<vmem>>, vector<1x2x64xf32>
    %95 = vector.shape_cast %94 : vector<1x2x64xf32> to vector<2x64xf32>
    %96 = vector.shape_cast %93 : vector<2x64xf32> to vector<1x2x64xf32>
    tpu.vector_store %arg6[%c0_118, %c0_119, %c0_120], %96 {strides = array<i32>} : memref<1x2x64xf32, #tpu.memory_space<vmem>>, vector<1x2x64xf32>,
    return
  }
  func.func @transform_0(%arg0: i32) -> (i32, i32, i32, i32) {
    %c0_i32 = arith.constant 0 : i32
    %c0_i32_0 = arith.constant 0 : i32
    %c0_i32_1 = arith.constant 0 : i32
    %c0_i32_2 = arith.constant 0 : i32
    return %arg0, %c0_i32, %c0_i32_0, %c0_i32_1 : i32, i32, i32, i32
  }
  func.func @transform_1(%arg0: i32) -> (i32, i32) {
    %c0_i32 = arith.constant 0 : i32
    %c0_i32_0 = arith.constant 0 : i32
    %c0_i32_1 = arith.constant 0 : i32
    return %c0_i32, %c0_i32_0 : i32, i32
  }
  func.func @transform_2(%arg0: i32) -> (i32, i32) {
    %c0_i32 = arith.constant 0 : i32
    %c0_i32_0 = arith.constant 0 : i32
    %c0_i32_1 = arith.constant 0 : i32
    return %c0_i32, %c0_i32_0 : i32, i32
  }
  func.func @transform_3(%arg0: i32) -> (i32, i32, i32) {
    %c0_i32 = arith.constant 0 : i32
    %c0_i32_0 = arith.constant 0 : i32
    %c0_i32_1 = arith.constant 0 : i32
    %c0_i32_2 = arith.constant 0 : i32
    return %c0_i32, %c0_i32_0, %c0_i32_1 : i32, i32, i32
  }
  func.func @transform_4(%arg0: i32) -> (i32, i32) {
    %c0_i32 = arith.constant 0 : i32
    %c0_i32_0 = arith.constant 0 : i32
    %c0_i32_1 = arith.constant 0 : i32
    return %c0_i32, %c0_i32_0 : i32, i32
  }
  func.func @transform_5(%arg0: i32) -> (i32, i32, i32) {
    %c0_i32 = arith.constant 0 : i32
    %c0_i32_0 = arith.constant 0 : i32
    %c0_i32_1 = arith.constant 0 : i32
    return %arg0, %c0_i32, %c0_i32_0 : i32, i32, i32
  }
}

</mosaic_0001>

<llo_original>
// kernel: feature_extractor_forward.1
$region0: #{feature_extractor_forward.1}
  #allocation0 [shape = 'u32[]', space=smem, size = 0x4, offset = 0x4, fixed_abs, tag = 'smem constant byte address 0x4 - core index']
  #allocation1 [shape = 'u32[72,128]{1,0:T(1,128)}', space=vmem, size = 0x9000, scoped, tag = 'internal scratch']
  #allocation2 [shape = 'f32[2,18,18,32]{3,2,1,0:T(8,128)}', space=vmem, size = 0x6c000, scoped, tag = 'scratch operand']
  %s0 = inlined_call_operand.vmem [shape: f32[2,18,18,4], index: 0, kind: input, shape index: {}]
  %s1 = inlined_call_operand.vmem [shape: bf16[36,32], index: 1, kind: input, shape index: {}]
  %s2 = inlined_call_operand.vmem [shape: f32[1,32], index: 2, kind: input, shape index: {}]
  %s3 = inlined_call_operand.vmem [shape: bf16[9,32,64], index: 3, kind: input, shape index: {}]
  %s4 = inlined_call_operand.vmem [shape: f32[1,64], index: 4, kind: input, shape index: {}]
  %s5 = inlined_call_operand.hbm [shape: f32[1,2,64], index: 5, kind: output, shape index: {}]
  %s6 = sld [smem:[#allocation0]]
  $region30: #{feature_extractor_forward.1} parent=0
    _
  %s8 = ssub.s32 1, %s6
  %s9 = scalar_select 0, %s8, %s6
  $region1: #{feature_extractor_forward.1} parent=0
    #allocation3 [shape = 'u8[1024]{0}', space=vmem, size = 0x400, scoped, tag = 'output window, operand 0, single buffered']
    #allocation4 [shape = 's32[1]{0}', space=sflag, size = 0x4, scoped, tag = 'scoped memory for feature_extractor_forward.1']
    %10 = vsyncpa [#allocation4], 0
    // Predicated region
    $region2: #{feature_extractor_forward.1} parent=1 // pred_check
      _
    $region3: #{feature_extractor_forward.1} parent=1 // pred_check_branch
      %12 = sbr.rel (0) target = $region5
    $region4: #{feature_extractor_forward.1} parent=1 // pred_region
      _
    $region5: #{feature_extractor_forward.1} parent=1 // pred_fallthru
      _
    // Predicated region
    $region6: #{feature_extractor_forward.1} parent=1 // pred_check
      _
    $region7: #{feature_extractor_forward.1} parent=1 // pred_check_branch
      %14 = sbr.rel (0) target = $region9
    $region8: #{feature_extractor_forward.1} parent=1 // pred_region
      _
    $region9: #{feature_extractor_forward.1} parent=1 // pred_fallthru
      _
    // Predicated region
    $region10: #{feature_extractor_forward.1} parent=1 // pred_check
      _
    $region11: #{feature_extractor_forward.1} parent=1 // pred_check_branch
      %16 = sbr.rel (0) target = $region13
    $region12: #{feature_extractor_forward.1} parent=1 // pred_region
      _
    $region13: #{feature_extractor_forward.1} parent=1 // pred_fallthru
      _
    // Predicated region
    $region14: #{feature_extractor_forward.1} parent=1 // pred_check
      _
    $region15: #{feature_extractor_forward.1} parent=1 // pred_check_branch
      %18 = sbr.rel (0) target = $region17
    $region16: #{feature_extractor_forward.1} parent=1 // pred_region
      _
    $region17: #{feature_extractor_forward.1} parent=1 // pred_fallthru
      _
    // Predicated region
    $region18: #{feature_extractor_forward.1} parent=1 // pred_check
      _
    $region19: #{feature_extractor_forward.1} parent=1 // pred_check_branch
      %20 = sbr.rel (0) target = $region21
    $region20: #{feature_extractor_forward.1} parent=1 // pred_region
      _
    $region21: #{feature_extractor_forward.1} parent=1 // pred_fallthru
      _
    %v22 = vld [vmem:[%s0] sm:$0xff]
    %v23 = vld [vmem:[%s0 + $0x8] sm:$0xff]
    %v24 = vld [vmem:[%s0 + $0x18] sm:$0xff]
    %v25 = vld [vmem:[%s0 + $0x20] sm:$0xff]
    %v26 = vld [vmem:[%s0 + $0x30] sm:$0xff]
    %v27 = vld [vmem:[%s0 + $0x38] sm:$0xff]
    %v28 = vld [vmem:[%s0 + $0x48] sm:$0xff]
    %v29 = vld [vmem:[%s0 + $0x50] sm:$0xff]
    %v30 = vld [vmem:[%s0 + $0x60] sm:$0xff]
    %v31 = vld [vmem:[%s0 + $0x68] sm:$0xff]
    %v32 = vld [vmem:[%s0 + $0x78] sm:$0xff]
    %v33 = vld [vmem:[%s0 + $0x80] sm:$0xff]
    %v34 = vld [vmem:[%s0 + $0x90] sm:$0xff]
    %v35 = vld [vmem:[%s0 + $0x98] sm:$0xff]
    %v36 = vld [vmem:[%s0 + $0xa8] sm:$0xff]
    %v37 = vld [vmem:[%s0 + $0xb0] sm:$0xff]
    %v38 = vld [vmem:[%s0 + $0xc0] sm:$0xff]
    %v39 = vld [vmem:[%s0 + $0xc8] sm:$0xff]
    %v40 = vld [vmem:[%s0 + $0xd8] sm:$0xff]
    %v41 = vld [vmem:[%s0 + $0xe0] sm:$0xff]
    %v42 = vld [vmem:[%s0 + $0xf0] sm:$0xff]
    %v43 = vld [vmem:[%s0 + $0xf8] sm:$0xff]
    %v44 = vld [vmem:[%s0 + $0x108] sm:$0xff]
    %v45 = vld [vmem:[%s0 + $0x110] sm:$0xff]
    %v46 = vld [vmem:[%s0 + $0x120] sm:$0xff]
    %v47 = vld [vmem:[%s0 + $0x128] sm:$0xff]
    %v48 = vld [vmem:[%s0 + $0x138] sm:$0xff]
    %v49 = vld [vmem:[%s0 + $0x140] sm:$0xff]
    %v50 = vld [vmem:[%s0 + $0x150] sm:$0xff]
    %v51 = vld [vmem:[%s0 + $0x158] sm:$0xff]
    %v52 = vld [vmem:[%s0 + $0x168] sm:$0xff]
    %v53 = vld [vmem:[%s0 + $0x170] sm:$0xff]
    %v54 = vld [vmem:[%s0 + $0x1b0] sm:$0xff]
    %v55 = vld [vmem:[%s0 + $0x1b8] sm:$0xff]
    %v56 = vld [vmem:[%s0 + $0x1c8] sm:$0xff]
    %v57 = vld [vmem:[%s0 + $0x1d0] sm:$0xff]
    %v58 = vld [vmem:[%s0 + $0x1e0] sm:$0xff]
    %v59 = vld [vmem:[%s0 + $0x1e8] sm:$0xff]
    %v60 = vld [vmem:[%s0 + $0x1f8] sm:$0xff]
    %v61 = vld [vmem:[%s0 + $0x200] sm:$0xff]
    %v62 = vld [vmem:[%s0 + $0x210] sm:$0xff]
    %v63 = vld [vmem:[%s0 + $0x218] sm:$0xff]
    %v64 = vld [vmem:[%s0 + $0x228] sm:$0xff]
    %v65 = vld [vmem:[%s0 + $0x230] sm:$0xff]
    %v66 = vld [vmem:[%s0 + $0x240] sm:$0xff]
    %v67 = vld [vmem:[%s0 + $0x248] sm:$0xff]
    %v68 = vld [vmem:[%s0 + $0x258] sm:$0xff]
    %v69 = vld [vmem:[%s0 + $0x260] sm:$0xff]
    %v70 = vld [vmem:[%s0 + $0x270] sm:$0xff]
    %v71 = vld [vmem:[%s0 + $0x278] sm:$0xff]
    %v72 = vld [vmem:[%s0 + $0x288] sm:$0xff]
    %v73 = vld [vmem:[%s0 + $0x290] sm:$0xff]
    %v74 = vld [vmem:[%s0 + $0x2a0] sm:$0xff]
    %v75 = vld [vmem:[%s0 + $0x2a8] sm:$0xff]
    %v76 = vld [vmem:[%s0 + $0x2b8] sm:$0xff]
    %v77 = vld [vmem:[%s0 + $0x2c0] sm:$0xff]
    %v78 = vld [vmem:[%s0 + $0x2d0] sm:$0xff]
    %v79 = vld [vmem:[%s0 + $0x2d8] sm:$0xff]
    %v80 = vld [vmem:[%s0 + $0x2e8] sm:$0xff]
    %v81 = vld [vmem:[%s0 + $0x2f0] sm:$0xff]
    %v82 = vld [vmem:[%s0 + $0x300] sm:$0xff]
    %v83 = vld [vmem:[%s0 + $0x308] sm:$0xff]
    %v84 = vld [vmem:[%s0 + $0x318] sm:$0xff]
    %v85 = vld [vmem:[%s0 + $0x320] sm:$0xff]
    %v86 = vld [vmem:[%s0 + $0x1] sm:$0xff]
    %v87 = vld [vmem:[%s0 + $0x9] sm:$0xff]
    %v88 = vld [vmem:[%s0 + $0x19] sm:$0xff]
    %v89 = vld [vmem:[%s0 + $0x21] sm:$0xff]
    %v90 = vld [vmem:[%s0 + $0x31] sm:$0xff]
    %v91 = vld [vmem:[%s0 + $0x39] sm:$0xff]
    %v92 = vld [vmem:[%s0 + $0x49] sm:$0xff]
    %v93 = vld [vmem:[%s0 + $0x51] sm:$0xff]
    %v94 = vld [vmem:[%s0 + $0x61] sm:$0xff]
    %v95 = vld [vmem:[%s0 + $0x69] sm:$0xff]
    %v96 = vld [vmem:[%s0 + $0x79] sm:$0xff]
    %v97 = vld [vmem:[%s0 + $0x81] sm:$0xff]
    %v98 = vld [vmem:[%s0 + $0x91] sm:$0xff]
    %v99 = vld [vmem:[%s0 + $0x99] sm:$0xff]
    %v100 = vld [vmem:[%s0 + $0xa9] sm:$0xff]
    %v101 = vld [vmem:[%s0 + $0xb1] sm:$0xff]
    %v102 = vld [vmem:[%s0 + $0xc1] sm:$0xff]
    %v103 = vld [vmem:[%s0 + $0xc9] sm:$0xff]
    %v104 = vld [vmem:[%s0 + $0xd9] sm:$0xff]
    %v105 = vld [vmem:[%s0 + $0xe1] sm:$0xff]
    %v106 = vld [vmem:[%s0 + $0xf1] sm:$0xff]
    %v107 = vld [vmem:[%s0 + $0xf9] sm:$0xff]
    %v108 = vld [vmem:[%s0 + $0x109] sm:$0xff]
    %v109 = vld [vmem:[%s0 + $0x111] sm:$0xff]
    %v110 = vld [vmem:[%s0 + $0x121] sm:$0xff]
    %v111 = vld [vmem:[%s0 + $0x129] sm:$0xff]
    %v112 = vld [vmem:[%s0 + $0x139] sm:$0xff]
    %v113 = vld [vmem:[%s0 + $0x141] sm:$0xff]
    %v114 = vld [vmem:[%s0 + $0x151] sm:$0xff]
    %v115 = vld [vmem:[%s0 + $0x159] sm:$0xff]
    %v116 = vld [vmem:[%s0 + $0x169] sm:$0xff]
    %v117 = vld [vmem:[%s0 + $0x171] sm:$0xff]
    %v118 = vld [vmem:[%s0 + $0x1b1] sm:$0xff]
    %v119 = vld [vmem:[%s0 + $0x1b9] sm:$0xff]
    %v120 = vld [vmem:[%s0 + $0x1c9] sm:$0xff]
    %v121 = vld [vmem:[%s0 + $0x1d1] sm:$0xff]
    %v122 = vld [vmem:[%s0 + $0x1e1] sm:$0xff]
    %v123 = vld [vmem:[%s0 + $0x1e9] sm:$0xff]
    %v124 = vld [vmem:[%s0 + $0x1f9] sm:$0xff]
    %v125 = vld [vmem:[%s0 + $0x201] sm:$0xff]
    %v126 = vld [vmem:[%s0 + $0x211] sm:$0xff]
    %v127 = vld [vmem:[%s0 + $0x219] sm:$0xff]
    %v128 = vld [vmem:[%s0 + $0x229] sm:$0xff]
    %v129 = vld [vmem:[%s0 + $0x231] sm:$0xff]
    %v130 = vld [vmem:[%s0 + $0x241] sm:$0xff]
    %v131 = vld [vmem:[%s0 + $0x249] sm:$0xff]
    %v132 = vld [vmem:[%s0 + $0x259] sm:$0xff]
    %v133 = vld [vmem:[%s0 + $0x261] sm:$0xff]
    %v134 = vld [vmem:[%s0 + $0x271] sm:$0xff]
    %v135 = vld [vmem:[%s0 + $0x279] sm:$0xff]
    %v136 = vld [vmem:[%s0 + $0x289] sm:$0xff]
    %v137 = vld [vmem:[%s0 + $0x291] sm:$0xff]
    %v138 = vld [vmem:[%s0 + $0x2a1] sm:$0xff]
    %v139 = vld [vmem:[%s0 + $0x2a9] sm:$0xff]
    %v140 = vld [vmem:[%s0 + $0x2b9] sm:$0xff]
    %v141 = vld [vmem:[%s0 + $0x2c1] sm:$0xff]
    %v142 = vld [vmem:[%s0 + $0x2d1] sm:$0xff]
    %v143 = vld [vmem:[%s0 + $0x2d9] sm:$0xff]
    %v144 = vld [vmem:[%s0 + $0x2e9] sm:$0xff]
    %v145 = vld [vmem:[%s0 + $0x2f1] sm:$0xff]
    %v146 = vld [vmem:[%s0 + $0x301] sm:$0xff]
    %v147 = vld [vmem:[%s0 + $0x309] sm:$0xff]
    %v148 = vld [vmem:[%s0 + $0x319] sm:$0xff]
    %v149 = vld [vmem:[%s0 + $0x321] sm:$0xff]
    %v150 = vld [vmem:[%s0 + $0x2] sm:$0xff]
    %v151 = vld [vmem:[%s0 + $0xa] sm:$0xff]
    %v152 = vld [vmem:[%s0 + $0x1a] sm:$0xff]
    %v153 = vld [vmem:[%s0 + $0x22] sm:$0xff]
    %v154 = vld [vmem:[%s0 + $0x32] sm:$0xff]
    %v155 = vld [vmem:[%s0 + $0x3a] sm:$0xff]
    %v156 = vld [vmem:[%s0 + $0x4a] sm:$0xff]
    %v157 = vld [vmem:[%s0 + $0x52] sm:$0xff]
    %v158 = vld [vmem:[%s0 + $0x62] sm:$0xff]
    %v159 = vld [vmem:[%s0 + $0x6a] sm:$0xff]
    %v160 = vld [vmem:[%s0 + $0x7a] sm:$0xff]
    %v161 = vld [vmem:[%s0 + $0x82] sm:$0xff]
    %v162 = vld [vmem:[%s0 + $0x92] sm:$0xff]
    %v163 = vld [vmem:[%s0 + $0x9a] sm:$0xff]
    %v164 = vld [vmem:[%s0 + $0xaa] sm:$0xff]
    %v165 = vld [vmem:[%s0 + $0xb2] sm:$0xff]
    %v166 = vld [vmem:[%s0 + $0xc2] sm:$0xff]
    %v167 = vld [vmem:[%s0 + $0xca] sm:$0xff]
    %v168 = vld [vmem:[%s0 + $0xda] sm:$0xff]
    %v169 = vld [vmem:[%s0 + $0xe2] sm:$0xff]
    %v170 = vld [vmem:[%s0 + $0xf2] sm:$0xff]
    %v171 = vld [vmem:[%s0 + $0xfa] sm:$0xff]
    %v172 = vld [vmem:[%s0 + $0x10a] sm:$0xff]
    %v173 = vld [vmem:[%s0 + $0x112] sm:$0xff]
    %v174 = vld [vmem:[%s0 + $0x122] sm:$0xff]
    %v175 = vld [vmem:[%s0 + $0x12a] sm:$0xff]
    %v176 = vld [vmem:[%s0 + $0x13a] sm:$0xff]
    %v177 = vld [vmem:[%s0 + $0x142] sm:$0xff]
    %v178 = vld [vmem:[%s0 + $0x152] sm:$0xff]
    %v179 = vld [vmem:[%s0 + $0x15a] sm:$0xff]
    %v180 = vld [vmem:[%s0 + $0x16a] sm:$0xff]
    %v181 = vld [vmem:[%s0 + $0x172] sm:$0xff]
    %v182 = vld [vmem:[%s0 + $0x1b2] sm:$0xff]
    %v183 = vld [vmem:[%s0 + $0x1ba] sm:$0xff]
    %v184 = vld [vmem:[%s0 + $0x1ca] sm:$0xff]
    %v185 = vld [vmem:[%s0 + $0x1d2] sm:$0xff]
    %v186 = vld [vmem:[%s0 + $0x1e2] sm:$0xff]
    %v187 = vld [vmem:[%s0 + $0x1ea] sm:$0xff]
    %v188 = vld [vmem:[%s0 + $0x1fa] sm:$0xff]
    %v189 = vld [vmem:[%s0 + $0x202] sm:$0xff]
    %v190 = vld [vmem:[%s0 + $0x212] sm:$0xff]
    %v191 = vld [vmem:[%s0 + $0x21a] sm:$0xff]
    %v192 = vld [vmem:[%s0 + $0x22a] sm:$0xff]
    %v193 = vld [vmem:[%s0 + $0x232] sm:$0xff]
    %v194 = vld [vmem:[%s0 + $0x242] sm:$0xff]
    %v195 = vld [vmem:[%s0 + $0x24a] sm:$0xff]
    %v196 = vld [vmem:[%s0 + $0x25a] sm:$0xff]
    %v197 = vld [vmem:[%s0 + $0x262] sm:$0xff]
    %v198 = vld [vmem:[%s0 + $0x272] sm:$0xff]
    %v199 = vld [vmem:[%s0 + $0x27a] sm:$0xff]
    %v200 = vld [vmem:[%s0 + $0x28a] sm:$0xff]
    %v201 = vld [vmem:[%s0 + $0x292] sm:$0xff]
    %v202 = vld [vmem:[%s0 + $0x2a2] sm:$0xff]
    %v203 = vld [vmem:[%s0 + $0x2aa] sm:$0xff]
    %v204 = vld [vmem:[%s0 + $0x2ba] sm:$0xff]
    %v205 = vld [vmem:[%s0 + $0x2c2] sm:$0xff]
    %v206 = vld [vmem:[%s0 + $0x2d2] sm:$0xff]
    %v207 = vld [vmem:[%s0 + $0x2da] sm:$0xff]
    %v208 = vld [vmem:[%s0 + $0x2ea] sm:$0xff]
    %v209 = vld [vmem:[%s0 + $0x2f2] sm:$0xff]
    %v210 = vld [vmem:[%s0 + $0x302] sm:$0xff]
    %v211 = vld [vmem:[%s0 + $0x30a] sm:$0xff]
    %v212 = vld [vmem:[%s0 + $0x31a] sm:$0xff]
    %v213 = vld [vmem:[%s0 + $0x322] sm:$0xff]
    %s214 = scalar_lea.vmem %s0, 24
    %v215 = vld [vmem:[%s214] sm:$0xff]
    %v216 = vld [vmem:[%s214 + $0x8] sm:$0xff]
    %v217 = vld [vmem:[%s214 + $0x18] sm:$0xff]
    %v218 = vld [vmem:[%s214 + $0x20] sm:$0xff]
    %v219 = vld [vmem:[%s214 + $0x30] sm:$0xff]
    %v220 = vld [vmem:[%s214 + $0x38] sm:$0xff]
    %v221 = vld [vmem:[%s214 + $0x48] sm:$0xff]
    %v222 = vld [vmem:[%s214 + $0x50] sm:$0xff]
    %v223 = vld [vmem:[%s214 + $0x60] sm:$0xff]
    %v224 = vld [vmem:[%s214 + $0x68] sm:$0xff]
    %v225 = vld [vmem:[%s214 + $0x78] sm:$0xff]
    %v226 = vld [vmem:[%s214 + $0x80] sm:$0xff]
    %v227 = vld [vmem:[%s214 + $0x90] sm:$0xff]
    %v228 = vld [vmem:[%s214 + $0x98] sm:$0xff]
    %v229 = vld [vmem:[%s214 + $0xa8] sm:$0xff]
    %v230 = vld [vmem:[%s214 + $0xb0] sm:$0xff]
    %v231 = vld [vmem:[%s214 + $0xc0] sm:$0xff]
    %v232 = vld [vmem:[%s214 + $0xc8] sm:$0xff]
    %v233 = vld [vmem:[%s214 + $0xd8] sm:$0xff]
    %v234 = vld [vmem:[%s214 + $0xe0] sm:$0xff]
    %v235 = vld [vmem:[%s214 + $0xf0] sm:$0xff]
    %v236 = vld [vmem:[%s214 + $0xf8] sm:$0xff]
    %v237 = vld [vmem:[%s214 + $0x108] sm:$0xff]
    %v238 = vld [vmem:[%s214 + $0x110] sm:$0xff]
    %v239 = vld [vmem:[%s214 + $0x120] sm:$0xff]
    %v240 = vld [vmem:[%s214 + $0x128] sm:$0xff]
    %v241 = vld [vmem:[%s214 + $0x138] sm:$0xff]
    %v242 = vld [vmem:[%s214 + $0x140] sm:$0xff]
    %v243 = vld [vmem:[%s214 + $0x150] sm:$0xff]
    %v244 = vld [vmem:[%s214 + $0x158] sm:$0xff]
    %v245 = vld [vmem:[%s214 + $0x168] sm:$0xff]
    %v246 = vld [vmem:[%s214 + $0x170] sm:$0xff]
    %v247 = vld [vmem:[%s214 + $0x1b0] sm:$0xff]
    %v248 = vld [vmem:[%s214 + $0x1b8] sm:$0xff]
    %v249 = vld [vmem:[%s214 + $0x1c8] sm:$0xff]
    %v250 = vld [vmem:[%s214 + $0x1d0] sm:$0xff]
    %v251 = vld [vmem:[%s214 + $0x1e0] sm:$0xff]
    %v252 = vld [vmem:[%s214 + $0x1e8] sm:$0xff]
    %v253 = vld [vmem:[%s214 + $0x1f8] sm:$0xff]
    %v254 = vld [vmem:[%s214 + $0x200] sm:$0xff]
    %v255 = vld [vmem:[%s214 + $0x210] sm:$0xff]
    %v256 = vld [vmem:[%s214 + $0x218] sm:$0xff]
    %v257 = vld [vmem:[%s214 + $0x228] sm:$0xff]
    %v258 = vld [vmem:[%s214 + $0x230] sm:$0xff]
    %v259 = vld [vmem:[%s214 + $0x240] sm:$0xff]
    %v260 = vld [vmem:[%s214 + $0x248] sm:$0xff]
    %v261 = vld [vmem:[%s214 + $0x258] sm:$0xff]
    %v262 = vld [vmem:[%s214 + $0x260] sm:$0xff]
    %v263 = vld [vmem:[%s214 + $0x270] sm:$0xff]
    %v264 = vld [vmem:[%s214 + $0x278] sm:$0xff]
    %v265 = vld [vmem:[%s214 + $0x288] sm:$0xff]
    %v266 = vld [vmem:[%s214 + $0x290] sm:$0xff]
    %v267 = vld [vmem:[%s214 + $0x2a0] sm:$0xff]
    %v268 = vld [vmem:[%s214 + $0x2a8] sm:$0xff]
    %v269 = vld [vmem:[%s214 + $0x2b8] sm:$0xff]
    %v270 = vld [vmem:[%s214 + $0x2c0] sm:$0xff]
    %v271 = vld [vmem:[%s214 + $0x2d0] sm:$0xff]
    %v272 = vld [vmem:[%s214 + $0x2d8] sm:$0xff]
    %v273 = vld [vmem:[%s214 + $0x2e8] sm:$0xff]
    %v274 = vld [vmem:[%s214 + $0x2f0] sm:$0xff]
    %v275 = vld [vmem:[%s214 + $0x300] sm:$0xff]
    %v276 = vld [vmem:[%s214 + $0x308] sm:$0xff]
    %v277 = vld [vmem:[%s214 + $0x318] sm:$0xff]
    %v278 = vld [vmem:[%s214 + $0x320] sm:$0xff]
    %v279 = vld [vmem:[%s214 + $0x1] sm:$0xff]
    %v280 = vld [vmem:[%s214 + $0x9] sm:$0xff]
    %v281 = vld [vmem:[%s214 + $0x19] sm:$0xff]
    %v282 = vld [vmem:[%s214 + $0x21] sm:$0xff]
    %v283 = vld [vmem:[%s214 + $0x31] sm:$0xff]
    %v284 = vld [vmem:[%s214 + $0x39] sm:$0xff]
    %v285 = vld [vmem:[%s214 + $0x49] sm:$0xff]
    %v286 = vld [vmem:[%s214 + $0x51] sm:$0xff]
    %v287 = vld [vmem:[%s214 + $0x61] sm:$0xff]
    %v288 = vld [vmem:[%s214 + $0x69] sm:$0xff]
    %v289 = vld [vmem:[%s214 + $0x79] sm:$0xff]
    %v290 = vld [vmem:[%s214 + $0x81] sm:$0xff]
    %v291 = vld [vmem:[%s214 + $0x91] sm:$0xff]
    %v292 = vld [vmem:[%s214 + $0x99] sm:$0xff]
    %v293 = vld [vmem:[%s214 + $0xa9] sm:$0xff]
    %v294 = vld [vmem:[%s214 + $0xb1] sm:$0xff]
    %v295 = vld [vmem:[%s214 + $0xc1] sm:$0xff]
    %v296 = vld [vmem:[%s214 + $0xc9] sm:$0xff]
    %v297 = vld [vmem:[%s214 + $0xd9] sm:$0xff]
    %v298 = vld [vmem:[%s214 + $0xe1] sm:$0xff]
    %v299 = vld [vmem:[%s214 + $0xf1] sm:$0xff]
    %v300 = vld [vmem:[%s214 + $0xf9] sm:$0xff]
    %v301 = vld [vmem:[%s214 + $0x109] sm:$0xff]
    %v302 = vld [vmem:[%s214 + $0x111] sm:$0xff]
    %v303 = vld [vmem:[%s214 + $0x121] sm:$0xff]
    %v304 = vld [vmem:[%s214 + $0x129] sm:$0xff]
    %v305 = vld [vmem:[%s214 + $0x139] sm:$0xff]
    %v306 = vld [vmem:[%s214 + $0x141] sm:$0xff]
    %v307 = vld [vmem:[%s214 + $0x151] sm:$0xff]
    %v308 = vld [vmem:[%s214 + $0x159] sm:$0xff]
    %v309 = vld [vmem:[%s214 + $0x169] sm:$0xff]
    %v310 = vld [vmem:[%s214 + $0x171] sm:$0xff]
    %v311 = vld [vmem:[%s214 + $0x1b1] sm:$0xff]
    %v312 = vld [vmem:[%s214 + $0x1b9] sm:$0xff]
    %v313 = vld [vmem:[%s214 + $0x1c9] sm:$0xff]
    %v314 = vld [vmem:[%s214 + $0x1d1] sm:$0xff]
    %v315 = vld [vmem:[%s214 + $0x1e1] sm:$0xff]
    %v316 = vld [vmem:[%s214 + $0x1e9] sm:$0xff]
    %v317 = vld [vmem:[%s214 + $0x1f9] sm:$0xff]
    %v318 = vld [vmem:[%s214 + $0x201] sm:$0xff]
    %v319 = vld [vmem:[%s214 + $0x211] sm:$0xff]
    %v320 = vld [vmem:[%s214 + $0x219] sm:$0xff]
    %v321 = vld [vmem:[%s214 + $0x229] sm:$0xff]
    %v322 = vld [vmem:[%s214 + $0x231] sm:$0xff]
    %v323 = vld [vmem:[%s214 + $0x241] sm:$0xff]
    %v324 = vld [vmem:[%s214 + $0x249] sm:$0xff]
    %v325 = vld [vmem:[%s214 + $0x259] sm:$0xff]
    %v326 = vld [vmem:[%s214 + $0x261] sm:$0xff]
    %v327 = vld [vmem:[%s214 + $0x271] sm:$0xff]
    %v328 = vld [vmem:[%s214 + $0x279] sm:$0xff]
    %v329 = vld [vmem:[%s214 + $0x289] sm:$0xff]
    %v330 = vld [vmem:[%s214 + $0x291] sm:$0xff]
    %v331 = vld [vmem:[%s214 + $0x2a1] sm:$0xff]
    %v332 = vld [vmem:[%s214 + $0x2a9] sm:$0xff]
    %v333 = vld [vmem:[%s214 + $0x2b9] sm:$0xff]
    %v334 = vld [vmem:[%s214 + $0x2c1] sm:$0xff]
    %v335 = vld [vmem:[%s214 + $0x2d1] sm:$0xff]
    %v336 = vld [vmem:[%s214 + $0x2d9] sm:$0xff]
    %v337 = vld [vmem:[%s214 + $0x2e9] sm:$0xff]
    %v338 = vld [vmem:[%s214 + $0x2f1] sm:$0xff]
    %v339 = vld [vmem:[%s214 + $0x301] sm:$0xff]
    %v340 = vld [vmem:[%s214 + $0x309] sm:$0xff]
    %v341 = vld [vmem:[%s214 + $0x319] sm:$0xff]
    %v342 = vld [vmem:[%s214 + $0x321] sm:$0xff]
    %v343 = vld [vmem:[%s214 + $0x2] sm:$0xff]
    %v344 = vld [vmem:[%s214 + $0xa] sm:$0xff]
    %v345 = vld [vmem:[%s214 + $0x1a] sm:$0xff]
    %v346 = vld [vmem:[%s214 + $0x22] sm:$0xff]
    %v347 = vld [vmem:[%s214 + $0x32] sm:$0xff]
    %v348 = vld [vmem:[%s214 + $0x3a] sm:$0xff]
    %v349 = vld [vmem:[%s214 + $0x4a] sm:$0xff]
    %v350 = vld [vmem:[%s214 + $0x52] sm:$0xff]
    %v351 = vld [vmem:[%s214 + $0x62] sm:$0xff]
    %v352 = vld [vmem:[%s214 + $0x6a] sm:$0xff]
    %v353 = vld [vmem:[%s214 + $0x7a] sm:$0xff]
    %v354 = vld [vmem:[%s214 + $0x82] sm:$0xff]
    %v355 = vld [vmem:[%s214 + $0x92] sm:$0xff]
    %v356 = vld [vmem:[%s214 + $0x9a] sm:$0xff]
    %v357 = vld [vmem:[%s214 + $0xaa] sm:$0xff]
    %v358 = vld [vmem:[%s214 + $0xb2] sm:$0xff]
    %v359 = vld [vmem:[%s214 + $0xc2] sm:$0xff]
    %v360 = vld [vmem:[%s214 + $0xca] sm:$0xff]
    %v361 = vld [vmem:[%s214 + $0xda] sm:$0xff]
    %v362 = vld [vmem:[%s214 + $0xe2] sm:$0xff]
    %v363 = vld [vmem:[%s214 + $0xf2] sm:$0xff]
    %v364 = vld [vmem:[%s214 + $0xfa] sm:$0xff]
    %v365 = vld [vmem:[%s214 + $0x10a] sm:$0xff]
    %v366 = vld [vmem:[%s214 + $0x112] sm:$0xff]
    %v367 = vld [vmem:[%s214 + $0x122] sm:$0xff]
    %v368 = vld [vmem:[%s214 + $0x12a] sm:$0xff]
    %v369 = vld [vmem:[%s214 + $0x13a] sm:$0xff]
    %v370 = vld [vmem:[%s214 + $0x142] sm:$0xff]
    %v371 = vld [vmem:[%s214 + $0x152] sm:$0xff]
    %v372 = vld [vmem:[%s214 + $0x15a] sm:$0xff]
    %v373 = vld [vmem:[%s214 + $0x16a] sm:$0xff]
    %v374 = vld [vmem:[%s214 + $0x172] sm:$0xff]
    %v375 = vld [vmem:[%s214 + $0x1b2] sm:$0xff]
    %v376 = vld [vmem:[%s214 + $0x1ba] sm:$0xff]
    %v377 = vld [vmem:[%s214 + $0x1ca] sm:$0xff]
    %v378 = vld [vmem:[%s214 + $0x1d2] sm:$0xff]
    %v379 = vld [vmem:[%s214 + $0x1e2] sm:$0xff]
    %v380 = vld [vmem:[%s214 + $0x1ea] sm:$0xff]
    %v381 = vld [vmem:[%s214 + $0x1fa] sm:$0xff]
    %v382 = vld [vmem:[%s214 + $0x202] sm:$0xff]
    %v383 = vld [vmem:[%s214 + $0x212] sm:$0xff]
    %v384 = vld [vmem:[%s214 + $0x21a] sm:$0xff]
    %v385 = vld [vmem:[%s214 + $0x22a] sm:$0xff]
    %v386 = vld [vmem:[%s214 + $0x232] sm:$0xff]
    %v387 = vld [vmem:[%s214 + $0x242] sm:$0xff]
    %v388 = vld [vmem:[%s214 + $0x24a] sm:$0xff]
    %v389 = vld [vmem:[%s214 + $0x25a] sm:$0xff]
    %v390 = vld [vmem:[%s214 + $0x262] sm:$0xff]
    %v391 = vld [vmem:[%s214 + $0x272] sm:$0xff]
    %v392 = vld [vmem:[%s214 + $0x27a] sm:$0xff]
    %v393 = vld [vmem:[%s214 + $0x28a] sm:$0xff]
    %v394 = vld [vmem:[%s214 + $0x292] sm:$0xff]
    %v395 = vld [vmem:[%s214 + $0x2a2] sm:$0xff]
    %v396 = vld [vmem:[%s214 + $0x2aa] sm:$0xff]
    %v397 = vld [vmem:[%s214 + $0x2ba] sm:$0xff]
    %v398 = vld [vmem:[%s214 + $0x2c2] sm:$0xff]
    %v399 = vld [vmem:[%s214 + $0x2d2] sm:$0xff]
    %v400 = vld [vmem:[%s214 + $0x2da] sm:$0xff]
    %v401 = vld [vmem:[%s214 + $0x2ea] sm:$0xff]
    %v402 = vld [vmem:[%s214 + $0x2f2] sm:$0xff]
    %v403 = vld [vmem:[%s214 + $0x302] sm:$0xff]
    %v404 = vld [vmem:[%s214 + $0x30a] sm:$0xff]
    %v405 = vld [vmem:[%s214 + $0x31a] sm:$0xff]
    %v406 = vld [vmem:[%s214 + $0x322] sm:$0xff]
    %s407 = scalar_lea.vmem %s0, 48
    %v408 = vld [vmem:[%s407] sm:$0xff]
    %v409 = vld [vmem:[%s407 + $0x8] sm:$0xff]
    %v410 = vld [vmem:[%s407 + $0x18] sm:$0xff]
    %v411 = vld [vmem:[%s407 + $0x20] sm:$0xff]
    %v412 = vld [vmem:[%s407 + $0x30] sm:$0xff]
    %v413 = vld [vmem:[%s407 + $0x38] sm:$0xff]
    %v414 = vld [vmem:[%s407 + $0x48] sm:$0xff]
    %v415 = vld [vmem:[%s407 + $0x50] sm:$0xff]
    %v416 = vld [vmem:[%s407 + $0x60] sm:$0xff]
    %v417 = vld [vmem:[%s407 + $0x68] sm:$0xff]
    %v418 = vld [vmem:[%s407 + $0x78] sm:$0xff]
    %v419 = vld [vmem:[%s407 + $0x80] sm:$0xff]
    %v420 = vld [vmem:[%s407 + $0x90] sm:$0xff]
    %v421 = vld [vmem:[%s407 + $0x98] sm:$0xff]
    %v422 = vld [vmem:[%s407 + $0xa8] sm:$0xff]
    %v423 = vld [vmem:[%s407 + $0xb0] sm:$0xff]
    %v424 = vld [vmem:[%s407 + $0xc0] sm:$0xff]
    %v425 = vld [vmem:[%s407 + $0xc8] sm:$0xff]
    %v426 = vld [vmem:[%s407 + $0xd8] sm:$0xff]
    %v427 = vld [vmem:[%s407 + $0xe0] sm:$0xff]
    %v428 = vld [vmem:[%s407 + $0xf0] sm:$0xff]
    %v429 = vld [vmem:[%s407 + $0xf8] sm:$0xff]
    %v430 = vld [vmem:[%s407 + $0x108] sm:$0xff]
    %v431 = vld [vmem:[%s407 + $0x110] sm:$0xff]
    %v432 = vld [vmem:[%s407 + $0x120] sm:$0xff]
    %v433 = vld [vmem:[%s407 + $0x128] sm:$0xff]
    %v434 = vld [vmem:[%s407 + $0x138] sm:$0xff]
    %v435 = vld [vmem:[%s407 + $0x140] sm:$0xff]
    %v436 = vld [vmem:[%s407 + $0x150] sm:$0xff]
    %v437 = vld [vmem:[%s407 + $0x158] sm:$0xff]
    %v438 = vld [vmem:[%s407 + $0x168] sm:$0xff]
    %v439 = vld [vmem:[%s407 + $0x170] sm:$0xff]
    %v440 = vld [vmem:[%s407 + $0x1b0] sm:$0xff]
    %v441 = vld [vmem:[%s407 + $0x1b8] sm:$0xff]
    %v442 = vld [vmem:[%s407 + $0x1c8] sm:$0xff]
    %v443 = vld [vmem:[%s407 + $0x1d0] sm:$0xff]
    %v444 = vld [vmem:[%s407 + $0x1e0] sm:$0xff]
    %v445 = vld [vmem:[%s407 + $0x1e8] sm:$0xff]
    %v446 = vld [vmem:[%s407 + $0x1f8] sm:$0xff]
    %v447 = vld [vmem:[%s407 + $0x200] sm:$0xff]
    %v448 = vld [vmem:[%s407 + $0x210] sm:$0xff]
    %v449 = vld [vmem:[%s407 + $0x218] sm:$0xff]
    %v450 = vld [vmem:[%s407 + $0x228] sm:$0xff]
    %v451 = vld [vmem:[%s407 + $0x230] sm:$0xff]
    %v452 = vld [vmem:[%s407 + $0x240] sm:$0xff]
    %v453 = vld [vmem:[%s407 + $0x248] sm:$0xff]
    %v454 = vld [vmem:[%s407 + $0x258] sm:$0xff]
    %v455 = vld [vmem:[%s407 + $0x260] sm:$0xff]
    %v456 = vld [vmem:[%s407 + $0x270] sm:$0xff]
    %v457 = vld [vmem:[%s407 + $0x278] sm:$0xff]
    %v458 = vld [vmem:[%s407 + $0x288] sm:$0xff]
    %v459 = vld [vmem:[%s407 + $0x290] sm:$0xff]
    %v460 = vld [vmem:[%s407 + $0x2a0] sm:$0xff]
    %v461 = vld [vmem:[%s407 + $0x2a8] sm:$0xff]
    %v462 = vld [vmem:[%s407 + $0x2b8] sm:$0xff]
    %v463 = vld [vmem:[%s407 + $0x2c0] sm:$0xff]
    %v464 = vld [vmem:[%s407 + $0x2d0] sm:$0xff]
    %v465 = vld [vmem:[%s407 + $0x2d8] sm:$0xff]
    %v466 = vld [vmem:[%s407 + $0x2e8] sm:$0xff]
    %v467 = vld [vmem:[%s407 + $0x2f0] sm:$0xff]
    %v468 = vld [vmem:[%s407 + $0x300] sm:$0xff]
    %v469 = vld [vmem:[%s407 + $0x308] sm:$0xff]
    %v470 = vld [vmem:[%s407 + $0x318] sm:$0xff]
    %v471 = vld [vmem:[%s407 + $0x320] sm:$0xff]
    %v472 = vld [vmem:[%s407 + $0x1] sm:$0xff]
    %v473 = vld [vmem:[%s407 + $0x9] sm:$0xff]
    %v474 = vld [vmem:[%s407 + $0x19] sm:$0xff]
    %v475 = vld [vmem:[%s407 + $0x21] sm:$0xff]
    %v476 = vld [vmem:[%s407 + $0x31] sm:$0xff]
    %v477 = vld [vmem:[%s407 + $0x39] sm:$0xff]
    %v478 = vld [vmem:[%s407 + $0x49] sm:$0xff]
    %v479 = vld [vmem:[%s407 + $0x51] sm:$0xff]
    %v480 = vld [vmem:[%s407 + $0x61] sm:$0xff]
    %v481 = vld [vmem:[%s407 + $0x69] sm:$0xff]
    %v482 = vld [vmem:[%s407 + $0x79] sm:$0xff]
    %v483 = vld [vmem:[%s407 + $0x81] sm:$0xff]
    %v484 = vld [vmem:[%s407 + $0x91] sm:$0xff]
    %v485 = vld [vmem:[%s407 + $0x99] sm:$0xff]
    %v486 = vld [vmem:[%s407 + $0xa9] sm:$0xff]
    %v487 = vld [vmem:[%s407 + $0xb1] sm:$0xff]
    %v488 = vld [vmem:[%s407 + $0xc1] sm:$0xff]
    %v489 = vld [vmem:[%s407 + $0xc9] sm:$0xff]
    %v490 = vld [vmem:[%s407 + $0xd9] sm:$0xff]
    %v491 = vld [vmem:[%s407 + $0xe1] sm:$0xff]
    %v492 = vld [vmem:[%s407 + $0xf1] sm:$0xff]
    %v493 = vld [vmem:[%s407 + $0xf9] sm:$0xff]
    %v494 = vld [vmem:[%s407 + $0x109] sm:$0xff]
    %v495 = vld [vmem:[%s407 + $0x111] sm:$0xff]
    %v496 = vld [vmem:[%s407 + $0x121] sm:$0xff]
    %v497 = vld [vmem:[%s407 + $0x129] sm:$0xff]
    %v498 = vld [vmem:[%s407 + $0x139] sm:$0xff]
    %v499 = vld [vmem:[%s407 + $0x141] sm:$0xff]
    %v500 = vld [vmem:[%s407 + $0x151] sm:$0xff]
    %v501 = vld [vmem:[%s407 + $0x159] sm:$0xff]
    %v502 = vld [vmem:[%s407 + $0x169] sm:$0xff]
    %v503 = vld [vmem:[%s407 + $0x171] sm:$0xff]
    %v504 = vld [vmem:[%s407 + $0x1b1] sm:$0xff]
    %v505 = vld [vmem:[%s407 + $0x1b9] sm:$0xff]
    %v506 = vld [vmem:[%s407 + $0x1c9] sm:$0xff]
    %v507 = vld [vmem:[%s407 + $0x1d1] sm:$0xff]
    %v508 = vld [vmem:[%s407 + $0x1e1] sm:$0xff]
    %v509 = vld [vmem:[%s407 + $0x1e9] sm:$0xff]
    %v510 = vld [vmem:[%s407 + $0x1f9] sm:$0xff]
    %v511 = vld [vmem:[%s407 + $0x201] sm:$0xff]
    %v512 = vld [vmem:[%s407 + $0x211] sm:$0xff]
    %v513 = vld [vmem:[%s407 + $0x219] sm:$0xff]
    %v514 = vld [vmem:[%s407 + $0x229] sm:$0xff]
    %v515 = vld [vmem:[%s407 + $0x231] sm:$0xff]
    %v516 = vld [vmem:[%s407 + $0x241] sm:$0xff]
    %v517 = vld [vmem:[%s407 + $0x249] sm:$0xff]
    %v518 = vld [vmem:[%s407 + $0x259] sm:$0xff]
    %v519 = vld [vmem:[%s407 + $0x261] sm:$0xff]
    %v520 = vld [vmem:[%s407 + $0x271] sm:$0xff]
    %v521 = vld [vmem:[%s407 + $0x279] sm:$0xff]
    %v522 = vld [vmem:[%s407 + $0x289] sm:$0xff]
    %v523 = vld [vmem:[%s407 + $0x291] sm:$0xff]
    %v524 = vld [vmem:[%s407 + $0x2a1] sm:$0xff]
    %v525 = vld [vmem:[%s407 + $0x2a9] sm:$0xff]
    %v526 = vld [vmem:[%s407 + $0x2b9] sm:$0xff]
    %v527 = vld [vmem:[%s407 + $0x2c1] sm:$0xff]
    %v528 = vld [vmem:[%s407 + $0x2d1] sm:$0xff]
    %v529 = vld [vmem:[%s407 + $0x2d9] sm:$0xff]
    %v530 = vld [vmem:[%s407 + $0x2e9] sm:$0xff]
    %v531 = vld [vmem:[%s407 + $0x2f1] sm:$0xff]
    %v532 = vld [vmem:[%s407 + $0x301] sm:$0xff]
    %v533 = vld [vmem:[%s407 + $0x309] sm:$0xff]
    %v534 = vld [vmem:[%s407 + $0x319] sm:$0xff]
    %v535 = vld [vmem:[%s407 + $0x321] sm:$0xff]
    %v536 = vld [vmem:[%s407 + $0x2] sm:$0xff]
    %v537 = vld [vmem:[%s407 + $0xa] sm:$0xff]
    %v538 = vld [vmem:[%s407 + $0x1a] sm:$0xff]
    %v539 = vld [vmem:[%s407 + $0x22] sm:$0xff]
    %v540 = vld [vmem:[%s407 + $0x32] sm:$0xff]
    %v541 = vld [vmem:[%s407 + $0x3a] sm:$0xff]
    %v542 = vld [vmem:[%s407 + $0x4a] sm:$0xff]
    %v543 = vld [vmem:[%s407 + $0x52] sm:$0xff]
    %v544 = vld [vmem:[%s407 + $0x62] sm:$0xff]
    %v545 = vld [vmem:[%s407 + $0x6a] sm:$0xff]
    %v546 = vld [vmem:[%s407 + $0x7a] sm:$0xff]
    %v547 = vld [vmem:[%s407 + $0x82] sm:$0xff]
    %v548 = vld [vmem:[%s407 + $0x92] sm:$0xff]
    %v549 = vld [vmem:[%s407 + $0x9a] sm:$0xff]
    %v550 = vld [vmem:[%s407 + $0xaa] sm:$0xff]
    %v551 = vld [vmem:[%s407 + $0xb2] sm:$0xff]
    %v552 = vld [vmem:[%s407 + $0xc2] sm:$0xff]
    %v553 = vld [vmem:[%s407 + $0xca] sm:$0xff]
    %v554 = vld [vmem:[%s407 + $0xda] sm:$0xff]
    %v555 = vld [vmem:[%s407 + $0xe2] sm:$0xff]
    %v556 = vld [vmem:[%s407 + $0xf2] sm:$0xff]
    %v557 = vld [vmem:[%s407 + $0xfa] sm:$0xff]
    %v558 = vld [vmem:[%s407 + $0x10a] sm:$0xff]
    %v559 = vld [vmem:[%s407 + $0x112] sm:$0xff]
    %v560 = vld [vmem:[%s407 + $0x122] sm:$0xff]
    %v561 = vld [vmem:[%s407 + $0x12a] sm:$0xff]
    %v562 = vld [vmem:[%s407 + $0x13a] sm:$0xff]
    %v563 = vld [vmem:[%s407 + $0x142] sm:$0xff]
    %v564 = vld [vmem:[%s407 + $0x152] sm:$0xff]
    %v565 = vld [vmem:[%s407 + $0x15a] sm:$0xff]
    %v566 = vld [vmem:[%s407 + $0x16a] sm:$0xff]
    %v567 = vld [vmem:[%s407 + $0x172] sm:$0xff]
    %v568 = vld [vmem:[%s407 + $0x1b2] sm:$0xff]
    %v569 = vld [vmem:[%s407 + $0x1ba] sm:$0xff]
    %v570 = vld [vmem:[%s407 + $0x1ca] sm:$0xff]
    %v571 = vld [vmem:[%s407 + $0x1d2] sm:$0xff]
    %v572 = vld [vmem:[%s407 + $0x1e2] sm:$0xff]
    %v573 = vld [vmem:[%s407 + $0x1ea] sm:$0xff]
    %v574 = vld [vmem:[%s407 + $0x1fa] sm:$0xff]
    %v575 = vld [vmem:[%s407 + $0x202] sm:$0xff]
    %v576 = vld [vmem:[%s407 + $0x212] sm:$0xff]
    %v577 = vld [vmem:[%s407 + $0x21a] sm:$0xff]
    %v578 = vld [vmem:[%s407 + $0x22a] sm:$0xff]
    %v579 = vld [vmem:[%s407 + $0x232] sm:$0xff]
    %v580 = vld [vmem:[%s407 + $0x242] sm:$0xff]
    %v581 = vld [vmem:[%s407 + $0x24a] sm:$0xff]
    %v582 = vld [vmem:[%s407 + $0x25a] sm:$0xff]
    %v583 = vld [vmem:[%s407 + $0x262] sm:$0xff]
    %v584 = vld [vmem:[%s407 + $0x272] sm:$0xff]
    %v585 = vld [vmem:[%s407 + $0x27a] sm:$0xff]
    %v586 = vld [vmem:[%s407 + $0x28a] sm:$0xff]
    %v587 = vld [vmem:[%s407 + $0x292] sm:$0xff]
    %v588 = vld [vmem:[%s407 + $0x2a2] sm:$0xff]
    %v589 = vld [vmem:[%s407 + $0x2aa] sm:$0xff]
    %v590 = vld [vmem:[%s407 + $0x2ba] sm:$0xff]
    %v591 = vld [vmem:[%s407 + $0x2c2] sm:$0xff]
    %v592 = vld [vmem:[%s407 + $0x2d2] sm:$0xff]
    %v593 = vld [vmem:[%s407 + $0x2da] sm:$0xff]
    %v594 = vld [vmem:[%s407 + $0x2ea] sm:$0xff]
    %v595 = vld [vmem:[%s407 + $0x2f2] sm:$0xff]
    %v596 = vld [vmem:[%s407 + $0x302] sm:$0xff]
    %v597 = vld [vmem:[%s407 + $0x30a] sm:$0xff]
    %v598 = vld [vmem:[%s407 + $0x31a] sm:$0xff]
    %v599 = vld [vmem:[%s407 + $0x322] sm:$0xff]
    %664 = vrot.lane.b32.xlu0 %v86, 4
    %v665 = vpop.permute.xlu0 %664
    %666 = vrot.lane.b32.xlu0 %v87, 4
    %v667 = vpop.permute.xlu0 %666
    %668 = vrot.lane.b32.xlu0 %v88, 4
    %v669 = vpop.permute.xlu0 %668
    %670 = vrot.lane.b32.xlu0 %v89, 4
    %v671 = vpop.permute.xlu0 %670
    %672 = vrot.lane.b32.xlu0 %v90, 4
    %v673 = vpop.permute.xlu0 %672
    %674 = vrot.lane.b32.xlu0 %v91, 4
    %v675 = vpop.permute.xlu0 %674
    %676 = vrot.lane.b32.xlu0 %v92, 4
    %v677 = vpop.permute.xlu0 %676
    %678 = vrot.lane.b32.xlu0 %v93, 4
    %v679 = vpop.permute.xlu0 %678
    %680 = vrot.lane.b32.xlu0 %v94, 4
    %v681 = vpop.permute.xlu0 %680
    %682 = vrot.lane.b32.xlu0 %v95, 4
    %v683 = vpop.permute.xlu0 %682
    %684 = vrot.lane.b32.xlu0 %v96, 4
    %v685 = vpop.permute.xlu0 %684
    %686 = vrot.lane.b32.xlu0 %v97, 4
    %v687 = vpop.permute.xlu0 %686
    %688 = vrot.lane.b32.xlu0 %v98, 4
    %v689 = vpop.permute.xlu0 %688
    %690 = vrot.lane.b32.xlu0 %v99, 4
    %v691 = vpop.permute.xlu0 %690
    %692 = vrot.lane.b32.xlu0 %v100, 4
    %v693 = vpop.permute.xlu0 %692
    %694 = vrot.lane.b32.xlu0 %v101, 4
    %v695 = vpop.permute.xlu0 %694
    %696 = vrot.lane.b32.xlu0 %v102, 4
    %v697 = vpop.permute.xlu0 %696
    %698 = vrot.lane.b32.xlu0 %v103, 4
    %v699 = vpop.permute.xlu0 %698
    %700 = vrot.lane.b32.xlu0 %v104, 4
    %v701 = vpop.permute.xlu0 %700
    %702 = vrot.lane.b32.xlu0 %v105, 4
    %v703 = vpop.permute.xlu0 %702
    %704 = vrot.lane.b32.xlu0 %v106, 4
    %v705 = vpop.permute.xlu0 %704
    %706 = vrot.lane.b32.xlu0 %v107, 4
    %v707 = vpop.permute.xlu0 %706
    %708 = vrot.lane.b32.xlu0 %v108, 4
    %v709 = vpop.permute.xlu0 %708
    %710 = vrot.lane.b32.xlu0 %v109, 4
    %v711 = vpop.permute.xlu0 %710
    %712 = vrot.lane.b32.xlu0 %v110, 4
    %v713 = vpop.permute.xlu0 %712
    %714 = vrot.lane.b32.xlu0 %v111, 4
    %v715 = vpop.permute.xlu0 %714
    %716 = vrot.lane.b32.xlu0 %v112, 4
    %v717 = vpop.permute.xlu0 %716
    %718 = vrot.lane.b32.xlu0 %v113, 4
    %v719 = vpop.permute.xlu0 %718
    %720 = vrot.lane.b32.xlu0 %v114, 4
    %v721 = vpop.permute.xlu0 %720
    %722 = vrot.lane.b32.xlu0 %v115, 4
    %v723 = vpop.permute.xlu0 %722
    %724 = vrot.lane.b32.xlu0 %v116, 4
    %v725 = vpop.permute.xlu0 %724
    %726 = vrot.lane.b32.xlu0 %v117, 4
    %v727 = vpop.permute.xlu0 %726
    %728 = vrot.lane.b32.xlu0 %v118, 4
    %v729 = vpop.permute.xlu0 %728
    %730 = vrot.lane.b32.xlu0 %v119, 4
    %v731 = vpop.permute.xlu0 %730
    %732 = vrot.lane.b32.xlu0 %v120, 4
    %v733 = vpop.permute.xlu0 %732
    %734 = vrot.lane.b32.xlu0 %v121, 4
    %v735 = vpop.permute.xlu0 %734
    %736 = vrot.lane.b32.xlu0 %v122, 4
    %v737 = vpop.permute.xlu0 %736
    %738 = vrot.lane.b32.xlu0 %v123, 4
    %v739 = vpop.permute.xlu0 %738
    %740 = vrot.lane.b32.xlu0 %v124, 4
    %v741 = vpop.permute.xlu0 %740
    %742 = vrot.lane.b32.xlu0 %v125, 4
    %v743 = vpop.permute.xlu0 %742
    %744 = vrot.lane.b32.xlu0 %v126, 4
    %v745 = vpop.permute.xlu0 %744
    %746 = vrot.lane.b32.xlu0 %v127, 4
    %v747 = vpop.permute.xlu0 %746
    %748 = vrot.lane.b32.xlu0 %v128, 4
    %v749 = vpop.permute.xlu0 %748
    %750 = vrot.lane.b32.xlu0 %v129, 4
    %v751 = vpop.permute.xlu0 %750
    %752 = vrot.lane.b32.xlu0 %v130, 4
    %v753 = vpop.permute.xlu0 %752
    %754 = vrot.lane.b32.xlu0 %v131, 4
    %v755 = vpop.permute.xlu0 %754
    %756 = vrot.lane.b32.xlu0 %v132, 4
    %v757 = vpop.permute.xlu0 %756
    %758 = vrot.lane.b32.xlu0 %v133, 4
    %v759 = vpop.permute.xlu0 %758
    %760 = vrot.lane.b32.xlu0 %v134, 4
    %v761 = vpop.permute.xlu0 %760
    %762 = vrot.lane.b32.xlu0 %v135, 4
    %v763 = vpop.permute.xlu0 %762
    %764 = vrot.lane.b32.xlu0 %v136, 4
    %v765 = vpop.permute.xlu0 %764
    %766 = vrot.lane.b32.xlu0 %v137, 4
    %v767 = vpop.permute.xlu0 %766
    %768 = vrot.lane.b32.xlu0 %v138, 4
    %v769 = vpop.permute.xlu0 %768
    %770 = vrot.lane.b32.xlu0 %v139, 4
    %v771 = vpop.permute.xlu0 %770
    %772 = vrot.lane.b32.xlu0 %v140, 4
    %v773 = vpop.permute.xlu0 %772
    %774 = vrot.lane.b32.xlu0 %v141, 4
    %v775 = vpop.permute.xlu0 %774
    %776 = vrot.lane.b32.xlu0 %v142, 4
    %v777 = vpop.permute.xlu0 %776
    %778 = vrot.lane.b32.xlu0 %v143, 4
    %v779 = vpop.permute.xlu0 %778
    %780 = vrot.lane.b32.xlu0 %v144, 4
    %v781 = vpop.permute.xlu0 %780
    %782 = vrot.lane.b32.xlu0 %v145, 4
    %v783 = vpop.permute.xlu0 %782
    %784 = vrot.lane.b32.xlu0 %v146, 4
    %v785 = vpop.permute.xlu0 %784
    %786 = vrot.lane.b32.xlu0 %v147, 4
    %v787 = vpop.permute.xlu0 %786
    %788 = vrot.lane.b32.xlu0 %v148, 4
    %v789 = vpop.permute.xlu0 %788
    %790 = vrot.lane.b32.xlu0 %v149, 4
    %v791 = vpop.permute.xlu0 %790
    %920 = vrot.lane.b32.xlu0 %v150, 8
    %v921 = vpop.permute.xlu0 %920
    %922 = vrot.lane.b32.xlu0 %v151, 8
    %v923 = vpop.permute.xlu0 %922
    %924 = vrot.lane.b32.xlu0 %v152, 8
    %v925 = vpop.permute.xlu0 %924
    %926 = vrot.lane.b32.xlu0 %v153, 8
    %v927 = vpop.permute.xlu0 %926
    %928 = vrot.lane.b32.xlu0 %v154, 8
    %v929 = vpop.permute.xlu0 %928
    %930 = vrot.lane.b32.xlu0 %v155, 8
    %v931 = vpop.permute.xlu0 %930
    %932 = vrot.lane.b32.xlu0 %v156, 8
    %v933 = vpop.permute.xlu0 %932
    %934 = vrot.lane.b32.xlu0 %v157, 8
    %v935 = vpop.permute.xlu0 %934
    %936 = vrot.lane.b32.xlu0 %v158, 8
    %v937 = vpop.permute.xlu0 %936
    %938 = vrot.lane.b32.xlu0 %v159, 8
    %v939 = vpop.permute.xlu0 %938
    %940 = vrot.lane.b32.xlu0 %v160, 8
    %v941 = vpop.permute.xlu0 %940
    %942 = vrot.lane.b32.xlu0 %v161, 8
    %v943 = vpop.permute.xlu0 %942
    %944 = vrot.lane.b32.xlu0 %v162, 8
    %v945 = vpop.permute.xlu0 %944
    %946 = vrot.lane.b32.xlu0 %v163, 8
    %v947 = vpop.permute.xlu0 %946
    %948 = vrot.lane.b32.xlu0 %v164, 8
    %v949 = vpop.permute.xlu0 %948
    %950 = vrot.lane.b32.xlu0 %v165, 8
    %v951 = vpop.permute.xlu0 %950
    %952 = vrot.lane.b32.xlu0 %v166, 8
    %v953 = vpop.permute.xlu0 %952
    %954 = vrot.lane.b32.xlu0 %v167, 8
    %v955 = vpop.permute.xlu0 %954
    %956 = vrot.lane.b32.xlu0 %v168, 8
    %v957 = vpop.permute.xlu0 %956
    %958 = vrot.lane.b32.xlu0 %v169, 8
    %v959 = vpop.permute.xlu0 %958
    %960 = vrot.lane.b32.xlu0 %v170, 8
    %v961 = vpop.permute.xlu0 %960
    %962 = vrot.lane.b32.xlu0 %v171, 8
    %v963 = vpop.permute.xlu0 %962
    %964 = vrot.lane.b32.xlu0 %v172, 8
    %v965 = vpop.permute.xlu0 %964
    %966 = vrot.lane.b32.xlu0 %v173, 8
    %v967 = vpop.permute.xlu0 %966
    %968 = vrot.lane.b32.xlu0 %v174, 8
    %v969 = vpop.permute.xlu0 %968
    %970 = vrot.lane.b32.xlu0 %v175, 8
    %v971 = vpop.permute.xlu0 %970
    %972 = vrot.lane.b32.xlu0 %v176, 8
    %v973 = vpop.permute.xlu0 %972
    %974 = vrot.lane.b32.xlu0 %v177, 8
    %v975 = vpop.permute.xlu0 %974
    %976 = vrot.lane.b32.xlu0 %v178, 8
    %v977 = vpop.permute.xlu0 %976
    %978 = vrot.lane.b32.xlu0 %v179, 8
    %v979 = vpop.permute.xlu0 %978
    %980 = vrot.lane.b32.xlu0 %v180, 8
    %v981 = vpop.permute.xlu0 %980
    %982 = vrot.lane.b32.xlu0 %v181, 8
    %v983 = vpop.permute.xlu0 %982
    %984 = vrot.lane.b32.xlu0 %v182, 8
    %v985 = vpop.permute.xlu0 %984
    %986 = vrot.lane.b32.xlu0 %v183, 8
    %v987 = vpop.permute.xlu0 %986
    %988 = vrot.lane.b32.xlu0 %v184, 8
    %v989 = vpop.permute.xlu0 %988
    %990 = vrot.lane.b32.xlu0 %v185, 8
    %v991 = vpop.permute.xlu0 %990
    %992 = vrot.lane.b32.xlu0 %v186, 8
    %v993 = vpop.permute.xlu0 %992
    %994 = vrot.lane.b32.xlu0 %v187, 8
    %v995 = vpop.permute.xlu0 %994
    %996 = vrot.lane.b32.xlu0 %v188, 8
    %v997 = vpop.permute.xlu0 %996
    %998 = vrot.lane.b32.xlu0 %v189, 8
    %v999 = vpop.permute.xlu0 %998
    %1000 = vrot.lane.b32.xlu0 %v190, 8
    %v1001 = vpop.permute.xlu0 %1000
    %1002 = vrot.lane.b32.xlu0 %v191, 8
    %v1003 = vpop.permute.xlu0 %1002
    %1004 = vrot.lane.b32.xlu0 %v192, 8
    %v1005 = vpop.permute.xlu0 %1004
    %1006 = vrot.lane.b32.xlu0 %v193, 8
    %v1007 = vpop.permute.xlu0 %1006
    %1008 = vrot.lane.b32.xlu0 %v194, 8
    %v1009 = vpop.permute.xlu0 %1008
    %1010 = vrot.lane.b32.xlu0 %v195, 8
    %v1011 = vpop.permute.xlu0 %1010
    %1012 = vrot.lane.b32.xlu0 %v196, 8
    %v1013 = vpop.permute.xlu0 %1012
    %1014 = vrot.lane.b32.xlu0 %v197, 8
    %v1015 = vpop.permute.xlu0 %1014
    %1016 = vrot.lane.b32.xlu0 %v198, 8
    %v1017 = vpop.permute.xlu0 %1016
    %1018 = vrot.lane.b32.xlu0 %v199, 8
    %v1019 = vpop.permute.xlu0 %1018
    %1020 = vrot.lane.b32.xlu0 %v200, 8
    %v1021 = vpop.permute.xlu0 %1020
    %1022 = vrot.lane.b32.xlu0 %v201, 8
    %v1023 = vpop.permute.xlu0 %1022
    %1024 = vrot.lane.b32.xlu0 %v202, 8
    %v1025 = vpop.permute.xlu0 %1024
    %1026 = vrot.lane.b32.xlu0 %v203, 8
    %v1027 = vpop.permute.xlu0 %1026
    %1028 = vrot.lane.b32.xlu0 %v204, 8
    %v1029 = vpop.permute.xlu0 %1028
    %1030 = vrot.lane.b32.xlu0 %v205, 8
    %v1031 = vpop.permute.xlu0 %1030
    %1032 = vrot.lane.b32.xlu0 %v206, 8
    %v1033 = vpop.permute.xlu0 %1032
    %1034 = vrot.lane.b32.xlu0 %v207, 8
    %v1035 = vpop.permute.xlu0 %1034
    %1036 = vrot.lane.b32.xlu0 %v208, 8
    %v1037 = vpop.permute.xlu0 %1036
    %1038 = vrot.lane.b32.xlu0 %v209, 8
    %v1039 = vpop.permute.xlu0 %1038
    %1040 = vrot.lane.b32.xlu0 %v210, 8
    %v1041 = vpop.permute.xlu0 %1040
    %1042 = vrot.lane.b32.xlu0 %v211, 8
    %v1043 = vpop.permute.xlu0 %1042
    %1044 = vrot.lane.b32.xlu0 %v212, 8
    %v1045 = vpop.permute.xlu0 %1044
    %1046 = vrot.lane.b32.xlu0 %v213, 8
    %v1047 = vpop.permute.xlu0 %1046
    %1176 = vrot.lane.b32.xlu0 %v215, 12
    %v1177 = vpop.permute.xlu0 %1176
    %1178 = vrot.lane.b32.xlu0 %v216, 12
    %v1179 = vpop.permute.xlu0 %1178
    %1180 = vrot.lane.b32.xlu0 %v217, 12
    %v1181 = vpop.permute.xlu0 %1180
    %1182 = vrot.lane.b32.xlu0 %v218, 12
    %v1183 = vpop.permute.xlu0 %1182
    %1184 = vrot.lane.b32.xlu0 %v219, 12
    %v1185 = vpop.permute.xlu0 %1184
    %1186 = vrot.lane.b32.xlu0 %v220, 12
    %v1187 = vpop.permute.xlu0 %1186
    %1188 = vrot.lane.b32.xlu0 %v221, 12
    %v1189 = vpop.permute.xlu0 %1188
    %1190 = vrot.lane.b32.xlu0 %v222, 12
    %v1191 = vpop.permute.xlu0 %1190
    %1192 = vrot.lane.b32.xlu0 %v223, 12
    %v1193 = vpop.permute.xlu0 %1192
    %1194 = vrot.lane.b32.xlu0 %v224, 12
    %v1195 = vpop.permute.xlu0 %1194
    %1196 = vrot.lane.b32.xlu0 %v225, 12
    %v1197 = vpop.permute.xlu0 %1196
    %1198 = vrot.lane.b32.xlu0 %v226, 12
    %v1199 = vpop.permute.xlu0 %1198
    %1200 = vrot.lane.b32.xlu0 %v227, 12
    %v1201 = vpop.permute.xlu0 %1200
    %1202 = vrot.lane.b32.xlu0 %v228, 12
    %v1203 = vpop.permute.xlu0 %1202
    %1204 = vrot.lane.b32.xlu0 %v229, 12
    %v1205 = vpop.permute.xlu0 %1204
    %1206 = vrot.lane.b32.xlu0 %v230, 12
    %v1207 = vpop.permute.xlu0 %1206
    %1208 = vrot.lane.b32.xlu0 %v231, 12
    %v1209 = vpop.permute.xlu0 %1208
    %1210 = vrot.lane.b32.xlu0 %v232, 12
    %v1211 = vpop.permute.xlu0 %1210
    %1212 = vrot.lane.b32.xlu0 %v233, 12
    %v1213 = vpop.permute.xlu0 %1212
    %1214 = vrot.lane.b32.xlu0 %v234, 12
    %v1215 = vpop.permute.xlu0 %1214
    %1216 = vrot.lane.b32.xlu0 %v235, 12
    %v1217 = vpop.permute.xlu0 %1216
    %1218 = vrot.lane.b32.xlu0 %v236, 12
    %v1219 = vpop.permute.xlu0 %1218
    %1220 = vrot.lane.b32.xlu0 %v237, 12
    %v1221 = vpop.permute.xlu0 %1220
    %1222 = vrot.lane.b32.xlu0 %v238, 12
    %v1223 = vpop.permute.xlu0 %1222
    %1224 = vrot.lane.b32.xlu0 %v239, 12
    %v1225 = vpop.permute.xlu0 %1224
    %1226 = vrot.lane.b32.xlu0 %v240, 12
    %v1227 = vpop.permute.xlu0 %1226
    %1228 = vrot.lane.b32.xlu0 %v241, 12
    %v1229 = vpop.permute.xlu0 %1228
    %1230 = vrot.lane.b32.xlu0 %v242, 12
    %v1231 = vpop.permute.xlu0 %1230
    %1232 = vrot.lane.b32.xlu0 %v243, 12
    %v1233 = vpop.permute.xlu0 %1232
    %1234 = vrot.lane.b32.xlu0 %v244, 12
    %v1235 = vpop.permute.xlu0 %1234
    %1236 = vrot.lane.b32.xlu0 %v245, 12
    %v1237 = vpop.permute.xlu0 %1236
    %1238 = vrot.lane.b32.xlu0 %v246, 12
    %v1239 = vpop.permute.xlu0 %1238
    %1240 = vrot.lane.b32.xlu0 %v247, 12
    %v1241 = vpop.permute.xlu0 %1240
    %1242 = vrot.lane.b32.xlu0 %v248, 12
    %v1243 = vpop.permute.xlu0 %1242
    %1244 = vrot.lane.b32.xlu0 %v249, 12
    %v1245 = vpop.permute.xlu0 %1244
    %1246 = vrot.lane.b32.xlu0 %v250, 12
    %v1247 = vpop.permute.xlu0 %1246
    %1248 = vrot.lane.b32.xlu0 %v251, 12
    %v1249 = vpop.permute.xlu0 %1248
    %1250 = vrot.lane.b32.xlu0 %v252, 12
    %v1251 = vpop.permute.xlu0 %1250
    %1252 = vrot.lane.b32.xlu0 %v253, 12
    %v1253 = vpop.permute.xlu0 %1252
    %1254 = vrot.lane.b32.xlu0 %v254, 12
    %v1255 = vpop.permute.xlu0 %1254
    %1256 = vrot.lane.b32.xlu0 %v255, 12
    %v1257 = vpop.permute.xlu0 %1256
    %1258 = vrot.lane.b32.xlu0 %v256, 12
    %v1259 = vpop.permute.xlu0 %1258
    %1260 = vrot.lane.b32.xlu0 %v257, 12
    %v1261 = vpop.permute.xlu0 %1260
    %1262 = vrot.lane.b32.xlu0 %v258, 12
    %v1263 = vpop.permute.xlu0 %1262
    %1264 = vrot.lane.b32.xlu0 %v259, 12
    %v1265 = vpop.permute.xlu0 %1264
    %1266 = vrot.lane.b32.xlu0 %v260, 12
    %v1267 = vpop.permute.xlu0 %1266
    %1268 = vrot.lane.b32.xlu0 %v261, 12
    %v1269 = vpop.permute.xlu0 %1268
    %1270 = vrot.lane.b32.xlu0 %v262, 12
    %v1271 = vpop.permute.xlu0 %1270
    %1272 = vrot.lane.b32.xlu0 %v263, 12
    %v1273 = vpop.permute.xlu0 %1272
    %1274 = vrot.lane.b32.xlu0 %v264, 12
    %v1275 = vpop.permute.xlu0 %1274
    %1276 = vrot.lane.b32.xlu0 %v265, 12
    %v1277 = vpop.permute.xlu0 %1276
    %1278 = vrot.lane.b32.xlu0 %v266, 12
    %v1279 = vpop.permute.xlu0 %1278
    %1280 = vrot.lane.b32.xlu0 %v267, 12
    %v1281 = vpop.permute.xlu0 %1280
    %1282 = vrot.lane.b32.xlu0 %v268, 12
    %v1283 = vpop.permute.xlu0 %1282
    %1284 = vrot.lane.b32.xlu0 %v269, 12
    %v1285 = vpop.permute.xlu0 %1284
    %1286 = vrot.lane.b32.xlu0 %v270, 12
    %v1287 = vpop.permute.xlu0 %1286
    %1288 = vrot.lane.b32.xlu0 %v271, 12
    %v1289 = vpop.permute.xlu0 %1288
    %1290 = vrot.lane.b32.xlu0 %v272, 12
    %v1291 = vpop.permute.xlu0 %1290
    %1292 = vrot.lane.b32.xlu0 %v273, 12
    %v1293 = vpop.permute.xlu0 %1292
    %1294 = vrot.lane.b32.xlu0 %v274, 12
    %v1295 = vpop.permute.xlu0 %1294
    %1296 = vrot.lane.b32.xlu0 %v275, 12
    %v1297 = vpop.permute.xlu0 %1296
    %1298 = vrot.lane.b32.xlu0 %v276, 12
    %v1299 = vpop.permute.xlu0 %1298
    %1300 = vrot.lane.b32.xlu0 %v277, 12
    %v1301 = vpop.permute.xlu0 %1300
    %1302 = vrot.lane.b32.xlu0 %v278, 12
    %v1303 = vpop.permute.xlu0 %1302
    %1432 = vrot.lane.b32.xlu0 %v279, 16
    %v1433 = vpop.permute.xlu0 %1432
    %1434 = vrot.lane.b32.xlu0 %v280, 16
    %v1435 = vpop.permute.xlu0 %1434
    %1436 = vrot.lane.b32.xlu0 %v281, 16
    %v1437 = vpop.permute.xlu0 %1436
    %1438 = vrot.lane.b32.xlu0 %v282, 16
    %v1439 = vpop.permute.xlu0 %1438
    %1440 = vrot.lane.b32.xlu0 %v283, 16
    %v1441 = vpop.permute.xlu0 %1440
    %1442 = vrot.lane.b32.xlu0 %v284, 16
    %v1443 = vpop.permute.xlu0 %1442
    %1444 = vrot.lane.b32.xlu0 %v285, 16
    %v1445 = vpop.permute.xlu0 %1444
    %1446 = vrot.lane.b32.xlu0 %v286, 16
    %v1447 = vpop.permute.xlu0 %1446
    %1448 = vrot.lane.b32.xlu0 %v287, 16
    %v1449 = vpop.permute.xlu0 %1448
    %1450 = vrot.lane.b32.xlu0 %v288, 16
    %v1451 = vpop.permute.xlu0 %1450
    %1452 = vrot.lane.b32.xlu0 %v289, 16
    %v1453 = vpop.permute.xlu0 %1452
    %1454 = vrot.lane.b32.xlu0 %v290, 16
    %v1455 = vpop.permute.xlu0 %1454
    %1456 = vrot.lane.b32.xlu0 %v291, 16
    %v1457 = vpop.permute.xlu0 %1456
    %1458 = vrot.lane.b32.xlu0 %v292, 16
    %v1459 = vpop.permute.xlu0 %1458
    %1460 = vrot.lane.b32.xlu0 %v293, 16
    %v1461 = vpop.permute.xlu0 %1460
    %1462 = vrot.lane.b32.xlu0 %v294, 16
    %v1463 = vpop.permute.xlu0 %1462
    %1464 = vrot.lane.b32.xlu0 %v295, 16
    %v1465 = vpop.permute.xlu0 %1464
    %1466 = vrot.lane.b32.xlu0 %v296, 16
    %v1467 = vpop.permute.xlu0 %1466
    %1468 = vrot.lane.b32.xlu0 %v297, 16
    %v1469 = vpop.permute.xlu0 %1468
    %1470 = vrot.lane.b32.xlu0 %v298, 16
    %v1471 = vpop.permute.xlu0 %1470
    %1472 = vrot.lane.b32.xlu0 %v299, 16
    %v1473 = vpop.permute.xlu0 %1472
    %1474 = vrot.lane.b32.xlu0 %v300, 16
    %v1475 = vpop.permute.xlu0 %1474
    %1476 = vrot.lane.b32.xlu0 %v301, 16
    %v1477 = vpop.permute.xlu0 %1476
    %1478 = vrot.lane.b32.xlu0 %v302, 16
    %v1479 = vpop.permute.xlu0 %1478
    %1480 = vrot.lane.b32.xlu0 %v303, 16
    %v1481 = vpop.permute.xlu0 %1480
    %1482 = vrot.lane.b32.xlu0 %v304, 16
    %v1483 = vpop.permute.xlu0 %1482
    %1484 = vrot.lane.b32.xlu0 %v305, 16
    %v1485 = vpop.permute.xlu0 %1484
    %1486 = vrot.lane.b32.xlu0 %v306, 16
    %v1487 = vpop.permute.xlu0 %1486
    %1488 = vrot.lane.b32.xlu0 %v307, 16
    %v1489 = vpop.permute.xlu0 %1488
    %1490 = vrot.lane.b32.xlu0 %v308, 16
    %v1491 = vpop.permute.xlu0 %1490
    %1492 = vrot.lane.b32.xlu0 %v309, 16
    %v1493 = vpop.permute.xlu0 %1492
    %1494 = vrot.lane.b32.xlu0 %v310, 16
    %v1495 = vpop.permute.xlu0 %1494
    %1496 = vrot.lane.b32.xlu0 %v311, 16
    %v1497 = vpop.permute.xlu0 %1496
    %1498 = vrot.lane.b32.xlu0 %v312, 16
    %v1499 = vpop.permute.xlu0 %1498
    %1500 = vrot.lane.b32.xlu0 %v313, 16
    %v1501 = vpop.permute.xlu0 %1500
    %1502 = vrot.lane.b32.xlu0 %v314, 16
    %v1503 = vpop.permute.xlu0 %1502
    %1504 = vrot.lane.b32.xlu0 %v315, 16
    %v1505 = vpop.permute.xlu0 %1504
    %1506 = vrot.lane.b32.xlu0 %v316, 16
    %v1507 = vpop.permute.xlu0 %1506
    %1508 = vrot.lane.b32.xlu0 %v317, 16
    %v1509 = vpop.permute.xlu0 %1508
    %1510 = vrot.lane.b32.xlu0 %v318, 16
    %v1511 = vpop.permute.xlu0 %1510
    %1512 = vrot.lane.b32.xlu0 %v319, 16
    %v1513 = vpop.permute.xlu0 %1512
    %1514 = vrot.lane.b32.xlu0 %v320, 16
    %v1515 = vpop.permute.xlu0 %1514
    %1516 = vrot.lane.b32.xlu0 %v321, 16
    %v1517 = vpop.permute.xlu0 %1516
    %1518 = vrot.lane.b32.xlu0 %v322, 16
    %v1519 = vpop.permute.xlu0 %1518
    %1520 = vrot.lane.b32.xlu0 %v323, 16
    %v1521 = vpop.permute.xlu0 %1520
    %1522 = vrot.lane.b32.xlu0 %v324, 16
    %v1523 = vpop.permute.xlu0 %1522
    %1524 = vrot.lane.b32.xlu0 %v325, 16
    %v1525 = vpop.permute.xlu0 %1524
    %1526 = vrot.lane.b32.xlu0 %v326, 16
    %v1527 = vpop.permute.xlu0 %1526
    %1528 = vrot.lane.b32.xlu0 %v327, 16
    %v1529 = vpop.permute.xlu0 %1528
    %1530 = vrot.lane.b32.xlu0 %v328, 16
    %v1531 = vpop.permute.xlu0 %1530
    %1532 = vrot.lane.b32.xlu0 %v329, 16
    %v1533 = vpop.permute.xlu0 %1532
    %1534 = vrot.lane.b32.xlu0 %v330, 16
    %v1535 = vpop.permute.xlu0 %1534
    %1536 = vrot.lane.b32.xlu0 %v331, 16
    %v1537 = vpop.permute.xlu0 %1536
    %1538 = vrot.lane.b32.xlu0 %v332, 16
    %v1539 = vpop.permute.xlu0 %1538
    %1540 = vrot.lane.b32.xlu0 %v333, 16
    %v1541 = vpop.permute.xlu0 %1540
    %1542 = vrot.lane.b32.xlu0 %v334, 16
    %v1543 = vpop.permute.xlu0 %1542
    %1544 = vrot.lane.b32.xlu0 %v335, 16
    %v1545 = vpop.permute.xlu0 %1544
    %1546 = vrot.lane.b32.xlu0 %v336, 16
    %v1547 = vpop.permute.xlu0 %1546
    %1548 = vrot.lane.b32.xlu0 %v337, 16
    %v1549 = vpop.permute.xlu0 %1548
    %1550 = vrot.lane.b32.xlu0 %v338, 16
    %v1551 = vpop.permute.xlu0 %1550
    %1552 = vrot.lane.b32.xlu0 %v339, 16
    %v1553 = vpop.permute.xlu0 %1552
    %1554 = vrot.lane.b32.xlu0 %v340, 16
    %v1555 = vpop.permute.xlu0 %1554
    %1556 = vrot.lane.b32.xlu0 %v341, 16
    %v1557 = vpop.permute.xlu0 %1556
    %1558 = vrot.lane.b32.xlu0 %v342, 16
    %v1559 = vpop.permute.xlu0 %1558
    %1688 = vrot.lane.b32.xlu0 %v343, 20
    %v1689 = vpop.permute.xlu0 %1688
    %1690 = vrot.lane.b32.xlu0 %v344, 20
    %v1691 = vpop.permute.xlu0 %1690
    %1692 = vrot.lane.b32.xlu0 %v345, 20
    %v1693 = vpop.permute.xlu0 %1692
    %1694 = vrot.lane.b32.xlu0 %v346, 20
    %v1695 = vpop.permute.xlu0 %1694
    %1696 = vrot.lane.b32.xlu0 %v347, 20
    %v1697 = vpop.permute.xlu0 %1696
    %1698 = vrot.lane.b32.xlu0 %v348, 20
    %v1699 = vpop.permute.xlu0 %1698
    %1700 = vrot.lane.b32.xlu0 %v349, 20
    %v1701 = vpop.permute.xlu0 %1700
    %1702 = vrot.lane.b32.xlu0 %v350, 20
    %v1703 = vpop.permute.xlu0 %1702
    %1704 = vrot.lane.b32.xlu0 %v351, 20
    %v1705 = vpop.permute.xlu0 %1704
    %1706 = vrot.lane.b32.xlu0 %v352, 20
    %v1707 = vpop.permute.xlu0 %1706
    %1708 = vrot.lane.b32.xlu0 %v353, 20
    %v1709 = vpop.permute.xlu0 %1708
    %1710 = vrot.lane.b32.xlu0 %v354, 20
    %v1711 = vpop.permute.xlu0 %1710
    %1712 = vrot.lane.b32.xlu0 %v355, 20
    %v1713 = vpop.permute.xlu0 %1712
    %1714 = vrot.lane.b32.xlu0 %v356, 20
    %v1715 = vpop.permute.xlu0 %1714
    %1716 = vrot.lane.b32.xlu0 %v357, 20
    %v1717 = vpop.permute.xlu0 %1716
    %1718 = vrot.lane.b32.xlu0 %v358, 20
    %v1719 = vpop.permute.xlu0 %1718
    %1720 = vrot.lane.b32.xlu0 %v359, 20
    %v1721 = vpop.permute.xlu0 %1720
    %1722 = vrot.lane.b32.xlu0 %v360, 20
    %v1723 = vpop.permute.xlu0 %1722
    %1724 = vrot.lane.b32.xlu0 %v361, 20
    %v1725 = vpop.permute.xlu0 %1724
    %1726 = vrot.lane.b32.xlu0 %v362, 20
    %v1727 = vpop.permute.xlu0 %1726
    %1728 = vrot.lane.b32.xlu0 %v363, 20
    %v1729 = vpop.permute.xlu0 %1728
    %1730 = vrot.lane.b32.xlu0 %v364, 20
    %v1731 = vpop.permute.xlu0 %1730
    %1732 = vrot.lane.b32.xlu0 %v365, 20
    %v1733 = vpop.permute.xlu0 %1732
    %1734 = vrot.lane.b32.xlu0 %v366, 20
    %v1735 = vpop.permute.xlu0 %1734
    %1736 = vrot.lane.b32.xlu0 %v367, 20
    %v1737 = vpop.permute.xlu0 %1736
    %1738 = vrot.lane.b32.xlu0 %v368, 20
    %v1739 = vpop.permute.xlu0 %1738
    %1740 = vrot.lane.b32.xlu0 %v369, 20
    %v1741 = vpop.permute.xlu0 %1740
    %1742 = vrot.lane.b32.xlu0 %v370, 20
    %v1743 = vpop.permute.xlu0 %1742
    %1744 = vrot.lane.b32.xlu0 %v371, 20
    %v1745 = vpop.permute.xlu0 %1744
    %1746 = vrot.lane.b32.xlu0 %v372, 20
    %v1747 = vpop.permute.xlu0 %1746
    %1748 = vrot.lane.b32.xlu0 %v373, 20
    %v1749 = vpop.permute.xlu0 %1748
    %1750 = vrot.lane.b32.xlu0 %v374, 20
    %v1751 = vpop.permute.xlu0 %1750
    %1752 = vrot.lane.b32.xlu0 %v375, 20
    %v1753 = vpop.permute.xlu0 %1752
    %1754 = vrot.lane.b32.xlu0 %v376, 20
    %v1755 = vpop.permute.xlu0 %1754
    %1756 = vrot.lane.b32.xlu0 %v377, 20
    %v1757 = vpop.permute.xlu0 %1756
    %1758 = vrot.lane.b32.xlu0 %v378, 20
    %v1759 = vpop.permute.xlu0 %1758
    %1760 = vrot.lane.b32.xlu0 %v379, 20
    %v1761 = vpop.permute.xlu0 %1760
    %1762 = vrot.lane.b32.xlu0 %v380, 20
    %v1763 = vpop.permute.xlu0 %1762
    %1764 = vrot.lane.b32.xlu0 %v381, 20
    %v1765 = vpop.permute.xlu0 %1764
    %1766 = vrot.lane.b32.xlu0 %v382, 20
    %v1767 = vpop.permute.xlu0 %1766
    %1768 = vrot.lane.b32.xlu0 %v383, 20
    %v1769 = vpop.permute.xlu0 %1768
    %1770 = vrot.lane.b32.xlu0 %v384, 20
    %v1771 = vpop.permute.xlu0 %1770
    %1772 = vrot.lane.b32.xlu0 %v385, 20
    %v1773 = vpop.permute.xlu0 %1772
    %1774 = vrot.lane.b32.xlu0 %v386, 20
    %v1775 = vpop.permute.xlu0 %1774
    %1776 = vrot.lane.b32.xlu0 %v387, 20
    %v1777 = vpop.permute.xlu0 %1776
    %1778 = vrot.lane.b32.xlu0 %v388, 20
    %v1779 = vpop.permute.xlu0 %1778
    %1780 = vrot.lane.b32.xlu0 %v389, 20
    %v1781 = vpop.permute.xlu0 %1780
    %1782 = vrot.lane.b32.xlu0 %v390, 20
    %v1783 = vpop.permute.xlu0 %1782
    %1784 = vrot.lane.b32.xlu0 %v391, 20
    %v1785 = vpop.permute.xlu0 %1784
    %1786 = vrot.lane.b32.xlu0 %v392, 20
    %v1787 = vpop.permute.xlu0 %1786
    %1788 = vrot.lane.b32.xlu0 %v393, 20
    %v1789 = vpop.permute.xlu0 %1788
    %1790 = vrot.lane.b32.xlu0 %v394, 20
    %v1791 = vpop.permute.xlu0 %1790
    %1792 = vrot.lane.b32.xlu0 %v395, 20
    %v1793 = vpop.permute.xlu0 %1792
    %1794 = vrot.lane.b32.xlu0 %v396, 20
    %v1795 = vpop.permute.xlu0 %1794
    %1796 = vrot.lane.b32.xlu0 %v397, 20
    %v1797 = vpop.permute.xlu0 %1796
    %1798 = vrot.lane.b32.xlu0 %v398, 20
    %v1799 = vpop.permute.xlu0 %1798
    %1800 = vrot.lane.b32.xlu0 %v399, 20
    %v1801 = vpop.permute.xlu0 %1800
    %1802 = vrot.lane.b32.xlu0 %v400, 20
    %v1803 = vpop.permute.xlu0 %1802
    %1804 = vrot.lane.b32.xlu0 %v401, 20
    %v1805 = vpop.permute.xlu0 %1804
    %1806 = vrot.lane.b32.xlu0 %v402, 20
    %v1807 = vpop.permute.xlu0 %1806
    %1808 = vrot.lane.b32.xlu0 %v403, 20
    %v1809 = vpop.permute.xlu0 %1808
    %1810 = vrot.lane.b32.xlu0 %v404, 20
    %v1811 = vpop.permute.xlu0 %1810
    %1812 = vrot.lane.b32.xlu0 %v405, 20
    %v1813 = vpop.permute.xlu0 %1812
    %1814 = vrot.lane.b32.xlu0 %v406, 20
    %v1815 = vpop.permute.xlu0 %1814
    %1944 = vrot.lane.b32.xlu0 %v408, 24
    %v1945 = vpop.permute.xlu0 %1944
    %1946 = vrot.lane.b32.xlu0 %v409, 24
    %v1947 = vpop.permute.xlu0 %1946
    %1948 = vrot.lane.b32.xlu0 %v410, 24
    %v1949 = vpop.permute.xlu0 %1948
    %1950 = vrot.lane.b32.xlu0 %v411, 24
    %v1951 = vpop.permute.xlu0 %1950
    %1952 = vrot.lane.b32.xlu0 %v412, 24
    %v1953 = vpop.permute.xlu0 %1952
    %1954 = vrot.lane.b32.xlu0 %v413, 24
    %v1955 = vpop.permute.xlu0 %1954
    %1956 = vrot.lane.b32.xlu0 %v414, 24
    %v1957 = vpop.permute.xlu0 %1956
    %1958 = vrot.lane.b32.xlu0 %v415, 24
    %v1959 = vpop.permute.xlu0 %1958
    %1960 = vrot.lane.b32.xlu0 %v416, 24
    %v1961 = vpop.permute.xlu0 %1960
    %1962 = vrot.lane.b32.xlu0 %v417, 24
    %v1963 = vpop.permute.xlu0 %1962
    %1964 = vrot.lane.b32.xlu0 %v418, 24
    %v1965 = vpop.permute.xlu0 %1964
    %1966 = vrot.lane.b32.xlu0 %v419, 24
    %v1967 = vpop.permute.xlu0 %1966
    %1968 = vrot.lane.b32.xlu0 %v420, 24
    %v1969 = vpop.permute.xlu0 %1968
    %1970 = vrot.lane.b32.xlu0 %v421, 24
    %v1971 = vpop.permute.xlu0 %1970
    %1972 = vrot.lane.b32.xlu0 %v422, 24
    %v1973 = vpop.permute.xlu0 %1972
    %1974 = vrot.lane.b32.xlu0 %v423, 24
    %v1975 = vpop.permute.xlu0 %1974
    %1976 = vrot.lane.b32.xlu0 %v424, 24
    %v1977 = vpop.permute.xlu0 %1976
    %1978 = vrot.lane.b32.xlu0 %v425, 24
    %v1979 = vpop.permute.xlu0 %1978
    %1980 = vrot.lane.b32.xlu0 %v426, 24
    %v1981 = vpop.permute.xlu0 %1980
    %1982 = vrot.lane.b32.xlu0 %v427, 24
    %v1983 = vpop.permute.xlu0 %1982
    %1984 = vrot.lane.b32.xlu0 %v428, 24
    %v1985 = vpop.permute.xlu0 %1984
    %1986 = vrot.lane.b32.xlu0 %v429, 24
    %v1987 = vpop.permute.xlu0 %1986
    %1988 = vrot.lane.b32.xlu0 %v430, 24
    %v1989 = vpop.permute.xlu0 %1988
    %1990 = vrot.lane.b32.xlu0 %v431, 24
    %v1991 = vpop.permute.xlu0 %1990
    %1992 = vrot.lane.b32.xlu0 %v432, 24
    %v1993 = vpop.permute.xlu0 %1992
    %1994 = vrot.lane.b32.xlu0 %v433, 24
    %v1995 = vpop.permute.xlu0 %1994
    %1996 = vrot.lane.b32.xlu0 %v434, 24
    %v1997 = vpop.permute.xlu0 %1996
    %1998 = vrot.lane.b32.xlu0 %v435, 24
    %v1999 = vpop.permute.xlu0 %1998
    %2000 = vrot.lane.b32.xlu0 %v436, 24
    %v2001 = vpop.permute.xlu0 %2000
    %2002 = vrot.lane.b32.xlu0 %v437, 24
    %v2003 = vpop.permute.xlu0 %2002
    %2004 = vrot.lane.b32.xlu0 %v438, 24
    %v2005 = vpop.permute.xlu0 %2004
    %2006 = vrot.lane.b32.xlu0 %v439, 24
    %v2007 = vpop.permute.xlu0 %2006
    %2008 = vrot.lane.b32.xlu0 %v440, 24
    %v2009 = vpop.permute.xlu0 %2008
    %2010 = vrot.lane.b32.xlu0 %v441, 24
    %v2011 = vpop.permute.xlu0 %2010
    %2012 = vrot.lane.b32.xlu0 %v442, 24
    %v2013 = vpop.permute.xlu0 %2012
    %2014 = vrot.lane.b32.xlu0 %v443, 24
    %v2015 = vpop.permute.xlu0 %2014
    %2016 = vrot.lane.b32.xlu0 %v444, 24
    %v2017 = vpop.permute.xlu0 %2016
    %2018 = vrot.lane.b32.xlu0 %v445, 24
    %v2019 = vpop.permute.xlu0 %2018
    %2020 = vrot.lane.b32.xlu0 %v446, 24
    %v2021 = vpop.permute.xlu0 %2020
    %2022 = vrot.lane.b32.xlu0 %v447, 24
    %v2023 = vpop.permute.xlu0 %2022
    %2024 = vrot.lane.b32.xlu0 %v448, 24
    %v2025 = vpop.permute.xlu0 %2024
    %2026 = vrot.lane.b32.xlu0 %v449, 24
    %v2027 = vpop.permute.xlu0 %2026
    %2028 = vrot.lane.b32.xlu0 %v450, 24
    %v2029 = vpop.permute.xlu0 %2028
    %2030 = vrot.lane.b32.xlu0 %v451, 24
    %v2031 = vpop.permute.xlu0 %2030
    %2032 = vrot.lane.b32.xlu0 %v452, 24
    %v2033 = vpop.permute.xlu0 %2032
    %2034 = vrot.lane.b32.xlu0 %v453, 24
    %v2035 = vpop.permute.xlu0 %2034
    %2036 = vrot.lane.b32.xlu0 %v454, 24
    %v2037 = vpop.permute.xlu0 %2036
    %2038 = vrot.lane.b32.xlu0 %v455, 24
    %v2039 = vpop.permute.xlu0 %2038
    %2040 = vrot.lane.b32.xlu0 %v456, 24
    %v2041 = vpop.permute.xlu0 %2040
    %2042 = vrot.lane.b32.xlu0 %v457, 24
    %v2043 = vpop.permute.xlu0 %2042
    %2044 = vrot.lane.b32.xlu0 %v458, 24
    %v2045 = vpop.permute.xlu0 %2044
    %2046 = vrot.lane.b32.xlu0 %v459, 24
    %v2047 = vpop.permute.xlu0 %2046
    %2048 = vrot.lane.b32.xlu0 %v460, 24
    %v2049 = vpop.permute.xlu0 %2048
    %2050 = vrot.lane.b32.xlu0 %v461, 24
    %v2051 = vpop.permute.xlu0 %2050
    %2052 = vrot.lane.b32.xlu0 %v462, 24
    %v2053 = vpop.permute.xlu0 %2052
    %2054 = vrot.lane.b32.xlu0 %v463, 24
    %v2055 = vpop.permute.xlu0 %2054
    %2056 = vrot.lane.b32.xlu0 %v464, 24
    %v2057 = vpop.permute.xlu0 %2056
    %2058 = vrot.lane.b32.xlu0 %v465, 24
    %v2059 = vpop.permute.xlu0 %2058
    %2060 = vrot.lane.b32.xlu0 %v466, 24
    %v2061 = vpop.permute.xlu0 %2060
    %2062 = vrot.lane.b32.xlu0 %v467, 24
    %v2063 = vpop.permute.xlu0 %2062
    %2064 = vrot.lane.b32.xlu0 %v468, 24
    %v2065 = vpop.permute.xlu0 %2064
    %2066 = vrot.lane.b32.xlu0 %v469, 24
    %v2067 = vpop.permute.xlu0 %2066
    %2068 = vrot.lane.b32.xlu0 %v470, 24
    %v2069 = vpop.permute.xlu0 %2068
    %2070 = vrot.lane.b32.xlu0 %v471, 24
    %v2071 = vpop.permute.xlu0 %2070
    %2200 = vrot.lane.b32.xlu0 %v472, 28
    %v2201 = vpop.permute.xlu0 %2200
    %2202 = vrot.lane.b32.xlu0 %v473, 28
    %v2203 = vpop.permute.xlu0 %2202
    %2204 = vrot.lane.b32.xlu0 %v474, 28
    %v2205 = vpop.permute.xlu0 %2204
    %2206 = vrot.lane.b32.xlu0 %v475, 28
    %v2207 = vpop.permute.xlu0 %2206
    %2208 = vrot.lane.b32.xlu0 %v476, 28
    %v2209 = vpop.permute.xlu0 %2208
    %2210 = vrot.lane.b32.xlu0 %v477, 28
    %v2211 = vpop.permute.xlu0 %2210
    %2212 = vrot.lane.b32.xlu0 %v478, 28
    %v2213 = vpop.permute.xlu0 %2212
    %2214 = vrot.lane.b32.xlu0 %v479, 28
    %v2215 = vpop.permute.xlu0 %2214
    %2216 = vrot.lane.b32.xlu0 %v480, 28
    %v2217 = vpop.permute.xlu0 %2216
    %2218 = vrot.lane.b32.xlu0 %v481, 28
    %v2219 = vpop.permute.xlu0 %2218
    %2220 = vrot.lane.b32.xlu0 %v482, 28
    %v2221 = vpop.permute.xlu0 %2220
    %2222 = vrot.lane.b32.xlu0 %v483, 28
    %v2223 = vpop.permute.xlu0 %2222
    %2224 = vrot.lane.b32.xlu0 %v484, 28
    %v2225 = vpop.permute.xlu0 %2224
    %2226 = vrot.lane.b32.xlu0 %v485, 28
    %v2227 = vpop.permute.xlu0 %2226
    %2228 = vrot.lane.b32.xlu0 %v486, 28
    %v2229 = vpop.permute.xlu0 %2228
    %2230 = vrot.lane.b32.xlu0 %v487, 28
    %v2231 = vpop.permute.xlu0 %2230
    %2232 = vrot.lane.b32.xlu0 %v488, 28
    %v2233 = vpop.permute.xlu0 %2232
    %2234 = vrot.lane.b32.xlu0 %v489, 28
    %v2235 = vpop.permute.xlu0 %2234
    %2236 = vrot.lane.b32.xlu0 %v490, 28
    %v2237 = vpop.permute.xlu0 %2236
    %2238 = vrot.lane.b32.xlu0 %v491, 28
    %v2239 = vpop.permute.xlu0 %2238
    %2240 = vrot.lane.b32.xlu0 %v492, 28
    %v2241 = vpop.permute.xlu0 %2240
    %2242 = vrot.lane.b32.xlu0 %v493, 28
    %v2243 = vpop.permute.xlu0 %2242
    %2244 = vrot.lane.b32.xlu0 %v494, 28
    %v2245 = vpop.permute.xlu0 %2244
    %2246 = vrot.lane.b32.xlu0 %v495, 28
    %v2247 = vpop.permute.xlu0 %2246
    %2248 = vrot.lane.b32.xlu0 %v496, 28
    %v2249 = vpop.permute.xlu0 %2248
    %2250 = vrot.lane.b32.xlu0 %v497, 28
    %v2251 = vpop.permute.xlu0 %2250
    %2252 = vrot.lane.b32.xlu0 %v498, 28
    %v2253 = vpop.permute.xlu0 %2252
    %2254 = vrot.lane.b32.xlu0 %v499, 28
    %v2255 = vpop.permute.xlu0 %2254
    %2256 = vrot.lane.b32.xlu0 %v500, 28
    %v2257 = vpop.permute.xlu0 %2256
    %2258 = vrot.lane.b32.xlu0 %v501, 28
    %v2259 = vpop.permute.xlu0 %2258
    %2260 = vrot.lane.b32.xlu0 %v502, 28
    %v2261 = vpop.permute.xlu0 %2260
    %2262 = vrot.lane.b32.xlu0 %v503, 28
    %v2263 = vpop.permute.xlu0 %2262
    %2264 = vrot.lane.b32.xlu0 %v504, 28
    %v2265 = vpop.permute.xlu0 %2264
    %2266 = vrot.lane.b32.xlu0 %v505, 28
    %v2267 = vpop.permute.xlu0 %2266
    %2268 = vrot.lane.b32.xlu0 %v506, 28
    %v2269 = vpop.permute.xlu0 %2268
    %2270 = vrot.lane.b32.xlu0 %v507, 28
    %v2271 = vpop.permute.xlu0 %2270
    %2272 = vrot.lane.b32.xlu0 %v508, 28
    %v2273 = vpop.permute.xlu0 %2272
    %2274 = vrot.lane.b32.xlu0 %v509, 28
    %v2275 = vpop.permute.xlu0 %2274
    %2276 = vrot.lane.b32.xlu0 %v510, 28
    %v2277 = vpop.permute.xlu0 %2276
    %2278 = vrot.lane.b32.xlu0 %v511, 28
    %v2279 = vpop.permute.xlu0 %2278
    %2280 = vrot.lane.b32.xlu0 %v512, 28
    %v2281 = vpop.permute.xlu0 %2280
    %2282 = vrot.lane.b32.xlu0 %v513, 28
    %v2283 = vpop.permute.xlu0 %2282
    %2284 = vrot.lane.b32.xlu0 %v514, 28
    %v2285 = vpop.permute.xlu0 %2284
    %2286 = vrot.lane.b32.xlu0 %v515, 28
    %v2287 = vpop.permute.xlu0 %2286
    %2288 = vrot.lane.b32.xlu0 %v516, 28
    %v2289 = vpop.permute.xlu0 %2288
    %2290 = vrot.lane.b32.xlu0 %v517, 28
    %v2291 = vpop.permute.xlu0 %2290
    %2292 = vrot.lane.b32.xlu0 %v518, 28
    %v2293 = vpop.permute.xlu0 %2292
    %2294 = vrot.lane.b32.xlu0 %v519, 28
    %v2295 = vpop.permute.xlu0 %2294
    %2296 = vrot.lane.b32.xlu0 %v520, 28
    %v2297 = vpop.permute.xlu0 %2296
    %2298 = vrot.lane.b32.xlu0 %v521, 28
    %v2299 = vpop.permute.xlu0 %2298
    %2300 = vrot.lane.b32.xlu0 %v522, 28
    %v2301 = vpop.permute.xlu0 %2300
    %2302 = vrot.lane.b32.xlu0 %v523, 28
    %v2303 = vpop.permute.xlu0 %2302
    %2304 = vrot.lane.b32.xlu0 %v524, 28
    %v2305 = vpop.permute.xlu0 %2304
    %2306 = vrot.lane.b32.xlu0 %v525, 28
    %v2307 = vpop.permute.xlu0 %2306
    %2308 = vrot.lane.b32.xlu0 %v526, 28
    %v2309 = vpop.permute.xlu0 %2308
    %2310 = vrot.lane.b32.xlu0 %v527, 28
    %v2311 = vpop.permute.xlu0 %2310
    %2312 = vrot.lane.b32.xlu0 %v528, 28
    %v2313 = vpop.permute.xlu0 %2312
    %2314 = vrot.lane.b32.xlu0 %v529, 28
    %v2315 = vpop.permute.xlu0 %2314
    %2316 = vrot.lane.b32.xlu0 %v530, 28
    %v2317 = vpop.permute.xlu0 %2316
    %2318 = vrot.lane.b32.xlu0 %v531, 28
    %v2319 = vpop.permute.xlu0 %2318
    %2320 = vrot.lane.b32.xlu0 %v532, 28
    %v2321 = vpop.permute.xlu0 %2320
    %2322 = vrot.lane.b32.xlu0 %v533, 28
    %v2323 = vpop.permute.xlu0 %2322
    %2324 = vrot.lane.b32.xlu0 %v534, 28
    %v2325 = vpop.permute.xlu0 %2324
    %2326 = vrot.lane.b32.xlu0 %v535, 28
    %v2327 = vpop.permute.xlu0 %2326
    %2456 = vrot.lane.b32.xlu0 %v536, 32
    %v2457 = vpop.permute.xlu0 %2456
    %2458 = vrot.lane.b32.xlu0 %v537, 32
    %v2459 = vpop.permute.xlu0 %2458
    %2460 = vrot.lane.b32.xlu0 %v538, 32
    %v2461 = vpop.permute.xlu0 %2460
    %2462 = vrot.lane.b32.xlu0 %v539, 32
    %v2463 = vpop.permute.xlu0 %2462
    %2464 = vrot.lane.b32.xlu0 %v540, 32
    %v2465 = vpop.permute.xlu0 %2464
    %2466 = vrot.lane.b32.xlu0 %v541, 32
    %v2467 = vpop.permute.xlu0 %2466
    %2468 = vrot.lane.b32.xlu0 %v542, 32
    %v2469 = vpop.permute.xlu0 %2468
    %2470 = vrot.lane.b32.xlu0 %v543, 32
    %v2471 = vpop.permute.xlu0 %2470
    %2472 = vrot.lane.b32.xlu0 %v544, 32
    %v2473 = vpop.permute.xlu0 %2472
    %2474 = vrot.lane.b32.xlu0 %v545, 32
    %v2475 = vpop.permute.xlu0 %2474
    %2476 = vrot.lane.b32.xlu0 %v546, 32
    %v2477 = vpop.permute.xlu0 %2476
    %2478 = vrot.lane.b32.xlu0 %v547, 32
    %v2479 = vpop.permute.xlu0 %2478
    %2480 = vrot.lane.b32.xlu0 %v548, 32
    %v2481 = vpop.permute.xlu0 %2480
    %2482 = vrot.lane.b32.xlu0 %v549, 32
    %v2483 = vpop.permute.xlu0 %2482
    %2484 = vrot.lane.b32.xlu0 %v550, 32
    %v2485 = vpop.permute.xlu0 %2484
    %2486 = vrot.lane.b32.xlu0 %v551, 32
    %v2487 = vpop.permute.xlu0 %2486
    %2488 = vrot.lane.b32.xlu0 %v552, 32
    %v2489 = vpop.permute.xlu0 %2488
    %2490 = vrot.lane.b32.xlu0 %v553, 32
    %v2491 = vpop.permute.xlu0 %2490
    %2492 = vrot.lane.b32.xlu0 %v554, 32
    %v2493 = vpop.permute.xlu0 %2492
    %2494 = vrot.lane.b32.xlu0 %v555, 32
    %v2495 = vpop.permute.xlu0 %2494
    %2496 = vrot.lane.b32.xlu0 %v556, 32
    %v2497 = vpop.permute.xlu0 %2496
    %2498 = vrot.lane.b32.xlu0 %v557, 32
    %v2499 = vpop.permute.xlu0 %2498
    %2500 = vrot.lane.b32.xlu0 %v558, 32
    %v2501 = vpop.permute.xlu0 %2500
    %2502 = vrot.lane.b32.xlu0 %v559, 32
    %v2503 = vpop.permute.xlu0 %2502
    %2504 = vrot.lane.b32.xlu0 %v560, 32
    %v2505 = vpop.permute.xlu0 %2504
    %2506 = vrot.lane.b32.xlu0 %v561, 32
    %v2507 = vpop.permute.xlu0 %2506
    %2508 = vrot.lane.b32.xlu0 %v562, 32
    %v2509 = vpop.permute.xlu0 %2508
    %2510 = vrot.lane.b32.xlu0 %v563, 32
    %v2511 = vpop.permute.xlu0 %2510
    %2512 = vrot.lane.b32.xlu0 %v564, 32
    %v2513 = vpop.permute.xlu0 %2512
    %2514 = vrot.lane.b32.xlu0 %v565, 32
    %v2515 = vpop.permute.xlu0 %2514
    %2516 = vrot.lane.b32.xlu0 %v566, 32
    %v2517 = vpop.permute.xlu0 %2516
    %2518 = vrot.lane.b32.xlu0 %v567, 32
    %v2519 = vpop.permute.xlu0 %2518
    %2520 = vrot.lane.b32.xlu0 %v568, 32
    %v2521 = vpop.permute.xlu0 %2520
    %2522 = vrot.lane.b32.xlu0 %v569, 32
    %v2523 = vpop.permute.xlu0 %2522
    %2524 = vrot.lane.b32.xlu0 %v570, 32
    %v2525 = vpop.permute.xlu0 %2524
    %2526 = vrot.lane.b32.xlu0 %v571, 32
    %v2527 = vpop.permute.xlu0 %2526
    %2528 = vrot.lane.b32.xlu0 %v572, 32
    %v2529 = vpop.permute.xlu0 %2528
    %2530 = vrot.lane.b32.xlu0 %v573, 32
    %v2531 = vpop.permute.xlu0 %2530
    %2532 = vrot.lane.b32.xlu0 %v574, 32
    %v2533 = vpop.permute.xlu0 %2532
    %2534 = vrot.lane.b32.xlu0 %v575, 32
    %v2535 = vpop.permute.xlu0 %2534
    %2536 = vrot.lane.b32.xlu0 %v576, 32
    %v2537 = vpop.permute.xlu0 %2536
    %2538 = vrot.lane.b32.xlu0 %v577, 32
    %v2539 = vpop.permute.xlu0 %2538
    %2540 = vrot.lane.b32.xlu0 %v578, 32
    %v2541 = vpop.permute.xlu0 %2540
    %2542 = vrot.lane.b32.xlu0 %v579, 32
    %v2543 = vpop.permute.xlu0 %2542
    %2544 = vrot.lane.b32.xlu0 %v580, 32
    %v2545 = vpop.permute.xlu0 %2544
    %2546 = vrot.lane.b32.xlu0 %v581, 32
    %v2547 = vpop.permute.xlu0 %2546
    %2548 = vrot.lane.b32.xlu0 %v582, 32
    %v2549 = vpop.permute.xlu0 %2548
    %2550 = vrot.lane.b32.xlu0 %v583, 32
    %v2551 = vpop.permute.xlu0 %2550
    %2552 = vrot.lane.b32.xlu0 %v584, 32
    %v2553 = vpop.permute.xlu0 %2552
    %2554 = vrot.lane.b32.xlu0 %v585, 32
    %v2555 = vpop.permute.xlu0 %2554
    %2556 = vrot.lane.b32.xlu0 %v586, 32
    %v2557 = vpop.permute.xlu0 %2556
    %2558 = vrot.lane.b32.xlu0 %v587, 32
    %v2559 = vpop.permute.xlu0 %2558
    %2560 = vrot.lane.b32.xlu0 %v588, 32
    %v2561 = vpop.permute.xlu0 %2560
    %2562 = vrot.lane.b32.xlu0 %v589, 32
    %v2563 = vpop.permute.xlu0 %2562
    %2564 = vrot.lane.b32.xlu0 %v590, 32
    %v2565 = vpop.permute.xlu0 %2564
    %2566 = vrot.lane.b32.xlu0 %v591, 32
    %v2567 = vpop.permute.xlu0 %2566
    %2568 = vrot.lane.b32.xlu0 %v592, 32
    %v2569 = vpop.permute.xlu0 %2568
    %2570 = vrot.lane.b32.xlu0 %v593, 32
    %v2571 = vpop.permute.xlu0 %2570
    %2572 = vrot.lane.b32.xlu0 %v594, 32
    %v2573 = vpop.permute.xlu0 %2572
    %2574 = vrot.lane.b32.xlu0 %v595, 32
    %v2575 = vpop.permute.xlu0 %2574
    %2576 = vrot.lane.b32.xlu0 %v596, 32
    %v2577 = vpop.permute.xlu0 %2576
    %2578 = vrot.lane.b32.xlu0 %v597, 32
    %v2579 = vpop.permute.xlu0 %2578
    %2580 = vrot.lane.b32.xlu0 %v598, 32
    %v2581 = vpop.permute.xlu0 %2580
    %2582 = vrot.lane.b32.xlu0 %v599, 32
    %v2583 = vpop.permute.xlu0 %2582
    %vm2648 = vcmask 31744
    %v2649 = vsel %vm2648, %v22, %v665
    %v2650 = vsel %vm2648, %v23, %v667
    %v2651 = vsel %vm2648, %v24, %v669
    %v2652 = vsel %vm2648, %v25, %v671
    %v2653 = vsel %vm2648, %v26, %v673
    %v2654 = vsel %vm2648, %v27, %v675
    %v2655 = vsel %vm2648, %v28, %v677
    %v2656 = vsel %vm2648, %v29, %v679
    %v2657 = vsel %vm2648, %v30, %v681
    %v2658 = vsel %vm2648, %v31, %v683
    %v2659 = vsel %vm2648, %v32, %v685
    %v2660 = vsel %vm2648, %v33, %v687
    %v2661 = vsel %vm2648, %v34, %v689
    %v2662 = vsel %vm2648, %v35, %v691
    %v2663 = vsel %vm2648, %v36, %v693
    %v2664 = vsel %vm2648, %v37, %v695
    %v2665 = vsel %vm2648, %v38, %v697
    %v2666 = vsel %vm2648, %v39, %v699
    %v2667 = vsel %vm2648, %v40, %v701
    %v2668 = vsel %vm2648, %v41, %v703
    %v2669 = vsel %vm2648, %v42, %v705
    %v2670 = vsel %vm2648, %v43, %v707
    %v2671 = vsel %vm2648, %v44, %v709
    %v2672 = vsel %vm2648, %v45, %v711
    %v2673 = vsel %vm2648, %v46, %v713
    %v2674 = vsel %vm2648, %v47, %v715
    %v2675 = vsel %vm2648, %v48, %v717
    %v2676 = vsel %vm2648, %v49, %v719
    %v2677 = vsel %vm2648, %v50, %v721
    %v2678 = vsel %vm2648, %v51, %v723
    %v2679 = vsel %vm2648, %v52, %v725
    %v2680 = vsel %vm2648, %v53, %v727
    %v2681 = vsel %vm2648, %v54, %v729
    %v2682 = vsel %vm2648, %v55, %v731
    %v2683 = vsel %vm2648, %v56, %v733
    %v2684 = vsel %vm2648, %v57, %v735
    %v2685 = vsel %vm2648, %v58, %v737
    %v2686 = vsel %vm2648, %v59, %v739
    %v2687 = vsel %vm2648, %v60, %v741
    %v2688 = vsel %vm2648, %v61, %v743
    %v2689 = vsel %vm2648, %v62, %v745
    %v2690 = vsel %vm2648, %v63, %v747
    %v2691 = vsel %vm2648, %v64, %v749
    %v2692 = vsel %vm2648, %v65, %v751
    %v2693 = vsel %vm2648, %v66, %v753
    %v2694 = vsel %vm2648, %v67, %v755
    %v2695 = vsel %vm2648, %v68, %v757
    %v2696 = vsel %vm2648, %v69, %v759
    %v2697 = vsel %vm2648, %v70, %v761
    %v2698 = vsel %vm2648, %v71, %v763
    %v2699 = vsel %vm2648, %v72, %v765
    %v2700 = vsel %vm2648, %v73, %v767
    %v2701 = vsel %vm2648, %v74, %v769
    %v2702 = vsel %vm2648, %v75, %v771
    %v2703 = vsel %vm2648, %v76, %v773
    %v2704 = vsel %vm2648, %v77, %v775
    %v2705 = vsel %vm2648, %v78, %v777
    %v2706 = vsel %vm2648, %v79, %v779
    %v2707 = vsel %vm2648, %v80, %v781
    %v2708 = vsel %vm2648, %v81, %v783
    %v2709 = vsel %vm2648, %v82, %v785
    %v2710 = vsel %vm2648, %v83, %v787
    %v2711 = vsel %vm2648, %v84, %v789
    %v2712 = vsel %vm2648, %v85, %v791
    %vm2713 = vcmask 64512
    %v2714 = vsel %vm2713, %v2649, %v921
    %v2715 = vsel %vm2713, %v2650, %v923
    %v2716 = vsel %vm2713, %v2651, %v925
    %v2717 = vsel %vm2713, %v2652, %v927
    %v2718 = vsel %vm2713, %v2653, %v929
    %v2719 = vsel %vm2713, %v2654, %v931
    %v2720 = vsel %vm2713, %v2655, %v933
    %v2721 = vsel %vm2713, %v2656, %v935
    %v2722 = vsel %vm2713, %v2657, %v937
    %v2723 = vsel %vm2713, %v2658, %v939
    %v2724 = vsel %vm2713, %v2659, %v941
    %v2725 = vsel %vm2713, %v2660, %v943
    %v2726 = vsel %vm2713, %v2661, %v945
    %v2727 = vsel %vm2713, %v2662, %v947
    %v2728 = vsel %vm2713, %v2663, %v949
    %v2729 = vsel %vm2713, %v2664, %v951
    %v2730 = vsel %vm2713, %v2665, %v953
    %v2731 = vsel %vm2713, %v2666, %v955
    %v2732 = vsel %vm2713, %v2667, %v957
    %v2733 = vsel %vm2713, %v2668, %v959
    %v2734 = vsel %vm2713, %v2669, %v961
    %v2735 = vsel %vm2713, %v2670, %v963
    %v2736 = vsel %vm2713, %v2671, %v965
    %v2737 = vsel %vm2713, %v2672, %v967
    %v2738 = vsel %vm2713, %v2673, %v969
    %v2739 = vsel %vm2713, %v2674, %v971
    %v2740 = vsel %vm2713, %v2675, %v973
    %v2741 = vsel %vm2713, %v2676, %v975
    %v2742 = vsel %vm2713, %v2677, %v977
    %v2743 = vsel %vm2713, %v2678, %v979
    %v2744 = vsel %vm2713, %v2679, %v981
    %v2745 = vsel %vm2713, %v2680, %v983
    %v2746 = vsel %vm2713, %v2681, %v985
    %v2747 = vsel %vm2713, %v2682, %v987
    %v2748 = vsel %vm2713, %v2683, %v989
    %v2749 = vsel %vm2713, %v2684, %v991
    %v2750 = vsel %vm2713, %v2685, %v993
    %v2751 = vsel %vm2713, %v2686, %v995
    %v2752 = vsel %vm2713, %v2687, %v997
    %v2753 = vsel %vm2713, %v2688, %v999
    %v2754 = vsel %vm2713, %v2689, %v1001
    %v2755 = vsel %vm2713, %v2690, %v1003
    %v2756 = vsel %vm2713, %v2691, %v1005
    %v2757 = vsel %vm2713, %v2692, %v1007
    %v2758 = vsel %vm2713, %v2693, %v1009
    %v2759 = vsel %vm2713, %v2694, %v1011
    %v2760 = vsel %vm2713, %v2695, %v1013
    %v2761 = vsel %vm2713, %v2696, %v1015
    %v2762 = vsel %vm2713, %v2697, %v1017
    %v2763 = vsel %vm2713, %v2698, %v1019
    %v2764 = vsel %vm2713, %v2699, %v1021
    %v2765 = vsel %vm2713, %v2700, %v1023
    %v2766 = vsel %vm2713, %v2701, %v1025
    %v2767 = vsel %vm2713, %v2702, %v1027
    %v2768 = vsel %vm2713, %v2703, %v1029
    %v2769 = vsel %vm2713, %v2704, %v1031
    %v2770 = vsel %vm2713, %v2705, %v1033
    %v2771 = vsel %vm2713, %v2706, %v1035
    %v2772 = vsel %vm2713, %v2707, %v1037
    %v2773 = vsel %vm2713, %v2708, %v1039
    %v2774 = vsel %vm2713, %v2709, %v1041
    %v2775 = vsel %vm2713, %v2710, %v1043
    %v2776 = vsel %vm2713, %v2711, %v1045
    %v2777 = vsel %vm2713, %v2712, %v1047
    %vm2778 = vcmask 97280
    %v2779 = vsel %vm2778, %v2714, %v1177
    %v2780 = vsel %vm2778, %v2715, %v1179
    %v2781 = vsel %vm2778, %v2716, %v1181
    %v2782 = vsel %vm2778, %v2717, %v1183
    %v2783 = vsel %vm2778, %v2718, %v1185
    %v2784 = vsel %vm2778, %v2719, %v1187
    %v2785 = vsel %vm2778, %v2720, %v1189
    %v2786 = vsel %vm2778, %v2721, %v1191
    %v2787 = vsel %vm2778, %v2722, %v1193
    %v2788 = vsel %vm2778, %v2723, %v1195
    %v2789 = vsel %vm2778, %v2724, %v1197
    %v2790 = vsel %vm2778, %v2725, %v1199
    %v2791 = vsel %vm2778, %v2726, %v1201
    %v2792 = vsel %vm2778, %v2727, %v1203
    %v2793 = vsel %vm2778, %v2728, %v1205
    %v2794 = vsel %vm2778, %v2729, %v1207
    %v2795 = vsel %vm2778, %v2730, %v1209
    %v2796 = vsel %vm2778, %v2731, %v1211
    %v2797 = vsel %vm2778, %v2732, %v1213
    %v2798 = vsel %vm2778, %v2733, %v1215
    %v2799 = vsel %vm2778, %v2734, %v1217
    %v2800 = vsel %vm2778, %v2735, %v1219
    %v2801 = vsel %vm2778, %v2736, %v1221
    %v2802 = vsel %vm2778, %v2737, %v1223
    %v2803 = vsel %vm2778, %v2738, %v1225
    %v2804 = vsel %vm2778, %v2739, %v1227
    %v2805 = vsel %vm2778, %v2740, %v1229
    %v2806 = vsel %vm2778, %v2741, %v1231
    %v2807 = vsel %vm2778, %v2742, %v1233
    %v2808 = vsel %vm2778, %v2743, %v1235
    %v2809 = vsel %vm2778, %v2744, %v1237
    %v2810 = vsel %vm2778, %v2745, %v1239
    %v2811 = vsel %vm2778, %v2746, %v1241
    %v2812 = vsel %vm2778, %v2747, %v1243
    %v2813 = vsel %vm2778, %v2748, %v1245
    %v2814 = vsel %vm2778, %v2749, %v1247
    %v2815 = vsel %vm2778, %v2750, %v1249
    %v2816 = vsel %vm2778, %v2751, %v1251
    %v2817 = vsel %vm2778, %v2752, %v1253
    %v2818 = vsel %vm2778, %v2753, %v1255
    %v2819 = vsel %vm2778, %v2754, %v1257
    %v2820 = vsel %vm2778, %v2755, %v1259
    %v2821 = vsel %vm2778, %v2756, %v1261
    %v2822 = vsel %vm2778, %v2757, %v1263
    %v2823 = vsel %vm2778, %v2758, %v1265
    %v2824 = vsel %vm2778, %v2759, %v1267
    %v2825 = vsel %vm2778, %v2760, %v1269
    %v2826 = vsel %vm2778, %v2761, %v1271
    %v2827 = vsel %vm2778, %v2762, %v1273
    %v2828 = vsel %vm2778, %v2763, %v1275
    %v2829 = vsel %vm2778, %v2764, %v1277
    %v2830 = vsel %vm2778, %v2765, %v1279
    %v2831 = vsel %vm2778, %v2766, %v1281
    %v2832 = vsel %vm2778, %v2767, %v1283
    %v2833 = vsel %vm2778, %v2768, %v1285
    %v2834 = vsel %vm2778, %v2769, %v1287
    %v2835 = vsel %vm2778, %v2770, %v1289
    %v2836 = vsel %vm2778, %v2771, %v1291
    %v2837 = vsel %vm2778, %v2772, %v1293
    %v2838 = vsel %vm2778, %v2773, %v1295
    %v2839 = vsel %vm2778, %v2774, %v1297
    %v2840 = vsel %vm2778, %v2775, %v1299
    %v2841 = vsel %vm2778, %v2776, %v1301
    %v2842 = vsel %vm2778, %v2777, %v1303
    %vm2843 = vcmask 130048
    %v2844 = vsel %vm2843, %v2779, %v1433
    %v2845 = vsel %vm2843, %v2780, %v1435
    %v2846 = vsel %vm2843, %v2781, %v1437
    %v2847 = vsel %vm2843, %v2782, %v1439
    %v2848 = vsel %vm2843, %v2783, %v1441
    %v2849 = vsel %vm2843, %v2784, %v1443
    %v2850 = vsel %vm2843, %v2785, %v1445
    %v2851 = vsel %vm2843, %v2786, %v1447
    %v2852 = vsel %vm2843, %v2787, %v1449
    %v2853 = vsel %vm2843, %v2788, %v1451
    %v2854 = vsel %vm2843, %v2789, %v1453
    %v2855 = vsel %vm2843, %v2790, %v1455
    %v2856 = vsel %vm2843, %v2791, %v1457
    %v2857 = vsel %vm2843, %v2792, %v1459
    %v2858 = vsel %vm2843, %v2793, %v1461
    %v2859 = vsel %vm2843, %v2794, %v1463
    %v2860 = vsel %vm2843, %v2795, %v1465
    %v2861 = vsel %vm2843, %v2796, %v1467
    %v2862 = vsel %vm2843, %v2797, %v1469
    %v2863 = vsel %vm2843, %v2798, %v1471
    %v2864 = vsel %vm2843, %v2799, %v1473
    %v2865 = vsel %vm2843, %v2800, %v1475
    %v2866 = vsel %vm2843, %v2801, %v1477
    %v2867 = vsel %vm2843, %v2802, %v1479
    %v2868 = vsel %vm2843, %v2803, %v1481
    %v2869 = vsel %vm2843, %v2804, %v1483
    %v2870 = vsel %vm2843, %v2805, %v1485
    %v2871 = vsel %vm2843, %v2806, %v1487
    %v2872 = vsel %vm2843, %v2807, %v1489
    %v2873 = vsel %vm2843, %v2808, %v1491
    %v2874 = vsel %vm2843, %v2809, %v1493
    %v2875 = vsel %vm2843, %v2810, %v1495
    %v2876 = vsel %vm2843, %v2811, %v1497
    %v2877 = vsel %vm2843, %v2812, %v1499
    %v2878 = vsel %vm2843, %v2813, %v1501
    %v2879 = vsel %vm2843, %v2814, %v1503
    %v2880 = vsel %vm2843, %v2815, %v1505
    %v2881 = vsel %vm2843, %v2816, %v1507
    %v2882 = vsel %vm2843, %v2817, %v1509
    %v2883 = vsel %vm2843, %v2818, %v1511
    %v2884 = vsel %vm2843, %v2819, %v1513
    %v2885 = vsel %vm2843, %v2820, %v1515
    %v2886 = vsel %vm2843, %v2821, %v1517
    %v2887 = vsel %vm2843, %v2822, %v1519
    %v2888 = vsel %vm2843, %v2823, %v1521
    %v2889 = vsel %vm2843, %v2824, %v1523
    %v2890 = vsel %vm2843, %v2825, %v1525
    %v2891 = vsel %vm2843, %v2826, %v1527
    %v2892 = vsel %vm2843, %v2827, %v1529
    %v2893 = vsel %vm2843, %v2828, %v1531
    %v2894 = vsel %vm2843, %v2829, %v1533
    %v2895 = vsel %vm2843, %v2830, %v1535
    %v2896 = vsel %vm2843, %v2831, %v1537
    %v2897 = vsel %vm2843, %v2832, %v1539
    %v2898 = vsel %vm2843, %v2833, %v1541
    %v2899 = vsel %vm2843, %v2834, %v1543
    %v2900 = vsel %vm2843, %v2835, %v1545
    %v2901 = vsel %vm2843, %v2836, %v1547
    %v2902 = vsel %vm2843, %v2837, %v1549
    %v2903 = vsel %vm2843, %v2838, %v1551
    %v2904 = vsel %vm2843, %v2839, %v1553
    %v2905 = vsel %vm2843, %v2840, %v1555
    %v2906 = vsel %vm2843, %v2841, %v1557
    %v2907 = vsel %vm2843, %v2842, %v1559
    %vm2908 = vcmask 162816
    %v2909 = vsel %vm2908, %v2844, %v1689
    %v2910 = vsel %vm2908, %v2845, %v1691
    %v2911 = vsel %vm2908, %v2846, %v1693
    %v2912 = vsel %vm2908, %v2847, %v1695
    %v2913 = vsel %vm2908, %v2848, %v1697
    %v2914 = vsel %vm2908, %v2849, %v1699
    %v2915 = vsel %vm2908, %v2850, %v1701
    %v2916 = vsel %vm2908, %v2851, %v1703
    %v2917 = vsel %vm2908, %v2852, %v1705
    %v2918 = vsel %vm2908, %v2853, %v1707
    %v2919 = vsel %vm2908, %v2854, %v1709
    %v2920 = vsel %vm2908, %v2855, %v1711
    %v2921 = vsel %vm2908, %v2856, %v1713
    %v2922 = vsel %vm2908, %v2857, %v1715
    %v2923 = vsel %vm2908, %v2858, %v1717
    %v2924 = vsel %vm2908, %v2859, %v1719
    %v2925 = vsel %vm2908, %v2860, %v1721
    %v2926 = vsel %vm2908, %v2861, %v1723
    %v2927 = vsel %vm2908, %v2862, %v1725
    %v2928 = vsel %vm2908, %v2863, %v1727
    %v2929 = vsel %vm2908, %v2864, %v1729
    %v2930 = vsel %vm2908, %v2865, %v1731
    %v2931 = vsel %vm2908, %v2866, %v1733
    %v2932 = vsel %vm2908, %v2867, %v1735
    %v2933 = vsel %vm2908, %v2868, %v1737
    %v2934 = vsel %vm2908, %v2869, %v1739
    %v2935 = vsel %vm2908, %v2870, %v1741
    %v2936 = vsel %vm2908, %v2871, %v1743
    %v2937 = vsel %vm2908, %v2872, %v1745
    %v2938 = vsel %vm2908, %v2873, %v1747
    %v2939 = vsel %vm2908, %v2874, %v1749
    %v2940 = vsel %vm2908, %v2875, %v1751
    %v2941 = vsel %vm2908, %v2876, %v1753
    %v2942 = vsel %vm2908, %v2877, %v1755
    %v2943 = vsel %vm2908, %v2878, %v1757
    %v2944 = vsel %vm2908, %v2879, %v1759
    %v2945 = vsel %vm2908, %v2880, %v1761
    %v2946 = vsel %vm2908, %v2881, %v1763
    %v2947 = vsel %vm2908, %v2882, %v1765
    %v2948 = vsel %vm2908, %v2883, %v1767
    %v2949 = vsel %vm2908, %v2884, %v1769
    %v2950 = vsel %vm2908, %v2885, %v1771
    %v2951 = vsel %vm2908, %v2886, %v1773
    %v2952 = vsel %vm2908, %v2887, %v1775
    %v2953 = vsel %vm2908, %v2888, %v1777
    %v2954 = vsel %vm2908, %v2889, %v1779
    %v2955 = vsel %vm2908, %v2890, %v1781
    %v2956 = vsel %vm2908, %v2891, %v1783
    %v2957 = vsel %vm2908, %v2892, %v1785
    %v2958 = vsel %vm2908, %v2893, %v1787
    %v2959 = vsel %vm2908, %v2894, %v1789
    %v2960 = vsel %vm2908, %v2895, %v1791
    %v2961 = vsel %vm2908, %v2896, %v1793
    %v2962 = vsel %vm2908, %v2897, %v1795
    %v2963 = vsel %vm2908, %v2898, %v1797
    %v2964 = vsel %vm2908, %v2899, %v1799
    %v2965 = vsel %vm2908, %v2900, %v1801
    %v2966 = vsel %vm2908, %v2901, %v1803
    %v2967 = vsel %vm2908, %v2902, %v1805
    %v2968 = vsel %vm2908, %v2903, %v1807
    %v2969 = vsel %vm2908, %v2904, %v1809
    %v2970 = vsel %vm2908, %v2905, %v1811
    %v2971 = vsel %vm2908, %v2906, %v1813
    %v2972 = vsel %vm2908, %v2907, %v1815
    %vm2973 = vcmask 195584
    %v2974 = vsel %vm2973, %v2909, %v1945
    %v2975 = vsel %vm2973, %v2910, %v1947
    %v2976 = vsel %vm2973, %v2911, %v1949
    %v2977 = vsel %vm2973, %v2912, %v1951
    %v2978 = vsel %vm2973, %v2913, %v1953
    %v2979 = vsel %vm2973, %v2914, %v1955
    %v2980 = vsel %vm2973, %v2915, %v1957
    %v2981 = vsel %vm2973, %v2916, %v1959
    %v2982 = vsel %vm2973, %v2917, %v1961
    %v2983 = vsel %vm2973, %v2918, %v1963
    %v2984 = vsel %vm2973, %v2919, %v1965
    %v2985 = vsel %vm2973, %v2920, %v1967
    %v2986 = vsel %vm2973, %v2921, %v1969
    %v2987 = vsel %vm2973, %v2922, %v1971
    %v2988 = vsel %vm2973, %v2923, %v1973
    %v2989 = vsel %vm2973, %v2924, %v1975
    %v2990 = vsel %vm2973, %v2925, %v1977
    %v2991 = vsel %vm2973, %v2926, %v1979
    %v2992 = vsel %vm2973, %v2927, %v1981
    %v2993 = vsel %vm2973, %v2928, %v1983
    %v2994 = vsel %vm2973, %v2929, %v1985
    %v2995 = vsel %vm2973, %v2930, %v1987
    %v2996 = vsel %vm2973, %v2931, %v1989
    %v2997 = vsel %vm2973, %v2932, %v1991
    %v2998 = vsel %vm2973, %v2933, %v1993
    %v2999 = vsel %vm2973, %v2934, %v1995
    %v3000 = vsel %vm2973, %v2935, %v1997
    %v3001 = vsel %vm2973, %v2936, %v1999
    %v3002 = vsel %vm2973, %v2937, %v2001
    %v3003 = vsel %vm2973, %v2938, %v2003
    %v3004 = vsel %vm2973, %v2939, %v2005
    %v3005 = vsel %vm2973, %v2940, %v2007
    %v3006 = vsel %vm2973, %v2941, %v2009
    %v3007 = vsel %vm2973, %v2942, %v2011
    %v3008 = vsel %vm2973, %v2943, %v2013
    %v3009 = vsel %vm2973, %v2944, %v2015
    %v3010 = vsel %vm2973, %v2945, %v2017
    %v3011 = vsel %vm2973, %v2946, %v2019
    %v3012 = vsel %vm2973, %v2947, %v2021
    %v3013 = vsel %vm2973, %v2948, %v2023
    %v3014 = vsel %vm2973, %v2949, %v2025
    %v3015 = vsel %vm2973, %v2950, %v2027
    %v3016 = vsel %vm2973, %v2951, %v2029
    %v3017 = vsel %vm2973, %v2952, %v2031
    %v3018 = vsel %vm2973, %v2953, %v2033
    %v3019 = vsel %vm2973, %v2954, %v2035
    %v3020 = vsel %vm2973, %v2955, %v2037
    %v3021 = vsel %vm2973, %v2956, %v2039
    %v3022 = vsel %vm2973, %v2957, %v2041
    %v3023 = vsel %vm2973, %v2958, %v2043
    %v3024 = vsel %vm2973, %v2959, %v2045
    %v3025 = vsel %vm2973, %v2960, %v2047
    %v3026 = vsel %vm2973, %v2961, %v2049
    %v3027 = vsel %vm2973, %v2962, %v2051
    %v3028 = vsel %vm2973, %v2963, %v2053
    %v3029 = vsel %vm2973, %v2964, %v2055
    %v3030 = vsel %vm2973, %v2965, %v2057
    %v3031 = vsel %vm2973, %v2966, %v2059
    %v3032 = vsel %vm2973, %v2967, %v2061
    %v3033 = vsel %vm2973, %v2968, %v2063
    %v3034 = vsel %vm2973, %v2969, %v2065
    %v3035 = vsel %vm2973, %v2970, %v2067
    %v3036 = vsel %vm2973, %v2971, %v2069
    %v3037 = vsel %vm2973, %v2972, %v2071
    %vm3038 = vcmask 228352
    %v3039 = vsel %vm3038, %v2974, %v2201
    %v3040 = vsel %vm3038, %v2975, %v2203
    %v3041 = vsel %vm3038, %v2976, %v2205
    %v3042 = vsel %vm3038, %v2977, %v2207
    %v3043 = vsel %vm3038, %v2978, %v2209
    %v3044 = vsel %vm3038, %v2979, %v2211
    %v3045 = vsel %vm3038, %v2980, %v2213
    %v3046 = vsel %vm3038, %v2981, %v2215
    %v3047 = vsel %vm3038, %v2982, %v2217
    %v3048 = vsel %vm3038, %v2983, %v2219
    %v3049 = vsel %vm3038, %v2984, %v2221
    %v3050 = vsel %vm3038, %v2985, %v2223
    %v3051 = vsel %vm3038, %v2986, %v2225
    %v3052 = vsel %vm3038, %v2987, %v2227
    %v3053 = vsel %vm3038, %v2988, %v2229
    %v3054 = vsel %vm3038, %v2989, %v2231
    %v3055 = vsel %vm3038, %v2990, %v2233
    %v3056 = vsel %vm3038, %v2991, %v2235
    %v3057 = vsel %vm3038, %v2992, %v2237
    %v3058 = vsel %vm3038, %v2993, %v2239
    %v3059 = vsel %vm3038, %v2994, %v2241
    %v3060 = vsel %vm3038, %v2995, %v2243
    %v3061 = vsel %vm3038, %v2996, %v2245
    %v3062 = vsel %vm3038, %v2997, %v2247
    %v3063 = vsel %vm3038, %v2998, %v2249
    %v3064 = vsel %vm3038, %v2999, %v2251
    %v3065 = vsel %vm3038, %v3000, %v2253
    %v3066 = vsel %vm3038, %v3001, %v2255
    %v3067 = vsel %vm3038, %v3002, %v2257
    %v3068 = vsel %vm3038, %v3003, %v2259
    %v3069 = vsel %vm3038, %v3004, %v2261
    %v3070 = vsel %vm3038, %v3005, %v2263
    %v3071 = vsel %vm3038, %v3006, %v2265
    %v3072 = vsel %vm3038, %v3007, %v2267
    %v3073 = vsel %vm3038, %v3008, %v2269
    %v3074 = vsel %vm3038, %v3009, %v2271
    %v3075 = vsel %vm3038, %v3010, %v2273
    %v3076 = vsel %vm3038, %v3011, %v2275
    %v3077 = vsel %vm3038, %v3012, %v2277
    %v3078 = vsel %vm3038, %v3013, %v2279
    %v3079 = vsel %vm3038, %v3014, %v2281
    %v3080 = vsel %vm3038, %v3015, %v2283
    %v3081 = vsel %vm3038, %v3016, %v2285
    %v3082 = vsel %vm3038, %v3017, %v2287
    %v3083 = vsel %vm3038, %v3018, %v2289
    %v3084 = vsel %vm3038, %v3019, %v2291
    %v3085 = vsel %vm3038, %v3020, %v2293
    %v3086 = vsel %vm3038, %v3021, %v2295
    %v3087 = vsel %vm3038, %v3022, %v2297
    %v3088 = vsel %vm3038, %v3023, %v2299
    %v3089 = vsel %vm3038, %v3024, %v2301
    %v3090 = vsel %vm3038, %v3025, %v2303
    %v3091 = vsel %vm3038, %v3026, %v2305
    %v3092 = vsel %vm3038, %v3027, %v2307
    %v3093 = vsel %vm3038, %v3028, %v2309
    %v3094 = vsel %vm3038, %v3029, %v2311
    %v3095 = vsel %vm3038, %v3030, %v2313
    %v3096 = vsel %vm3038, %v3031, %v2315
    %v3097 = vsel %vm3038, %v3032, %v2317
    %v3098 = vsel %vm3038, %v3033, %v2319
    %v3099 = vsel %vm3038, %v3034, %v2321
    %v3100 = vsel %vm3038, %v3035, %v2323
    %v3101 = vsel %vm3038, %v3036, %v2325
    %v3102 = vsel %vm3038, %v3037, %v2327
    %vm3103 = vcmask 261120
    %v3104 = vsel %vm3103, %v3039, %v2457
    %v3105 = vsel %vm3103, %v3040, %v2459
    %v3106 = vsel %vm3103, %v3041, %v2461
    %v3107 = vsel %vm3103, %v3042, %v2463
    %v3108 = vsel %vm3103, %v3043, %v2465
    %v3109 = vsel %vm3103, %v3044, %v2467
    %v3110 = vsel %vm3103, %v3045, %v2469
    %v3111 = vsel %vm3103, %v3046, %v2471
    %v3112 = vsel %vm3103, %v3047, %v2473
    %v3113 = vsel %vm3103, %v3048, %v2475
    %v3114 = vsel %vm3103, %v3049, %v2477
    %v3115 = vsel %vm3103, %v3050, %v2479
    %v3116 = vsel %vm3103, %v3051, %v2481
    %v3117 = vsel %vm3103, %v3052, %v2483
    %v3118 = vsel %vm3103, %v3053, %v2485
    %v3119 = vsel %vm3103, %v3054, %v2487
    %v3120 = vsel %vm3103, %v3055, %v2489
    %v3121 = vsel %vm3103, %v3056, %v2491
    %v3122 = vsel %vm3103, %v3057, %v2493
    %v3123 = vsel %vm3103, %v3058, %v2495
    %v3124 = vsel %vm3103, %v3059, %v2497
    %v3125 = vsel %vm3103, %v3060, %v2499
    %v3126 = vsel %vm3103, %v3061, %v2501
    %v3127 = vsel %vm3103, %v3062, %v2503
    %v3128 = vsel %vm3103, %v3063, %v2505
    %v3129 = vsel %vm3103, %v3064, %v2507
    %v3130 = vsel %vm3103, %v3065, %v2509
    %v3131 = vsel %vm3103, %v3066, %v2511
    %v3132 = vsel %vm3103, %v3067, %v2513
    %v3133 = vsel %vm3103, %v3068, %v2515
    %v3134 = vsel %vm3103, %v3069, %v2517
    %v3135 = vsel %vm3103, %v3070, %v2519
    %v3136 = vsel %vm3103, %v3071, %v2521
    %v3137 = vsel %vm3103, %v3072, %v2523
    %v3138 = vsel %vm3103, %v3073, %v2525
    %v3139 = vsel %vm3103, %v3074, %v2527
    %v3140 = vsel %vm3103, %v3075, %v2529
    %v3141 = vsel %vm3103, %v3076, %v2531
    %v3142 = vsel %vm3103, %v3077, %v2533
    %v3143 = vsel %vm3103, %v3078, %v2535
    %v3144 = vsel %vm3103, %v3079, %v2537
    %v3145 = vsel %vm3103, %v3080, %v2539
    %v3146 = vsel %vm3103, %v3081, %v2541
    %v3147 = vsel %vm3103, %v3082, %v2543
    %v3148 = vsel %vm3103, %v3083, %v2545
    %v3149 = vsel %vm3103, %v3084, %v2547
    %v3150 = vsel %vm3103, %v3085, %v2549
    %v3151 = vsel %vm3103, %v3086, %v2551
    %v3152 = vsel %vm3103, %v3087, %v2553
    %v3153 = vsel %vm3103, %v3088, %v2555
    %v3154 = vsel %vm3103, %v3089, %v2557
    %v3155 = vsel %vm3103, %v3090, %v2559
    %v3156 = vsel %vm3103, %v3091, %v2561
    %v3157 = vsel %vm3103, %v3092, %v2563
    %v3158 = vsel %vm3103, %v3093, %v2565
    %v3159 = vsel %vm3103, %v3094, %v2567
    %v3160 = vsel %vm3103, %v3095, %v2569
    %v3161 = vsel %vm3103, %v3096, %v2571
    %v3162 = vsel %vm3103, %v3097, %v2573
    %v3163 = vsel %vm3103, %v3098, %v2575
    %v3164 = vsel %vm3103, %v3099, %v2577
    %v3165 = vsel %vm3103, %v3100, %v2579
    %v3166 = vsel %vm3103, %v3101, %v2581
    %v3167 = vsel %vm3103, %v3102, %v2583
    %v3168 = vpack.c.bf16 %v3105, %v3104
    %v3169 = vpack.c.bf16 %v3107, %v3106
    %v3170 = vpack.c.bf16 %v3109, %v3108
    %v3171 = vpack.c.bf16 %v3111, %v3110
    %v3172 = vpack.c.bf16 %v3113, %v3112
    %v3173 = vpack.c.bf16 %v3115, %v3114
    %v3174 = vpack.c.bf16 %v3117, %v3116
    %v3175 = vpack.c.bf16 %v3119, %v3118
    %v3176 = vpack.c.bf16 %v3121, %v3120
    %v3177 = vpack.c.bf16 %v3123, %v3122
    %v3178 = vpack.c.bf16 %v3125, %v3124
    %v3179 = vpack.c.bf16 %v3127, %v3126
    %v3180 = vpack.c.bf16 %v3129, %v3128
    %v3181 = vpack.c.bf16 %v3131, %v3130
    %v3182 = vpack.c.bf16 %v3133, %v3132
    %v3183 = vpack.c.bf16 %v3135, %v3134
    %v3184 = vpack.c.bf16 %v3137, %v3136
    %v3185 = vpack.c.bf16 %v3139, %v3138
    %v3186 = vpack.c.bf16 %v3141, %v3140
    %v3187 = vpack.c.bf16 %v3143, %v3142
    %v3188 = vpack.c.bf16 %v3145, %v3144
    %v3189 = vpack.c.bf16 %v3147, %v3146
    %v3190 = vpack.c.bf16 %v3149, %v3148
    %v3191 = vpack.c.bf16 %v3151, %v3150
    %v3192 = vpack.c.bf16 %v3153, %v3152
    %v3193 = vpack.c.bf16 %v3155, %v3154
    %v3194 = vpack.c.bf16 %v3157, %v3156
    %v3195 = vpack.c.bf16 %v3159, %v3158
    %v3196 = vpack.c.bf16 %v3161, %v3160
    %v3197 = vpack.c.bf16 %v3163, %v3162
    %v3198 = vpack.c.bf16 %v3165, %v3164
    %v3199 = vpack.c.bf16 %v3167, %v3166
    %v3200 = vld [vmem:[%s1] sm:$0xf]
    %v3201 = vld [vmem:[%s1 + $0x4] sm:$0xf]
    %v3202 = vld [vmem:[%s1 + $0x8] sm:$0xf]
    %v3203 = vld [vmem:[%s1 + $0xc] sm:$0xf]
    %v3204 = vld [vmem:[%s1 + $0x10] sm:$0x3]
    %v3205 = vld [vmem:[%s2] sm:$0x1]
    %v3207 = vperm.slane %v3205, 0
    %v3214 = vunpack.c.l.b16 %v3200
    %v3215 = vunpack.c.l.b16 %v3201
    %v3216 = vunpack.c.l.b16 %v3202
    %v3217 = vunpack.c.l.b16 %v3203
    %v3218 = vunpack.c.l.b16 %v3204
    %v3219 = vpack.c.b16 %v3215, %v3214
    %v3220 = vpack.c.b16 %v3217, %v3216
    %v3221 = vpack.c.b16 %v3218, %v3218
    %vm3224 = vcmask 293888
    %v3226 = vsel %vm3224, %v3168, 0
    %v3229 = vsel %vm3224, %v3169, 0
    %v3232 = vsel %vm3224, %v3170, 0
    %v3235 = vsel %vm3224, %v3171, 0
    %v3238 = vsel %vm3224, %v3172, 0
    %v3241 = vsel %vm3224, %v3173, 0
    %v3244 = vsel %vm3224, %v3174, 0
    %v3247 = vsel %vm3224, %v3175, 0
    %v3250 = vsel %vm3224, %v3176, 0
    %v3253 = vsel %vm3224, %v3177, 0
    %v3256 = vsel %vm3224, %v3178, 0
    %v3259 = vsel %vm3224, %v3179, 0
    %v3262 = vsel %vm3224, %v3180, 0
    %v3265 = vsel %vm3224, %v3181, 0
    %v3268 = vsel %vm3224, %v3182, 0
    %v3271 = vsel %vm3224, %v3183, 0
    %v3274 = vsel %vm3224, %v3184, 0
    %v3277 = vsel %vm3224, %v3185, 0
    %v3280 = vsel %vm3224, %v3186, 0
    %v3283 = vsel %vm3224, %v3187, 0
    %v3286 = vsel %vm3224, %v3188, 0
    %v3289 = vsel %vm3224, %v3189, 0
    %v3292 = vsel %vm3224, %v3190, 0
    %v3295 = vsel %vm3224, %v3191, 0
    %v3298 = vsel %vm3224, %v3192, 0
    %v3301 = vsel %vm3224, %v3193, 0
    %v3304 = vsel %vm3224, %v3194, 0
    %v3307 = vsel %vm3224, %v3195, 0
    %v3310 = vsel %vm3224, %v3196, 0
    %v3313 = vsel %vm3224, %v3197, 0
    %v3316 = vsel %vm3224, %v3198, 0
    %v3319 = vsel %vm3224, %v3199, 0
    %vm3321 = vcmask 1041408
    %v3323 = vsel %vm3321, %v3221, 0
    %3325 = vmatpush.bf16.msra.mxu0 0
    %3326 = vmatpush.bf16.msra.mxu0 0
    %3327 = vmatpush.bf16.msra.mxu0 0
    %3328 = vmatpush.bf16.msra.mxu0 0
    %3329 = vmatpush.bf16.msra.mxu0 0
    %3330 = vmatpush.bf16.msra.mxu0 %v3323
    %3331 = vmatpush.bf16.msra.mxu0 %v3220
    %3332 = vmatpush.bf16.msra.mxu0 %v3219
    %3333 = vmatmul.bf16.gmra.mxu0 %v3226
    %v3334 = vpop.f32.mrf.mxu0
    %v3335 = vadd.f32 %v3207, %v3334
    %v3336 = vpop.f32.mrf.mxu0
    %v3337 = vadd.f32 %v3207, %v3336
    %3338 = vmatmul.bf16.gmra.mxu0 %v3229
    %v3339 = vpop.f32.mrf.mxu0
    %v3340 = vadd.f32 %v3207, %v3339
    %v3341 = vpop.f32.mrf.mxu0
    %v3342 = vadd.f32 %v3207, %v3341
    %3343 = vmatmul.bf16.gmra.mxu0 %v3232
    %v3344 = vpop.f32.mrf.mxu0
    %v3345 = vadd.f32 %v3207, %v3344
    %v3346 = vpop.f32.mrf.mxu0
    %v3347 = vadd.f32 %v3207, %v3346
    %3348 = vmatmul.bf16.gmra.mxu0 %v3235
    %v3349 = vpop.f32.mrf.mxu0
    %v3350 = vadd.f32 %v3207, %v3349
    %v3351 = vpop.f32.mrf.mxu0
    %v3352 = vadd.f32 %v3207, %v3351
    %3353 = vmatmul.bf16.gmra.mxu0 %v3238
    %v3354 = vpop.f32.mrf.mxu0
    %v3355 = vadd.f32 %v3207, %v3354
    %v3356 = vpop.f32.mrf.mxu0
    %v3357 = vadd.f32 %v3207, %v3356
    %3358 = vmatmul.bf16.gmra.mxu0 %v3241
    %v3359 = vpop.f32.mrf.mxu0
    %v3360 = vadd.f32 %v3207, %v3359
    %v3361 = vpop.f32.mrf.mxu0
    %v3362 = vadd.f32 %v3207, %v3361
    %3363 = vmatmul.bf16.gmra.mxu0 %v3244
    %v3364 = vpop.f32.mrf.mxu0
    %v3365 = vadd.f32 %v3207, %v3364
    %v3366 = vpop.f32.mrf.mxu0
    %v3367 = vadd.f32 %v3207, %v3366
    %3368 = vmatmul.bf16.gmra.mxu0 %v3247
    %v3369 = vpop.f32.mrf.mxu0
    %v3370 = vadd.f32 %v3207, %v3369
    %v3371 = vpop.f32.mrf.mxu0
    %v3372 = vadd.f32 %v3207, %v3371
    %3373 = vmatmul.bf16.gmra.mxu0 %v3250
    %v3374 = vpop.f32.mrf.mxu0
    %v3375 = vadd.f32 %v3207, %v3374
    %v3376 = vpop.f32.mrf.mxu0
    %v3377 = vadd.f32 %v3207, %v3376
    %3378 = vmatmul.bf16.gmra.mxu0 %v3253
    %v3379 = vpop.f32.mrf.mxu0
    %v3380 = vadd.f32 %v3207, %v3379
    %v3381 = vpop.f32.mrf.mxu0
    %v3382 = vadd.f32 %v3207, %v3381
    %3383 = vmatmul.bf16.gmra.mxu0 %v3256
    %v3384 = vpop.f32.mrf.mxu0
    %v3385 = vadd.f32 %v3207, %v3384
    %v3386 = vpop.f32.mrf.mxu0
    %v3387 = vadd.f32 %v3207, %v3386
    %3388 = vmatmul.bf16.gmra.mxu0 %v3259
    %v3389 = vpop.f32.mrf.mxu0
    %v3390 = vadd.f32 %v3207, %v3389
    %v3391 = vpop.f32.mrf.mxu0
    %v3392 = vadd.f32 %v3207, %v3391
    %3393 = vmatmul.bf16.gmra.mxu0 %v3262
    %v3394 = vpop.f32.mrf.mxu0
    %v3395 = vadd.f32 %v3207, %v3394
    %v3396 = vpop.f32.mrf.mxu0
    %v3397 = vadd.f32 %v3207, %v3396
    %3398 = vmatmul.bf16.gmra.mxu0 %v3265
    %v3399 = vpop.f32.mrf.mxu0
    %v3400 = vadd.f32 %v3207, %v3399
    %v3401 = vpop.f32.mrf.mxu0
    %v3402 = vadd.f32 %v3207, %v3401
    %3403 = vmatmul.bf16.gmra.mxu0 %v3268
    %v3404 = vpop.f32.mrf.mxu0
    %v3405 = vadd.f32 %v3207, %v3404
    %v3406 = vpop.f32.mrf.mxu0
    %v3407 = vadd.f32 %v3207, %v3406
    %3408 = vmatmul.bf16.gmra.mxu0 %v3271
    %v3409 = vpop.f32.mrf.mxu0
    %v3410 = vadd.f32 %v3207, %v3409
    %v3411 = vpop.f32.mrf.mxu0
    %v3412 = vadd.f32 %v3207, %v3411
    %3413 = vmatmul.bf16.gmra.mxu0 %v3274
    %v3414 = vpop.f32.mrf.mxu0
    %v3415 = vadd.f32 %v3207, %v3414
    %v3416 = vpop.f32.mrf.mxu0
    %v3417 = vadd.f32 %v3207, %v3416
    %3418 = vmatmul.bf16.gmra.mxu0 %v3277
    %v3419 = vpop.f32.mrf.mxu0
    %v3420 = vadd.f32 %v3207, %v3419
    %v3421 = vpop.f32.mrf.mxu0
    %v3422 = vadd.f32 %v3207, %v3421
    %3423 = vmatmul.bf16.gmra.mxu0 %v3280
    %v3424 = vpop.f32.mrf.mxu0
    %v3425 = vadd.f32 %v3207, %v3424
    %v3426 = vpop.f32.mrf.mxu0
    %v3427 = vadd.f32 %v3207, %v3426
    %3428 = vmatmul.bf16.gmra.mxu0 %v3283
    %v3429 = vpop.f32.mrf.mxu0
    %v3430 = vadd.f32 %v3207, %v3429
    %v3431 = vpop.f32.mrf.mxu0
    %v3432 = vadd.f32 %v3207, %v3431
    %3433 = vmatmul.bf16.gmra.mxu0 %v3286
    %v3434 = vpop.f32.mrf.mxu0
    %v3435 = vadd.f32 %v3207, %v3434
    %v3436 = vpop.f32.mrf.mxu0
    %v3437 = vadd.f32 %v3207, %v3436
    %3438 = vmatmul.bf16.gmra.mxu0 %v3289
    %v3439 = vpop.f32.mrf.mxu0
    %v3440 = vadd.f32 %v3207, %v3439
    %v3441 = vpop.f32.mrf.mxu0
    %v3442 = vadd.f32 %v3207, %v3441
    %3443 = vmatmul.bf16.gmra.mxu0 %v3292
    %v3444 = vpop.f32.mrf.mxu0
    %v3445 = vadd.f32 %v3207, %v3444
    %v3446 = vpop.f32.mrf.mxu0
    %v3447 = vadd.f32 %v3207, %v3446
    %3448 = vmatmul.bf16.gmra.mxu0 %v3295
    %v3449 = vpop.f32.mrf.mxu0
    %v3450 = vadd.f32 %v3207, %v3449
    %v3451 = vpop.f32.mrf.mxu0
    %v3452 = vadd.f32 %v3207, %v3451
    %3453 = vmatmul.bf16.gmra.mxu0 %v3298
    %v3454 = vpop.f32.mrf.mxu0
    %v3455 = vadd.f32 %v3207, %v3454
    %v3456 = vpop.f32.mrf.mxu0
    %v3457 = vadd.f32 %v3207, %v3456
    %3458 = vmatmul.bf16.gmra.mxu0 %v3301
    %v3459 = vpop.f32.mrf.mxu0
    %v3460 = vadd.f32 %v3207, %v3459
    %v3461 = vpop.f32.mrf.mxu0
    %v3462 = vadd.f32 %v3207, %v3461
    %3463 = vmatmul.bf16.gmra.mxu0 %v3304
    %v3464 = vpop.f32.mrf.mxu0
    %v3465 = vadd.f32 %v3207, %v3464
    %v3466 = vpop.f32.mrf.mxu0
    %v3467 = vadd.f32 %v3207, %v3466
    %3468 = vmatmul.bf16.gmra.mxu0 %v3307
    %v3469 = vpop.f32.mrf.mxu0
    %v3470 = vadd.f32 %v3207, %v3469
    %v3471 = vpop.f32.mrf.mxu0
    %v3472 = vadd.f32 %v3207, %v3471
    %3473 = vmatmul.bf16.gmra.mxu0 %v3310
    %v3474 = vpop.f32.mrf.mxu0
    %v3475 = vadd.f32 %v3207, %v3474
    %v3476 = vpop.f32.mrf.mxu0
    %v3477 = vadd.f32 %v3207, %v3476
    %3478 = vmatmul.bf16.gmra.mxu0 %v3313
    %v3479 = vpop.f32.mrf.mxu0
    %v3480 = vadd.f32 %v3207, %v3479
    %v3481 = vpop.f32.mrf.mxu0
    %v3482 = vadd.f32 %v3207, %v3481
    %3483 = vmatmul.bf16.gmra.mxu0 %v3316
    %v3484 = vpop.f32.mrf.mxu0
    %v3485 = vadd.f32 %v3207, %v3484
    %v3486 = vpop.f32.mrf.mxu0
    %v3487 = vadd.f32 %v3207, %v3486
    %3488 = vmatmul.bf16.gmra.mxu0 %v3319
    %v3489 = vpop.f32.mrf.mxu0
    %v3490 = vadd.f32 %v3207, %v3489
    %v3491 = vpop.f32.mrf.mxu0
    %v3492 = vadd.f32 %v3207, %v3491
    %3493 = vdwg.mxu0
    %v3494 = vmax.f32 %v3335, 0.0
    %v3495 = vmax.f32 %v3337, 0.0
    %v3496 = vmax.f32 %v3340, 0.0
    %v3497 = vmax.f32 %v3342, 0.0
    %v3498 = vmax.f32 %v3345, 0.0
    %v3499 = vmax.f32 %v3347, 0.0
    %v3500 = vmax.f32 %v3350, 0.0
    %v3501 = vmax.f32 %v3352, 0.0
    %v3502 = vmax.f32 %v3355, 0.0
    %v3503 = vmax.f32 %v3357, 0.0
    %v3504 = vmax.f32 %v3360, 0.0
    %v3505 = vmax.f32 %v3362, 0.0
    %v3506 = vmax.f32 %v3365, 0.0
    %v3507 = vmax.f32 %v3367, 0.0
    %v3508 = vmax.f32 %v3370, 0.0
    %v3509 = vmax.f32 %v3372, 0.0
    %v3510 = vmax.f32 %v3375, 0.0
    %v3511 = vmax.f32 %v3377, 0.0
    %v3512 = vmax.f32 %v3380, 0.0
    %v3513 = vmax.f32 %v3382, 0.0
    %v3514 = vmax.f32 %v3385, 0.0
    %v3515 = vmax.f32 %v3387, 0.0
    %v3516 = vmax.f32 %v3390, 0.0
    %v3517 = vmax.f32 %v3392, 0.0
    %v3518 = vmax.f32 %v3395, 0.0
    %v3519 = vmax.f32 %v3397, 0.0
    %v3520 = vmax.f32 %v3400, 0.0
    %v3521 = vmax.f32 %v3402, 0.0
    %v3522 = vmax.f32 %v3405, 0.0
    %v3523 = vmax.f32 %v3407, 0.0
    %v3524 = vmax.f32 %v3410, 0.0
    %v3525 = vmax.f32 %v3412, 0.0
    %v3526 = vmax.f32 %v3415, 0.0
    %v3527 = vmax.f32 %v3417, 0.0
    %v3528 = vmax.f32 %v3420, 0.0
    %v3529 = vmax.f32 %v3422, 0.0
    %v3530 = vmax.f32 %v3425, 0.0
    %v3531 = vmax.f32 %v3427, 0.0
    %v3532 = vmax.f32 %v3430, 0.0
    %v3533 = vmax.f32 %v3432, 0.0
    %v3534 = vmax.f32 %v3435, 0.0
    %v3535 = vmax.f32 %v3437, 0.0
    %v3536 = vmax.f32 %v3440, 0.0
    %v3537 = vmax.f32 %v3442, 0.0
    %v3538 = vmax.f32 %v3445, 0.0
    %v3539 = vmax.f32 %v3447, 0.0
    %v3540 = vmax.f32 %v3450, 0.0
    %v3541 = vmax.f32 %v3452, 0.0
    %v3542 = vmax.f32 %v3455, 0.0
    %v3543 = vmax.f32 %v3457, 0.0
    %v3544 = vmax.f32 %v3460, 0.0
    %v3545 = vmax.f32 %v3462, 0.0
    %v3546 = vmax.f32 %v3465, 0.0
    %v3547 = vmax.f32 %v3467, 0.0
    %v3548 = vmax.f32 %v3470, 0.0
    %v3549 = vmax.f32 %v3472, 0.0
    %v3550 = vmax.f32 %v3475, 0.0
    %v3551 = vmax.f32 %v3477, 0.0
    %v3552 = vmax.f32 %v3480, 0.0
    %v3553 = vmax.f32 %v3482, 0.0
    %v3554 = vmax.f32 %v3485, 0.0
    %v3555 = vmax.f32 %v3487, 0.0
    %v3556 = vmax.f32 %v3490, 0.0
    %v3557 = vmax.f32 %v3492, 0.0
    %3558 = vst.msk [vmem:[#allocation2] sm:$0xff] %vm3103, 0.0
    %3559 = vst.msk [vmem:[#allocation2 + $0x8] sm:$0xff] %vm3103, 0.0
    %vm3560 = vcmask 254976
    %3561 = vst.msk [vmem:[#allocation2 + $0x10] sm:$0x3] %vm3560, 0.0
    %3562 = vst.msk [vmem:[#allocation2 + $0x18] sm:$0xff] %vm3103, 0.0
    %3563 = vst.msk [vmem:[#allocation2 + $0x20] sm:$0xff] %vm3103, 0.0
    %3564 = vst.msk [vmem:[#allocation2 + $0x28] sm:$0x3] %vm3560, 0.0
    %3565 = vst.msk [vmem:[#allocation2 + $0x30] sm:$0xff] %vm3103, 0.0
    %3566 = vst.msk [vmem:[#allocation2 + $0x38] sm:$0xff] %vm3103, 0.0
    %3567 = vst.msk [vmem:[#allocation2 + $0x40] sm:$0x3] %vm3560, 0.0
    %3568 = vst.msk [vmem:[#allocation2 + $0x48] sm:$0xff] %vm3103, 0.0
    %3569 = vst.msk [vmem:[#allocation2 + $0x50] sm:$0xff] %vm3103, 0.0
    %3570 = vst.msk [vmem:[#allocation2 + $0x58] sm:$0x3] %vm3560, 0.0
    %3571 = vst.msk [vmem:[#allocation2 + $0x60] sm:$0xff] %vm3103, 0.0
    %3572 = vst.msk [vmem:[#allocation2 + $0x68] sm:$0xff] %vm3103, 0.0
    %3573 = vst.msk [vmem:[#allocation2 + $0x70] sm:$0x3] %vm3560, 0.0
    %3574 = vst.msk [vmem:[#allocation2 + $0x78] sm:$0xff] %vm3103, 0.0
    %3575 = vst.msk [vmem:[#allocation2 + $0x80] sm:$0xff] %vm3103, 0.0
    %3576 = vst.msk [vmem:[#allocation2 + $0x88] sm:$0x3] %vm3560, 0.0
    %3577 = vst.msk [vmem:[#allocation2 + $0x90] sm:$0xff] %vm3103, 0.0
    %3578 = vst.msk [vmem:[#allocation2 + $0x98] sm:$0xff] %vm3103, 0.0
    %3579 = vst.msk [vmem:[#allocation2 + $0xa0] sm:$0x3] %vm3560, 0.0
    %3580 = vst.msk [vmem:[#allocation2 + $0xa8] sm:$0xff] %vm3103, 0.0
    %3581 = vst.msk [vmem:[#allocation2 + $0xb0] sm:$0xff] %vm3103, 0.0
    %3582 = vst.msk [vmem:[#allocation2 + $0xb8] sm:$0x3] %vm3560, 0.0
    %3583 = vst.msk [vmem:[#allocation2 + $0xc0] sm:$0xff] %vm3103, 0.0
    %3584 = vst.msk [vmem:[#allocation2 + $0xc8] sm:$0xff] %vm3103, 0.0
    %3585 = vst.msk [vmem:[#allocation2 + $0xd0] sm:$0x3] %vm3560, 0.0
    %3586 = vst.msk [vmem:[#allocation2 + $0xd8] sm:$0xff] %vm3103, 0.0
    %3587 = vst.msk [vmem:[#allocation2 + $0xe0] sm:$0xff] %vm3103, 0.0
    %3588 = vst.msk [vmem:[#allocation2 + $0xe8] sm:$0x3] %vm3560, 0.0
    %3589 = vst.msk [vmem:[#allocation2 + $0xf0] sm:$0xff] %vm3103, 0.0
    %3590 = vst.msk [vmem:[#allocation2 + $0xf8] sm:$0xff] %vm3103, 0.0
    %3591 = vst.msk [vmem:[#allocation2 + $0x100] sm:$0x3] %vm3560, 0.0
    %3592 = vst.msk [vmem:[#allocation2 + $0x108] sm:$0xff] %vm3103, 0.0
    %3593 = vst.msk [vmem:[#allocation2 + $0x110] sm:$0xff] %vm3103, 0.0
    %3594 = vst.msk [vmem:[#allocation2 + $0x118] sm:$0x3] %vm3560, 0.0
    %3595 = vst.msk [vmem:[#allocation2 + $0x120] sm:$0xff] %vm3103, 0.0
    %3596 = vst.msk [vmem:[#allocation2 + $0x128] sm:$0xff] %vm3103, 0.0
    %3597 = vst.msk [vmem:[#allocation2 + $0x130] sm:$0x3] %vm3560, 0.0
    %3598 = vst.msk [vmem:[#allocation2 + $0x138] sm:$0xff] %vm3103, 0.0
    %3599 = vst.msk [vmem:[#allocation2 + $0x140] sm:$0xff] %vm3103, 0.0
    %3600 = vst.msk [vmem:[#allocation2 + $0x148] sm:$0x3] %vm3560, 0.0
    %3601 = vst.msk [vmem:[#allocation2 + $0x150] sm:$0xff] %vm3103, 0.0
    %3602 = vst.msk [vmem:[#allocation2 + $0x158] sm:$0xff] %vm3103, 0.0
    %3603 = vst.msk [vmem:[#allocation2 + $0x160] sm:$0x3] %vm3560, 0.0
    %3604 = vst.msk [vmem:[#allocation2 + $0x168] sm:$0xff] %vm3103, 0.0
    %3605 = vst.msk [vmem:[#allocation2 + $0x170] sm:$0xff] %vm3103, 0.0
    %3606 = vst.msk [vmem:[#allocation2 + $0x178] sm:$0x3] %vm3560, 0.0
    %3607 = vst.msk [vmem:[#allocation2 + $0x180] sm:$0xff] %vm3103, 0.0
    %3608 = vst.msk [vmem:[#allocation2 + $0x188] sm:$0xff] %vm3103, 0.0
    %3609 = vst.msk [vmem:[#allocation2 + $0x190] sm:$0x3] %vm3560, 0.0
    %3610 = vst.msk [vmem:[#allocation2 + $0x198] sm:$0xff] %vm3103, 0.0
    %3611 = vst.msk [vmem:[#allocation2 + $0x1a0] sm:$0xff] %vm3103, 0.0
    %3612 = vst.msk [vmem:[#allocation2 + $0x1a8] sm:$0x3] %vm3560, 0.0
    %3613 = vst.msk [vmem:[#allocation2 + $0x1b0] sm:$0xff] %vm3103, 0.0
    %3614 = vst.msk [vmem:[#allocation2 + $0x1b8] sm:$0xff] %vm3103, 0.0
    %3615 = vst.msk [vmem:[#allocation2 + $0x1c0] sm:$0x3] %vm3560, 0.0
    %3616 = vst.msk [vmem:[#allocation2 + $0x1c8] sm:$0xff] %vm3103, 0.0
    %3617 = vst.msk [vmem:[#allocation2 + $0x1d0] sm:$0xff] %vm3103, 0.0
    %3618 = vst.msk [vmem:[#allocation2 + $0x1d8] sm:$0x3] %vm3560, 0.0
    %3619 = vst.msk [vmem:[#allocation2 + $0x1e0] sm:$0xff] %vm3103, 0.0
    %3620 = vst.msk [vmem:[#allocation2 + $0x1e8] sm:$0xff] %vm3103, 0.0
    %3621 = vst.msk [vmem:[#allocation2 + $0x1f0] sm:$0x3] %vm3560, 0.0
    %3622 = vst.msk [vmem:[#allocation2 + $0x1f8] sm:$0xff] %vm3103, 0.0
    %3623 = vst.msk [vmem:[#allocation2 + $0x200] sm:$0xff] %vm3103, 0.0
    %3624 = vst.msk [vmem:[#allocation2 + $0x208] sm:$0x3] %vm3560, 0.0
    %3625 = vst.msk [vmem:[#allocation2 + $0x210] sm:$0xff] %vm3103, 0.0
    %3626 = vst.msk [vmem:[#allocation2 + $0x218] sm:$0xff] %vm3103, 0.0
    %3627 = vst.msk [vmem:[#allocation2 + $0x220] sm:$0x3] %vm3560, 0.0
    %3628 = vst.msk [vmem:[#allocation2 + $0x228] sm:$0xff] %vm3103, 0.0
    %3629 = vst.msk [vmem:[#allocation2 + $0x230] sm:$0xff] %vm3103, 0.0
    %3630 = vst.msk [vmem:[#allocation2 + $0x238] sm:$0x3] %vm3560, 0.0
    %3631 = vst.msk [vmem:[#allocation2 + $0x240] sm:$0xff] %vm3103, 0.0
    %3632 = vst.msk [vmem:[#allocation2 + $0x248] sm:$0xff] %vm3103, 0.0
    %3633 = vst.msk [vmem:[#allocation2 + $0x250] sm:$0x3] %vm3560, 0.0
    %3634 = vst.msk [vmem:[#allocation2 + $0x258] sm:$0xff] %vm3103, 0.0
    %3635 = vst.msk [vmem:[#allocation2 + $0x260] sm:$0xff] %vm3103, 0.0
    %3636 = vst.msk [vmem:[#allocation2 + $0x268] sm:$0x3] %vm3560, 0.0
    %3637 = vst.msk [vmem:[#allocation2 + $0x270] sm:$0xff] %vm3103, 0.0
    %3638 = vst.msk [vmem:[#allocation2 + $0x278] sm:$0xff] %vm3103, 0.0
    %3639 = vst.msk [vmem:[#allocation2 + $0x280] sm:$0x3] %vm3560, 0.0
    %3640 = vst.msk [vmem:[#allocation2 + $0x288] sm:$0xff] %vm3103, 0.0
    %3641 = vst.msk [vmem:[#allocation2 + $0x290] sm:$0xff] %vm3103, 0.0
    %3642 = vst.msk [vmem:[#allocation2 + $0x298] sm:$0x3] %vm3560, 0.0
    %3643 = vst.msk [vmem:[#allocation2 + $0x2a0] sm:$0xff] %vm3103, 0.0
    %3644 = vst.msk [vmem:[#allocation2 + $0x2a8] sm:$0xff] %vm3103, 0.0
    %3645 = vst.msk [vmem:[#allocation2 + $0x2b0] sm:$0x3] %vm3560, 0.0
    %3646 = vst.msk [vmem:[#allocation2 + $0x2b8] sm:$0xff] %vm3103, 0.0
    %3647 = vst.msk [vmem:[#allocation2 + $0x2c0] sm:$0xff] %vm3103, 0.0
    %3648 = vst.msk [vmem:[#allocation2 + $0x2c8] sm:$0x3] %vm3560, 0.0
    %3649 = vst.msk [vmem:[#allocation2 + $0x2d0] sm:$0xff] %vm3103, 0.0
    %3650 = vst.msk [vmem:[#allocation2 + $0x2d8] sm:$0xff] %vm3103, 0.0
    %3651 = vst.msk [vmem:[#allocation2 + $0x2e0] sm:$0x3] %vm3560, 0.0
    %3652 = vst.msk [vmem:[#allocation2 + $0x2e8] sm:$0xff] %vm3103, 0.0
    %3653 = vst.msk [vmem:[#allocation2 + $0x2f0] sm:$0xff] %vm3103, 0.0
    %3654 = vst.msk [vmem:[#allocation2 + $0x2f8] sm:$0x3] %vm3560, 0.0
    %3655 = vst.msk [vmem:[#allocation2 + $0x300] sm:$0xff] %vm3103, 0.0
    %3656 = vst.msk [vmem:[#allocation2 + $0x308] sm:$0xff] %vm3103, 0.0
    %3657 = vst.msk [vmem:[#allocation2 + $0x310] sm:$0x3] %vm3560, 0.0
    %3658 = vst.msk [vmem:[#allocation2 + $0x318] sm:$0xff] %vm3103, 0.0
    %3659 = vst.msk [vmem:[#allocation2 + $0x320] sm:$0xff] %vm3103, 0.0
    %3660 = vst.msk [vmem:[#allocation2 + $0x328] sm:$0x3] %vm3560, 0.0
    %3661 = vst.msk [vmem:[#allocation2 + $0x330] sm:$0xff] %vm3103, 0.0
    %3662 = vst.msk [vmem:[#allocation2 + $0x338] sm:$0xff] %vm3103, 0.0
    %3663 = vst.msk [vmem:[#allocation2 + $0x340] sm:$0x3] %vm3560, 0.0
    %3664 = vst.msk [vmem:[#allocation2 + $0x348] sm:$0xff] %vm3103, 0.0
    %3665 = vst.msk [vmem:[#allocation2 + $0x350] sm:$0xff] %vm3103, 0.0
    %3666 = vst.msk [vmem:[#allocation2 + $0x358] sm:$0x3] %vm3560, 0.0
    %s3667 = scalar_lea.vmem [#allocation2], 24
    %3668 = vst.msk [vmem:[%s3667 + $0x1] sm:$0xff] %vm3103, %v3494
    %3669 = vst.msk [vmem:[%s3667 + $0x9] sm:$0xff] %vm3103, %v3495
    %3670 = vst.msk [vmem:[%s3667 + $0x19] sm:$0xff] %vm3103, %v3496
    %3671 = vst.msk [vmem:[%s3667 + $0x21] sm:$0xff] %vm3103, %v3497
    %3672 = vst.msk [vmem:[%s3667 + $0x31] sm:$0xff] %vm3103, %v3498
    %3673 = vst.msk [vmem:[%s3667 + $0x39] sm:$0xff] %vm3103, %v3499
    %3674 = vst.msk [vmem:[%s3667 + $0x49] sm:$0xff] %vm3103, %v3500
    %3675 = vst.msk [vmem:[%s3667 + $0x51] sm:$0xff] %vm3103, %v3501
    %3676 = vst.msk [vmem:[%s3667 + $0x61] sm:$0xff] %vm3103, %v3502
    %3677 = vst.msk [vmem:[%s3667 + $0x69] sm:$0xff] %vm3103, %v3503
    %3678 = vst.msk [vmem:[%s3667 + $0x79] sm:$0xff] %vm3103, %v3504
    %3679 = vst.msk [vmem:[%s3667 + $0x81] sm:$0xff] %vm3103, %v3505
    %3680 = vst.msk [vmem:[%s3667 + $0x91] sm:$0xff] %vm3103, %v3506
    %3681 = vst.msk [vmem:[%s3667 + $0x99] sm:$0xff] %vm3103, %v3507
    %3682 = vst.msk [vmem:[%s3667 + $0xa9] sm:$0xff] %vm3103, %v3508
    %3683 = vst.msk [vmem:[%s3667 + $0xb1] sm:$0xff] %vm3103, %v3509
    %3684 = vst.msk [vmem:[%s3667 + $0xc1] sm:$0xff] %vm3103, %v3510
    %3685 = vst.msk [vmem:[%s3667 + $0xc9] sm:$0xff] %vm3103, %v3511
    %3686 = vst.msk [vmem:[%s3667 + $0xd9] sm:$0xff] %vm3103, %v3512
    %3687 = vst.msk [vmem:[%s3667 + $0xe1] sm:$0xff] %vm3103, %v3513
    %3688 = vst.msk [vmem:[%s3667 + $0xf1] sm:$0xff] %vm3103, %v3514
    %3689 = vst.msk [vmem:[%s3667 + $0xf9] sm:$0xff] %vm3103, %v3515
    %3690 = vst.msk [vmem:[%s3667 + $0x109] sm:$0xff] %vm3103, %v3516
    %3691 = vst.msk [vmem:[%s3667 + $0x111] sm:$0xff] %vm3103, %v3517
    %3692 = vst.msk [vmem:[%s3667 + $0x121] sm:$0xff] %vm3103, %v3518
    %3693 = vst.msk [vmem:[%s3667 + $0x129] sm:$0xff] %vm3103, %v3519
    %3694 = vst.msk [vmem:[%s3667 + $0x139] sm:$0xff] %vm3103, %v3520
    %3695 = vst.msk [vmem:[%s3667 + $0x141] sm:$0xff] %vm3103, %v3521
    %3696 = vst.msk [vmem:[%s3667 + $0x151] sm:$0xff] %vm3103, %v3522
    %3697 = vst.msk [vmem:[%s3667 + $0x159] sm:$0xff] %vm3103, %v3523
    %3698 = vst.msk [vmem:[%s3667 + $0x169] sm:$0xff] %vm3103, %v3524
    %3699 = vst.msk [vmem:[%s3667 + $0x171] sm:$0xff] %vm3103, %v3525
    %3700 = vst.msk [vmem:[%s3667 + $0x1b1] sm:$0xff] %vm3103, %v3526
    %3701 = vst.msk [vmem:[%s3667 + $0x1b9] sm:$0xff] %vm3103, %v3527
    %3702 = vst.msk [vmem:[%s3667 + $0x1c9] sm:$0xff] %vm3103, %v3528
    %3703 = vst.msk [vmem:[%s3667 + $0x1d1] sm:$0xff] %vm3103, %v3529
    %3704 = vst.msk [vmem:[%s3667 + $0x1e1] sm:$0xff] %vm3103, %v3530
    %3705 = vst.msk [vmem:[%s3667 + $0x1e9] sm:$0xff] %vm3103, %v3531
    %3706 = vst.msk [vmem:[%s3667 + $0x1f9] sm:$0xff] %vm3103, %v3532
    %3707 = vst.msk [vmem:[%s3667 + $0x201] sm:$0xff] %vm3103, %v3533
    %3708 = vst.msk [vmem:[%s3667 + $0x211] sm:$0xff] %vm3103, %v3534
    %3709 = vst.msk [vmem:[%s3667 + $0x219] sm:$0xff] %vm3103, %v3535
    %3710 = vst.msk [vmem:[%s3667 + $0x229] sm:$0xff] %vm3103, %v3536
    %3711 = vst.msk [vmem:[%s3667 + $0x231] sm:$0xff] %vm3103, %v3537
    %3712 = vst.msk [vmem:[%s3667 + $0x241] sm:$0xff] %vm3103, %v3538
    %3713 = vst.msk [vmem:[%s3667 + $0x249] sm:$0xff] %vm3103, %v3539
    %3714 = vst.msk [vmem:[%s3667 + $0x259] sm:$0xff] %vm3103, %v3540
    %3715 = vst.msk [vmem:[%s3667 + $0x261] sm:$0xff] %vm3103, %v3541
    %3716 = vst.msk [vmem:[%s3667 + $0x271] sm:$0xff] %vm3103, %v3542
    %3717 = vst.msk [vmem:[%s3667 + $0x279] sm:$0xff] %vm3103, %v3543
    %3718 = vst.msk [vmem:[%s3667 + $0x289] sm:$0xff] %vm3103, %v3544
    %3719 = vst.msk [vmem:[%s3667 + $0x291] sm:$0xff] %vm3103, %v3545
    %3720 = vst.msk [vmem:[%s3667 + $0x2a1] sm:$0xff] %vm3103, %v3546
    %3721 = vst.msk [vmem:[%s3667 + $0x2a9] sm:$0xff] %vm3103, %v3547
    %3722 = vst.msk [vmem:[%s3667 + $0x2b9] sm:$0xff] %vm3103, %v3548
    %3723 = vst.msk [vmem:[%s3667 + $0x2c1] sm:$0xff] %vm3103, %v3549
    %3724 = vst.msk [vmem:[%s3667 + $0x2d1] sm:$0xff] %vm3103, %v3550
    %3725 = vst.msk [vmem:[%s3667 + $0x2d9] sm:$0xff] %vm3103, %v3551
    %3726 = vst.msk [vmem:[%s3667 + $0x2e9] sm:$0xff] %vm3103, %v3552
    %3727 = vst.msk [vmem:[%s3667 + $0x2f1] sm:$0xff] %vm3103, %v3553
    %3728 = vst.msk [vmem:[%s3667 + $0x301] sm:$0xff] %vm3103, %v3554
    %3729 = vst.msk [vmem:[%s3667 + $0x309] sm:$0xff] %vm3103, %v3555
    %3730 = vst.msk [vmem:[%s3667 + $0x319] sm:$0xff] %vm3103, %v3556
    %3731 = vst.msk [vmem:[%s3667 + $0x321] sm:$0xff] %vm3103, %v3557
    %v3732 = vld [vmem:[#allocation2] sm:$0xff]
    %v3733 = vld [vmem:[#allocation2 + $0x8] sm:$0xff]
    %v3734 = vld [vmem:[#allocation2 + $0x18] sm:$0xff]
    %v3735 = vld [vmem:[#allocation2 + $0x20] sm:$0xff]
    %v3736 = vld [vmem:[#allocation2 + $0x30] sm:$0xff]
    %v3737 = vld [vmem:[#allocation2 + $0x38] sm:$0xff]
    %v3738 = vld [vmem:[#allocation2 + $0x48] sm:$0xff]
    %v3739 = vld [vmem:[#allocation2 + $0x50] sm:$0xff]
    %v3740 = vld [vmem:[#allocation2 + $0x60] sm:$0xff]
    %v3741 = vld [vmem:[#allocation2 + $0x68] sm:$0xff]
    %v3742 = vld [vmem:[#allocation2 + $0x78] sm:$0xff]
    %v3743 = vld [vmem:[#allocation2 + $0x80] sm:$0xff]
    %v3744 = vld [vmem:[#allocation2 + $0x90] sm:$0xff]
    %v3745 = vld [vmem:[#allocation2 + $0x98] sm:$0xff]
    %v3746 = vld [vmem:[#allocation2 + $0xa8] sm:$0xff]
    %v3747 = vld [vmem:[#allocation2 + $0xb0] sm:$0xff]
    %v3748 = vld [vmem:[#allocation2 + $0xc0] sm:$0xff]
    %v3749 = vld [vmem:[#allocation2 + $0xc8] sm:$0xff]
    %v3750 = vld [vmem:[#allocation2 + $0xd8] sm:$0xff]
    %v3751 = vld [vmem:[#allocation2 + $0xe0] sm:$0xff]
    %v3752 = vld [vmem:[#allocation2 + $0xf0] sm:$0xff]
    %v3753 = vld [vmem:[#allocation2 + $0xf8] sm:$0xff]
    %v3754 = vld [vmem:[#allocation2 + $0x108] sm:$0xff]
    %v3755 = vld [vmem:[#allocation2 + $0x110] sm:$0xff]
    %v3756 = vld [vmem:[#allocation2 + $0x120] sm:$0xff]
    %v3757 = vld [vmem:[#allocation2 + $0x128] sm:$0xff]
    %v3758 = vld [vmem:[#allocation2 + $0x138] sm:$0xff]
    %v3759 = vld [vmem:[#allocation2 + $0x140] sm:$0xff]
    %v3760 = vld [vmem:[#allocation2 + $0x150] sm:$0xff]
    %v3761 = vld [vmem:[#allocation2 + $0x158] sm:$0xff]
    %v3762 = vld [vmem:[#allocation2 + $0x168] sm:$0xff]
    %v3763 = vld [vmem:[#allocation2 + $0x170] sm:$0xff]
    %v3764 = vld [vmem:[#allocation2 + $0x1b0] sm:$0xff]
    %v3765 = vld [vmem:[#allocation2 + $0x1b8] sm:$0xff]
    %v3766 = vld [vmem:[#allocation2 + $0x1c8] sm:$0xff]
    %v3767 = vld [vmem:[#allocation2 + $0x1d0] sm:$0xff]
    %v3768 = vld [vmem:[#allocation2 + $0x1e0] sm:$0xff]
    %v3769 = vld [vmem:[#allocation2 + $0x1e8] sm:$0xff]
    %v3770 = vld [vmem:[#allocation2 + $0x1f8] sm:$0xff]
    %v3771 = vld [vmem:[#allocation2 + $0x200] sm:$0xff]
    %v3772 = vld [vmem:[#allocation2 + $0x210] sm:$0xff]
    %v3773 = vld [vmem:[#allocation2 + $0x218] sm:$0xff]
    %v3774 = vld [vmem:[#allocation2 + $0x228] sm:$0xff]
    %v3775 = vld [vmem:[#allocation2 + $0x230] sm:$0xff]
    %v3776 = vld [vmem:[#allocation2 + $0x240] sm:$0xff]
    %v3777 = vld [vmem:[#allocation2 + $0x248] sm:$0xff]
    %v3778 = vld [vmem:[#allocation2 + $0x258] sm:$0xff]
    %v3779 = vld [vmem:[#allocation2 + $0x260] sm:$0xff]
    %v3780 = vld [vmem:[#allocation2 + $0x270] sm:$0xff]
    %v3781 = vld [vmem:[#allocation2 + $0x278] sm:$0xff]
    %v3782 = vld [vmem:[#allocation2 + $0x288] sm:$0xff]
    %v3783 = vld [vmem:[#allocation2 + $0x290] sm:$0xff]
    %v3784 = vld [vmem:[#allocation2 + $0x2a0] sm:$0xff]
    %v3785 = vld [vmem:[#allocation2 + $0x2a8] sm:$0xff]
    %v3786 = vld [vmem:[#allocation2 + $0x2b8] sm:$0xff]
    %v3787 = vld [vmem:[#allocation2 + $0x2c0] sm:$0xff]
    %v3788 = vld [vmem:[#allocation2 + $0x2d0] sm:$0xff]
    %v3789 = vld [vmem:[#allocation2 + $0x2d8] sm:$0xff]
    %v3790 = vld [vmem:[#allocation2 + $0x2e8] sm:$0xff]
    %v3791 = vld [vmem:[#allocation2 + $0x2f0] sm:$0xff]
    %v3792 = vld [vmem:[#allocation2 + $0x300] sm:$0xff]
    %v3793 = vld [vmem:[#allocation2 + $0x308] sm:$0xff]
    %v3794 = vld [vmem:[#allocation2 + $0x318] sm:$0xff]
    %v3795 = vld [vmem:[#allocation2 + $0x320] sm:$0xff]
    %v3796 = vpack.c.bf16 %v3733, %v3732
    %v3797 = vpack.c.bf16 %v3735, %v3734
    %v3798 = vpack.c.bf16 %v3737, %v3736
    %v3799 = vpack.c.bf16 %v3739, %v3738
    %v3800 = vpack.c.bf16 %v3741, %v3740
    %v3801 = vpack.c.bf16 %v3743, %v3742
    %v3802 = vpack.c.bf16 %v3745, %v3744
    %v3803 = vpack.c.bf16 %v3747, %v3746
    %v3804 = vpack.c.bf16 %v3749, %v3748
    %v3805 = vpack.c.bf16 %v3751, %v3750
    %v3806 = vpack.c.bf16 %v3753, %v3752
    %v3807 = vpack.c.bf16 %v3755, %v3754
    %v3808 = vpack.c.bf16 %v3757, %v3756
    %v3809 = vpack.c.bf16 %v3759, %v3758
    %v3810 = vpack.c.bf16 %v3761, %v3760
    %v3811 = vpack.c.bf16 %v3763, %v3762
    %v3812 = vpack.c.bf16 %v3765, %v3764
    %v3813 = vpack.c.bf16 %v3767, %v3766
    %v3814 = vpack.c.bf16 %v3769, %v3768
    %v3815 = vpack.c.bf16 %v3771, %v3770
    %v3816 = vpack.c.bf16 %v3773, %v3772
    %v3817 = vpack.c.bf16 %v3775, %v3774
    %v3818 = vpack.c.bf16 %v3777, %v3776
    %v3819 = vpack.c.bf16 %v3779, %v3778
    %v3820 = vpack.c.bf16 %v3781, %v3780
    %v3821 = vpack.c.bf16 %v3783, %v3782
    %v3822 = vpack.c.bf16 %v3785, %v3784
    %v3823 = vpack.c.bf16 %v3787, %v3786
    %v3824 = vpack.c.bf16 %v3789, %v3788
    %v3825 = vpack.c.bf16 %v3791, %v3790
    %v3826 = vpack.c.bf16 %v3793, %v3792
    %v3827 = vpack.c.bf16 %v3795, %v3794
    %v3828 = vld [vmem:[%s3] sm:$0xf]
    %v3829 = vld [vmem:[%s3 + $0x4] sm:$0xf]
    %v3830 = vld [vmem:[%s3 + $0x8] sm:$0xf]
    %v3831 = vld [vmem:[%s3 + $0xc] sm:$0xf]
    %v3832 = vld [vmem:[#allocation2 + $0x1] sm:$0xff]
    %v3833 = vld [vmem:[#allocation2 + $0x9] sm:$0xff]
    %v3834 = vld [vmem:[#allocation2 + $0x19] sm:$0xff]
    %v3835 = vld [vmem:[#allocation2 + $0x21] sm:$0xff]
    %v3836 = vld [vmem:[#allocation2 + $0x31] sm:$0xff]
    %v3837 = vld [vmem:[#allocation2 + $0x39] sm:$0xff]
    %v3838 = vld [vmem:[#allocation2 + $0x49] sm:$0xff]
    %v3839 = vld [vmem:[#allocation2 + $0x51] sm:$0xff]
    %v3840 = vld [vmem:[#allocation2 + $0x61] sm:$0xff]
    %v3841 = vld [vmem:[#allocation2 + $0x69] sm:$0xff]
    %v3842 = vld [vmem:[#allocation2 + $0x79] sm:$0xff]
    %v3843 = vld [vmem:[#allocation2 + $0x81] sm:$0xff]
    %v3844 = vld [vmem:[#allocation2 + $0x91] sm:$0xff]
    %v3845 = vld [vmem:[#allocation2 + $0x99] sm:$0xff]
    %v3846 = vld [vmem:[#allocation2 + $0xa9] sm:$0xff]
    %v3847 = vld [vmem:[#allocation2 + $0xb1] sm:$0xff]
    %v3848 = vld [vmem:[#allocation2 + $0xc1] sm:$0xff]
    %v3849 = vld [vmem:[#allocation2 + $0xc9] sm:$0xff]
    %v3850 = vld [vmem:[#allocation2 + $0xd9] sm:$0xff]
    %v3851 = vld [vmem:[#allocation2 + $0xe1] sm:$0xff]
    %v3852 = vld [vmem:[#allocation2 + $0xf1] sm:$0xff]
    %v3853 = vld [vmem:[#allocation2 + $0xf9] sm:$0xff]
    %v3854 = vld [vmem:[#allocation2 + $0x109] sm:$0xff]
    %v3855 = vld [vmem:[#allocation2 + $0x111] sm:$0xff]
    %v3856 = vld [vmem:[#allocation2 + $0x121] sm:$0xff]
    %v3857 = vld [vmem:[#allocation2 + $0x129] sm:$0xff]
    %v3858 = vld [vmem:[#allocation2 + $0x139] sm:$0xff]
    %v3859 = vld [vmem:[#allocation2 + $0x141] sm:$0xff]
    %v3860 = vld [vmem:[#allocation2 + $0x151] sm:$0xff]
    %v3861 = vld [vmem:[#allocation2 + $0x159] sm:$0xff]
    %v3862 = vld [vmem:[#allocation2 + $0x169] sm:$0xff]
    %v3863 = vld [vmem:[#allocation2 + $0x171] sm:$0xff]
    %v3864 = vld [vmem:[#allocation2 + $0x1b1] sm:$0xff]
    %v3865 = vld [vmem:[#allocation2 + $0x1b9] sm:$0xff]
    %v3866 = vld [vmem:[#allocation2 + $0x1c9] sm:$0xff]
    %v3867 = vld [vmem:[#allocation2 + $0x1d1] sm:$0xff]
    %v3868 = vld [vmem:[#allocation2 + $0x1e1] sm:$0xff]
    %v3869 = vld [vmem:[#allocation2 + $0x1e9] sm:$0xff]
    %v3870 = vld [vmem:[#allocation2 + $0x1f9] sm:$0xff]
    %v3871 = vld [vmem:[#allocation2 + $0x201] sm:$0xff]
    %v3872 = vld [vmem:[#allocation2 + $0x211] sm:$0xff]
    %v3873 = vld [vmem:[#allocation2 + $0x219] sm:$0xff]
    %v3874 = vld [vmem:[#allocation2 + $0x229] sm:$0xff]
    %v3875 = vld [vmem:[#allocation2 + $0x231] sm:$0xff]
    %v3876 = vld [vmem:[#allocation2 + $0x241] sm:$0xff]
    %v3877 = vld [vmem:[#allocation2 + $0x249] sm:$0xff]
    %v3878 = vld [vmem:[#allocation2 + $0x259] sm:$0xff]
    %v3879 = vld [vmem:[#allocation2 + $0x261] sm:$0xff]
    %v3880 = vld [vmem:[#allocation2 + $0x271] sm:$0xff]
    %v3881 = vld [vmem:[#allocation2 + $0x279] sm:$0xff]
    %v3882 = vld [vmem:[#allocation2 + $0x289] sm:$0xff]
    %v3883 = vld [vmem:[#allocation2 + $0x291] sm:$0xff]
    %v3884 = vld [vmem:[#allocation2 + $0x2a1] sm:$0xff]
    %v3885 = vld [vmem:[#allocation2 + $0x2a9] sm:$0xff]
    %v3886 = vld [vmem:[#allocation2 + $0x2b9] sm:$0xff]
    %v3887 = vld [vmem:[#allocation2 + $0x2c1] sm:$0xff]
    %v3888 = vld [vmem:[#allocation2 + $0x2d1] sm:$0xff]
    %v3889 = vld [vmem:[#allocation2 + $0x2d9] sm:$0xff]
    %v3890 = vld [vmem:[#allocation2 + $0x2e9] sm:$0xff]
    %v3891 = vld [vmem:[#allocation2 + $0x2f1] sm:$0xff]
    %v3892 = vld [vmem:[#allocation2 + $0x301] sm:$0xff]
    %v3893 = vld [vmem:[#allocation2 + $0x309] sm:$0xff]
    %v3894 = vld [vmem:[#allocation2 + $0x319] sm:$0xff]
    %v3895 = vld [vmem:[#allocation2 + $0x321] sm:$0xff]
    %v3896 = vpack.c.bf16 %v3833, %v3832
    %v3897 = vpack.c.bf16 %v3835, %v3834
    %v3898 = vpack.c.bf16 %v3837, %v3836
    %v3899 = vpack.c.bf16 %v3839, %v3838
    %v3900 = vpack.c.bf16 %v3841, %v3840
    %v3901 = vpack.c.bf16 %v3843, %v3842
    %v3902 = vpack.c.bf16 %v3845, %v3844
    %v3903 = vpack.c.bf16 %v3847, %v3846
    %v3904 = vpack.c.bf16 %v3849, %v3848
    %v3905 = vpack.c.bf16 %v3851, %v3850
    %v3906 = vpack.c.bf16 %v3853, %v3852
    %v3907 = vpack.c.bf16 %v3855, %v3854
    %v3908 = vpack.c.bf16 %v3857, %v3856
    %v3909 = vpack.c.bf16 %v3859, %v3858
    %v3910 = vpack.c.bf16 %v3861, %v3860
    %v3911 = vpack.c.bf16 %v3863, %v3862
    %v3912 = vpack.c.bf16 %v3865, %v3864
    %v3913 = vpack.c.bf16 %v3867, %v3866
    %v3914 = vpack.c.bf16 %v3869, %v3868
    %v3915 = vpack.c.bf16 %v3871, %v3870
    %v3916 = vpack.c.bf16 %v3873, %v3872
    %v3917 = vpack.c.bf16 %v3875, %v3874
    %v3918 = vpack.c.bf16 %v3877, %v3876
    %v3919 = vpack.c.bf16 %v3879, %v3878
    %v3920 = vpack.c.bf16 %v3881, %v3880
    %v3921 = vpack.c.bf16 %v3883, %v3882
    %v3922 = vpack.c.bf16 %v3885, %v3884
    %v3923 = vpack.c.bf16 %v3887, %v3886
    %v3924 = vpack.c.bf16 %v3889, %v3888
    %v3925 = vpack.c.bf16 %v3891, %v3890
    %v3926 = vpack.c.bf16 %v3893, %v3892
    %v3927 = vpack.c.bf16 %v3895, %v3894
    %s3928 = scalar_lea.vmem %s3, 16
    %v3929 = vld [vmem:[%s3928] sm:$0xf]
    %v3930 = vld [vmem:[%s3928 + $0x4] sm:$0xf]
    %v3931 = vld [vmem:[%s3928 + $0x8] sm:$0xf]
    %v3932 = vld [vmem:[%s3928 + $0xc] sm:$0xf]
    %v3937 = vunpack.c.l.b16 %v3929
    %v3938 = vunpack.c.l.b16 %v3930
    %v3939 = vunpack.c.l.b16 %v3931
    %v3940 = vunpack.c.l.b16 %v3932
    %v3941 = vpack.c.b16 %v3938, %v3937
    %v3942 = vpack.c.b16 %v3940, %v3939
    %v3946 = vsel %vm3103, %v3896, 0
    %v3949 = vsel %vm3103, %v3897, 0
    %v3952 = vsel %vm3103, %v3898, 0
    %v3955 = vsel %vm3103, %v3899, 0
    %v3958 = vsel %vm3103, %v3900, 0
    %v3961 = vsel %vm3103, %v3901, 0
    %v3964 = vsel %vm3103, %v3902, 0
    %v3967 = vsel %vm3103, %v3903, 0
    %v3970 = vsel %vm3103, %v3904, 0
    %v3973 = vsel %vm3103, %v3905, 0
    %v3976 = vsel %vm3103, %v3906, 0
    %v3979 = vsel %vm3103, %v3907, 0
    %v3982 = vsel %vm3103, %v3908, 0
    %v3985 = vsel %vm3103, %v3909, 0
    %v3988 = vsel %vm3103, %v3910, 0
    %v3991 = vsel %vm3103, %v3911, 0
    %v3994 = vsel %vm3103, %v3912, 0
    %v3997 = vsel %vm3103, %v3913, 0
    %v4000 = vsel %vm3103, %v3914, 0
    %v4003 = vsel %vm3103, %v3915, 0
    %v4006 = vsel %vm3103, %v3916, 0
    %v4009 = vsel %vm3103, %v3917, 0
    %v4012 = vsel %vm3103, %v3918, 0
    %v4015 = vsel %vm3103, %v3919, 0
    %v4018 = vsel %vm3103, %v3920, 0
    %v4021 = vsel %vm3103, %v3921, 0
    %v4024 = vsel %vm3103, %v3922, 0
    %v4027 = vsel %vm3103, %v3923, 0
    %v4030 = vsel %vm3103, %v3924, 0
    %v4033 = vsel %vm3103, %v3925, 0
    %v4036 = vsel %vm3103, %v3926, 0
    %v4039 = vsel %vm3103, %v3927, 0
    %4041 = vmatpush.bf16.msra.mxu0 0
    %4042 = vmatpush.bf16.msra.mxu0 0
    %4043 = vmatpush.bf16.msra.mxu0 0
    %4044 = vmatpush.bf16.msra.mxu0 0
    %4045 = vmatpush.bf16.msra.mxu0 0
    %4046 = vmatpush.bf16.msra.mxu0 0
    %4047 = vmatpush.bf16.msra.mxu0 %v3942
    %4048 = vmatpush.bf16.msra.mxu0 %v3941
    %4049 = vmatmul.bf16.gmra.mxu0 %v3946
    %v4050 = vpop.f32.mrf.mxu0
    %v4051 = vadd.f32 0.0, %v4050
    %v4052 = vpop.f32.mrf.mxu0
    %v4053 = vadd.f32 0.0, %v4052
    %4054 = vmatmul.bf16.gmra.mxu0 %v3949
    %v4055 = vpop.f32.mrf.mxu0
    %v4056 = vadd.f32 0.0, %v4055
    %v4057 = vpop.f32.mrf.mxu0
    %v4058 = vadd.f32 0.0, %v4057
    %4059 = vmatmul.bf16.gmra.mxu0 %v3952
    %v4060 = vpop.f32.mrf.mxu0
    %v4061 = vadd.f32 0.0, %v4060
    %v4062 = vpop.f32.mrf.mxu0
    %v4063 = vadd.f32 0.0, %v4062
    %4064 = vmatmul.bf16.gmra.mxu0 %v3955
    %v4065 = vpop.f32.mrf.mxu0
    %v4066 = vadd.f32 0.0, %v4065
    %v4067 = vpop.f32.mrf.mxu0
    %v4068 = vadd.f32 0.0, %v4067
    %4069 = vmatmul.bf16.gmra.mxu0 %v3958
    %v4070 = vpop.f32.mrf.mxu0
    %v4071 = vadd.f32 0.0, %v4070
    %v4072 = vpop.f32.mrf.mxu0
    %v4073 = vadd.f32 0.0, %v4072
    %4074 = vmatmul.bf16.gmra.mxu0 %v3961
    %v4075 = vpop.f32.mrf.mxu0
    %v4076 = vadd.f32 0.0, %v4075
    %v4077 = vpop.f32.mrf.mxu0
    %v4078 = vadd.f32 0.0, %v4077
    %4079 = vmatmul.bf16.gmra.mxu0 %v3964
    %v4080 = vpop.f32.mrf.mxu0
    %v4081 = vadd.f32 0.0, %v4080
    %v4082 = vpop.f32.mrf.mxu0
    %v4083 = vadd.f32 0.0, %v4082
    %4084 = vmatmul.bf16.gmra.mxu0 %v3967
    %v4085 = vpop.f32.mrf.mxu0
    %v4086 = vadd.f32 0.0, %v4085
    %v4087 = vpop.f32.mrf.mxu0
    %v4088 = vadd.f32 0.0, %v4087
    %4089 = vmatmul.bf16.gmra.mxu0 %v3970
    %v4090 = vpop.f32.mrf.mxu0
    %v4091 = vadd.f32 0.0, %v4090
    %v4092 = vpop.f32.mrf.mxu0
    %v4093 = vadd.f32 0.0, %v4092
    %4094 = vmatmul.bf16.gmra.mxu0 %v3973
    %v4095 = vpop.f32.mrf.mxu0
    %v4096 = vadd.f32 0.0, %v4095
    %v4097 = vpop.f32.mrf.mxu0
    %v4098 = vadd.f32 0.0, %v4097
    %4099 = vmatmul.bf16.gmra.mxu0 %v3976
    %v4100 = vpop.f32.mrf.mxu0
    %v4101 = vadd.f32 0.0, %v4100
    %v4102 = vpop.f32.mrf.mxu0
    %v4103 = vadd.f32 0.0, %v4102
    %4104 = vmatmul.bf16.gmra.mxu0 %v3979
    %v4105 = vpop.f32.mrf.mxu0
    %v4106 = vadd.f32 0.0, %v4105
    %v4107 = vpop.f32.mrf.mxu0
    %v4108 = vadd.f32 0.0, %v4107
    %4109 = vmatmul.bf16.gmra.mxu0 %v3982
    %v4110 = vpop.f32.mrf.mxu0
    %v4111 = vadd.f32 0.0, %v4110
    %v4112 = vpop.f32.mrf.mxu0
    %v4113 = vadd.f32 0.0, %v4112
    %4114 = vmatmul.bf16.gmra.mxu0 %v3985
    %v4115 = vpop.f32.mrf.mxu0
    %v4116 = vadd.f32 0.0, %v4115
    %v4117 = vpop.f32.mrf.mxu0
    %v4118 = vadd.f32 0.0, %v4117
    %4119 = vmatmul.bf16.gmra.mxu0 %v3988
    %v4120 = vpop.f32.mrf.mxu0
    %v4121 = vadd.f32 0.0, %v4120
    %v4122 = vpop.f32.mrf.mxu0
    %v4123 = vadd.f32 0.0, %v4122
    %4124 = vmatmul.bf16.gmra.mxu0 %v3991
    %v4125 = vpop.f32.mrf.mxu0
    %v4126 = vadd.f32 0.0, %v4125
    %v4127 = vpop.f32.mrf.mxu0
    %v4128 = vadd.f32 0.0, %v4127
    %4129 = vmatmul.bf16.gmra.mxu0 %v3994
    %v4130 = vpop.f32.mrf.mxu0
    %v4131 = vadd.f32 0.0, %v4130
    %v4132 = vpop.f32.mrf.mxu0
    %v4133 = vadd.f32 0.0, %v4132
    %4134 = vmatmul.bf16.gmra.mxu0 %v3997
    %v4135 = vpop.f32.mrf.mxu0
    %v4136 = vadd.f32 0.0, %v4135
    %v4137 = vpop.f32.mrf.mxu0
    %v4138 = vadd.f32 0.0, %v4137
    %4139 = vmatmul.bf16.gmra.mxu0 %v4000
    %v4140 = vpop.f32.mrf.mxu0
    %v4141 = vadd.f32 0.0, %v4140
    %v4142 = vpop.f32.mrf.mxu0
    %v4143 = vadd.f32 0.0, %v4142
    %4144 = vmatmul.bf16.gmra.mxu0 %v4003
    %v4145 = vpop.f32.mrf.mxu0
    %v4146 = vadd.f32 0.0, %v4145
    %v4147 = vpop.f32.mrf.mxu0
    %v4148 = vadd.f32 0.0, %v4147
    %4149 = vmatmul.bf16.gmra.mxu0 %v4006
    %v4150 = vpop.f32.mrf.mxu0
    %v4151 = vadd.f32 0.0, %v4150
    %v4152 = vpop.f32.mrf.mxu0
    %v4153 = vadd.f32 0.0, %v4152
    %4154 = vmatmul.bf16.gmra.mxu0 %v4009
    %v4155 = vpop.f32.mrf.mxu0
    %v4156 = vadd.f32 0.0, %v4155
    %v4157 = vpop.f32.mrf.mxu0
    %v4158 = vadd.f32 0.0, %v4157
    %4159 = vmatmul.bf16.gmra.mxu0 %v4012
    %v4160 = vpop.f32.mrf.mxu0
    %v4161 = vadd.f32 0.0, %v4160
    %v4162 = vpop.f32.mrf.mxu0
    %v4163 = vadd.f32 0.0, %v4162
    %4164 = vmatmul.bf16.gmra.mxu0 %v4015
    %v4165 = vpop.f32.mrf.mxu0
    %v4166 = vadd.f32 0.0, %v4165
    %v4167 = vpop.f32.mrf.mxu0
    %v4168 = vadd.f32 0.0, %v4167
    %4169 = vmatmul.bf16.gmra.mxu0 %v4018
    %v4170 = vpop.f32.mrf.mxu0
    %v4171 = vadd.f32 0.0, %v4170
    %v4172 = vpop.f32.mrf.mxu0
    %v4173 = vadd.f32 0.0, %v4172
    %4174 = vmatmul.bf16.gmra.mxu0 %v4021
    %v4175 = vpop.f32.mrf.mxu0
    %v4176 = vadd.f32 0.0, %v4175
    %v4177 = vpop.f32.mrf.mxu0
    %v4178 = vadd.f32 0.0, %v4177
    %4179 = vmatmul.bf16.gmra.mxu0 %v4024
    %v4180 = vpop.f32.mrf.mxu0
    %v4181 = vadd.f32 0.0, %v4180
    %v4182 = vpop.f32.mrf.mxu0
    %v4183 = vadd.f32 0.0, %v4182
    %4184 = vmatmul.bf16.gmra.mxu0 %v4027
    %v4185 = vpop.f32.mrf.mxu0
    %v4186 = vadd.f32 0.0, %v4185
    %v4187 = vpop.f32.mrf.mxu0
    %v4188 = vadd.f32 0.0, %v4187
    %4189 = vmatmul.bf16.gmra.mxu0 %v4030
    %v4190 = vpop.f32.mrf.mxu0
    %v4191 = vadd.f32 0.0, %v4190
    %v4192 = vpop.f32.mrf.mxu0
    %v4193 = vadd.f32 0.0, %v4192
    %4194 = vmatmul.bf16.gmra.mxu0 %v4033
    %v4195 = vpop.f32.mrf.mxu0
    %v4196 = vadd.f32 0.0, %v4195
    %v4197 = vpop.f32.mrf.mxu0
    %v4198 = vadd.f32 0.0, %v4197
    %4199 = vmatmul.bf16.gmra.mxu0 %v4036
    %v4200 = vpop.f32.mrf.mxu0
    %v4201 = vadd.f32 0.0, %v4200
    %v4202 = vpop.f32.mrf.mxu0
    %v4203 = vadd.f32 0.0, %v4202
    %4204 = vmatmul.bf16.gmra.mxu0 %v4039
    %v4205 = vpop.f32.mrf.mxu0
    %v4206 = vadd.f32 0.0, %v4205
    %v4207 = vpop.f32.mrf.mxu0
    %v4208 = vadd.f32 0.0, %v4207
    %4209 = vdwg.mxu0
    %v4214 = vunpack.c.l.b16 %v3828
    %v4215 = vunpack.c.l.b16 %v3829
    %v4216 = vunpack.c.l.b16 %v3830
    %v4217 = vunpack.c.l.b16 %v3831
    %v4218 = vpack.c.b16 %v4215, %v4214
    %v4219 = vpack.c.b16 %v4217, %v4216
    %v4223 = vsel %vm3103, %v3796, 0
    %v4226 = vsel %vm3103, %v3797, 0
    %v4229 = vsel %vm3103, %v3798, 0
    %v4232 = vsel %vm3103, %v3799, 0
    %v4235 = vsel %vm3103, %v3800, 0
    %v4238 = vsel %vm3103, %v3801, 0
    %v4241 = vsel %vm3103, %v3802, 0
    %v4244 = vsel %vm3103, %v3803, 0
    %v4247 = vsel %vm3103, %v3804, 0
    %v4250 = vsel %vm3103, %v3805, 0
    %v4253 = vsel %vm3103, %v3806, 0
    %v4256 = vsel %vm3103, %v3807, 0
    %v4259 = vsel %vm3103, %v3808, 0
    %v4262 = vsel %vm3103, %v3809, 0
    %v4265 = vsel %vm3103, %v3810, 0
    %v4268 = vsel %vm3103, %v3811, 0
    %v4271 = vsel %vm3103, %v3812, 0
    %v4274 = vsel %vm3103, %v3813, 0
    %v4277 = vsel %vm3103, %v3814, 0
    %v4280 = vsel %vm3103, %v3815, 0
    %v4283 = vsel %vm3103, %v3816, 0
    %v4286 = vsel %vm3103, %v3817, 0
    %v4289 = vsel %vm3103, %v3818, 0
    %v4292 = vsel %vm3103, %v3819, 0
    %v4295 = vsel %vm3103, %v3820, 0
    %v4298 = vsel %vm3103, %v3821, 0
    %v4301 = vsel %vm3103, %v3822, 0
    %v4304 = vsel %vm3103, %v3823, 0
    %v4307 = vsel %vm3103, %v3824, 0
    %v4310 = vsel %vm3103, %v3825, 0
    %v4313 = vsel %vm3103, %v3826, 0
    %v4316 = vsel %vm3103, %v3827, 0
    %4318 = vmatpush.bf16.msra.mxu0 0
    %4319 = vmatpush.bf16.msra.mxu0 0
    %4320 = vmatpush.bf16.msra.mxu0 0
    %4321 = vmatpush.bf16.msra.mxu0 0
    %4322 = vmatpush.bf16.msra.mxu0 0
    %4323 = vmatpush.bf16.msra.mxu0 0
    %4324 = vmatpush.bf16.msra.mxu0 %v4219
    %4325 = vmatpush.bf16.msra.mxu0 %v4218
    %4326 = vmatmul.bf16.gmra.mxu0 %v4223
    %v4327 = vpop.f32.mrf.mxu0
    %v4328 = vadd.f32 %v4051, %v4327
    %v4329 = vpop.f32.mrf.mxu0
    %v4330 = vadd.f32 %v4053, %v4329
    %4331 = vmatmul.bf16.gmra.mxu0 %v4226
    %v4332 = vpop.f32.mrf.mxu0
    %v4333 = vadd.f32 %v4056, %v4332
    %v4334 = vpop.f32.mrf.mxu0
    %v4335 = vadd.f32 %v4058, %v4334
    %4336 = vmatmul.bf16.gmra.mxu0 %v4229
    %v4337 = vpop.f32.mrf.mxu0
    %v4338 = vadd.f32 %v4061, %v4337
    %v4339 = vpop.f32.mrf.mxu0
    %v4340 = vadd.f32 %v4063, %v4339
    %4341 = vmatmul.bf16.gmra.mxu0 %v4232
    %v4342 = vpop.f32.mrf.mxu0
    %v4343 = vadd.f32 %v4066, %v4342
    %v4344 = vpop.f32.mrf.mxu0
    %v4345 = vadd.f32 %v4068, %v4344
    %4346 = vmatmul.bf16.gmra.mxu0 %v4235
    %v4347 = vpop.f32.mrf.mxu0
    %v4348 = vadd.f32 %v4071, %v4347
    %v4349 = vpop.f32.mrf.mxu0
    %v4350 = vadd.f32 %v4073, %v4349
    %4351 = vmatmul.bf16.gmra.mxu0 %v4238
    %v4352 = vpop.f32.mrf.mxu0
    %v4353 = vadd.f32 %v4076, %v4352
    %v4354 = vpop.f32.mrf.mxu0
    %v4355 = vadd.f32 %v4078, %v4354
    %4356 = vmatmul.bf16.gmra.mxu0 %v4241
    %v4357 = vpop.f32.mrf.mxu0
    %v4358 = vadd.f32 %v4081, %v4357
    %v4359 = vpop.f32.mrf.mxu0
    %v4360 = vadd.f32 %v4083, %v4359
    %4361 = vmatmul.bf16.gmra.mxu0 %v4244
    %v4362 = vpop.f32.mrf.mxu0
    %v4363 = vadd.f32 %v4086, %v4362
    %v4364 = vpop.f32.mrf.mxu0
    %v4365 = vadd.f32 %v4088, %v4364
    %4366 = vmatmul.bf16.gmra.mxu0 %v4247
    %v4367 = vpop.f32.mrf.mxu0
    %v4368 = vadd.f32 %v4091, %v4367
    %v4369 = vpop.f32.mrf.mxu0
    %v4370 = vadd.f32 %v4093, %v4369
    %4371 = vmatmul.bf16.gmra.mxu0 %v4250
    %v4372 = vpop.f32.mrf.mxu0
    %v4373 = vadd.f32 %v4096, %v4372
    %v4374 = vpop.f32.mrf.mxu0
    %v4375 = vadd.f32 %v4098, %v4374
    %4376 = vmatmul.bf16.gmra.mxu0 %v4253
    %v4377 = vpop.f32.mrf.mxu0
    %v4378 = vadd.f32 %v4101, %v4377
    %v4379 = vpop.f32.mrf.mxu0
    %v4380 = vadd.f32 %v4103, %v4379
    %4381 = vmatmul.bf16.gmra.mxu0 %v4256
    %v4382 = vpop.f32.mrf.mxu0
    %v4383 = vadd.f32 %v4106, %v4382
    %v4384 = vpop.f32.mrf.mxu0
    %v4385 = vadd.f32 %v4108, %v4384
    %4386 = vmatmul.bf16.gmra.mxu0 %v4259
    %v4387 = vpop.f32.mrf.mxu0
    %v4388 = vadd.f32 %v4111, %v4387
    %v4389 = vpop.f32.mrf.mxu0
    %v4390 = vadd.f32 %v4113, %v4389
    %4391 = vmatmul.bf16.gmra.mxu0 %v4262
    %v4392 = vpop.f32.mrf.mxu0
    %v4393 = vadd.f32 %v4116, %v4392
    %v4394 = vpop.f32.mrf.mxu0
    %v4395 = vadd.f32 %v4118, %v4394
    %4396 = vmatmul.bf16.gmra.mxu0 %v4265
    %v4397 = vpop.f32.mrf.mxu0
    %v4398 = vadd.f32 %v4121, %v4397
    %v4399 = vpop.f32.mrf.mxu0
    %v4400 = vadd.f32 %v4123, %v4399
    %4401 = vmatmul.bf16.gmra.mxu0 %v4268
    %v4402 = vpop.f32.mrf.mxu0
    %v4403 = vadd.f32 %v4126, %v4402
    %v4404 = vpop.f32.mrf.mxu0
    %v4405 = vadd.f32 %v4128, %v4404
    %4406 = vmatmul.bf16.gmra.mxu0 %v4271
    %v4407 = vpop.f32.mrf.mxu0
    %v4408 = vadd.f32 %v4131, %v4407
    %v4409 = vpop.f32.mrf.mxu0
    %v4410 = vadd.f32 %v4133, %v4409
    %4411 = vmatmul.bf16.gmra.mxu0 %v4274
    %v4412 = vpop.f32.mrf.mxu0
    %v4413 = vadd.f32 %v4136, %v4412
    %v4414 = vpop.f32.mrf.mxu0
    %v4415 = vadd.f32 %v4138, %v4414
    %4416 = vmatmul.bf16.gmra.mxu0 %v4277
    %v4417 = vpop.f32.mrf.mxu0
    %v4418 = vadd.f32 %v4141, %v4417
    %v4419 = vpop.f32.mrf.mxu0
    %v4420 = vadd.f32 %v4143, %v4419
    %4421 = vmatmul.bf16.gmra.mxu0 %v4280
    %v4422 = vpop.f32.mrf.mxu0
    %v4423 = vadd.f32 %v4146, %v4422
    %v4424 = vpop.f32.mrf.mxu0
    %v4425 = vadd.f32 %v4148, %v4424
    %4426 = vmatmul.bf16.gmra.mxu0 %v4283
    %v4427 = vpop.f32.mrf.mxu0
    %v4428 = vadd.f32 %v4151, %v4427
    %v4429 = vpop.f32.mrf.mxu0
    %v4430 = vadd.f32 %v4153, %v4429
    %4431 = vmatmul.bf16.gmra.mxu0 %v4286
    %v4432 = vpop.f32.mrf.mxu0
    %v4433 = vadd.f32 %v4156, %v4432
    %v4434 = vpop.f32.mrf.mxu0
    %v4435 = vadd.f32 %v4158, %v4434
    %4436 = vmatmul.bf16.gmra.mxu0 %v4289
    %v4437 = vpop.f32.mrf.mxu0
    %v4438 = vadd.f32 %v4161, %v4437
    %v4439 = vpop.f32.mrf.mxu0
    %v4440 = vadd.f32 %v4163, %v4439
    %4441 = vmatmul.bf16.gmra.mxu0 %v4292
    %v4442 = vpop.f32.mrf.mxu0
    %v4443 = vadd.f32 %v4166, %v4442
    %v4444 = vpop.f32.mrf.mxu0
    %v4445 = vadd.f32 %v4168, %v4444
    %4446 = vmatmul.bf16.gmra.mxu0 %v4295
    %v4447 = vpop.f32.mrf.mxu0
    %v4448 = vadd.f32 %v4171, %v4447
    %v4449 = vpop.f32.mrf.mxu0
    %v4450 = vadd.f32 %v4173, %v4449
    %4451 = vmatmul.bf16.gmra.mxu0 %v4298
    %v4452 = vpop.f32.mrf.mxu0
    %v4453 = vadd.f32 %v4176, %v4452
    %v4454 = vpop.f32.mrf.mxu0
    %v4455 = vadd.f32 %v4178, %v4454
    %4456 = vmatmul.bf16.gmra.mxu0 %v4301
    %v4457 = vpop.f32.mrf.mxu0
    %v4458 = vadd.f32 %v4181, %v4457
    %v4459 = vpop.f32.mrf.mxu0
    %v4460 = vadd.f32 %v4183, %v4459
    %4461 = vmatmul.bf16.gmra.mxu0 %v4304
    %v4462 = vpop.f32.mrf.mxu0
    %v4463 = vadd.f32 %v4186, %v4462
    %v4464 = vpop.f32.mrf.mxu0
    %v4465 = vadd.f32 %v4188, %v4464
    %4466 = vmatmul.bf16.gmra.mxu0 %v4307
    %v4467 = vpop.f32.mrf.mxu0
    %v4468 = vadd.f32 %v4191, %v4467
    %v4469 = vpop.f32.mrf.mxu0
    %v4470 = vadd.f32 %v4193, %v4469
    %4471 = vmatmul.bf16.gmra.mxu0 %v4310
    %v4472 = vpop.f32.mrf.mxu0
    %v4473 = vadd.f32 %v4196, %v4472
    %v4474 = vpop.f32.mrf.mxu0
    %v4475 = vadd.f32 %v4198, %v4474
    %4476 = vmatmul.bf16.gmra.mxu0 %v4313
    %v4477 = vpop.f32.mrf.mxu0
    %v4478 = vadd.f32 %v4201, %v4477
    %v4479 = vpop.f32.mrf.mxu0
    %v4480 = vadd.f32 %v4203, %v4479
    %4481 = vmatmul.bf16.gmra.mxu0 %v4316
    %v4482 = vpop.f32.mrf.mxu0
    %v4483 = vadd.f32 %v4206, %v4482
    %v4484 = vpop.f32.mrf.mxu0
    %v4485 = vadd.f32 %v4208, %v4484
    %4486 = vdwg.mxu0
    %v4487 = vld [vmem:[#allocation2 + $0x2] sm:$0xff]
    %v4488 = vld [vmem:[#allocation2 + $0xa] sm:$0xff]
    %v4489 = vld [vmem:[#allocation2 + $0x1a] sm:$0xff]
    %v4490 = vld [vmem:[#allocation2 + $0x22] sm:$0xff]
    %v4491 = vld [vmem:[#allocation2 + $0x32] sm:$0xff]
    %v4492 = vld [vmem:[#allocation2 + $0x3a] sm:$0xff]
    %v4493 = vld [vmem:[#allocation2 + $0x4a] sm:$0xff]
    %v4494 = vld [vmem:[#allocation2 + $0x52] sm:$0xff]
    %v4495 = vld [vmem:[#allocation2 + $0x62] sm:$0xff]
    %v4496 = vld [vmem:[#allocation2 + $0x6a] sm:$0xff]
    %v4497 = vld [vmem:[#allocation2 + $0x7a] sm:$0xff]
    %v4498 = vld [vmem:[#allocation2 + $0x82] sm:$0xff]
    %v4499 = vld [vmem:[#allocation2 + $0x92] sm:$0xff]
    %v4500 = vld [vmem:[#allocation2 + $0x9a] sm:$0xff]
    %v4501 = vld [vmem:[#allocation2 + $0xaa] sm:$0xff]
    %v4502 = vld [vmem:[#allocation2 + $0xb2] sm:$0xff]
    %v4503 = vld [vmem:[#allocation2 + $0xc2] sm:$0xff]
    %v4504 = vld [vmem:[#allocation2 + $0xca] sm:$0xff]
    %v4505 = vld [vmem:[#allocation2 + $0xda] sm:$0xff]
    %v4506 = vld [vmem:[#allocation2 + $0xe2] sm:$0xff]
    %v4507 = vld [vmem:[#allocation2 + $0xf2] sm:$0xff]
    %v4508 = vld [vmem:[#allocation2 + $0xfa] sm:$0xff]
    %v4509 = vld [vmem:[#allocation2 + $0x10a] sm:$0xff]
    %v4510 = vld [vmem:[#allocation2 + $0x112] sm:$0xff]
    %v4511 = vld [vmem:[#allocation2 + $0x122] sm:$0xff]
    %v4512 = vld [vmem:[#allocation2 + $0x12a] sm:$0xff]
    %v4513 = vld [vmem:[#allocation2 + $0x13a] sm:$0xff]
    %v4514 = vld [vmem:[#allocation2 + $0x142] sm:$0xff]
    %v4515 = vld [vmem:[#allocation2 + $0x152] sm:$0xff]
    %v4516 = vld [vmem:[#allocation2 + $0x15a] sm:$0xff]
    %v4517 = vld [vmem:[#allocation2 + $0x16a] sm:$0xff]
    %v4518 = vld [vmem:[#allocation2 + $0x172] sm:$0xff]
    %v4519 = vld [vmem:[#allocation2 + $0x1b2] sm:$0xff]
    %v4520 = vld [vmem:[#allocation2 + $0x1ba] sm:$0xff]
    %v4521 = vld [vmem:[#allocation2 + $0x1ca] sm:$0xff]
    %v4522 = vld [vmem:[#allocation2 + $0x1d2] sm:$0xff]
    %v4523 = vld [vmem:[#allocation2 + $0x1e2] sm:$0xff]
    %v4524 = vld [vmem:[#allocation2 + $0x1ea] sm:$0xff]
    %v4525 = vld [vmem:[#allocation2 + $0x1fa] sm:$0xff]
    %v4526 = vld [vmem:[#allocation2 + $0x202] sm:$0xff]
    %v4527 = vld [vmem:[#allocation2 + $0x212] sm:$0xff]
    %v4528 = vld [vmem:[#allocation2 + $0x21a] sm:$0xff]
    %v4529 = vld [vmem:[#allocation2 + $0x22a] sm:$0xff]
    %v4530 = vld [vmem:[#allocation2 + $0x232] sm:$0xff]
    %v4531 = vld [vmem:[#allocation2 + $0x242] sm:$0xff]
    %v4532 = vld [vmem:[#allocation2 + $0x24a] sm:$0xff]
    %v4533 = vld [vmem:[#allocation2 + $0x25a] sm:$0xff]
    %v4534 = vld [vmem:[#allocation2 + $0x262] sm:$0xff]
    %v4535 = vld [vmem:[#allocation2 + $0x272] sm:$0xff]
    %v4536 = vld [vmem:[#allocation2 + $0x27a] sm:$0xff]
    %v4537 = vld [vmem:[#allocation2 + $0x28a] sm:$0xff]
    %v4538 = vld [vmem:[#allocation2 + $0x292] sm:$0xff]
    %v4539 = vld [vmem:[#allocation2 + $0x2a2] sm:$0xff]
    %v4540 = vld [vmem:[#allocation2 + $0x2aa] sm:$0xff]
    %v4541 = vld [vmem:[#allocation2 + $0x2ba] sm:$0xff]
    %v4542 = vld [vmem:[#allocation2 + $0x2c2] sm:$0xff]
    %v4543 = vld [vmem:[#allocation2 + $0x2d2] sm:$0xff]
    %v4544 = vld [vmem:[#allocation2 + $0x2da] sm:$0xff]
    %v4545 = vld [vmem:[#allocation2 + $0x2ea] sm:$0xff]
    %v4546 = vld [vmem:[#allocation2 + $0x2f2] sm:$0xff]
    %v4547 = vld [vmem:[#allocation2 + $0x302] sm:$0xff]
    %v4548 = vld [vmem:[#allocation2 + $0x30a] sm:$0xff]
    %v4549 = vld [vmem:[#allocation2 + $0x31a] sm:$0xff]
    %v4550 = vld [vmem:[#allocation2 + $0x322] sm:$0xff]
    %v4551 = vpack.c.bf16 %v4488, %v4487
    %v4552 = vpack.c.bf16 %v4490, %v4489
    %v4553 = vpack.c.bf16 %v4492, %v4491
    %v4554 = vpack.c.bf16 %v4494, %v4493
    %v4555 = vpack.c.bf16 %v4496, %v4495
    %v4556 = vpack.c.bf16 %v4498, %v4497
    %v4557 = vpack.c.bf16 %v4500, %v4499
    %v4558 = vpack.c.bf16 %v4502, %v4501
    %v4559 = vpack.c.bf16 %v4504, %v4503
    %v4560 = vpack.c.bf16 %v4506, %v4505
    %v4561 = vpack.c.bf16 %v4508, %v4507
    %v4562 = vpack.c.bf16 %v4510, %v4509
    %v4563 = vpack.c.bf16 %v4512, %v4511
    %v4564 = vpack.c.bf16 %v4514, %v4513
    %v4565 = vpack.c.bf16 %v4516, %v4515
    %v4566 = vpack.c.bf16 %v4518, %v4517
    %v4567 = vpack.c.bf16 %v4520, %v4519
    %v4568 = vpack.c.bf16 %v4522, %v4521
    %v4569 = vpack.c.bf16 %v4524, %v4523
    %v4570 = vpack.c.bf16 %v4526, %v4525
    %v4571 = vpack.c.bf16 %v4528, %v4527
    %v4572 = vpack.c.bf16 %v4530, %v4529
    %v4573 = vpack.c.bf16 %v4532, %v4531
    %v4574 = vpack.c.bf16 %v4534, %v4533
    %v4575 = vpack.c.bf16 %v4536, %v4535
    %v4576 = vpack.c.bf16 %v4538, %v4537
    %v4577 = vpack.c.bf16 %v4540, %v4539
    %v4578 = vpack.c.bf16 %v4542, %v4541
    %v4579 = vpack.c.bf16 %v4544, %v4543
    %v4580 = vpack.c.bf16 %v4546, %v4545
    %v4581 = vpack.c.bf16 %v4548, %v4547
    %v4582 = vpack.c.bf16 %v4550, %v4549
    %s4583 = scalar_lea.vmem %s3, 32
    %v4584 = vld [vmem:[%s4583] sm:$0xf]
    %v4585 = vld [vmem:[%s4583 + $0x4] sm:$0xf]
    %v4586 = vld [vmem:[%s4583 + $0x8] sm:$0xf]
    %v4587 = vld [vmem:[%s4583 + $0xc] sm:$0xf]
    %v4592 = vunpack.c.l.b16 %v4584
    %v4593 = vunpack.c.l.b16 %v4585
    %v4594 = vunpack.c.l.b16 %v4586
    %v4595 = vunpack.c.l.b16 %v4587
    %v4596 = vpack.c.b16 %v4593, %v4592
    %v4597 = vpack.c.b16 %v4595, %v4594
    %v4601 = vsel %vm3103, %v4551, 0
    %v4604 = vsel %vm3103, %v4552, 0
    %v4607 = vsel %vm3103, %v4553, 0
    %v4610 = vsel %vm3103, %v4554, 0
    %v4613 = vsel %vm3103, %v4555, 0
    %v4616 = vsel %vm3103, %v4556, 0
    %v4619 = vsel %vm3103, %v4557, 0
    %v4622 = vsel %vm3103, %v4558, 0
    %v4625 = vsel %vm3103, %v4559, 0
    %v4628 = vsel %vm3103, %v4560, 0
    %v4631 = vsel %vm3103, %v4561, 0
    %v4634 = vsel %vm3103, %v4562, 0
    %v4637 = vsel %vm3103, %v4563, 0
    %v4640 = vsel %vm3103, %v4564, 0
    %v4643 = vsel %vm3103, %v4565, 0
    %v4646 = vsel %vm3103, %v4566, 0
    %v4649 = vsel %vm3103, %v4567, 0
    %v4652 = vsel %vm3103, %v4568, 0
    %v4655 = vsel %vm3103, %v4569, 0
    %v4658 = vsel %vm3103, %v4570, 0
    %v4661 = vsel %vm3103, %v4571, 0
    %v4664 = vsel %vm3103, %v4572, 0
    %v4667 = vsel %vm3103, %v4573, 0
    %v4670 = vsel %vm3103, %v4574, 0
    %v4673 = vsel %vm3103, %v4575, 0
    %v4676 = vsel %vm3103, %v4576, 0
    %v4679 = vsel %vm3103, %v4577, 0
    %v4682 = vsel %vm3103, %v4578, 0
    %v4685 = vsel %vm3103, %v4579, 0
    %v4688 = vsel %vm3103, %v4580, 0
    %v4691 = vsel %vm3103, %v4581, 0
    %v4694 = vsel %vm3103, %v4582, 0
    %4696 = vmatpush.bf16.msra.mxu0 0
    %4697 = vmatpush.bf16.msra.mxu0 0
    %4698 = vmatpush.bf16.msra.mxu0 0
    %4699 = vmatpush.bf16.msra.mxu0 0
    %4700 = vmatpush.bf16.msra.mxu0 0
    %4701 = vmatpush.bf16.msra.mxu0 0
    %4702 = vmatpush.bf16.msra.mxu0 %v4597
    %4703 = vmatpush.bf16.msra.mxu0 %v4596
    %4704 = vmatmul.bf16.gmra.mxu0 %v4601
    %v4705 = vpop.f32.mrf.mxu0
    %v4706 = vadd.f32 0.0, %v4705
    %v4707 = vpop.f32.mrf.mxu0
    %v4708 = vadd.f32 0.0, %v4707
    %4709 = vmatmul.bf16.gmra.mxu0 %v4604
    %v4710 = vpop.f32.mrf.mxu0
    %v4711 = vadd.f32 0.0, %v4710
    %v4712 = vpop.f32.mrf.mxu0
    %v4713 = vadd.f32 0.0, %v4712
    %4714 = vmatmul.bf16.gmra.mxu0 %v4607
    %v4715 = vpop.f32.mrf.mxu0
    %v4716 = vadd.f32 0.0, %v4715
    %v4717 = vpop.f32.mrf.mxu0
    %v4718 = vadd.f32 0.0, %v4717
    %4719 = vmatmul.bf16.gmra.mxu0 %v4610
    %v4720 = vpop.f32.mrf.mxu0
    %v4721 = vadd.f32 0.0, %v4720
    %v4722 = vpop.f32.mrf.mxu0
    %v4723 = vadd.f32 0.0, %v4722
    %4724 = vmatmul.bf16.gmra.mxu0 %v4613
    %v4725 = vpop.f32.mrf.mxu0
    %v4726 = vadd.f32 0.0, %v4725
    %v4727 = vpop.f32.mrf.mxu0
    %v4728 = vadd.f32 0.0, %v4727
    %4729 = vmatmul.bf16.gmra.mxu0 %v4616
    %v4730 = vpop.f32.mrf.mxu0
    %v4731 = vadd.f32 0.0, %v4730
    %v4732 = vpop.f32.mrf.mxu0
    %v4733 = vadd.f32 0.0, %v4732
    %4734 = vmatmul.bf16.gmra.mxu0 %v4619
    %v4735 = vpop.f32.mrf.mxu0
    %v4736 = vadd.f32 0.0, %v4735
    %v4737 = vpop.f32.mrf.mxu0
    %v4738 = vadd.f32 0.0, %v4737
    %4739 = vmatmul.bf16.gmra.mxu0 %v4622
    %v4740 = vpop.f32.mrf.mxu0
    %v4741 = vadd.f32 0.0, %v4740
    %v4742 = vpop.f32.mrf.mxu0
    %v4743 = vadd.f32 0.0, %v4742
    %4744 = vmatmul.bf16.gmra.mxu0 %v4625
    %v4745 = vpop.f32.mrf.mxu0
    %v4746 = vadd.f32 0.0, %v4745
    %v4747 = vpop.f32.mrf.mxu0
    %v4748 = vadd.f32 0.0, %v4747
    %4749 = vmatmul.bf16.gmra.mxu0 %v4628
    %v4750 = vpop.f32.mrf.mxu0
    %v4751 = vadd.f32 0.0, %v4750
    %v4752 = vpop.f32.mrf.mxu0
    %v4753 = vadd.f32 0.0, %v4752
    %4754 = vmatmul.bf16.gmra.mxu0 %v4631
    %v4755 = vpop.f32.mrf.mxu0
    %v4756 = vadd.f32 0.0, %v4755
    %v4757 = vpop.f32.mrf.mxu0
    %v4758 = vadd.f32 0.0, %v4757
    %4759 = vmatmul.bf16.gmra.mxu0 %v4634
    %v4760 = vpop.f32.mrf.mxu0
    %v4761 = vadd.f32 0.0, %v4760
    %v4762 = vpop.f32.mrf.mxu0
    %v4763 = vadd.f32 0.0, %v4762
    %4764 = vmatmul.bf16.gmra.mxu0 %v4637
    %v4765 = vpop.f32.mrf.mxu0
    %v4766 = vadd.f32 0.0, %v4765
    %v4767 = vpop.f32.mrf.mxu0
    %v4768 = vadd.f32 0.0, %v4767
    %4769 = vmatmul.bf16.gmra.mxu0 %v4640
    %v4770 = vpop.f32.mrf.mxu0
    %v4771 = vadd.f32 0.0, %v4770
    %v4772 = vpop.f32.mrf.mxu0
    %v4773 = vadd.f32 0.0, %v4772
    %4774 = vmatmul.bf16.gmra.mxu0 %v4643
    %v4775 = vpop.f32.mrf.mxu0
    %v4776 = vadd.f32 0.0, %v4775
    %v4777 = vpop.f32.mrf.mxu0
    %v4778 = vadd.f32 0.0, %v4777
    %4779 = vmatmul.bf16.gmra.mxu0 %v4646
    %v4780 = vpop.f32.mrf.mxu0
    %v4781 = vadd.f32 0.0, %v4780
    %v4782 = vpop.f32.mrf.mxu0
    %v4783 = vadd.f32 0.0, %v4782
    %4784 = vmatmul.bf16.gmra.mxu0 %v4649
    %v4785 = vpop.f32.mrf.mxu0
    %v4786 = vadd.f32 0.0, %v4785
    %v4787 = vpop.f32.mrf.mxu0
    %v4788 = vadd.f32 0.0, %v4787
    %4789 = vmatmul.bf16.gmra.mxu0 %v4652
    %v4790 = vpop.f32.mrf.mxu0
    %v4791 = vadd.f32 0.0, %v4790
    %v4792 = vpop.f32.mrf.mxu0
    %v4793 = vadd.f32 0.0, %v4792
    %4794 = vmatmul.bf16.gmra.mxu0 %v4655
    %v4795 = vpop.f32.mrf.mxu0
    %v4796 = vadd.f32 0.0, %v4795
    %v4797 = vpop.f32.mrf.mxu0
    %v4798 = vadd.f32 0.0, %v4797
    %4799 = vmatmul.bf16.gmra.mxu0 %v4658
    %v4800 = vpop.f32.mrf.mxu0
    %v4801 = vadd.f32 0.0, %v4800
    %v4802 = vpop.f32.mrf.mxu0
    %v4803 = vadd.f32 0.0, %v4802
    %4804 = vmatmul.bf16.gmra.mxu0 %v4661
    %v4805 = vpop.f32.mrf.mxu0
    %v4806 = vadd.f32 0.0, %v4805
    %v4807 = vpop.f32.mrf.mxu0
    %v4808 = vadd.f32 0.0, %v4807
    %4809 = vmatmul.bf16.gmra.mxu0 %v4664
    %v4810 = vpop.f32.mrf.mxu0
    %v4811 = vadd.f32 0.0, %v4810
    %v4812 = vpop.f32.mrf.mxu0
    %v4813 = vadd.f32 0.0, %v4812
    %4814 = vmatmul.bf16.gmra.mxu0 %v4667
    %v4815 = vpop.f32.mrf.mxu0
    %v4816 = vadd.f32 0.0, %v4815
    %v4817 = vpop.f32.mrf.mxu0
    %v4818 = vadd.f32 0.0, %v4817
    %4819 = vmatmul.bf16.gmra.mxu0 %v4670
    %v4820 = vpop.f32.mrf.mxu0
    %v4821 = vadd.f32 0.0, %v4820
    %v4822 = vpop.f32.mrf.mxu0
    %v4823 = vadd.f32 0.0, %v4822
    %4824 = vmatmul.bf16.gmra.mxu0 %v4673
    %v4825 = vpop.f32.mrf.mxu0
    %v4826 = vadd.f32 0.0, %v4825
    %v4827 = vpop.f32.mrf.mxu0
    %v4828 = vadd.f32 0.0, %v4827
    %4829 = vmatmul.bf16.gmra.mxu0 %v4676
    %v4830 = vpop.f32.mrf.mxu0
    %v4831 = vadd.f32 0.0, %v4830
    %v4832 = vpop.f32.mrf.mxu0
    %v4833 = vadd.f32 0.0, %v4832
    %4834 = vmatmul.bf16.gmra.mxu0 %v4679
    %v4835 = vpop.f32.mrf.mxu0
    %v4836 = vadd.f32 0.0, %v4835
    %v4837 = vpop.f32.mrf.mxu0
    %v4838 = vadd.f32 0.0, %v4837
    %4839 = vmatmul.bf16.gmra.mxu0 %v4682
    %v4840 = vpop.f32.mrf.mxu0
    %v4841 = vadd.f32 0.0, %v4840
    %v4842 = vpop.f32.mrf.mxu0
    %v4843 = vadd.f32 0.0, %v4842
    %4844 = vmatmul.bf16.gmra.mxu0 %v4685
    %v4845 = vpop.f32.mrf.mxu0
    %v4846 = vadd.f32 0.0, %v4845
    %v4847 = vpop.f32.mrf.mxu0
    %v4848 = vadd.f32 0.0, %v4847
    %4849 = vmatmul.bf16.gmra.mxu0 %v4688
    %v4850 = vpop.f32.mrf.mxu0
    %v4851 = vadd.f32 0.0, %v4850
    %v4852 = vpop.f32.mrf.mxu0
    %v4853 = vadd.f32 0.0, %v4852
    %4854 = vmatmul.bf16.gmra.mxu0 %v4691
    %v4855 = vpop.f32.mrf.mxu0
    %v4856 = vadd.f32 0.0, %v4855
    %v4857 = vpop.f32.mrf.mxu0
    %v4858 = vadd.f32 0.0, %v4857
    %4859 = vmatmul.bf16.gmra.mxu0 %v4694
    %v4860 = vpop.f32.mrf.mxu0
    %v4861 = vadd.f32 0.0, %v4860
    %v4862 = vpop.f32.mrf.mxu0
    %v4863 = vadd.f32 0.0, %v4862
    %4864 = vdwg.mxu0
    %v4865 = vadd.f32 %v4328, %v4706
    %v4866 = vadd.f32 %v4330, %v4708
    %v4867 = vadd.f32 %v4333, %v4711
    %v4868 = vadd.f32 %v4335, %v4713
    %v4869 = vadd.f32 %v4338, %v4716
    %v4870 = vadd.f32 %v4340, %v4718
    %v4871 = vadd.f32 %v4343, %v4721
    %v4872 = vadd.f32 %v4345, %v4723
    %v4873 = vadd.f32 %v4348, %v4726
    %v4874 = vadd.f32 %v4350, %v4728
    %v4875 = vadd.f32 %v4353, %v4731
    %v4876 = vadd.f32 %v4355, %v4733
    %v4877 = vadd.f32 %v4358, %v4736
    %v4878 = vadd.f32 %v4360, %v4738
    %v4879 = vadd.f32 %v4363, %v4741
    %v4880 = vadd.f32 %v4365, %v4743
    %v4881 = vadd.f32 %v4368, %v4746
    %v4882 = vadd.f32 %v4370, %v4748
    %v4883 = vadd.f32 %v4373, %v4751
    %v4884 = vadd.f32 %v4375, %v4753
    %v4885 = vadd.f32 %v4378, %v4756
    %v4886 = vadd.f32 %v4380, %v4758
    %v4887 = vadd.f32 %v4383, %v4761
    %v4888 = vadd.f32 %v4385, %v4763
    %v4889 = vadd.f32 %v4388, %v4766
    %v4890 = vadd.f32 %v4390, %v4768
    %v4891 = vadd.f32 %v4393, %v4771
    %v4892 = vadd.f32 %v4395, %v4773
    %v4893 = vadd.f32 %v4398, %v4776
    %v4894 = vadd.f32 %v4400, %v4778
    %v4895 = vadd.f32 %v4403, %v4781
    %v4896 = vadd.f32 %v4405, %v4783
    %v4897 = vadd.f32 %v4408, %v4786
    %v4898 = vadd.f32 %v4410, %v4788
    %v4899 = vadd.f32 %v4413, %v4791
    %v4900 = vadd.f32 %v4415, %v4793
    %v4901 = vadd.f32 %v4418, %v4796
    %v4902 = vadd.f32 %v4420, %v4798
    %v4903 = vadd.f32 %v4423, %v4801
    %v4904 = vadd.f32 %v4425, %v4803
    %v4905 = vadd.f32 %v4428, %v4806
    %v4906 = vadd.f32 %v4430, %v4808
    %v4907 = vadd.f32 %v4433, %v4811
    %v4908 = vadd.f32 %v4435, %v4813
    %v4909 = vadd.f32 %v4438, %v4816
    %v4910 = vadd.f32 %v4440, %v4818
    %v4911 = vadd.f32 %v4443, %v4821
    %v4912 = vadd.f32 %v4445, %v4823
    %v4913 = vadd.f32 %v4448, %v4826
    %v4914 = vadd.f32 %v4450, %v4828
    %v4915 = vadd.f32 %v4453, %v4831
    %v4916 = vadd.f32 %v4455, %v4833
    %v4917 = vadd.f32 %v4458, %v4836
    %v4918 = vadd.f32 %v4460, %v4838
    %v4919 = vadd.f32 %v4463, %v4841
    %v4920 = vadd.f32 %v4465, %v4843
    %v4921 = vadd.f32 %v4468, %v4846
    %v4922 = vadd.f32 %v4470, %v4848
    %v4923 = vadd.f32 %v4473, %v4851
    %v4924 = vadd.f32 %v4475, %v4853
    %v4925 = vadd.f32 %v4478, %v4856
    %v4926 = vadd.f32 %v4480, %v4858
    %v4927 = vadd.f32 %v4483, %v4861
    %v4928 = vadd.f32 %v4485, %v4863
    %v4929 = vld [vmem:[%s3667] sm:$0xff]
    %v4930 = vld [vmem:[%s3667 + $0x8] sm:$0xff]
    %v4931 = vld [vmem:[%s3667 + $0x18] sm:$0xff]
    %v4932 = vld [vmem:[%s3667 + $0x20] sm:$0xff]
    %v4933 = vld [vmem:[%s3667 + $0x30] sm:$0xff]
    %v4934 = vld [vmem:[%s3667 + $0x38] sm:$0xff]
    %v4935 = vld [vmem:[%s3667 + $0x48] sm:$0xff]
    %v4936 = vld [vmem:[%s3667 + $0x50] sm:$0xff]
    %v4937 = vld [vmem:[%s3667 + $0x60] sm:$0xff]
    %v4938 = vld [vmem:[%s3667 + $0x68] sm:$0xff]
    %v4939 = vld [vmem:[%s3667 + $0x78] sm:$0xff]
    %v4940 = vld [vmem:[%s3667 + $0x80] sm:$0xff]
    %v4941 = vld [vmem:[%s3667 + $0x90] sm:$0xff]
    %v4942 = vld [vmem:[%s3667 + $0x98] sm:$0xff]
    %v4943 = vld [vmem:[%s3667 + $0xa8] sm:$0xff]
    %v4944 = vld [vmem:[%s3667 + $0xb0] sm:$0xff]
    %v4945 = vld [vmem:[%s3667 + $0xc0] sm:$0xff]
    %v4946 = vld [vmem:[%s3667 + $0xc8] sm:$0xff]
    %v4947 = vld [vmem:[%s3667 + $0xd8] sm:$0xff]
    %v4948 = vld [vmem:[%s3667 + $0xe0] sm:$0xff]
    %v4949 = vld [vmem:[%s3667 + $0xf0] sm:$0xff]
    %v4950 = vld [vmem:[%s3667 + $0xf8] sm:$0xff]
    %v4951 = vld [vmem:[%s3667 + $0x108] sm:$0xff]
    %v4952 = vld [vmem:[%s3667 + $0x110] sm:$0xff]
    %v4953 = vld [vmem:[%s3667 + $0x120] sm:$0xff]
    %v4954 = vld [vmem:[%s3667 + $0x128] sm:$0xff]
    %v4955 = vld [vmem:[%s3667 + $0x138] sm:$0xff]
    %v4956 = vld [vmem:[%s3667 + $0x140] sm:$0xff]
    %v4957 = vld [vmem:[%s3667 + $0x150] sm:$0xff]
    %v4958 = vld [vmem:[%s3667 + $0x158] sm:$0xff]
    %v4959 = vld [vmem:[%s3667 + $0x168] sm:$0xff]
    %v4960 = vld [vmem:[%s3667 + $0x170] sm:$0xff]
    %v4961 = vld [vmem:[%s3667 + $0x1b0] sm:$0xff]
    %v4962 = vld [vmem:[%s3667 + $0x1b8] sm:$0xff]
    %v4963 = vld [vmem:[%s3667 + $0x1c8] sm:$0xff]
    %v4964 = vld [vmem:[%s3667 + $0x1d0] sm:$0xff]
    %v4965 = vld [vmem:[%s3667 + $0x1e0] sm:$0xff]
    %v4966 = vld [vmem:[%s3667 + $0x1e8] sm:$0xff]
    %v4967 = vld [vmem:[%s3667 + $0x1f8] sm:$0xff]
    %v4968 = vld [vmem:[%s3667 + $0x200] sm:$0xff]
    %v4969 = vld [vmem:[%s3667 + $0x210] sm:$0xff]
    %v4970 = vld [vmem:[%s3667 + $0x218] sm:$0xff]
    %v4971 = vld [vmem:[%s3667 + $0x228] sm:$0xff]
    %v4972 = vld [vmem:[%s3667 + $0x230] sm:$0xff]
    %v4973 = vld [vmem:[%s3667 + $0x240] sm:$0xff]
    %v4974 = vld [vmem:[%s3667 + $0x248] sm:$0xff]
    %v4975 = vld [vmem:[%s3667 + $0x258] sm:$0xff]
    %v4976 = vld [vmem:[%s3667 + $0x260] sm:$0xff]
    %v4977 = vld [vmem:[%s3667 + $0x270] sm:$0xff]
    %v4978 = vld [vmem:[%s3667 + $0x278] sm:$0xff]
    %v4979 = vld [vmem:[%s3667 + $0x288] sm:$0xff]
    %v4980 = vld [vmem:[%s3667 + $0x290] sm:$0xff]
    %v4981 = vld [vmem:[%s3667 + $0x2a0] sm:$0xff]
    %v4982 = vld [vmem:[%s3667 + $0x2a8] sm:$0xff]
    %v4983 = vld [vmem:[%s3667 + $0x2b8] sm:$0xff]
    %v4984 = vld [vmem:[%s3667 + $0x2c0] sm:$0xff]
    %v4985 = vld [vmem:[%s3667 + $0x2d0] sm:$0xff]
    %v4986 = vld [vmem:[%s3667 + $0x2d8] sm:$0xff]
    %v4987 = vld [vmem:[%s3667 + $0x2e8] sm:$0xff]
    %v4988 = vld [vmem:[%s3667 + $0x2f0] sm:$0xff]
    %v4989 = vld [vmem:[%s3667 + $0x300] sm:$0xff]
    %v4990 = vld [vmem:[%s3667 + $0x308] sm:$0xff]
    %v4991 = vld [vmem:[%s3667 + $0x318] sm:$0xff]
    %v4992 = vld [vmem:[%s3667 + $0x320] sm:$0xff]
    %v4993 = vpack.c.bf16 %v4930, %v4929
    %v4994 = vpack.c.bf16 %v4932, %v4931
    %v4995 = vpack.c.bf16 %v4934, %v4933
    %v4996 = vpack.c.bf16 %v4936, %v4935
    %v4997 = vpack.c.bf16 %v4938, %v4937
    %v4998 = vpack.c.bf16 %v4940, %v4939
    %v4999 = vpack.c.bf16 %v4942, %v4941
    %v5000 = vpack.c.bf16 %v4944, %v4943
    %v5001 = vpack.c.bf16 %v4946, %v4945
    %v5002 = vpack.c.bf16 %v4948, %v4947
    %v5003 = vpack.c.bf16 %v4950, %v4949
    %v5004 = vpack.c.bf16 %v4952, %v4951
    %v5005 = vpack.c.bf16 %v4954, %v4953
    %v5006 = vpack.c.bf16 %v4956, %v4955
    %v5007 = vpack.c.bf16 %v4958, %v4957
    %v5008 = vpack.c.bf16 %v4960, %v4959
    %v5009 = vpack.c.bf16 %v4962, %v4961
    %v5010 = vpack.c.bf16 %v4964, %v4963
    %v5011 = vpack.c.bf16 %v4966, %v4965
    %v5012 = vpack.c.bf16 %v4968, %v4967
    %v5013 = vpack.c.bf16 %v4970, %v4969
    %v5014 = vpack.c.bf16 %v4972, %v4971
    %v5015 = vpack.c.bf16 %v4974, %v4973
    %v5016 = vpack.c.bf16 %v4976, %v4975
    %v5017 = vpack.c.bf16 %v4978, %v4977
    %v5018 = vpack.c.bf16 %v4980, %v4979
    %v5019 = vpack.c.bf16 %v4982, %v4981
    %v5020 = vpack.c.bf16 %v4984, %v4983
    %v5021 = vpack.c.bf16 %v4986, %v4985
    %v5022 = vpack.c.bf16 %v4988, %v4987
    %v5023 = vpack.c.bf16 %v4990, %v4989
    %v5024 = vpack.c.bf16 %v4992, %v4991
    %s5025 = scalar_lea.vmem %s3, 48
    %v5026 = vld [vmem:[%s5025] sm:$0xf]
    %v5027 = vld [vmem:[%s5025 + $0x4] sm:$0xf]
    %v5028 = vld [vmem:[%s5025 + $0x8] sm:$0xf]
    %v5029 = vld [vmem:[%s5025 + $0xc] sm:$0xf]
    %v5034 = vunpack.c.l.b16 %v5026
    %v5035 = vunpack.c.l.b16 %v5027
    %v5036 = vunpack.c.l.b16 %v5028
    %v5037 = vunpack.c.l.b16 %v5029
    %v5038 = vpack.c.b16 %v5035, %v5034
    %v5039 = vpack.c.b16 %v5037, %v5036
    %v5043 = vsel %vm3103, %v4993, 0
    %v5046 = vsel %vm3103, %v4994, 0
    %v5049 = vsel %vm3103, %v4995, 0
    %v5052 = vsel %vm3103, %v4996, 0
    %v5055 = vsel %vm3103, %v4997, 0
    %v5058 = vsel %vm3103, %v4998, 0
    %v5061 = vsel %vm3103, %v4999, 0
    %v5064 = vsel %vm3103, %v5000, 0
    %v5067 = vsel %vm3103, %v5001, 0
    %v5070 = vsel %vm3103, %v5002, 0
    %v5073 = vsel %vm3103, %v5003, 0
    %v5076 = vsel %vm3103, %v5004, 0
    %v5079 = vsel %vm3103, %v5005, 0
    %v5082 = vsel %vm3103, %v5006, 0
    %v5085 = vsel %vm3103, %v5007, 0
    %v5088 = vsel %vm3103, %v5008, 0
    %v5091 = vsel %vm3103, %v5009, 0
    %v5094 = vsel %vm3103, %v5010, 0
    %v5097 = vsel %vm3103, %v5011, 0
    %v5100 = vsel %vm3103, %v5012, 0
    %v5103 = vsel %vm3103, %v5013, 0
    %v5106 = vsel %vm3103, %v5014, 0
    %v5109 = vsel %vm3103, %v5015, 0
    %v5112 = vsel %vm3103, %v5016, 0
    %v5115 = vsel %vm3103, %v5017, 0
    %v5118 = vsel %vm3103, %v5018, 0
    %v5121 = vsel %vm3103, %v5019, 0
    %v5124 = vsel %vm3103, %v5020, 0
    %v5127 = vsel %vm3103, %v5021, 0
    %v5130 = vsel %vm3103, %v5022, 0
    %v5133 = vsel %vm3103, %v5023, 0
    %v5136 = vsel %vm3103, %v5024, 0
    %5138 = vmatpush.bf16.msra.mxu0 0
    %5139 = vmatpush.bf16.msra.mxu0 0
    %5140 = vmatpush.bf16.msra.mxu0 0
    %5141 = vmatpush.bf16.msra.mxu0 0
    %5142 = vmatpush.bf16.msra.mxu0 0
    %5143 = vmatpush.bf16.msra.mxu0 0
    %5144 = vmatpush.bf16.msra.mxu0 %v5039
    %5145 = vmatpush.bf16.msra.mxu0 %v5038
    %5146 = vmatmul.bf16.gmra.mxu0 %v5043
    %v5147 = vpop.f32.mrf.mxu0
    %v5148 = vadd.f32 0.0, %v5147
    %v5149 = vpop.f32.mrf.mxu0
    %v5150 = vadd.f32 0.0, %v5149
    %5151 = vmatmul.bf16.gmra.mxu0 %v5046
    %v5152 = vpop.f32.mrf.mxu0
    %v5153 = vadd.f32 0.0, %v5152
    %v5154 = vpop.f32.mrf.mxu0
    %v5155 = vadd.f32 0.0, %v5154
    %5156 = vmatmul.bf16.gmra.mxu0 %v5049
    %v5157 = vpop.f32.mrf.mxu0
    %v5158 = vadd.f32 0.0, %v5157
    %v5159 = vpop.f32.mrf.mxu0
    %v5160 = vadd.f32 0.0, %v5159
    %5161 = vmatmul.bf16.gmra.mxu0 %v5052
    %v5162 = vpop.f32.mrf.mxu0
    %v5163 = vadd.f32 0.0, %v5162
    %v5164 = vpop.f32.mrf.mxu0
    %v5165 = vadd.f32 0.0, %v5164
    %5166 = vmatmul.bf16.gmra.mxu0 %v5055
    %v5167 = vpop.f32.mrf.mxu0
    %v5168 = vadd.f32 0.0, %v5167
    %v5169 = vpop.f32.mrf.mxu0
    %v5170 = vadd.f32 0.0, %v5169
    %5171 = vmatmul.bf16.gmra.mxu0 %v5058
    %v5172 = vpop.f32.mrf.mxu0
    %v5173 = vadd.f32 0.0, %v5172
    %v5174 = vpop.f32.mrf.mxu0
    %v5175 = vadd.f32 0.0, %v5174
    %5176 = vmatmul.bf16.gmra.mxu0 %v5061
    %v5177 = vpop.f32.mrf.mxu0
    %v5178 = vadd.f32 0.0, %v5177
    %v5179 = vpop.f32.mrf.mxu0
    %v5180 = vadd.f32 0.0, %v5179
    %5181 = vmatmul.bf16.gmra.mxu0 %v5064
    %v5182 = vpop.f32.mrf.mxu0
    %v5183 = vadd.f32 0.0, %v5182
    %v5184 = vpop.f32.mrf.mxu0
    %v5185 = vadd.f32 0.0, %v5184
    %5186 = vmatmul.bf16.gmra.mxu0 %v5067
    %v5187 = vpop.f32.mrf.mxu0
    %v5188 = vadd.f32 0.0, %v5187
    %v5189 = vpop.f32.mrf.mxu0
    %v5190 = vadd.f32 0.0, %v5189
    %5191 = vmatmul.bf16.gmra.mxu0 %v5070
    %v5192 = vpop.f32.mrf.mxu0
    %v5193 = vadd.f32 0.0, %v5192
    %v5194 = vpop.f32.mrf.mxu0
    %v5195 = vadd.f32 0.0, %v5194
    %5196 = vmatmul.bf16.gmra.mxu0 %v5073
    %v5197 = vpop.f32.mrf.mxu0
    %v5198 = vadd.f32 0.0, %v5197
    %v5199 = vpop.f32.mrf.mxu0
    %v5200 = vadd.f32 0.0, %v5199
    %5201 = vmatmul.bf16.gmra.mxu0 %v5076
    %v5202 = vpop.f32.mrf.mxu0
    %v5203 = vadd.f32 0.0, %v5202
    %v5204 = vpop.f32.mrf.mxu0
    %v5205 = vadd.f32 0.0, %v5204
    %5206 = vmatmul.bf16.gmra.mxu0 %v5079
    %v5207 = vpop.f32.mrf.mxu0
    %v5208 = vadd.f32 0.0, %v5207
    %v5209 = vpop.f32.mrf.mxu0
    %v5210 = vadd.f32 0.0, %v5209
    %5211 = vmatmul.bf16.gmra.mxu0 %v5082
    %v5212 = vpop.f32.mrf.mxu0
    %v5213 = vadd.f32 0.0, %v5212
    %v5214 = vpop.f32.mrf.mxu0
    %v5215 = vadd.f32 0.0, %v5214
    %5216 = vmatmul.bf16.gmra.mxu0 %v5085
    %v5217 = vpop.f32.mrf.mxu0
    %v5218 = vadd.f32 0.0, %v5217
    %v5219 = vpop.f32.mrf.mxu0
    %v5220 = vadd.f32 0.0, %v5219
    %5221 = vmatmul.bf16.gmra.mxu0 %v5088
    %v5222 = vpop.f32.mrf.mxu0
    %v5223 = vadd.f32 0.0, %v5222
    %v5224 = vpop.f32.mrf.mxu0
    %v5225 = vadd.f32 0.0, %v5224
    %5226 = vmatmul.bf16.gmra.mxu0 %v5091
    %v5227 = vpop.f32.mrf.mxu0
    %v5228 = vadd.f32 0.0, %v5227
    %v5229 = vpop.f32.mrf.mxu0
    %v5230 = vadd.f32 0.0, %v5229
    %5231 = vmatmul.bf16.gmra.mxu0 %v5094
    %v5232 = vpop.f32.mrf.mxu0
    %v5233 = vadd.f32 0.0, %v5232
    %v5234 = vpop.f32.mrf.mxu0
    %v5235 = vadd.f32 0.0, %v5234
    %5236 = vmatmul.bf16.gmra.mxu0 %v5097
    %v5237 = vpop.f32.mrf.mxu0
    %v5238 = vadd.f32 0.0, %v5237
    %v5239 = vpop.f32.mrf.mxu0
    %v5240 = vadd.f32 0.0, %v5239
    %5241 = vmatmul.bf16.gmra.mxu0 %v5100
    %v5242 = vpop.f32.mrf.mxu0
    %v5243 = vadd.f32 0.0, %v5242
    %v5244 = vpop.f32.mrf.mxu0
    %v5245 = vadd.f32 0.0, %v5244
    %5246 = vmatmul.bf16.gmra.mxu0 %v5103
    %v5247 = vpop.f32.mrf.mxu0
    %v5248 = vadd.f32 0.0, %v5247
    %v5249 = vpop.f32.mrf.mxu0
    %v5250 = vadd.f32 0.0, %v5249
    %5251 = vmatmul.bf16.gmra.mxu0 %v5106
    %v5252 = vpop.f32.mrf.mxu0
    %v5253 = vadd.f32 0.0, %v5252
    %v5254 = vpop.f32.mrf.mxu0
    %v5255 = vadd.f32 0.0, %v5254
    %5256 = vmatmul.bf16.gmra.mxu0 %v5109
    %v5257 = vpop.f32.mrf.mxu0
    %v5258 = vadd.f32 0.0, %v5257
    %v5259 = vpop.f32.mrf.mxu0
    %v5260 = vadd.f32 0.0, %v5259
    %5261 = vmatmul.bf16.gmra.mxu0 %v5112
    %v5262 = vpop.f32.mrf.mxu0
    %v5263 = vadd.f32 0.0, %v5262
    %v5264 = vpop.f32.mrf.mxu0
    %v5265 = vadd.f32 0.0, %v5264
    %5266 = vmatmul.bf16.gmra.mxu0 %v5115
    %v5267 = vpop.f32.mrf.mxu0
    %v5268 = vadd.f32 0.0, %v5267
    %v5269 = vpop.f32.mrf.mxu0
    %v5270 = vadd.f32 0.0, %v5269
    %5271 = vmatmul.bf16.gmra.mxu0 %v5118
    %v5272 = vpop.f32.mrf.mxu0
    %v5273 = vadd.f32 0.0, %v5272
    %v5274 = vpop.f32.mrf.mxu0
    %v5275 = vadd.f32 0.0, %v5274
    %5276 = vmatmul.bf16.gmra.mxu0 %v5121
    %v5277 = vpop.f32.mrf.mxu0
    %v5278 = vadd.f32 0.0, %v5277
    %v5279 = vpop.f32.mrf.mxu0
    %v5280 = vadd.f32 0.0, %v5279
    %5281 = vmatmul.bf16.gmra.mxu0 %v5124
    %v5282 = vpop.f32.mrf.mxu0
    %v5283 = vadd.f32 0.0, %v5282
    %v5284 = vpop.f32.mrf.mxu0
    %v5285 = vadd.f32 0.0, %v5284
    %5286 = vmatmul.bf16.gmra.mxu0 %v5127
    %v5287 = vpop.f32.mrf.mxu0
    %v5288 = vadd.f32 0.0, %v5287
    %v5289 = vpop.f32.mrf.mxu0
    %v5290 = vadd.f32 0.0, %v5289
    %5291 = vmatmul.bf16.gmra.mxu0 %v5130
    %v5292 = vpop.f32.mrf.mxu0
    %v5293 = vadd.f32 0.0, %v5292
    %v5294 = vpop.f32.mrf.mxu0
    %v5295 = vadd.f32 0.0, %v5294
    %5296 = vmatmul.bf16.gmra.mxu0 %v5133
    %v5297 = vpop.f32.mrf.mxu0
    %v5298 = vadd.f32 0.0, %v5297
    %v5299 = vpop.f32.mrf.mxu0
    %v5300 = vadd.f32 0.0, %v5299
    %5301 = vmatmul.bf16.gmra.mxu0 %v5136
    %v5302 = vpop.f32.mrf.mxu0
    %v5303 = vadd.f32 0.0, %v5302
    %v5304 = vpop.f32.mrf.mxu0
    %v5305 = vadd.f32 0.0, %v5304
    %5306 = vdwg.mxu0
    %v5307 = vadd.f32 %v4865, %v5148
    %v5308 = vadd.f32 %v4866, %v5150
    %v5309 = vadd.f32 %v4867, %v5153
    %v5310 = vadd.f32 %v4868, %v5155
    %v5311 = vadd.f32 %v4869, %v5158
    %v5312 = vadd.f32 %v4870, %v5160
    %v5313 = vadd.f32 %v4871, %v5163
    %v5314 = vadd.f32 %v4872, %v5165
    %v5315 = vadd.f32 %v4873, %v5168
    %v5316 = vadd.f32 %v4874, %v5170
    %v5317 = vadd.f32 %v4875, %v5173
    %v5318 = vadd.f32 %v4876, %v5175
    %v5319 = vadd.f32 %v4877, %v5178
    %v5320 = vadd.f32 %v4878, %v5180
    %v5321 = vadd.f32 %v4879, %v5183
    %v5322 = vadd.f32 %v4880, %v5185
    %v5323 = vadd.f32 %v4881, %v5188
    %v5324 = vadd.f32 %v4882, %v5190
    %v5325 = vadd.f32 %v4883, %v5193
    %v5326 = vadd.f32 %v4884, %v5195
    %v5327 = vadd.f32 %v4885, %v5198
    %v5328 = vadd.f32 %v4886, %v5200
    %v5329 = vadd.f32 %v4887, %v5203
    %v5330 = vadd.f32 %v4888, %v5205
    %v5331 = vadd.f32 %v4889, %v5208
    %v5332 = vadd.f32 %v4890, %v5210
    %v5333 = vadd.f32 %v4891, %v5213
    %v5334 = vadd.f32 %v4892, %v5215
    %v5335 = vadd.f32 %v4893, %v5218
    %v5336 = vadd.f32 %v4894, %v5220
    %v5337 = vadd.f32 %v4895, %v5223
    %v5338 = vadd.f32 %v4896, %v5225
    %v5339 = vadd.f32 %v4897, %v5228
    %v5340 = vadd.f32 %v4898, %v5230
    %v5341 = vadd.f32 %v4899, %v5233
    %v5342 = vadd.f32 %v4900, %v5235
    %v5343 = vadd.f32 %v4901, %v5238
    %v5344 = vadd.f32 %v4902, %v5240
    %v5345 = vadd.f32 %v4903, %v5243
    %v5346 = vadd.f32 %v4904, %v5245
    %v5347 = vadd.f32 %v4905, %v5248
    %v5348 = vadd.f32 %v4906, %v5250
    %v5349 = vadd.f32 %v4907, %v5253
    %v5350 = vadd.f32 %v4908, %v5255
    %v5351 = vadd.f32 %v4909, %v5258
    %v5352 = vadd.f32 %v4910, %v5260
    %v5353 = vadd.f32 %v4911, %v5263
    %v5354 = vadd.f32 %v4912, %v5265
    %v5355 = vadd.f32 %v4913, %v5268
    %v5356 = vadd.f32 %v4914, %v5270
    %v5357 = vadd.f32 %v4915, %v5273
    %v5358 = vadd.f32 %v4916, %v5275
    %v5359 = vadd.f32 %v4917, %v5278
    %v5360 = vadd.f32 %v4918, %v5280
    %v5361 = vadd.f32 %v4919, %v5283
    %v5362 = vadd.f32 %v4920, %v5285
    %v5363 = vadd.f32 %v4921, %v5288
    %v5364 = vadd.f32 %v4922, %v5290
    %v5365 = vadd.f32 %v4923, %v5293
    %v5366 = vadd.f32 %v4924, %v5295
    %v5367 = vadd.f32 %v4925, %v5298
    %v5368 = vadd.f32 %v4926, %v5300
    %v5369 = vadd.f32 %v4927, %v5303
    %v5370 = vadd.f32 %v4928, %v5305
    %v5371 = vld [vmem:[%s3667 + $0x1] sm:$0xff]
    %v5372 = vld [vmem:[%s3667 + $0x9] sm:$0xff]
    %v5373 = vld [vmem:[%s3667 + $0x19] sm:$0xff]
    %v5374 = vld [vmem:[%s3667 + $0x21] sm:$0xff]
    %v5375 = vld [vmem:[%s3667 + $0x31] sm:$0xff]
    %v5376 = vld [vmem:[%s3667 + $0x39] sm:$0xff]
    %v5377 = vld [vmem:[%s3667 + $0x49] sm:$0xff]
    %v5378 = vld [vmem:[%s3667 + $0x51] sm:$0xff]
    %v5379 = vld [vmem:[%s3667 + $0x61] sm:$0xff]
    %v5380 = vld [vmem:[%s3667 + $0x69] sm:$0xff]
    %v5381 = vld [vmem:[%s3667 + $0x79] sm:$0xff]
    %v5382 = vld [vmem:[%s3667 + $0x81] sm:$0xff]
    %v5383 = vld [vmem:[%s3667 + $0x91] sm:$0xff]
    %v5384 = vld [vmem:[%s3667 + $0x99] sm:$0xff]
    %v5385 = vld [vmem:[%s3667 + $0xa9] sm:$0xff]
    %v5386 = vld [vmem:[%s3667 + $0xb1] sm:$0xff]
    %v5387 = vld [vmem:[%s3667 + $0xc1] sm:$0xff]
    %v5388 = vld [vmem:[%s3667 + $0xc9] sm:$0xff]
    %v5389 = vld [vmem:[%s3667 + $0xd9] sm:$0xff]
    %v5390 = vld [vmem:[%s3667 + $0xe1] sm:$0xff]
    %v5391 = vld [vmem:[%s3667 + $0xf1] sm:$0xff]
    %v5392 = vld [vmem:[%s3667 + $0xf9] sm:$0xff]
    %v5393 = vld [vmem:[%s3667 + $0x109] sm:$0xff]
    %v5394 = vld [vmem:[%s3667 + $0x111] sm:$0xff]
    %v5395 = vld [vmem:[%s3667 + $0x121] sm:$0xff]
    %v5396 = vld [vmem:[%s3667 + $0x129] sm:$0xff]
    %v5397 = vld [vmem:[%s3667 + $0x139] sm:$0xff]
    %v5398 = vld [vmem:[%s3667 + $0x141] sm:$0xff]
    %v5399 = vld [vmem:[%s3667 + $0x151] sm:$0xff]
    %v5400 = vld [vmem:[%s3667 + $0x159] sm:$0xff]
    %v5401 = vld [vmem:[%s3667 + $0x169] sm:$0xff]
    %v5402 = vld [vmem:[%s3667 + $0x171] sm:$0xff]
    %v5403 = vld [vmem:[%s3667 + $0x1b1] sm:$0xff]
    %v5404 = vld [vmem:[%s3667 + $0x1b9] sm:$0xff]
    %v5405 = vld [vmem:[%s3667 + $0x1c9] sm:$0xff]
    %v5406 = vld [vmem:[%s3667 + $0x1d1] sm:$0xff]
    %v5407 = vld [vmem:[%s3667 + $0x1e1] sm:$0xff]
    %v5408 = vld [vmem:[%s3667 + $0x1e9] sm:$0xff]
    %v5409 = vld [vmem:[%s3667 + $0x1f9] sm:$0xff]
    %v5410 = vld [vmem:[%s3667 + $0x201] sm:$0xff]
    %v5411 = vld [vmem:[%s3667 + $0x211] sm:$0xff]
    %v5412 = vld [vmem:[%s3667 + $0x219] sm:$0xff]
    %v5413 = vld [vmem:[%s3667 + $0x229] sm:$0xff]
    %v5414 = vld [vmem:[%s3667 + $0x231] sm:$0xff]
    %v5415 = vld [vmem:[%s3667 + $0x241] sm:$0xff]
    %v5416 = vld [vmem:[%s3667 + $0x249] sm:$0xff]
    %v5417 = vld [vmem:[%s3667 + $0x259] sm:$0xff]
    %v5418 = vld [vmem:[%s3667 + $0x261] sm:$0xff]
    %v5419 = vld [vmem:[%s3667 + $0x271] sm:$0xff]
    %v5420 = vld [vmem:[%s3667 + $0x279] sm:$0xff]
    %v5421 = vld [vmem:[%s3667 + $0x289] sm:$0xff]
    %v5422 = vld [vmem:[%s3667 + $0x291] sm:$0xff]
    %v5423 = vld [vmem:[%s3667 + $0x2a1] sm:$0xff]
    %v5424 = vld [vmem:[%s3667 + $0x2a9] sm:$0xff]
    %v5425 = vld [vmem:[%s3667 + $0x2b9] sm:$0xff]
    %v5426 = vld [vmem:[%s3667 + $0x2c1] sm:$0xff]
    %v5427 = vld [vmem:[%s3667 + $0x2d1] sm:$0xff]
    %v5428 = vld [vmem:[%s3667 + $0x2d9] sm:$0xff]
    %v5429 = vld [vmem:[%s3667 + $0x2e9] sm:$0xff]
    %v5430 = vld [vmem:[%s3667 + $0x2f1] sm:$0xff]
    %v5431 = vld [vmem:[%s3667 + $0x301] sm:$0xff]
    %v5432 = vld [vmem:[%s3667 + $0x309] sm:$0xff]
    %v5433 = vld [vmem:[%s3667 + $0x319] sm:$0xff]
    %v5434 = vld [vmem:[%s3667 + $0x321] sm:$0xff]
    %v5435 = vpack.c.bf16 %v5372, %v5371
    %v5436 = vpack.c.bf16 %v5374, %v5373
    %v5437 = vpack.c.bf16 %v5376, %v5375
    %v5438 = vpack.c.bf16 %v5378, %v5377
    %v5439 = vpack.c.bf16 %v5380, %v5379
    %v5440 = vpack.c.bf16 %v5382, %v5381
    %v5441 = vpack.c.bf16 %v5384, %v5383
    %v5442 = vpack.c.bf16 %v5386, %v5385
    %v5443 = vpack.c.bf16 %v5388, %v5387
    %v5444 = vpack.c.bf16 %v5390, %v5389
    %v5445 = vpack.c.bf16 %v5392, %v5391
    %v5446 = vpack.c.bf16 %v5394, %v5393
    %v5447 = vpack.c.bf16 %v5396, %v5395
    %v5448 = vpack.c.bf16 %v5398, %v5397
    %v5449 = vpack.c.bf16 %v5400, %v5399
    %v5450 = vpack.c.bf16 %v5402, %v5401
    %v5451 = vpack.c.bf16 %v5404, %v5403
    %v5452 = vpack.c.bf16 %v5406, %v5405
    %v5453 = vpack.c.bf16 %v5408, %v5407
    %v5454 = vpack.c.bf16 %v5410, %v5409
    %v5455 = vpack.c.bf16 %v5412, %v5411
    %v5456 = vpack.c.bf16 %v5414, %v5413
    %v5457 = vpack.c.bf16 %v5416, %v5415
    %v5458 = vpack.c.bf16 %v5418, %v5417
    %v5459 = vpack.c.bf16 %v5420, %v5419
    %v5460 = vpack.c.bf16 %v5422, %v5421
    %v5461 = vpack.c.bf16 %v5424, %v5423
    %v5462 = vpack.c.bf16 %v5426, %v5425
    %v5463 = vpack.c.bf16 %v5428, %v5427
    %v5464 = vpack.c.bf16 %v5430, %v5429
    %v5465 = vpack.c.bf16 %v5432, %v5431
    %v5466 = vpack.c.bf16 %v5434, %v5433
    %s5467 = scalar_lea.vmem %s3, 64
    %v5468 = vld [vmem:[%s5467] sm:$0xf]
    %v5469 = vld [vmem:[%s5467 + $0x4] sm:$0xf]
    %v5470 = vld [vmem:[%s5467 + $0x8] sm:$0xf]
    %v5471 = vld [vmem:[%s5467 + $0xc] sm:$0xf]
    %v5476 = vunpack.c.l.b16 %v5468
    %v5477 = vunpack.c.l.b16 %v5469
    %v5478 = vunpack.c.l.b16 %v5470
    %v5479 = vunpack.c.l.b16 %v5471
    %v5480 = vpack.c.b16 %v5477, %v5476
    %v5481 = vpack.c.b16 %v5479, %v5478
    %v5485 = vsel %vm3103, %v5435, 0
    %v5488 = vsel %vm3103, %v5436, 0
    %v5491 = vsel %vm3103, %v5437, 0
    %v5494 = vsel %vm3103, %v5438, 0
    %v5497 = vsel %vm3103, %v5439, 0
    %v5500 = vsel %vm3103, %v5440, 0
    %v5503 = vsel %vm3103, %v5441, 0
    %v5506 = vsel %vm3103, %v5442, 0
    %v5509 = vsel %vm3103, %v5443, 0
    %v5512 = vsel %vm3103, %v5444, 0
    %v5515 = vsel %vm3103, %v5445, 0
    %v5518 = vsel %vm3103, %v5446, 0
    %v5521 = vsel %vm3103, %v5447, 0
    %v5524 = vsel %vm3103, %v5448, 0
    %v5527 = vsel %vm3103, %v5449, 0
    %v5530 = vsel %vm3103, %v5450, 0
    %v5533 = vsel %vm3103, %v5451, 0
    %v5536 = vsel %vm3103, %v5452, 0
    %v5539 = vsel %vm3103, %v5453, 0
    %v5542 = vsel %vm3103, %v5454, 0
    %v5545 = vsel %vm3103, %v5455, 0
    %v5548 = vsel %vm3103, %v5456, 0
    %v5551 = vsel %vm3103, %v5457, 0
    %v5554 = vsel %vm3103, %v5458, 0
    %v5557 = vsel %vm3103, %v5459, 0
    %v5560 = vsel %vm3103, %v5460, 0
    %v5563 = vsel %vm3103, %v5461, 0
    %v5566 = vsel %vm3103, %v5462, 0
    %v5569 = vsel %vm3103, %v5463, 0
    %v5572 = vsel %vm3103, %v5464, 0
    %v5575 = vsel %vm3103, %v5465, 0
    %v5578 = vsel %vm3103, %v5466, 0
    %5580 = vmatpush.bf16.msra.mxu0 0
    %5581 = vmatpush.bf16.msra.mxu0 0
    %5582 = vmatpush.bf16.msra.mxu0 0
    %5583 = vmatpush.bf16.msra.mxu0 0
    %5584 = vmatpush.bf16.msra.mxu0 0
    %5585 = vmatpush.bf16.msra.mxu0 0
    %5586 = vmatpush.bf16.msra.mxu0 %v5481
    %5587 = vmatpush.bf16.msra.mxu0 %v5480
    %5588 = vmatmul.bf16.gmra.mxu0 %v5485
    %v5589 = vpop.f32.mrf.mxu0
    %v5590 = vadd.f32 0.0, %v5589
    %v5591 = vpop.f32.mrf.mxu0
    %v5592 = vadd.f32 0.0, %v5591
    %5593 = vmatmul.bf16.gmra.mxu0 %v5488
    %v5594 = vpop.f32.mrf.mxu0
    %v5595 = vadd.f32 0.0, %v5594
    %v5596 = vpop.f32.mrf.mxu0
    %v5597 = vadd.f32 0.0, %v5596
    %5598 = vmatmul.bf16.gmra.mxu0 %v5491
    %v5599 = vpop.f32.mrf.mxu0
    %v5600 = vadd.f32 0.0, %v5599
    %v5601 = vpop.f32.mrf.mxu0
    %v5602 = vadd.f32 0.0, %v5601
    %5603 = vmatmul.bf16.gmra.mxu0 %v5494
    %v5604 = vpop.f32.mrf.mxu0
    %v5605 = vadd.f32 0.0, %v5604
    %v5606 = vpop.f32.mrf.mxu0
    %v5607 = vadd.f32 0.0, %v5606
    %5608 = vmatmul.bf16.gmra.mxu0 %v5497
    %v5609 = vpop.f32.mrf.mxu0
    %v5610 = vadd.f32 0.0, %v5609
    %v5611 = vpop.f32.mrf.mxu0
    %v5612 = vadd.f32 0.0, %v5611
    %5613 = vmatmul.bf16.gmra.mxu0 %v5500
    %v5614 = vpop.f32.mrf.mxu0
    %v5615 = vadd.f32 0.0, %v5614
    %v5616 = vpop.f32.mrf.mxu0
    %v5617 = vadd.f32 0.0, %v5616
    %5618 = vmatmul.bf16.gmra.mxu0 %v5503
    %v5619 = vpop.f32.mrf.mxu0
    %v5620 = vadd.f32 0.0, %v5619
    %v5621 = vpop.f32.mrf.mxu0
    %v5622 = vadd.f32 0.0, %v5621
    %5623 = vmatmul.bf16.gmra.mxu0 %v5506
    %v5624 = vpop.f32.mrf.mxu0
    %v5625 = vadd.f32 0.0, %v5624
    %v5626 = vpop.f32.mrf.mxu0
    %v5627 = vadd.f32 0.0, %v5626
    %5628 = vmatmul.bf16.gmra.mxu0 %v5509
    %v5629 = vpop.f32.mrf.mxu0
    %v5630 = vadd.f32 0.0, %v5629
    %v5631 = vpop.f32.mrf.mxu0
    %v5632 = vadd.f32 0.0, %v5631
    %5633 = vmatmul.bf16.gmra.mxu0 %v5512
    %v5634 = vpop.f32.mrf.mxu0
    %v5635 = vadd.f32 0.0, %v5634
    %v5636 = vpop.f32.mrf.mxu0
    %v5637 = vadd.f32 0.0, %v5636
    %5638 = vmatmul.bf16.gmra.mxu0 %v5515
    %v5639 = vpop.f32.mrf.mxu0
    %v5640 = vadd.f32 0.0, %v5639
    %v5641 = vpop.f32.mrf.mxu0
    %v5642 = vadd.f32 0.0, %v5641
    %5643 = vmatmul.bf16.gmra.mxu0 %v5518
    %v5644 = vpop.f32.mrf.mxu0
    %v5645 = vadd.f32 0.0, %v5644
    %v5646 = vpop.f32.mrf.mxu0
    %v5647 = vadd.f32 0.0, %v5646
    %5648 = vmatmul.bf16.gmra.mxu0 %v5521
    %v5649 = vpop.f32.mrf.mxu0
    %v5650 = vadd.f32 0.0, %v5649
    %v5651 = vpop.f32.mrf.mxu0
    %v5652 = vadd.f32 0.0, %v5651
    %5653 = vmatmul.bf16.gmra.mxu0 %v5524
    %v5654 = vpop.f32.mrf.mxu0
    %v5655 = vadd.f32 0.0, %v5654
    %v5656 = vpop.f32.mrf.mxu0
    %v5657 = vadd.f32 0.0, %v5656
    %5658 = vmatmul.bf16.gmra.mxu0 %v5527
    %v5659 = vpop.f32.mrf.mxu0
    %v5660 = vadd.f32 0.0, %v5659
    %v5661 = vpop.f32.mrf.mxu0
    %v5662 = vadd.f32 0.0, %v5661
    %5663 = vmatmul.bf16.gmra.mxu0 %v5530
    %v5664 = vpop.f32.mrf.mxu0
    %v5665 = vadd.f32 0.0, %v5664
    %v5666 = vpop.f32.mrf.mxu0
    %v5667 = vadd.f32 0.0, %v5666
    %5668 = vmatmul.bf16.gmra.mxu0 %v5533
    %v5669 = vpop.f32.mrf.mxu0
    %v5670 = vadd.f32 0.0, %v5669
    %v5671 = vpop.f32.mrf.mxu0
    %v5672 = vadd.f32 0.0, %v5671
    %5673 = vmatmul.bf16.gmra.mxu0 %v5536
    %v5674 = vpop.f32.mrf.mxu0
    %v5675 = vadd.f32 0.0, %v5674
    %v5676 = vpop.f32.mrf.mxu0
    %v5677 = vadd.f32 0.0, %v5676
    %5678 = vmatmul.bf16.gmra.mxu0 %v5539
    %v5679 = vpop.f32.mrf.mxu0
    %v5680 = vadd.f32 0.0, %v5679
    %v5681 = vpop.f32.mrf.mxu0
    %v5682 = vadd.f32 0.0, %v5681
    %5683 = vmatmul.bf16.gmra.mxu0 %v5542
    %v5684 = vpop.f32.mrf.mxu0
    %v5685 = vadd.f32 0.0, %v5684
    %v5686 = vpop.f32.mrf.mxu0
    %v5687 = vadd.f32 0.0, %v5686
    %5688 = vmatmul.bf16.gmra.mxu0 %v5545
    %v5689 = vpop.f32.mrf.mxu0
    %v5690 = vadd.f32 0.0, %v5689
    %v5691 = vpop.f32.mrf.mxu0
    %v5692 = vadd.f32 0.0, %v5691
    %5693 = vmatmul.bf16.gmra.mxu0 %v5548
    %v5694 = vpop.f32.mrf.mxu0
    %v5695 = vadd.f32 0.0, %v5694
    %v5696 = vpop.f32.mrf.mxu0
    %v5697 = vadd.f32 0.0, %v5696
    %5698 = vmatmul.bf16.gmra.mxu0 %v5551
    %v5699 = vpop.f32.mrf.mxu0
    %v5700 = vadd.f32 0.0, %v5699
    %v5701 = vpop.f32.mrf.mxu0
    %v5702 = vadd.f32 0.0, %v5701
    %5703 = vmatmul.bf16.gmra.mxu0 %v5554
    %v5704 = vpop.f32.mrf.mxu0
    %v5705 = vadd.f32 0.0, %v5704
    %v5706 = vpop.f32.mrf.mxu0
    %v5707 = vadd.f32 0.0, %v5706
    %5708 = vmatmul.bf16.gmra.mxu0 %v5557
    %v5709 = vpop.f32.mrf.mxu0
    %v5710 = vadd.f32 0.0, %v5709
    %v5711 = vpop.f32.mrf.mxu0
    %v5712 = vadd.f32 0.0, %v5711
    %5713 = vmatmul.bf16.gmra.mxu0 %v5560
    %v5714 = vpop.f32.mrf.mxu0
    %v5715 = vadd.f32 0.0, %v5714
    %v5716 = vpop.f32.mrf.mxu0
    %v5717 = vadd.f32 0.0, %v5716
    %5718 = vmatmul.bf16.gmra.mxu0 %v5563
    %v5719 = vpop.f32.mrf.mxu0
    %v5720 = vadd.f32 0.0, %v5719
    %v5721 = vpop.f32.mrf.mxu0
    %v5722 = vadd.f32 0.0, %v5721
    %5723 = vmatmul.bf16.gmra.mxu0 %v5566
    %v5724 = vpop.f32.mrf.mxu0
    %v5725 = vadd.f32 0.0, %v5724
    %v5726 = vpop.f32.mrf.mxu0
    %v5727 = vadd.f32 0.0, %v5726
    %5728 = vmatmul.bf16.gmra.mxu0 %v5569
    %v5729 = vpop.f32.mrf.mxu0
    %v5730 = vadd.f32 0.0, %v5729
    %v5731 = vpop.f32.mrf.mxu0
    %v5732 = vadd.f32 0.0, %v5731
    %5733 = vmatmul.bf16.gmra.mxu0 %v5572
    %v5734 = vpop.f32.mrf.mxu0
    %v5735 = vadd.f32 0.0, %v5734
    %v5736 = vpop.f32.mrf.mxu0
    %v5737 = vadd.f32 0.0, %v5736
    %5738 = vmatmul.bf16.gmra.mxu0 %v5575
    %v5739 = vpop.f32.mrf.mxu0
    %v5740 = vadd.f32 0.0, %v5739
    %v5741 = vpop.f32.mrf.mxu0
    %v5742 = vadd.f32 0.0, %v5741
    %5743 = vmatmul.bf16.gmra.mxu0 %v5578
    %v5744 = vpop.f32.mrf.mxu0
    %v5745 = vadd.f32 0.0, %v5744
    %v5746 = vpop.f32.mrf.mxu0
    %v5747 = vadd.f32 0.0, %v5746
    %5748 = vdwg.mxu0
    %v5749 = vadd.f32 %v5307, %v5590
    %v5750 = vadd.f32 %v5308, %v5592
    %v5751 = vadd.f32 %v5309, %v5595
    %v5752 = vadd.f32 %v5310, %v5597
    %v5753 = vadd.f32 %v5311, %v5600
    %v5754 = vadd.f32 %v5312, %v5602
    %v5755 = vadd.f32 %v5313, %v5605
    %v5756 = vadd.f32 %v5314, %v5607
    %v5757 = vadd.f32 %v5315, %v5610
    %v5758 = vadd.f32 %v5316, %v5612
    %v5759 = vadd.f32 %v5317, %v5615
    %v5760 = vadd.f32 %v5318, %v5617
    %v5761 = vadd.f32 %v5319, %v5620
    %v5762 = vadd.f32 %v5320, %v5622
    %v5763 = vadd.f32 %v5321, %v5625
    %v5764 = vadd.f32 %v5322, %v5627
    %v5765 = vadd.f32 %v5323, %v5630
    %v5766 = vadd.f32 %v5324, %v5632
    %v5767 = vadd.f32 %v5325, %v5635
    %v5768 = vadd.f32 %v5326, %v5637
    %v5769 = vadd.f32 %v5327, %v5640
    %v5770 = vadd.f32 %v5328, %v5642
    %v5771 = vadd.f32 %v5329, %v5645
    %v5772 = vadd.f32 %v5330, %v5647
    %v5773 = vadd.f32 %v5331, %v5650
    %v5774 = vadd.f32 %v5332, %v5652
    %v5775 = vadd.f32 %v5333, %v5655
    %v5776 = vadd.f32 %v5334, %v5657
    %v5777 = vadd.f32 %v5335, %v5660
    %v5778 = vadd.f32 %v5336, %v5662
    %v5779 = vadd.f32 %v5337, %v5665
    %v5780 = vadd.f32 %v5338, %v5667
    %v5781 = vadd.f32 %v5339, %v5670
    %v5782 = vadd.f32 %v5340, %v5672
    %v5783 = vadd.f32 %v5341, %v5675
    %v5784 = vadd.f32 %v5342, %v5677
    %v5785 = vadd.f32 %v5343, %v5680
    %v5786 = vadd.f32 %v5344, %v5682
    %v5787 = vadd.f32 %v5345, %v5685
    %v5788 = vadd.f32 %v5346, %v5687
    %v5789 = vadd.f32 %v5347, %v5690
    %v5790 = vadd.f32 %v5348, %v5692
    %v5791 = vadd.f32 %v5349, %v5695
    %v5792 = vadd.f32 %v5350, %v5697
    %v5793 = vadd.f32 %v5351, %v5700
    %v5794 = vadd.f32 %v5352, %v5702
    %v5795 = vadd.f32 %v5353, %v5705
    %v5796 = vadd.f32 %v5354, %v5707
    %v5797 = vadd.f32 %v5355, %v5710
    %v5798 = vadd.f32 %v5356, %v5712
    %v5799 = vadd.f32 %v5357, %v5715
    %v5800 = vadd.f32 %v5358, %v5717
    %v5801 = vadd.f32 %v5359, %v5720
    %v5802 = vadd.f32 %v5360, %v5722
    %v5803 = vadd.f32 %v5361, %v5725
    %v5804 = vadd.f32 %v5362, %v5727
    %v5805 = vadd.f32 %v5363, %v5730
    %v5806 = vadd.f32 %v5364, %v5732
    %v5807 = vadd.f32 %v5365, %v5735
    %v5808 = vadd.f32 %v5366, %v5737
    %v5809 = vadd.f32 %v5367, %v5740
    %v5810 = vadd.f32 %v5368, %v5742
    %v5811 = vadd.f32 %v5369, %v5745
    %v5812 = vadd.f32 %v5370, %v5747
    %v5813 = vld [vmem:[%s3667 + $0x2] sm:$0xff]
    %v5814 = vld [vmem:[%s3667 + $0xa] sm:$0xff]
    %v5815 = vld [vmem:[%s3667 + $0x1a] sm:$0xff]
    %v5816 = vld [vmem:[%s3667 + $0x22] sm:$0xff]
    %v5817 = vld [vmem:[%s3667 + $0x32] sm:$0xff]
    %v5818 = vld [vmem:[%s3667 + $0x3a] sm:$0xff]
    %v5819 = vld [vmem:[%s3667 + $0x4a] sm:$0xff]
    %v5820 = vld [vmem:[%s3667 + $0x52] sm:$0xff]
    %v5821 = vld [vmem:[%s3667 + $0x62] sm:$0xff]
    %v5822 = vld [vmem:[%s3667 + $0x6a] sm:$0xff]
    %v5823 = vld [vmem:[%s3667 + $0x7a] sm:$0xff]
    %v5824 = vld [vmem:[%s3667 + $0x82] sm:$0xff]
    %v5825 = vld [vmem:[%s3667 + $0x92] sm:$0xff]
    %v5826 = vld [vmem:[%s3667 + $0x9a] sm:$0xff]
    %v5827 = vld [vmem:[%s3667 + $0xaa] sm:$0xff]
    %v5828 = vld [vmem:[%s3667 + $0xb2] sm:$0xff]
    %v5829 = vld [vmem:[%s3667 + $0xc2] sm:$0xff]
    %v5830 = vld [vmem:[%s3667 + $0xca] sm:$0xff]
    %v5831 = vld [vmem:[%s3667 + $0xda] sm:$0xff]
    %v5832 = vld [vmem:[%s3667 + $0xe2] sm:$0xff]
    %v5833 = vld [vmem:[%s3667 + $0xf2] sm:$0xff]
    %v5834 = vld [vmem:[%s3667 + $0xfa] sm:$0xff]
    %v5835 = vld [vmem:[%s3667 + $0x10a] sm:$0xff]
    %v5836 = vld [vmem:[%s3667 + $0x112] sm:$0xff]
    %v5837 = vld [vmem:[%s3667 + $0x122] sm:$0xff]
    %v5838 = vld [vmem:[%s3667 + $0x12a] sm:$0xff]
    %v5839 = vld [vmem:[%s3667 + $0x13a] sm:$0xff]
    %v5840 = vld [vmem:[%s3667 + $0x142] sm:$0xff]
    %v5841 = vld [vmem:[%s3667 + $0x152] sm:$0xff]
    %v5842 = vld [vmem:[%s3667 + $0x15a] sm:$0xff]
    %v5843 = vld [vmem:[%s3667 + $0x16a] sm:$0xff]
    %v5844 = vld [vmem:[%s3667 + $0x172] sm:$0xff]
    %v5845 = vld [vmem:[%s3667 + $0x1b2] sm:$0xff]
    %v5846 = vld [vmem:[%s3667 + $0x1ba] sm:$0xff]
    %v5847 = vld [vmem:[%s3667 + $0x1ca] sm:$0xff]
    %v5848 = vld [vmem:[%s3667 + $0x1d2] sm:$0xff]
    %v5849 = vld [vmem:[%s3667 + $0x1e2] sm:$0xff]
    %v5850 = vld [vmem:[%s3667 + $0x1ea] sm:$0xff]
    %v5851 = vld [vmem:[%s3667 + $0x1fa] sm:$0xff]
    %v5852 = vld [vmem:[%s3667 + $0x202] sm:$0xff]
    %v5853 = vld [vmem:[%s3667 + $0x212] sm:$0xff]
    %v5854 = vld [vmem:[%s3667 + $0x21a] sm:$0xff]
    %v5855 = vld [vmem:[%s3667 + $0x22a] sm:$0xff]
    %v5856 = vld [vmem:[%s3667 + $0x232] sm:$0xff]
    %v5857 = vld [vmem:[%s3667 + $0x242] sm:$0xff]
    %v5858 = vld [vmem:[%s3667 + $0x24a] sm:$0xff]
    %v5859 = vld [vmem:[%s3667 + $0x25a] sm:$0xff]
    %v5860 = vld [vmem:[%s3667 + $0x262] sm:$0xff]
    %v5861 = vld [vmem:[%s3667 + $0x272] sm:$0xff]
    %v5862 = vld [vmem:[%s3667 + $0x27a] sm:$0xff]
    %v5863 = vld [vmem:[%s3667 + $0x28a] sm:$0xff]
    %v5864 = vld [vmem:[%s3667 + $0x292] sm:$0xff]
    %v5865 = vld [vmem:[%s3667 + $0x2a2] sm:$0xff]
    %v5866 = vld [vmem:[%s3667 + $0x2aa] sm:$0xff]
    %v5867 = vld [vmem:[%s3667 + $0x2ba] sm:$0xff]
    %v5868 = vld [vmem:[%s3667 + $0x2c2] sm:$0xff]
    %v5869 = vld [vmem:[%s3667 + $0x2d2] sm:$0xff]
    %v5870 = vld [vmem:[%s3667 + $0x2da] sm:$0xff]
    %v5871 = vld [vmem:[%s3667 + $0x2ea] sm:$0xff]
    %v5872 = vld [vmem:[%s3667 + $0x2f2] sm:$0xff]
    %v5873 = vld [vmem:[%s3667 + $0x302] sm:$0xff]
    %v5874 = vld [vmem:[%s3667 + $0x30a] sm:$0xff]
    %v5875 = vld [vmem:[%s3667 + $0x31a] sm:$0xff]
    %v5876 = vld [vmem:[%s3667 + $0x322] sm:$0xff]
    %v5877 = vpack.c.bf16 %v5814, %v5813
    %v5878 = vpack.c.bf16 %v5816, %v5815
    %v5879 = vpack.c.bf16 %v5818, %v5817
    %v5880 = vpack.c.bf16 %v5820, %v5819
    %v5881 = vpack.c.bf16 %v5822, %v5821
    %v5882 = vpack.c.bf16 %v5824, %v5823
    %v5883 = vpack.c.bf16 %v5826, %v5825
    %v5884 = vpack.c.bf16 %v5828, %v5827
    %v5885 = vpack.c.bf16 %v5830, %v5829
    %v5886 = vpack.c.bf16 %v5832, %v5831
    %v5887 = vpack.c.bf16 %v5834, %v5833
    %v5888 = vpack.c.bf16 %v5836, %v5835
    %v5889 = vpack.c.bf16 %v5838, %v5837
    %v5890 = vpack.c.bf16 %v5840, %v5839
    %v5891 = vpack.c.bf16 %v5842, %v5841
    %v5892 = vpack.c.bf16 %v5844, %v5843
    %v5893 = vpack.c.bf16 %v5846, %v5845
    %v5894 = vpack.c.bf16 %v5848, %v5847
    %v5895 = vpack.c.bf16 %v5850, %v5849
    %v5896 = vpack.c.bf16 %v5852, %v5851
    %v5897 = vpack.c.bf16 %v5854, %v5853
    %v5898 = vpack.c.bf16 %v5856, %v5855
    %v5899 = vpack.c.bf16 %v5858, %v5857
    %v5900 = vpack.c.bf16 %v5860, %v5859
    %v5901 = vpack.c.bf16 %v5862, %v5861
    %v5902 = vpack.c.bf16 %v5864, %v5863
    %v5903 = vpack.c.bf16 %v5866, %v5865
    %v5904 = vpack.c.bf16 %v5868, %v5867
    %v5905 = vpack.c.bf16 %v5870, %v5869
    %v5906 = vpack.c.bf16 %v5872, %v5871
    %v5907 = vpack.c.bf16 %v5874, %v5873
    %v5908 = vpack.c.bf16 %v5876, %v5875
    %s5909 = scalar_lea.vmem %s3, 80
    %v5910 = vld [vmem:[%s5909] sm:$0xf]
    %v5911 = vld [vmem:[%s5909 + $0x4] sm:$0xf]
    %v5912 = vld [vmem:[%s5909 + $0x8] sm:$0xf]
    %v5913 = vld [vmem:[%s5909 + $0xc] sm:$0xf]
    %v5918 = vunpack.c.l.b16 %v5910
    %v5919 = vunpack.c.l.b16 %v5911
    %v5920 = vunpack.c.l.b16 %v5912
    %v5921 = vunpack.c.l.b16 %v5913
    %v5922 = vpack.c.b16 %v5919, %v5918
    %v5923 = vpack.c.b16 %v5921, %v5920
    %v5927 = vsel %vm3103, %v5877, 0
    %v5930 = vsel %vm3103, %v5878, 0
    %v5933 = vsel %vm3103, %v5879, 0
    %v5936 = vsel %vm3103, %v5880, 0
    %v5939 = vsel %vm3103, %v5881, 0
    %v5942 = vsel %vm3103, %v5882, 0
    %v5945 = vsel %vm3103, %v5883, 0
    %v5948 = vsel %vm3103, %v5884, 0
    %v5951 = vsel %vm3103, %v5885, 0
    %v5954 = vsel %vm3103, %v5886, 0
    %v5957 = vsel %vm3103, %v5887, 0
    %v5960 = vsel %vm3103, %v5888, 0
    %v5963 = vsel %vm3103, %v5889, 0
    %v5966 = vsel %vm3103, %v5890, 0
    %v5969 = vsel %vm3103, %v5891, 0
    %v5972 = vsel %vm3103, %v5892, 0
    %v5975 = vsel %vm3103, %v5893, 0
    %v5978 = vsel %vm3103, %v5894, 0
    %v5981 = vsel %vm3103, %v5895, 0
    %v5984 = vsel %vm3103, %v5896, 0
    %v5987 = vsel %vm3103, %v5897, 0
    %v5990 = vsel %vm3103, %v5898, 0
    %v5993 = vsel %vm3103, %v5899, 0
    %v5996 = vsel %vm3103, %v5900, 0
    %v5999 = vsel %vm3103, %v5901, 0
    %v6002 = vsel %vm3103, %v5902, 0
    %v6005 = vsel %vm3103, %v5903, 0
    %v6008 = vsel %vm3103, %v5904, 0
    %v6011 = vsel %vm3103, %v5905, 0
    %v6014 = vsel %vm3103, %v5906, 0
    %v6017 = vsel %vm3103, %v5907, 0
    %v6020 = vsel %vm3103, %v5908, 0
    %6022 = vmatpush.bf16.msra.mxu0 0
    %6023 = vmatpush.bf16.msra.mxu0 0
    %6024 = vmatpush.bf16.msra.mxu0 0
    %6025 = vmatpush.bf16.msra.mxu0 0
    %6026 = vmatpush.bf16.msra.mxu0 0
    %6027 = vmatpush.bf16.msra.mxu0 0
    %6028 = vmatpush.bf16.msra.mxu0 %v5923
    %6029 = vmatpush.bf16.msra.mxu0 %v5922
    %6030 = vmatmul.bf16.gmra.mxu0 %v5927
    %v6031 = vpop.f32.mrf.mxu0
    %v6032 = vadd.f32 0.0, %v6031
    %v6033 = vpop.f32.mrf.mxu0
    %v6034 = vadd.f32 0.0, %v6033
    %6035 = vmatmul.bf16.gmra.mxu0 %v5930
    %v6036 = vpop.f32.mrf.mxu0
    %v6037 = vadd.f32 0.0, %v6036
    %v6038 = vpop.f32.mrf.mxu0
    %v6039 = vadd.f32 0.0, %v6038
    %6040 = vmatmul.bf16.gmra.mxu0 %v5933
    %v6041 = vpop.f32.mrf.mxu0
    %v6042 = vadd.f32 0.0, %v6041
    %v6043 = vpop.f32.mrf.mxu0
    %v6044 = vadd.f32 0.0, %v6043
    %6045 = vmatmul.bf16.gmra.mxu0 %v5936
    %v6046 = vpop.f32.mrf.mxu0
    %v6047 = vadd.f32 0.0, %v6046
    %v6048 = vpop.f32.mrf.mxu0
    %v6049 = vadd.f32 0.0, %v6048
    %6050 = vmatmul.bf16.gmra.mxu0 %v5939
    %v6051 = vpop.f32.mrf.mxu0
    %v6052 = vadd.f32 0.0, %v6051
    %v6053 = vpop.f32.mrf.mxu0
    %v6054 = vadd.f32 0.0, %v6053
    %6055 = vmatmul.bf16.gmra.mxu0 %v5942
    %v6056 = vpop.f32.mrf.mxu0
    %v6057 = vadd.f32 0.0, %v6056
    %v6058 = vpop.f32.mrf.mxu0
    %v6059 = vadd.f32 0.0, %v6058
    %6060 = vmatmul.bf16.gmra.mxu0 %v5945
    %v6061 = vpop.f32.mrf.mxu0
    %v6062 = vadd.f32 0.0, %v6061
    %v6063 = vpop.f32.mrf.mxu0
    %v6064 = vadd.f32 0.0, %v6063
    %6065 = vmatmul.bf16.gmra.mxu0 %v5948
    %v6066 = vpop.f32.mrf.mxu0
    %v6067 = vadd.f32 0.0, %v6066
    %v6068 = vpop.f32.mrf.mxu0
    %v6069 = vadd.f32 0.0, %v6068
    %6070 = vmatmul.bf16.gmra.mxu0 %v5951
    %v6071 = vpop.f32.mrf.mxu0
    %v6072 = vadd.f32 0.0, %v6071
    %v6073 = vpop.f32.mrf.mxu0
    %v6074 = vadd.f32 0.0, %v6073
    %6075 = vmatmul.bf16.gmra.mxu0 %v5954
    %v6076 = vpop.f32.mrf.mxu0
    %v6077 = vadd.f32 0.0, %v6076
    %v6078 = vpop.f32.mrf.mxu0
    %v6079 = vadd.f32 0.0, %v6078
    %6080 = vmatmul.bf16.gmra.mxu0 %v5957
    %v6081 = vpop.f32.mrf.mxu0
    %v6082 = vadd.f32 0.0, %v6081
    %v6083 = vpop.f32.mrf.mxu0
    %v6084 = vadd.f32 0.0, %v6083
    %6085 = vmatmul.bf16.gmra.mxu0 %v5960
    %v6086 = vpop.f32.mrf.mxu0
    %v6087 = vadd.f32 0.0, %v6086
    %v6088 = vpop.f32.mrf.mxu0
    %v6089 = vadd.f32 0.0, %v6088
    %6090 = vmatmul.bf16.gmra.mxu0 %v5963
    %v6091 = vpop.f32.mrf.mxu0
    %v6092 = vadd.f32 0.0, %v6091
    %v6093 = vpop.f32.mrf.mxu0
    %v6094 = vadd.f32 0.0, %v6093
    %6095 = vmatmul.bf16.gmra.mxu0 %v5966
    %v6096 = vpop.f32.mrf.mxu0
    %v6097 = vadd.f32 0.0, %v6096
    %v6098 = vpop.f32.mrf.mxu0
    %v6099 = vadd.f32 0.0, %v6098
    %6100 = vmatmul.bf16.gmra.mxu0 %v5969
    %v6101 = vpop.f32.mrf.mxu0
    %v6102 = vadd.f32 0.0, %v6101
    %v6103 = vpop.f32.mrf.mxu0
    %v6104 = vadd.f32 0.0, %v6103
    %6105 = vmatmul.bf16.gmra.mxu0 %v5972
    %v6106 = vpop.f32.mrf.mxu0
    %v6107 = vadd.f32 0.0, %v6106
    %v6108 = vpop.f32.mrf.mxu0
    %v6109 = vadd.f32 0.0, %v6108
    %6110 = vmatmul.bf16.gmra.mxu0 %v5975
    %v6111 = vpop.f32.mrf.mxu0
    %v6112 = vadd.f32 0.0, %v6111
    %v6113 = vpop.f32.mrf.mxu0
    %v6114 = vadd.f32 0.0, %v6113
    %6115 = vmatmul.bf16.gmra.mxu0 %v5978
    %v6116 = vpop.f32.mrf.mxu0
    %v6117 = vadd.f32 0.0, %v6116
    %v6118 = vpop.f32.mrf.mxu0
    %v6119 = vadd.f32 0.0, %v6118
    %6120 = vmatmul.bf16.gmra.mxu0 %v5981
    %v6121 = vpop.f32.mrf.mxu0
    %v6122 = vadd.f32 0.0, %v6121
    %v6123 = vpop.f32.mrf.mxu0
    %v6124 = vadd.f32 0.0, %v6123
    %6125 = vmatmul.bf16.gmra.mxu0 %v5984
    %v6126 = vpop.f32.mrf.mxu0
    %v6127 = vadd.f32 0.0, %v6126
    %v6128 = vpop.f32.mrf.mxu0
    %v6129 = vadd.f32 0.0, %v6128
    %6130 = vmatmul.bf16.gmra.mxu0 %v5987
    %v6131 = vpop.f32.mrf.mxu0
    %v6132 = vadd.f32 0.0, %v6131
    %v6133 = vpop.f32.mrf.mxu0
    %v6134 = vadd.f32 0.0, %v6133
    %6135 = vmatmul.bf16.gmra.mxu0 %v5990
    %v6136 = vpop.f32.mrf.mxu0
    %v6137 = vadd.f32 0.0, %v6136
    %v6138 = vpop.f32.mrf.mxu0
    %v6139 = vadd.f32 0.0, %v6138
    %6140 = vmatmul.bf16.gmra.mxu0 %v5993
    %v6141 = vpop.f32.mrf.mxu0
    %v6142 = vadd.f32 0.0, %v6141
    %v6143 = vpop.f32.mrf.mxu0
    %v6144 = vadd.f32 0.0, %v6143
    %6145 = vmatmul.bf16.gmra.mxu0 %v5996
    %v6146 = vpop.f32.mrf.mxu0
    %v6147 = vadd.f32 0.0, %v6146
    %v6148 = vpop.f32.mrf.mxu0
    %v6149 = vadd.f32 0.0, %v6148
    %6150 = vmatmul.bf16.gmra.mxu0 %v5999
    %v6151 = vpop.f32.mrf.mxu0
    %v6152 = vadd.f32 0.0, %v6151
    %v6153 = vpop.f32.mrf.mxu0
    %v6154 = vadd.f32 0.0, %v6153
    %6155 = vmatmul.bf16.gmra.mxu0 %v6002
    %v6156 = vpop.f32.mrf.mxu0
    %v6157 = vadd.f32 0.0, %v6156
    %v6158 = vpop.f32.mrf.mxu0
    %v6159 = vadd.f32 0.0, %v6158
    %6160 = vmatmul.bf16.gmra.mxu0 %v6005
    %v6161 = vpop.f32.mrf.mxu0
    %v6162 = vadd.f32 0.0, %v6161
    %v6163 = vpop.f32.mrf.mxu0
    %v6164 = vadd.f32 0.0, %v6163
    %6165 = vmatmul.bf16.gmra.mxu0 %v6008
    %v6166 = vpop.f32.mrf.mxu0
    %v6167 = vadd.f32 0.0, %v6166
    %v6168 = vpop.f32.mrf.mxu0
    %v6169 = vadd.f32 0.0, %v6168
    %6170 = vmatmul.bf16.gmra.mxu0 %v6011
    %v6171 = vpop.f32.mrf.mxu0
    %v6172 = vadd.f32 0.0, %v6171
    %v6173 = vpop.f32.mrf.mxu0
    %v6174 = vadd.f32 0.0, %v6173
    %6175 = vmatmul.bf16.gmra.mxu0 %v6014
    %v6176 = vpop.f32.mrf.mxu0
    %v6177 = vadd.f32 0.0, %v6176
    %v6178 = vpop.f32.mrf.mxu0
    %v6179 = vadd.f32 0.0, %v6178
    %6180 = vmatmul.bf16.gmra.mxu0 %v6017
    %v6181 = vpop.f32.mrf.mxu0
    %v6182 = vadd.f32 0.0, %v6181
    %v6183 = vpop.f32.mrf.mxu0
    %v6184 = vadd.f32 0.0, %v6183
    %6185 = vmatmul.bf16.gmra.mxu0 %v6020
    %v6186 = vpop.f32.mrf.mxu0
    %v6187 = vadd.f32 0.0, %v6186
    %v6188 = vpop.f32.mrf.mxu0
    %v6189 = vadd.f32 0.0, %v6188
    %6190 = vdwg.mxu0
    %v6191 = vadd.f32 %v5749, %v6032
    %v6192 = vadd.f32 %v5750, %v6034
    %v6193 = vadd.f32 %v5751, %v6037
    %v6194 = vadd.f32 %v5752, %v6039
    %v6195 = vadd.f32 %v5753, %v6042
    %v6196 = vadd.f32 %v5754, %v6044
    %v6197 = vadd.f32 %v5755, %v6047
    %v6198 = vadd.f32 %v5756, %v6049
    %v6199 = vadd.f32 %v5757, %v6052
    %v6200 = vadd.f32 %v5758, %v6054
    %v6201 = vadd.f32 %v5759, %v6057
    %v6202 = vadd.f32 %v5760, %v6059
    %v6203 = vadd.f32 %v5761, %v6062
    %v6204 = vadd.f32 %v5762, %v6064
    %v6205 = vadd.f32 %v5763, %v6067
    %v6206 = vadd.f32 %v5764, %v6069
    %v6207 = vadd.f32 %v5765, %v6072
    %v6208 = vadd.f32 %v5766, %v6074
    %v6209 = vadd.f32 %v5767, %v6077
    %v6210 = vadd.f32 %v5768, %v6079
    %v6211 = vadd.f32 %v5769, %v6082
    %v6212 = vadd.f32 %v5770, %v6084
    %v6213 = vadd.f32 %v5771, %v6087
    %v6214 = vadd.f32 %v5772, %v6089
    %v6215 = vadd.f32 %v5773, %v6092
    %v6216 = vadd.f32 %v5774, %v6094
    %v6217 = vadd.f32 %v5775, %v6097
    %v6218 = vadd.f32 %v5776, %v6099
    %v6219 = vadd.f32 %v5777, %v6102
    %v6220 = vadd.f32 %v5778, %v6104
    %v6221 = vadd.f32 %v5779, %v6107
    %v6222 = vadd.f32 %v5780, %v6109
    %v6223 = vadd.f32 %v5781, %v6112
    %v6224 = vadd.f32 %v5782, %v6114
    %v6225 = vadd.f32 %v5783, %v6117
    %v6226 = vadd.f32 %v5784, %v6119
    %v6227 = vadd.f32 %v5785, %v6122
    %v6228 = vadd.f32 %v5786, %v6124
    %v6229 = vadd.f32 %v5787, %v6127
    %v6230 = vadd.f32 %v5788, %v6129
    %v6231 = vadd.f32 %v5789, %v6132
    %v6232 = vadd.f32 %v5790, %v6134
    %v6233 = vadd.f32 %v5791, %v6137
    %v6234 = vadd.f32 %v5792, %v6139
    %v6235 = vadd.f32 %v5793, %v6142
    %v6236 = vadd.f32 %v5794, %v6144
    %v6237 = vadd.f32 %v5795, %v6147
    %v6238 = vadd.f32 %v5796, %v6149
    %v6239 = vadd.f32 %v5797, %v6152
    %v6240 = vadd.f32 %v5798, %v6154
    %v6241 = vadd.f32 %v5799, %v6157
    %v6242 = vadd.f32 %v5800, %v6159
    %v6243 = vadd.f32 %v5801, %v6162
    %v6244 = vadd.f32 %v5802, %v6164
    %v6245 = vadd.f32 %v5803, %v6167
    %v6246 = vadd.f32 %v5804, %v6169
    %v6247 = vadd.f32 %v5805, %v6172
    %v6248 = vadd.f32 %v5806, %v6174
    %v6249 = vadd.f32 %v5807, %v6177
    %v6250 = vadd.f32 %v5808, %v6179
    %v6251 = vadd.f32 %v5809, %v6182
    %v6252 = vadd.f32 %v5810, %v6184
    %v6253 = vadd.f32 %v5811, %v6187
    %v6254 = vadd.f32 %v5812, %v6189
    %s6255 = scalar_lea.vmem [#allocation2], 48
    %v6256 = vld [vmem:[%s6255] sm:$0xff]
    %v6257 = vld [vmem:[%s6255 + $0x8] sm:$0xff]
    %v6258 = vld [vmem:[%s6255 + $0x18] sm:$0xff]
    %v6259 = vld [vmem:[%s6255 + $0x20] sm:$0xff]
    %v6260 = vld [vmem:[%s6255 + $0x30] sm:$0xff]
    %v6261 = vld [vmem:[%s6255 + $0x38] sm:$0xff]
    %v6262 = vld [vmem:[%s6255 + $0x48] sm:$0xff]
    %v6263 = vld [vmem:[%s6255 + $0x50] sm:$0xff]
    %v6264 = vld [vmem:[%s6255 + $0x60] sm:$0xff]
    %v6265 = vld [vmem:[%s6255 + $0x68] sm:$0xff]
    %v6266 = vld [vmem:[%s6255 + $0x78] sm:$0xff]
    %v6267 = vld [vmem:[%s6255 + $0x80] sm:$0xff]
    %v6268 = vld [vmem:[%s6255 + $0x90] sm:$0xff]
    %v6269 = vld [vmem:[%s6255 + $0x98] sm:$0xff]
    %v6270 = vld [vmem:[%s6255 + $0xa8] sm:$0xff]
    %v6271 = vld [vmem:[%s6255 + $0xb0] sm:$0xff]
    %v6272 = vld [vmem:[%s6255 + $0xc0] sm:$0xff]
    %v6273 = vld [vmem:[%s6255 + $0xc8] sm:$0xff]
    %v6274 = vld [vmem:[%s6255 + $0xd8] sm:$0xff]
    %v6275 = vld [vmem:[%s6255 + $0xe0] sm:$0xff]
    %v6276 = vld [vmem:[%s6255 + $0xf0] sm:$0xff]
    %v6277 = vld [vmem:[%s6255 + $0xf8] sm:$0xff]
    %v6278 = vld [vmem:[%s6255 + $0x108] sm:$0xff]
    %v6279 = vld [vmem:[%s6255 + $0x110] sm:$0xff]
    %v6280 = vld [vmem:[%s6255 + $0x120] sm:$0xff]
    %v6281 = vld [vmem:[%s6255 + $0x128] sm:$0xff]
    %v6282 = vld [vmem:[%s6255 + $0x138] sm:$0xff]
    %v6283 = vld [vmem:[%s6255 + $0x140] sm:$0xff]
    %v6284 = vld [vmem:[%s6255 + $0x150] sm:$0xff]
    %v6285 = vld [vmem:[%s6255 + $0x158] sm:$0xff]
    %v6286 = vld [vmem:[%s6255 + $0x168] sm:$0xff]
    %v6287 = vld [vmem:[%s6255 + $0x170] sm:$0xff]
    %v6288 = vld [vmem:[%s6255 + $0x1b0] sm:$0xff]
    %v6289 = vld [vmem:[%s6255 + $0x1b8] sm:$0xff]
    %v6290 = vld [vmem:[%s6255 + $0x1c8] sm:$0xff]
    %v6291 = vld [vmem:[%s6255 + $0x1d0] sm:$0xff]
    %v6292 = vld [vmem:[%s6255 + $0x1e0] sm:$0xff]
    %v6293 = vld [vmem:[%s6255 + $0x1e8] sm:$0xff]
    %v6294 = vld [vmem:[%s6255 + $0x1f8] sm:$0xff]
    %v6295 = vld [vmem:[%s6255 + $0x200] sm:$0xff]
    %v6296 = vld [vmem:[%s6255 + $0x210] sm:$0xff]
    %v6297 = vld [vmem:[%s6255 + $0x218] sm:$0xff]
    %v6298 = vld [vmem:[%s6255 + $0x228] sm:$0xff]
    %v6299 = vld [vmem:[%s6255 + $0x230] sm:$0xff]
    %v6300 = vld [vmem:[%s6255 + $0x240] sm:$0xff]
    %v6301 = vld [vmem:[%s6255 + $0x248] sm:$0xff]
    %v6302 = vld [vmem:[%s6255 + $0x258] sm:$0xff]
    %v6303 = vld [vmem:[%s6255 + $0x260] sm:$0xff]
    %v6304 = vld [vmem:[%s6255 + $0x270] sm:$0xff]
    %v6305 = vld [vmem:[%s6255 + $0x278] sm:$0xff]
    %v6306 = vld [vmem:[%s6255 + $0x288] sm:$0xff]
    %v6307 = vld [vmem:[%s6255 + $0x290] sm:$0xff]
    %v6308 = vld [vmem:[%s6255 + $0x2a0] sm:$0xff]
    %v6309 = vld [vmem:[%s6255 + $0x2a8] sm:$0xff]
    %v6310 = vld [vmem:[%s6255 + $0x2b8] sm:$0xff]
    %v6311 = vld [vmem:[%s6255 + $0x2c0] sm:$0xff]
    %v6312 = vld [vmem:[%s6255 + $0x2d0] sm:$0xff]
    %v6313 = vld [vmem:[%s6255 + $0x2d8] sm:$0xff]
    %v6314 = vld [vmem:[%s6255 + $0x2e8] sm:$0xff]
    %v6315 = vld [vmem:[%s6255 + $0x2f0] sm:$0xff]
    %v6316 = vld [vmem:[%s6255 + $0x300] sm:$0xff]
    %v6317 = vld [vmem:[%s6255 + $0x308] sm:$0xff]
    %v6318 = vld [vmem:[%s6255 + $0x318] sm:$0xff]
    %v6319 = vld [vmem:[%s6255 + $0x320] sm:$0xff]
    %v6320 = vpack.c.bf16 %v6257, %v6256
    %v6321 = vpack.c.bf16 %v6259, %v6258
    %v6322 = vpack.c.bf16 %v6261, %v6260
    %v6323 = vpack.c.bf16 %v6263, %v6262
    %v6324 = vpack.c.bf16 %v6265, %v6264
    %v6325 = vpack.c.bf16 %v6267, %v6266
    %v6326 = vpack.c.bf16 %v6269, %v6268
    %v6327 = vpack.c.bf16 %v6271, %v6270
    %v6328 = vpack.c.bf16 %v6273, %v6272
    %v6329 = vpack.c.bf16 %v6275, %v6274
    %v6330 = vpack.c.bf16 %v6277, %v6276
    %v6331 = vpack.c.bf16 %v6279, %v6278
    %v6332 = vpack.c.bf16 %v6281, %v6280
    %v6333 = vpack.c.bf16 %v6283, %v6282
    %v6334 = vpack.c.bf16 %v6285, %v6284
    %v6335 = vpack.c.bf16 %v6287, %v6286
    %v6336 = vpack.c.bf16 %v6289, %v6288
    %v6337 = vpack.c.bf16 %v6291, %v6290
    %v6338 = vpack.c.bf16 %v6293, %v6292
    %v6339 = vpack.c.bf16 %v6295, %v6294
    %v6340 = vpack.c.bf16 %v6297, %v6296
    %v6341 = vpack.c.bf16 %v6299, %v6298
    %v6342 = vpack.c.bf16 %v6301, %v6300
    %v6343 = vpack.c.bf16 %v6303, %v6302
    %v6344 = vpack.c.bf16 %v6305, %v6304
    %v6345 = vpack.c.bf16 %v6307, %v6306
    %v6346 = vpack.c.bf16 %v6309, %v6308
    %v6347 = vpack.c.bf16 %v6311, %v6310
    %v6348 = vpack.c.bf16 %v6313, %v6312
    %v6349 = vpack.c.bf16 %v6315, %v6314
    %v6350 = vpack.c.bf16 %v6317, %v6316
    %v6351 = vpack.c.bf16 %v6319, %v6318
    %s6352 = scalar_lea.vmem %s3, 96
    %v6353 = vld [vmem:[%s6352] sm:$0xf]
    %v6354 = vld [vmem:[%s6352 + $0x4] sm:$0xf]
    %v6355 = vld [vmem:[%s6352 + $0x8] sm:$0xf]
    %v6356 = vld [vmem:[%s6352 + $0xc] sm:$0xf]
    %v6361 = vunpack.c.l.b16 %v6353
    %v6362 = vunpack.c.l.b16 %v6354
    %v6363 = vunpack.c.l.b16 %v6355
    %v6364 = vunpack.c.l.b16 %v6356
    %v6365 = vpack.c.b16 %v6362, %v6361
    %v6366 = vpack.c.b16 %v6364, %v6363
    %v6370 = vsel %vm3103, %v6320, 0
    %v6373 = vsel %vm3103, %v6321, 0
    %v6376 = vsel %vm3103, %v6322, 0
    %v6379 = vsel %vm3103, %v6323, 0
    %v6382 = vsel %vm3103, %v6324, 0
    %v6385 = vsel %vm3103, %v6325, 0
    %v6388 = vsel %vm3103, %v6326, 0
    %v6391 = vsel %vm3103, %v6327, 0
    %v6394 = vsel %vm3103, %v6328, 0
    %v6397 = vsel %vm3103, %v6329, 0
    %v6400 = vsel %vm3103, %v6330, 0
    %v6403 = vsel %vm3103, %v6331, 0
    %v6406 = vsel %vm3103, %v6332, 0
    %v6409 = vsel %vm3103, %v6333, 0
    %v6412 = vsel %vm3103, %v6334, 0
    %v6415 = vsel %vm3103, %v6335, 0
    %v6418 = vsel %vm3103, %v6336, 0
    %v6421 = vsel %vm3103, %v6337, 0
    %v6424 = vsel %vm3103, %v6338, 0
    %v6427 = vsel %vm3103, %v6339, 0
    %v6430 = vsel %vm3103, %v6340, 0
    %v6433 = vsel %vm3103, %v6341, 0
    %v6436 = vsel %vm3103, %v6342, 0
    %v6439 = vsel %vm3103, %v6343, 0
    %v6442 = vsel %vm3103, %v6344, 0
    %v6445 = vsel %vm3103, %v6345, 0
    %v6448 = vsel %vm3103, %v6346, 0
    %v6451 = vsel %vm3103, %v6347, 0
    %v6454 = vsel %vm3103, %v6348, 0
    %v6457 = vsel %vm3103, %v6349, 0
    %v6460 = vsel %vm3103, %v6350, 0
    %v6463 = vsel %vm3103, %v6351, 0
    %6465 = vmatpush.bf16.msra.mxu0 0
    %6466 = vmatpush.bf16.msra.mxu0 0
    %6467 = vmatpush.bf16.msra.mxu0 0
    %6468 = vmatpush.bf16.msra.mxu0 0
    %6469 = vmatpush.bf16.msra.mxu0 0
    %6470 = vmatpush.bf16.msra.mxu0 0
    %6471 = vmatpush.bf16.msra.mxu0 %v6366
    %6472 = vmatpush.bf16.msra.mxu0 %v6365
    %6473 = vmatmul.bf16.gmra.mxu0 %v6370
    %v6474 = vpop.f32.mrf.mxu0
    %v6475 = vadd.f32 0.0, %v6474
    %v6476 = vpop.f32.mrf.mxu0
    %v6477 = vadd.f32 0.0, %v6476
    %6478 = vmatmul.bf16.gmra.mxu0 %v6373
    %v6479 = vpop.f32.mrf.mxu0
    %v6480 = vadd.f32 0.0, %v6479
    %v6481 = vpop.f32.mrf.mxu0
    %v6482 = vadd.f32 0.0, %v6481
    %6483 = vmatmul.bf16.gmra.mxu0 %v6376
    %v6484 = vpop.f32.mrf.mxu0
    %v6485 = vadd.f32 0.0, %v6484
    %v6486 = vpop.f32.mrf.mxu0
    %v6487 = vadd.f32 0.0, %v6486
    %6488 = vmatmul.bf16.gmra.mxu0 %v6379
    %v6489 = vpop.f32.mrf.mxu0
    %v6490 = vadd.f32 0.0, %v6489
    %v6491 = vpop.f32.mrf.mxu0
    %v6492 = vadd.f32 0.0, %v6491
    %6493 = vmatmul.bf16.gmra.mxu0 %v6382
    %v6494 = vpop.f32.mrf.mxu0
    %v6495 = vadd.f32 0.0, %v6494
    %v6496 = vpop.f32.mrf.mxu0
    %v6497 = vadd.f32 0.0, %v6496
    %6498 = vmatmul.bf16.gmra.mxu0 %v6385
    %v6499 = vpop.f32.mrf.mxu0
    %v6500 = vadd.f32 0.0, %v6499
    %v6501 = vpop.f32.mrf.mxu0
    %v6502 = vadd.f32 0.0, %v6501
    %6503 = vmatmul.bf16.gmra.mxu0 %v6388
    %v6504 = vpop.f32.mrf.mxu0
    %v6505 = vadd.f32 0.0, %v6504
    %v6506 = vpop.f32.mrf.mxu0
    %v6507 = vadd.f32 0.0, %v6506
    %6508 = vmatmul.bf16.gmra.mxu0 %v6391
    %v6509 = vpop.f32.mrf.mxu0
    %v6510 = vadd.f32 0.0, %v6509
    %v6511 = vpop.f32.mrf.mxu0
    %v6512 = vadd.f32 0.0, %v6511
    %6513 = vmatmul.bf16.gmra.mxu0 %v6394
    %v6514 = vpop.f32.mrf.mxu0
    %v6515 = vadd.f32 0.0, %v6514
    %v6516 = vpop.f32.mrf.mxu0
    %v6517 = vadd.f32 0.0, %v6516
    %6518 = vmatmul.bf16.gmra.mxu0 %v6397
    %v6519 = vpop.f32.mrf.mxu0
    %v6520 = vadd.f32 0.0, %v6519
    %v6521 = vpop.f32.mrf.mxu0
    %v6522 = vadd.f32 0.0, %v6521
    %6523 = vmatmul.bf16.gmra.mxu0 %v6400
    %v6524 = vpop.f32.mrf.mxu0
    %v6525 = vadd.f32 0.0, %v6524
    %v6526 = vpop.f32.mrf.mxu0
    %v6527 = vadd.f32 0.0, %v6526
    %6528 = vmatmul.bf16.gmra.mxu0 %v6403
    %v6529 = vpop.f32.mrf.mxu0
    %v6530 = vadd.f32 0.0, %v6529
    %v6531 = vpop.f32.mrf.mxu0
    %v6532 = vadd.f32 0.0, %v6531
    %6533 = vmatmul.bf16.gmra.mxu0 %v6406
    %v6534 = vpop.f32.mrf.mxu0
    %v6535 = vadd.f32 0.0, %v6534
    %v6536 = vpop.f32.mrf.mxu0
    %v6537 = vadd.f32 0.0, %v6536
    %6538 = vmatmul.bf16.gmra.mxu0 %v6409
    %v6539 = vpop.f32.mrf.mxu0
    %v6540 = vadd.f32 0.0, %v6539
    %v6541 = vpop.f32.mrf.mxu0
    %v6542 = vadd.f32 0.0, %v6541
    %6543 = vmatmul.bf16.gmra.mxu0 %v6412
    %v6544 = vpop.f32.mrf.mxu0
    %v6545 = vadd.f32 0.0, %v6544
    %v6546 = vpop.f32.mrf.mxu0
    %v6547 = vadd.f32 0.0, %v6546
    %6548 = vmatmul.bf16.gmra.mxu0 %v6415
    %v6549 = vpop.f32.mrf.mxu0
    %v6550 = vadd.f32 0.0, %v6549
    %v6551 = vpop.f32.mrf.mxu0
    %v6552 = vadd.f32 0.0, %v6551
    %6553 = vmatmul.bf16.gmra.mxu0 %v6418
    %v6554 = vpop.f32.mrf.mxu0
    %v6555 = vadd.f32 0.0, %v6554
    %v6556 = vpop.f32.mrf.mxu0
    %v6557 = vadd.f32 0.0, %v6556
    %6558 = vmatmul.bf16.gmra.mxu0 %v6421
    %v6559 = vpop.f32.mrf.mxu0
    %v6560 = vadd.f32 0.0, %v6559
    %v6561 = vpop.f32.mrf.mxu0
    %v6562 = vadd.f32 0.0, %v6561
    %6563 = vmatmul.bf16.gmra.mxu0 %v6424
    %v6564 = vpop.f32.mrf.mxu0
    %v6565 = vadd.f32 0.0, %v6564
    %v6566 = vpop.f32.mrf.mxu0
    %v6567 = vadd.f32 0.0, %v6566
    %6568 = vmatmul.bf16.gmra.mxu0 %v6427
    %v6569 = vpop.f32.mrf.mxu0
    %v6570 = vadd.f32 0.0, %v6569
    %v6571 = vpop.f32.mrf.mxu0
    %v6572 = vadd.f32 0.0, %v6571
    %6573 = vmatmul.bf16.gmra.mxu0 %v6430
    %v6574 = vpop.f32.mrf.mxu0
    %v6575 = vadd.f32 0.0, %v6574
    %v6576 = vpop.f32.mrf.mxu0
    %v6577 = vadd.f32 0.0, %v6576
    %6578 = vmatmul.bf16.gmra.mxu0 %v6433
    %v6579 = vpop.f32.mrf.mxu0
    %v6580 = vadd.f32 0.0, %v6579
    %v6581 = vpop.f32.mrf.mxu0
    %v6582 = vadd.f32 0.0, %v6581
    %6583 = vmatmul.bf16.gmra.mxu0 %v6436
    %v6584 = vpop.f32.mrf.mxu0
    %v6585 = vadd.f32 0.0, %v6584
    %v6586 = vpop.f32.mrf.mxu0
    %v6587 = vadd.f32 0.0, %v6586
    %6588 = vmatmul.bf16.gmra.mxu0 %v6439
    %v6589 = vpop.f32.mrf.mxu0
    %v6590 = vadd.f32 0.0, %v6589
    %v6591 = vpop.f32.mrf.mxu0
    %v6592 = vadd.f32 0.0, %v6591
    %6593 = vmatmul.bf16.gmra.mxu0 %v6442
    %v6594 = vpop.f32.mrf.mxu0
    %v6595 = vadd.f32 0.0, %v6594
    %v6596 = vpop.f32.mrf.mxu0
    %v6597 = vadd.f32 0.0, %v6596
    %6598 = vmatmul.bf16.gmra.mxu0 %v6445
    %v6599 = vpop.f32.mrf.mxu0
    %v6600 = vadd.f32 0.0, %v6599
    %v6601 = vpop.f32.mrf.mxu0
    %v6602 = vadd.f32 0.0, %v6601
    %6603 = vmatmul.bf16.gmra.mxu0 %v6448
    %v6604 = vpop.f32.mrf.mxu0
    %v6605 = vadd.f32 0.0, %v6604
    %v6606 = vpop.f32.mrf.mxu0
    %v6607 = vadd.f32 0.0, %v6606
    %6608 = vmatmul.bf16.gmra.mxu0 %v6451
    %v6609 = vpop.f32.mrf.mxu0
    %v6610 = vadd.f32 0.0, %v6609
    %v6611 = vpop.f32.mrf.mxu0
    %v6612 = vadd.f32 0.0, %v6611
    %6613 = vmatmul.bf16.gmra.mxu0 %v6454
    %v6614 = vpop.f32.mrf.mxu0
    %v6615 = vadd.f32 0.0, %v6614
    %v6616 = vpop.f32.mrf.mxu0
    %v6617 = vadd.f32 0.0, %v6616
    %6618 = vmatmul.bf16.gmra.mxu0 %v6457
    %v6619 = vpop.f32.mrf.mxu0
    %v6620 = vadd.f32 0.0, %v6619
    %v6621 = vpop.f32.mrf.mxu0
    %v6622 = vadd.f32 0.0, %v6621
    %6623 = vmatmul.bf16.gmra.mxu0 %v6460
    %v6624 = vpop.f32.mrf.mxu0
    %v6625 = vadd.f32 0.0, %v6624
    %v6626 = vpop.f32.mrf.mxu0
    %v6627 = vadd.f32 0.0, %v6626
    %6628 = vmatmul.bf16.gmra.mxu0 %v6463
    %v6629 = vpop.f32.mrf.mxu0
    %v6630 = vadd.f32 0.0, %v6629
    %v6631 = vpop.f32.mrf.mxu0
    %v6632 = vadd.f32 0.0, %v6631
    %6633 = vdwg.mxu0
    %v6634 = vadd.f32 %v6191, %v6475
    %v6635 = vadd.f32 %v6192, %v6477
    %v6636 = vadd.f32 %v6193, %v6480
    %v6637 = vadd.f32 %v6194, %v6482
    %v6638 = vadd.f32 %v6195, %v6485
    %v6639 = vadd.f32 %v6196, %v6487
    %v6640 = vadd.f32 %v6197, %v6490
    %v6641 = vadd.f32 %v6198, %v6492
    %v6642 = vadd.f32 %v6199, %v6495
    %v6643 = vadd.f32 %v6200, %v6497
    %v6644 = vadd.f32 %v6201, %v6500
    %v6645 = vadd.f32 %v6202, %v6502
    %v6646 = vadd.f32 %v6203, %v6505
    %v6647 = vadd.f32 %v6204, %v6507
    %v6648 = vadd.f32 %v6205, %v6510
    %v6649 = vadd.f32 %v6206, %v6512
    %v6650 = vadd.f32 %v6207, %v6515
    %v6651 = vadd.f32 %v6208, %v6517
    %v6652 = vadd.f32 %v6209, %v6520
    %v6653 = vadd.f32 %v6210, %v6522
    %v6654 = vadd.f32 %v6211, %v6525
    %v6655 = vadd.f32 %v6212, %v6527
    %v6656 = vadd.f32 %v6213, %v6530
    %v6657 = vadd.f32 %v6214, %v6532
    %v6658 = vadd.f32 %v6215, %v6535
    %v6659 = vadd.f32 %v6216, %v6537
    %v6660 = vadd.f32 %v6217, %v6540
    %v6661 = vadd.f32 %v6218, %v6542
    %v6662 = vadd.f32 %v6219, %v6545
    %v6663 = vadd.f32 %v6220, %v6547
    %v6664 = vadd.f32 %v6221, %v6550
    %v6665 = vadd.f32 %v6222, %v6552
    %v6666 = vadd.f32 %v6223, %v6555
    %v6667 = vadd.f32 %v6224, %v6557
    %v6668 = vadd.f32 %v6225, %v6560
    %v6669 = vadd.f32 %v6226, %v6562
    %v6670 = vadd.f32 %v6227, %v6565
    %v6671 = vadd.f32 %v6228, %v6567
    %v6672 = vadd.f32 %v6229, %v6570
    %v6673 = vadd.f32 %v6230, %v6572
    %v6674 = vadd.f32 %v6231, %v6575
    %v6675 = vadd.f32 %v6232, %v6577
    %v6676 = vadd.f32 %v6233, %v6580
    %v6677 = vadd.f32 %v6234, %v6582
    %v6678 = vadd.f32 %v6235, %v6585
    %v6679 = vadd.f32 %v6236, %v6587
    %v6680 = vadd.f32 %v6237, %v6590
    %v6681 = vadd.f32 %v6238, %v6592
    %v6682 = vadd.f32 %v6239, %v6595
    %v6683 = vadd.f32 %v6240, %v6597
    %v6684 = vadd.f32 %v6241, %v6600
    %v6685 = vadd.f32 %v6242, %v6602
    %v6686 = vadd.f32 %v6243, %v6605
    %v6687 = vadd.f32 %v6244, %v6607
    %v6688 = vadd.f32 %v6245, %v6610
    %v6689 = vadd.f32 %v6246, %v6612
    %v6690 = vadd.f32 %v6247, %v6615
    %v6691 = vadd.f32 %v6248, %v6617
    %v6692 = vadd.f32 %v6249, %v6620
    %v6693 = vadd.f32 %v6250, %v6622
    %v6694 = vadd.f32 %v6251, %v6625
    %v6695 = vadd.f32 %v6252, %v6627
    %v6696 = vadd.f32 %v6253, %v6630
    %v6697 = vadd.f32 %v6254, %v6632
    %v6698 = vld [vmem:[%s6255 + $0x1] sm:$0xff]
    %v6699 = vld [vmem:[%s6255 + $0x9] sm:$0xff]
    %v6700 = vld [vmem:[%s6255 + $0x19] sm:$0xff]
    %v6701 = vld [vmem:[%s6255 + $0x21] sm:$0xff]
    %v6702 = vld [vmem:[%s6255 + $0x31] sm:$0xff]
    %v6703 = vld [vmem:[%s6255 + $0x39] sm:$0xff]
    %v6704 = vld [vmem:[%s6255 + $0x49] sm:$0xff]
    %v6705 = vld [vmem:[%s6255 + $0x51] sm:$0xff]
    %v6706 = vld [vmem:[%s6255 + $0x61] sm:$0xff]
    %v6707 = vld [vmem:[%s6255 + $0x69] sm:$0xff]
    %v6708 = vld [vmem:[%s6255 + $0x79] sm:$0xff]
    %v6709 = vld [vmem:[%s6255 + $0x81] sm:$0xff]
    %v6710 = vld [vmem:[%s6255 + $0x91] sm:$0xff]
    %v6711 = vld [vmem:[%s6255 + $0x99] sm:$0xff]
    %v6712 = vld [vmem:[%s6255 + $0xa9] sm:$0xff]
    %v6713 = vld [vmem:[%s6255 + $0xb1] sm:$0xff]
    %v6714 = vld [vmem:[%s6255 + $0xc1] sm:$0xff]
    %v6715 = vld [vmem:[%s6255 + $0xc9] sm:$0xff]
    %v6716 = vld [vmem:[%s6255 + $0xd9] sm:$0xff]
    %v6717 = vld [vmem:[%s6255 + $0xe1] sm:$0xff]
    %v6718 = vld [vmem:[%s6255 + $0xf1] sm:$0xff]
    %v6719 = vld [vmem:[%s6255 + $0xf9] sm:$0xff]
    %v6720 = vld [vmem:[%s6255 + $0x109] sm:$0xff]
    %v6721 = vld [vmem:[%s6255 + $0x111] sm:$0xff]
    %v6722 = vld [vmem:[%s6255 + $0x121] sm:$0xff]
    %v6723 = vld [vmem:[%s6255 + $0x129] sm:$0xff]
    %v6724 = vld [vmem:[%s6255 + $0x139] sm:$0xff]
    %v6725 = vld [vmem:[%s6255 + $0x141] sm:$0xff]
    %v6726 = vld [vmem:[%s6255 + $0x151] sm:$0xff]
    %v6727 = vld [vmem:[%s6255 + $0x159] sm:$0xff]
    %v6728 = vld [vmem:[%s6255 + $0x169] sm:$0xff]
    %v6729 = vld [vmem:[%s6255 + $0x171] sm:$0xff]
    %v6730 = vld [vmem:[%s6255 + $0x1b1] sm:$0xff]
    %v6731 = vld [vmem:[%s6255 + $0x1b9] sm:$0xff]
    %v6732 = vld [vmem:[%s6255 + $0x1c9] sm:$0xff]
    %v6733 = vld [vmem:[%s6255 + $0x1d1] sm:$0xff]
    %v6734 = vld [vmem:[%s6255 + $0x1e1] sm:$0xff]
    %v6735 = vld [vmem:[%s6255 + $0x1e9] sm:$0xff]
    %v6736 = vld [vmem:[%s6255 + $0x1f9] sm:$0xff]
    %v6737 = vld [vmem:[%s6255 + $0x201] sm:$0xff]
    %v6738 = vld [vmem:[%s6255 + $0x211] sm:$0xff]
    %v6739 = vld [vmem:[%s6255 + $0x219] sm:$0xff]
    %v6740 = vld [vmem:[%s6255 + $0x229] sm:$0xff]
    %v6741 = vld [vmem:[%s6255 + $0x231] sm:$0xff]
    %v6742 = vld [vmem:[%s6255 + $0x241] sm:$0xff]
    %v6743 = vld [vmem:[%s6255 + $0x249] sm:$0xff]
    %v6744 = vld [vmem:[%s6255 + $0x259] sm:$0xff]
    %v6745 = vld [vmem:[%s6255 + $0x261] sm:$0xff]
    %v6746 = vld [vmem:[%s6255 + $0x271] sm:$0xff]
    %v6747 = vld [vmem:[%s6255 + $0x279] sm:$0xff]
    %v6748 = vld [vmem:[%s6255 + $0x289] sm:$0xff]
    %v6749 = vld [vmem:[%s6255 + $0x291] sm:$0xff]
    %v6750 = vld [vmem:[%s6255 + $0x2a1] sm:$0xff]
    %v6751 = vld [vmem:[%s6255 + $0x2a9] sm:$0xff]
    %v6752 = vld [vmem:[%s6255 + $0x2b9] sm:$0xff]
    %v6753 = vld [vmem:[%s6255 + $0x2c1] sm:$0xff]
    %v6754 = vld [vmem:[%s6255 + $0x2d1] sm:$0xff]
    %v6755 = vld [vmem:[%s6255 + $0x2d9] sm:$0xff]
    %v6756 = vld [vmem:[%s6255 + $0x2e9] sm:$0xff]
    %v6757 = vld [vmem:[%s6255 + $0x2f1] sm:$0xff]
    %v6758 = vld [vmem:[%s6255 + $0x301] sm:$0xff]
    %v6759 = vld [vmem:[%s6255 + $0x309] sm:$0xff]
    %v6760 = vld [vmem:[%s6255 + $0x319] sm:$0xff]
    %v6761 = vld [vmem:[%s6255 + $0x321] sm:$0xff]
    %v6762 = vpack.c.bf16 %v6699, %v6698
    %v6763 = vpack.c.bf16 %v6701, %v6700
    %v6764 = vpack.c.bf16 %v6703, %v6702
    %v6765 = vpack.c.bf16 %v6705, %v6704
    %v6766 = vpack.c.bf16 %v6707, %v6706
    %v6767 = vpack.c.bf16 %v6709, %v6708
    %v6768 = vpack.c.bf16 %v6711, %v6710
    %v6769 = vpack.c.bf16 %v6713, %v6712
    %v6770 = vpack.c.bf16 %v6715, %v6714
    %v6771 = vpack.c.bf16 %v6717, %v6716
    %v6772 = vpack.c.bf16 %v6719, %v6718
    %v6773 = vpack.c.bf16 %v6721, %v6720
    %v6774 = vpack.c.bf16 %v6723, %v6722
    %v6775 = vpack.c.bf16 %v6725, %v6724
    %v6776 = vpack.c.bf16 %v6727, %v6726
    %v6777 = vpack.c.bf16 %v6729, %v6728
    %v6778 = vpack.c.bf16 %v6731, %v6730
    %v6779 = vpack.c.bf16 %v6733, %v6732
    %v6780 = vpack.c.bf16 %v6735, %v6734
    %v6781 = vpack.c.bf16 %v6737, %v6736
    %v6782 = vpack.c.bf16 %v6739, %v6738
    %v6783 = vpack.c.bf16 %v6741, %v6740
    %v6784 = vpack.c.bf16 %v6743, %v6742
    %v6785 = vpack.c.bf16 %v6745, %v6744
    %v6786 = vpack.c.bf16 %v6747, %v6746
    %v6787 = vpack.c.bf16 %v6749, %v6748
    %v6788 = vpack.c.bf16 %v6751, %v6750
    %v6789 = vpack.c.bf16 %v6753, %v6752
    %v6790 = vpack.c.bf16 %v6755, %v6754
    %v6791 = vpack.c.bf16 %v6757, %v6756
    %v6792 = vpack.c.bf16 %v6759, %v6758
    %v6793 = vpack.c.bf16 %v6761, %v6760
    %s6794 = scalar_lea.vmem %s3, 112
    %v6795 = vld [vmem:[%s6794] sm:$0xf]
    %v6796 = vld [vmem:[%s6794 + $0x4] sm:$0xf]
    %v6797 = vld [vmem:[%s6794 + $0x8] sm:$0xf]
    %v6798 = vld [vmem:[%s6794 + $0xc] sm:$0xf]
    %v6803 = vunpack.c.l.b16 %v6795
    %v6804 = vunpack.c.l.b16 %v6796
    %v6805 = vunpack.c.l.b16 %v6797
    %v6806 = vunpack.c.l.b16 %v6798
    %v6807 = vpack.c.b16 %v6804, %v6803
    %v6808 = vpack.c.b16 %v6806, %v6805
    %v6812 = vsel %vm3103, %v6762, 0
    %v6815 = vsel %vm3103, %v6763, 0
    %v6818 = vsel %vm3103, %v6764, 0
    %v6821 = vsel %vm3103, %v6765, 0
    %v6824 = vsel %vm3103, %v6766, 0
    %v6827 = vsel %vm3103, %v6767, 0
    %v6830 = vsel %vm3103, %v6768, 0
    %v6833 = vsel %vm3103, %v6769, 0
    %v6836 = vsel %vm3103, %v6770, 0
    %v6839 = vsel %vm3103, %v6771, 0
    %v6842 = vsel %vm3103, %v6772, 0
    %v6845 = vsel %vm3103, %v6773, 0
    %v6848 = vsel %vm3103, %v6774, 0
    %v6851 = vsel %vm3103, %v6775, 0
    %v6854 = vsel %vm3103, %v6776, 0
    %v6857 = vsel %vm3103, %v6777, 0
    %v6860 = vsel %vm3103, %v6778, 0
    %v6863 = vsel %vm3103, %v6779, 0
    %v6866 = vsel %vm3103, %v6780, 0
    %v6869 = vsel %vm3103, %v6781, 0
    %v6872 = vsel %vm3103, %v6782, 0
    %v6875 = vsel %vm3103, %v6783, 0
    %v6878 = vsel %vm3103, %v6784, 0
    %v6881 = vsel %vm3103, %v6785, 0
    %v6884 = vsel %vm3103, %v6786, 0
    %v6887 = vsel %vm3103, %v6787, 0
    %v6890 = vsel %vm3103, %v6788, 0
    %v6893 = vsel %vm3103, %v6789, 0
    %v6896 = vsel %vm3103, %v6790, 0
    %v6899 = vsel %vm3103, %v6791, 0
    %v6902 = vsel %vm3103, %v6792, 0
    %v6905 = vsel %vm3103, %v6793, 0
    %6907 = vmatpush.bf16.msra.mxu0 0
    %6908 = vmatpush.bf16.msra.mxu0 0
    %6909 = vmatpush.bf16.msra.mxu0 0
    %6910 = vmatpush.bf16.msra.mxu0 0
    %6911 = vmatpush.bf16.msra.mxu0 0
    %6912 = vmatpush.bf16.msra.mxu0 0
    %6913 = vmatpush.bf16.msra.mxu0 %v6808
    %6914 = vmatpush.bf16.msra.mxu0 %v6807
    %6915 = vmatmul.bf16.gmra.mxu0 %v6812
    %v6916 = vpop.f32.mrf.mxu0
    %v6917 = vadd.f32 0.0, %v6916
    %v6918 = vpop.f32.mrf.mxu0
    %v6919 = vadd.f32 0.0, %v6918
    %6920 = vmatmul.bf16.gmra.mxu0 %v6815
    %v6921 = vpop.f32.mrf.mxu0
    %v6922 = vadd.f32 0.0, %v6921
    %v6923 = vpop.f32.mrf.mxu0
    %v6924 = vadd.f32 0.0, %v6923
    %6925 = vmatmul.bf16.gmra.mxu0 %v6818
    %v6926 = vpop.f32.mrf.mxu0
    %v6927 = vadd.f32 0.0, %v6926
    %v6928 = vpop.f32.mrf.mxu0
    %v6929 = vadd.f32 0.0, %v6928
    %6930 = vmatmul.bf16.gmra.mxu0 %v6821
    %v6931 = vpop.f32.mrf.mxu0
    %v6932 = vadd.f32 0.0, %v6931
    %v6933 = vpop.f32.mrf.mxu0
    %v6934 = vadd.f32 0.0, %v6933
    %6935 = vmatmul.bf16.gmra.mxu0 %v6824
    %v6936 = vpop.f32.mrf.mxu0
    %v6937 = vadd.f32 0.0, %v6936
    %v6938 = vpop.f32.mrf.mxu0
    %v6939 = vadd.f32 0.0, %v6938
    %6940 = vmatmul.bf16.gmra.mxu0 %v6827
    %v6941 = vpop.f32.mrf.mxu0
    %v6942 = vadd.f32 0.0, %v6941
    %v6943 = vpop.f32.mrf.mxu0
    %v6944 = vadd.f32 0.0, %v6943
    %6945 = vmatmul.bf16.gmra.mxu0 %v6830
    %v6946 = vpop.f32.mrf.mxu0
    %v6947 = vadd.f32 0.0, %v6946
    %v6948 = vpop.f32.mrf.mxu0
    %v6949 = vadd.f32 0.0, %v6948
    %6950 = vmatmul.bf16.gmra.mxu0 %v6833
    %v6951 = vpop.f32.mrf.mxu0
    %v6952 = vadd.f32 0.0, %v6951
    %v6953 = vpop.f32.mrf.mxu0
    %v6954 = vadd.f32 0.0, %v6953
    %6955 = vmatmul.bf16.gmra.mxu0 %v6836
    %v6956 = vpop.f32.mrf.mxu0
    %v6957 = vadd.f32 0.0, %v6956
    %v6958 = vpop.f32.mrf.mxu0
    %v6959 = vadd.f32 0.0, %v6958
    %6960 = vmatmul.bf16.gmra.mxu0 %v6839
    %v6961 = vpop.f32.mrf.mxu0
    %v6962 = vadd.f32 0.0, %v6961
    %v6963 = vpop.f32.mrf.mxu0
    %v6964 = vadd.f32 0.0, %v6963
    %6965 = vmatmul.bf16.gmra.mxu0 %v6842
    %v6966 = vpop.f32.mrf.mxu0
    %v6967 = vadd.f32 0.0, %v6966
    %v6968 = vpop.f32.mrf.mxu0
    %v6969 = vadd.f32 0.0, %v6968
    %6970 = vmatmul.bf16.gmra.mxu0 %v6845
    %v6971 = vpop.f32.mrf.mxu0
    %v6972 = vadd.f32 0.0, %v6971
    %v6973 = vpop.f32.mrf.mxu0
    %v6974 = vadd.f32 0.0, %v6973
    %6975 = vmatmul.bf16.gmra.mxu0 %v6848
    %v6976 = vpop.f32.mrf.mxu0
    %v6977 = vadd.f32 0.0, %v6976
    %v6978 = vpop.f32.mrf.mxu0
    %v6979 = vadd.f32 0.0, %v6978
    %6980 = vmatmul.bf16.gmra.mxu0 %v6851
    %v6981 = vpop.f32.mrf.mxu0
    %v6982 = vadd.f32 0.0, %v6981
    %v6983 = vpop.f32.mrf.mxu0
    %v6984 = vadd.f32 0.0, %v6983
    %6985 = vmatmul.bf16.gmra.mxu0 %v6854
    %v6986 = vpop.f32.mrf.mxu0
    %v6987 = vadd.f32 0.0, %v6986
    %v6988 = vpop.f32.mrf.mxu0
    %v6989 = vadd.f32 0.0, %v6988
    %6990 = vmatmul.bf16.gmra.mxu0 %v6857
    %v6991 = vpop.f32.mrf.mxu0
    %v6992 = vadd.f32 0.0, %v6991
    %v6993 = vpop.f32.mrf.mxu0
    %v6994 = vadd.f32 0.0, %v6993
    %6995 = vmatmul.bf16.gmra.mxu0 %v6860
    %v6996 = vpop.f32.mrf.mxu0
    %v6997 = vadd.f32 0.0, %v6996
    %v6998 = vpop.f32.mrf.mxu0
    %v6999 = vadd.f32 0.0, %v6998
    %7000 = vmatmul.bf16.gmra.mxu0 %v6863
    %v7001 = vpop.f32.mrf.mxu0
    %v7002 = vadd.f32 0.0, %v7001
    %v7003 = vpop.f32.mrf.mxu0
    %v7004 = vadd.f32 0.0, %v7003
    %7005 = vmatmul.bf16.gmra.mxu0 %v6866
    %v7006 = vpop.f32.mrf.mxu0
    %v7007 = vadd.f32 0.0, %v7006
    %v7008 = vpop.f32.mrf.mxu0
    %v7009 = vadd.f32 0.0, %v7008
    %7010 = vmatmul.bf16.gmra.mxu0 %v6869
    %v7011 = vpop.f32.mrf.mxu0
    %v7012 = vadd.f32 0.0, %v7011
    %v7013 = vpop.f32.mrf.mxu0
    %v7014 = vadd.f32 0.0, %v7013
    %7015 = vmatmul.bf16.gmra.mxu0 %v6872
    %v7016 = vpop.f32.mrf.mxu0
    %v7017 = vadd.f32 0.0, %v7016
    %v7018 = vpop.f32.mrf.mxu0
    %v7019 = vadd.f32 0.0, %v7018
    %7020 = vmatmul.bf16.gmra.mxu0 %v6875
    %v7021 = vpop.f32.mrf.mxu0
    %v7022 = vadd.f32 0.0, %v7021
    %v7023 = vpop.f32.mrf.mxu0
    %v7024 = vadd.f32 0.0, %v7023
    %7025 = vmatmul.bf16.gmra.mxu0 %v6878
    %v7026 = vpop.f32.mrf.mxu0
    %v7027 = vadd.f32 0.0, %v7026
    %v7028 = vpop.f32.mrf.mxu0
    %v7029 = vadd.f32 0.0, %v7028
    %7030 = vmatmul.bf16.gmra.mxu0 %v6881
    %v7031 = vpop.f32.mrf.mxu0
    %v7032 = vadd.f32 0.0, %v7031
    %v7033 = vpop.f32.mrf.mxu0
    %v7034 = vadd.f32 0.0, %v7033
    %7035 = vmatmul.bf16.gmra.mxu0 %v6884
    %v7036 = vpop.f32.mrf.mxu0
    %v7037 = vadd.f32 0.0, %v7036
    %v7038 = vpop.f32.mrf.mxu0
    %v7039 = vadd.f32 0.0, %v7038
    %7040 = vmatmul.bf16.gmra.mxu0 %v6887
    %v7041 = vpop.f32.mrf.mxu0
    %v7042 = vadd.f32 0.0, %v7041
    %v7043 = vpop.f32.mrf.mxu0
    %v7044 = vadd.f32 0.0, %v7043
    %7045 = vmatmul.bf16.gmra.mxu0 %v6890
    %v7046 = vpop.f32.mrf.mxu0
    %v7047 = vadd.f32 0.0, %v7046
    %v7048 = vpop.f32.mrf.mxu0
    %v7049 = vadd.f32 0.0, %v7048
    %7050 = vmatmul.bf16.gmra.mxu0 %v6893
    %v7051 = vpop.f32.mrf.mxu0
    %v7052 = vadd.f32 0.0, %v7051
    %v7053 = vpop.f32.mrf.mxu0
    %v7054 = vadd.f32 0.0, %v7053
    %7055 = vmatmul.bf16.gmra.mxu0 %v6896
    %v7056 = vpop.f32.mrf.mxu0
    %v7057 = vadd.f32 0.0, %v7056
    %v7058 = vpop.f32.mrf.mxu0
    %v7059 = vadd.f32 0.0, %v7058
    %7060 = vmatmul.bf16.gmra.mxu0 %v6899
    %v7061 = vpop.f32.mrf.mxu0
    %v7062 = vadd.f32 0.0, %v7061
    %v7063 = vpop.f32.mrf.mxu0
    %v7064 = vadd.f32 0.0, %v7063
    %7065 = vmatmul.bf16.gmra.mxu0 %v6902
    %v7066 = vpop.f32.mrf.mxu0
    %v7067 = vadd.f32 0.0, %v7066
    %v7068 = vpop.f32.mrf.mxu0
    %v7069 = vadd.f32 0.0, %v7068
    %7070 = vmatmul.bf16.gmra.mxu0 %v6905
    %v7071 = vpop.f32.mrf.mxu0
    %v7072 = vadd.f32 0.0, %v7071
    %v7073 = vpop.f32.mrf.mxu0
    %v7074 = vadd.f32 0.0, %v7073
    %7075 = vdwg.mxu0
    %v7076 = vadd.f32 %v6634, %v6917
    %v7077 = vadd.f32 %v6635, %v6919
    %v7078 = vadd.f32 %v6636, %v6922
    %v7079 = vadd.f32 %v6637, %v6924
    %v7080 = vadd.f32 %v6638, %v6927
    %v7081 = vadd.f32 %v6639, %v6929
    %v7082 = vadd.f32 %v6640, %v6932
    %v7083 = vadd.f32 %v6641, %v6934
    %v7084 = vadd.f32 %v6642, %v6937
    %v7085 = vadd.f32 %v6643, %v6939
    %v7086 = vadd.f32 %v6644, %v6942
    %v7087 = vadd.f32 %v6645, %v6944
    %v7088 = vadd.f32 %v6646, %v6947
    %v7089 = vadd.f32 %v6647, %v6949
    %v7090 = vadd.f32 %v6648, %v6952
    %v7091 = vadd.f32 %v6649, %v6954
    %v7092 = vadd.f32 %v6650, %v6957
    %v7093 = vadd.f32 %v6651, %v6959
    %v7094 = vadd.f32 %v6652, %v6962
    %v7095 = vadd.f32 %v6653, %v6964
    %v7096 = vadd.f32 %v6654, %v6967
    %v7097 = vadd.f32 %v6655, %v6969
    %v7098 = vadd.f32 %v6656, %v6972
    %v7099 = vadd.f32 %v6657, %v6974
    %v7100 = vadd.f32 %v6658, %v6977
    %v7101 = vadd.f32 %v6659, %v6979
    %v7102 = vadd.f32 %v6660, %v6982
    %v7103 = vadd.f32 %v6661, %v6984
    %v7104 = vadd.f32 %v6662, %v6987
    %v7105 = vadd.f32 %v6663, %v6989
    %v7106 = vadd.f32 %v6664, %v6992
    %v7107 = vadd.f32 %v6665, %v6994
    %v7108 = vadd.f32 %v6666, %v6997
    %v7109 = vadd.f32 %v6667, %v6999
    %v7110 = vadd.f32 %v6668, %v7002
    %v7111 = vadd.f32 %v6669, %v7004
    %v7112 = vadd.f32 %v6670, %v7007
    %v7113 = vadd.f32 %v6671, %v7009
    %v7114 = vadd.f32 %v6672, %v7012
    %v7115 = vadd.f32 %v6673, %v7014
    %v7116 = vadd.f32 %v6674, %v7017
    %v7117 = vadd.f32 %v6675, %v7019
    %v7118 = vadd.f32 %v6676, %v7022
    %v7119 = vadd.f32 %v6677, %v7024
    %v7120 = vadd.f32 %v6678, %v7027
    %v7121 = vadd.f32 %v6679, %v7029
    %v7122 = vadd.f32 %v6680, %v7032
    %v7123 = vadd.f32 %v6681, %v7034
    %v7124 = vadd.f32 %v6682, %v7037
    %v7125 = vadd.f32 %v6683, %v7039
    %v7126 = vadd.f32 %v6684, %v7042
    %v7127 = vadd.f32 %v6685, %v7044
    %v7128 = vadd.f32 %v6686, %v7047
    %v7129 = vadd.f32 %v6687, %v7049
    %v7130 = vadd.f32 %v6688, %v7052
    %v7131 = vadd.f32 %v6689, %v7054
    %v7132 = vadd.f32 %v6690, %v7057
    %v7133 = vadd.f32 %v6691, %v7059
    %v7134 = vadd.f32 %v6692, %v7062
    %v7135 = vadd.f32 %v6693, %v7064
    %v7136 = vadd.f32 %v6694, %v7067
    %v7137 = vadd.f32 %v6695, %v7069
    %v7138 = vadd.f32 %v6696, %v7072
    %v7139 = vadd.f32 %v6697, %v7074
    %v7140 = vld [vmem:[%s6255 + $0x2] sm:$0xff]
    %v7141 = vld [vmem:[%s6255 + $0xa] sm:$0xff]
    %v7142 = vld [vmem:[%s6255 + $0x1a] sm:$0xff]
    %v7143 = vld [vmem:[%s6255 + $0x22] sm:$0xff]
    %v7144 = vld [vmem:[%s6255 + $0x32] sm:$0xff]
    %v7145 = vld [vmem:[%s6255 + $0x3a] sm:$0xff]
    %v7146 = vld [vmem:[%s6255 + $0x4a] sm:$0xff]
    %v7147 = vld [vmem:[%s6255 + $0x52] sm:$0xff]
    %v7148 = vld [vmem:[%s6255 + $0x62] sm:$0xff]
    %v7149 = vld [vmem:[%s6255 + $0x6a] sm:$0xff]
    %v7150 = vld [vmem:[%s6255 + $0x7a] sm:$0xff]
    %v7151 = vld [vmem:[%s6255 + $0x82] sm:$0xff]
    %v7152 = vld [vmem:[%s6255 + $0x92] sm:$0xff]
    %v7153 = vld [vmem:[%s6255 + $0x9a] sm:$0xff]
    %v7154 = vld [vmem:[%s6255 + $0xaa] sm:$0xff]
    %v7155 = vld [vmem:[%s6255 + $0xb2] sm:$0xff]
    %v7156 = vld [vmem:[%s6255 + $0xc2] sm:$0xff]
    %v7157 = vld [vmem:[%s6255 + $0xca] sm:$0xff]
    %v7158 = vld [vmem:[%s6255 + $0xda] sm:$0xff]
    %v7159 = vld [vmem:[%s6255 + $0xe2] sm:$0xff]
    %v7160 = vld [vmem:[%s6255 + $0xf2] sm:$0xff]
    %v7161 = vld [vmem:[%s6255 + $0xfa] sm:$0xff]
    %v7162 = vld [vmem:[%s6255 + $0x10a] sm:$0xff]
    %v7163 = vld [vmem:[%s6255 + $0x112] sm:$0xff]
    %v7164 = vld [vmem:[%s6255 + $0x122] sm:$0xff]
    %v7165 = vld [vmem:[%s6255 + $0x12a] sm:$0xff]
    %v7166 = vld [vmem:[%s6255 + $0x13a] sm:$0xff]
    %v7167 = vld [vmem:[%s6255 + $0x142] sm:$0xff]
    %v7168 = vld [vmem:[%s6255 + $0x152] sm:$0xff]
    %v7169 = vld [vmem:[%s6255 + $0x15a] sm:$0xff]
    %v7170 = vld [vmem:[%s6255 + $0x16a] sm:$0xff]
    %v7171 = vld [vmem:[%s6255 + $0x172] sm:$0xff]
    %v7172 = vld [vmem:[%s6255 + $0x1b2] sm:$0xff]
    %v7173 = vld [vmem:[%s6255 + $0x1ba] sm:$0xff]
    %v7174 = vld [vmem:[%s6255 + $0x1ca] sm:$0xff]
    %v7175 = vld [vmem:[%s6255 + $0x1d2] sm:$0xff]
    %v7176 = vld [vmem:[%s6255 + $0x1e2] sm:$0xff]
    %v7177 = vld [vmem:[%s6255 + $0x1ea] sm:$0xff]
    %v7178 = vld [vmem:[%s6255 + $0x1fa] sm:$0xff]
    %v7179 = vld [vmem:[%s6255 + $0x202] sm:$0xff]
    %v7180 = vld [vmem:[%s6255 + $0x212] sm:$0xff]
    %v7181 = vld [vmem:[%s6255 + $0x21a] sm:$0xff]
    %v7182 = vld [vmem:[%s6255 + $0x22a] sm:$0xff]
    %v7183 = vld [vmem:[%s6255 + $0x232] sm:$0xff]
    %v7184 = vld [vmem:[%s6255 + $0x242] sm:$0xff]
    %v7185 = vld [vmem:[%s6255 + $0x24a] sm:$0xff]
    %v7186 = vld [vmem:[%s6255 + $0x25a] sm:$0xff]
    %v7187 = vld [vmem:[%s6255 + $0x262] sm:$0xff]
    %v7188 = vld [vmem:[%s6255 + $0x272] sm:$0xff]
    %v7189 = vld [vmem:[%s6255 + $0x27a] sm:$0xff]
    %v7190 = vld [vmem:[%s6255 + $0x28a] sm:$0xff]
    %v7191 = vld [vmem:[%s6255 + $0x292] sm:$0xff]
    %v7192 = vld [vmem:[%s6255 + $0x2a2] sm:$0xff]
    %v7193 = vld [vmem:[%s6255 + $0x2aa] sm:$0xff]
    %v7194 = vld [vmem:[%s6255 + $0x2ba] sm:$0xff]
    %v7195 = vld [vmem:[%s6255 + $0x2c2] sm:$0xff]
    %v7196 = vld [vmem:[%s6255 + $0x2d2] sm:$0xff]
    %v7197 = vld [vmem:[%s6255 + $0x2da] sm:$0xff]
    %v7198 = vld [vmem:[%s6255 + $0x2ea] sm:$0xff]
    %v7199 = vld [vmem:[%s6255 + $0x2f2] sm:$0xff]
    %v7200 = vld [vmem:[%s6255 + $0x302] sm:$0xff]
    %v7201 = vld [vmem:[%s6255 + $0x30a] sm:$0xff]
    %v7202 = vld [vmem:[%s6255 + $0x31a] sm:$0xff]
    %v7203 = vld [vmem:[%s6255 + $0x322] sm:$0xff]
    %v7204 = vpack.c.bf16 %v7141, %v7140
    %v7205 = vpack.c.bf16 %v7143, %v7142
    %v7206 = vpack.c.bf16 %v7145, %v7144
    %v7207 = vpack.c.bf16 %v7147, %v7146
    %v7208 = vpack.c.bf16 %v7149, %v7148
    %v7209 = vpack.c.bf16 %v7151, %v7150
    %v7210 = vpack.c.bf16 %v7153, %v7152
    %v7211 = vpack.c.bf16 %v7155, %v7154
    %v7212 = vpack.c.bf16 %v7157, %v7156
    %v7213 = vpack.c.bf16 %v7159, %v7158
    %v7214 = vpack.c.bf16 %v7161, %v7160
    %v7215 = vpack.c.bf16 %v7163, %v7162
    %v7216 = vpack.c.bf16 %v7165, %v7164
    %v7217 = vpack.c.bf16 %v7167, %v7166
    %v7218 = vpack.c.bf16 %v7169, %v7168
    %v7219 = vpack.c.bf16 %v7171, %v7170
    %v7220 = vpack.c.bf16 %v7173, %v7172
    %v7221 = vpack.c.bf16 %v7175, %v7174
    %v7222 = vpack.c.bf16 %v7177, %v7176
    %v7223 = vpack.c.bf16 %v7179, %v7178
    %v7224 = vpack.c.bf16 %v7181, %v7180
    %v7225 = vpack.c.bf16 %v7183, %v7182
    %v7226 = vpack.c.bf16 %v7185, %v7184
    %v7227 = vpack.c.bf16 %v7187, %v7186
    %v7228 = vpack.c.bf16 %v7189, %v7188
    %v7229 = vpack.c.bf16 %v7191, %v7190
    %v7230 = vpack.c.bf16 %v7193, %v7192
    %v7231 = vpack.c.bf16 %v7195, %v7194
    %v7232 = vpack.c.bf16 %v7197, %v7196
    %v7233 = vpack.c.bf16 %v7199, %v7198
    %v7234 = vpack.c.bf16 %v7201, %v7200
    %v7235 = vpack.c.bf16 %v7203, %v7202
    %s7236 = scalar_lea.vmem %s3, 128
    %v7237 = vld [vmem:[%s7236] sm:$0xf]
    %v7238 = vld [vmem:[%s7236 + $0x4] sm:$0xf]
    %v7239 = vld [vmem:[%s7236 + $0x8] sm:$0xf]
    %v7240 = vld [vmem:[%s7236 + $0xc] sm:$0xf]
    %v7245 = vunpack.c.l.b16 %v7237
    %v7246 = vunpack.c.l.b16 %v7238
    %v7247 = vunpack.c.l.b16 %v7239
    %v7248 = vunpack.c.l.b16 %v7240
    %v7249 = vpack.c.b16 %v7246, %v7245
    %v7250 = vpack.c.b16 %v7248, %v7247
    %v7254 = vsel %vm3103, %v7204, 0
    %v7257 = vsel %vm3103, %v7205, 0
    %v7260 = vsel %vm3103, %v7206, 0
    %v7263 = vsel %vm3103, %v7207, 0
    %v7266 = vsel %vm3103, %v7208, 0
    %v7269 = vsel %vm3103, %v7209, 0
    %v7272 = vsel %vm3103, %v7210, 0
    %v7275 = vsel %vm3103, %v7211, 0
    %v7278 = vsel %vm3103, %v7212, 0
    %v7281 = vsel %vm3103, %v7213, 0
    %v7284 = vsel %vm3103, %v7214, 0
    %v7287 = vsel %vm3103, %v7215, 0
    %v7290 = vsel %vm3103, %v7216, 0
    %v7293 = vsel %vm3103, %v7217, 0
    %v7296 = vsel %vm3103, %v7218, 0
    %v7299 = vsel %vm3103, %v7219, 0
    %v7302 = vsel %vm3103, %v7220, 0
    %v7305 = vsel %vm3103, %v7221, 0
    %v7308 = vsel %vm3103, %v7222, 0
    %v7311 = vsel %vm3103, %v7223, 0
    %v7314 = vsel %vm3103, %v7224, 0
    %v7317 = vsel %vm3103, %v7225, 0
    %v7320 = vsel %vm3103, %v7226, 0
    %v7323 = vsel %vm3103, %v7227, 0
    %v7326 = vsel %vm3103, %v7228, 0
    %v7329 = vsel %vm3103, %v7229, 0
    %v7332 = vsel %vm3103, %v7230, 0
    %v7335 = vsel %vm3103, %v7231, 0
    %v7338 = vsel %vm3103, %v7232, 0
    %v7341 = vsel %vm3103, %v7233, 0
    %v7344 = vsel %vm3103, %v7234, 0
    %v7347 = vsel %vm3103, %v7235, 0
    %7349 = vmatpush.bf16.msra.mxu0 0
    %7350 = vmatpush.bf16.msra.mxu0 0
    %7351 = vmatpush.bf16.msra.mxu0 0
    %7352 = vmatpush.bf16.msra.mxu0 0
    %7353 = vmatpush.bf16.msra.mxu0 0
    %7354 = vmatpush.bf16.msra.mxu0 0
    %7355 = vmatpush.bf16.msra.mxu0 %v7250
    %7356 = vmatpush.bf16.msra.mxu0 %v7249
    %7357 = vmatmul.bf16.gmra.mxu0 %v7254
    %v7358 = vpop.f32.mrf.mxu0
    %v7359 = vadd.f32 0.0, %v7358
    %v7360 = vpop.f32.mrf.mxu0
    %v7361 = vadd.f32 0.0, %v7360
    %7362 = vmatmul.bf16.gmra.mxu0 %v7257
    %v7363 = vpop.f32.mrf.mxu0
    %v7364 = vadd.f32 0.0, %v7363
    %v7365 = vpop.f32.mrf.mxu0
    %v7366 = vadd.f32 0.0, %v7365
    %7367 = vmatmul.bf16.gmra.mxu0 %v7260
    %v7368 = vpop.f32.mrf.mxu0
    %v7369 = vadd.f32 0.0, %v7368
    %v7370 = vpop.f32.mrf.mxu0
    %v7371 = vadd.f32 0.0, %v7370
    %7372 = vmatmul.bf16.gmra.mxu0 %v7263
    %v7373 = vpop.f32.mrf.mxu0
    %v7374 = vadd.f32 0.0, %v7373
    %v7375 = vpop.f32.mrf.mxu0
    %v7376 = vadd.f32 0.0, %v7375
    %7377 = vmatmul.bf16.gmra.mxu0 %v7266
    %v7378 = vpop.f32.mrf.mxu0
    %v7379 = vadd.f32 0.0, %v7378
    %v7380 = vpop.f32.mrf.mxu0
    %v7381 = vadd.f32 0.0, %v7380
    %7382 = vmatmul.bf16.gmra.mxu0 %v7269
    %v7383 = vpop.f32.mrf.mxu0
    %v7384 = vadd.f32 0.0, %v7383
    %v7385 = vpop.f32.mrf.mxu0
    %v7386 = vadd.f32 0.0, %v7385
    %7387 = vmatmul.bf16.gmra.mxu0 %v7272
    %v7388 = vpop.f32.mrf.mxu0
    %v7389 = vadd.f32 0.0, %v7388
    %v7390 = vpop.f32.mrf.mxu0
    %v7391 = vadd.f32 0.0, %v7390
    %7392 = vmatmul.bf16.gmra.mxu0 %v7275
    %v7393 = vpop.f32.mrf.mxu0
    %v7394 = vadd.f32 0.0, %v7393
    %v7395 = vpop.f32.mrf.mxu0
    %v7396 = vadd.f32 0.0, %v7395
    %7397 = vmatmul.bf16.gmra.mxu0 %v7278
    %v7398 = vpop.f32.mrf.mxu0
    %v7399 = vadd.f32 0.0, %v7398
    %v7400 = vpop.f32.mrf.mxu0
    %v7401 = vadd.f32 0.0, %v7400
    %7402 = vmatmul.bf16.gmra.mxu0 %v7281
    %v7403 = vpop.f32.mrf.mxu0
    %v7404 = vadd.f32 0.0, %v7403
    %v7405 = vpop.f32.mrf.mxu0
    %v7406 = vadd.f32 0.0, %v7405
    %7407 = vmatmul.bf16.gmra.mxu0 %v7284
    %v7408 = vpop.f32.mrf.mxu0
    %v7409 = vadd.f32 0.0, %v7408
    %v7410 = vpop.f32.mrf.mxu0
    %v7411 = vadd.f32 0.0, %v7410
    %7412 = vmatmul.bf16.gmra.mxu0 %v7287
    %v7413 = vpop.f32.mrf.mxu0
    %v7414 = vadd.f32 0.0, %v7413
    %v7415 = vpop.f32.mrf.mxu0
    %v7416 = vadd.f32 0.0, %v7415
    %7417 = vmatmul.bf16.gmra.mxu0 %v7290
    %v7418 = vpop.f32.mrf.mxu0
    %v7419 = vadd.f32 0.0, %v7418
    %v7420 = vpop.f32.mrf.mxu0
    %v7421 = vadd.f32 0.0, %v7420
    %7422 = vmatmul.bf16.gmra.mxu0 %v7293
    %v7423 = vpop.f32.mrf.mxu0
    %v7424 = vadd.f32 0.0, %v7423
    %v7425 = vpop.f32.mrf.mxu0
    %v7426 = vadd.f32 0.0, %v7425
    %7427 = vmatmul.bf16.gmra.mxu0 %v7296
    %v7428 = vpop.f32.mrf.mxu0
    %v7429 = vadd.f32 0.0, %v7428
    %v7430 = vpop.f32.mrf.mxu0
    %v7431 = vadd.f32 0.0, %v7430
    %7432 = vmatmul.bf16.gmra.mxu0 %v7299
    %v7433 = vpop.f32.mrf.mxu0
    %v7434 = vadd.f32 0.0, %v7433
    %v7435 = vpop.f32.mrf.mxu0
    %v7436 = vadd.f32 0.0, %v7435
    %7437 = vmatmul.bf16.gmra.mxu0 %v7302
    %v7438 = vpop.f32.mrf.mxu0
    %v7439 = vadd.f32 0.0, %v7438
    %v7440 = vpop.f32.mrf.mxu0
    %v7441 = vadd.f32 0.0, %v7440
    %7442 = vmatmul.bf16.gmra.mxu0 %v7305
    %v7443 = vpop.f32.mrf.mxu0
    %v7444 = vadd.f32 0.0, %v7443
    %v7445 = vpop.f32.mrf.mxu0
    %v7446 = vadd.f32 0.0, %v7445
    %7447 = vmatmul.bf16.gmra.mxu0 %v7308
    %v7448 = vpop.f32.mrf.mxu0
    %v7449 = vadd.f32 0.0, %v7448
    %v7450 = vpop.f32.mrf.mxu0
    %v7451 = vadd.f32 0.0, %v7450
    %7452 = vmatmul.bf16.gmra.mxu0 %v7311
    %v7453 = vpop.f32.mrf.mxu0
    %v7454 = vadd.f32 0.0, %v7453
    %v7455 = vpop.f32.mrf.mxu0
    %v7456 = vadd.f32 0.0, %v7455
    %7457 = vmatmul.bf16.gmra.mxu0 %v7314
    %v7458 = vpop.f32.mrf.mxu0
    %v7459 = vadd.f32 0.0, %v7458
    %v7460 = vpop.f32.mrf.mxu0
    %v7461 = vadd.f32 0.0, %v7460
    %7462 = vmatmul.bf16.gmra.mxu0 %v7317
    %v7463 = vpop.f32.mrf.mxu0
    %v7464 = vadd.f32 0.0, %v7463
    %v7465 = vpop.f32.mrf.mxu0
    %v7466 = vadd.f32 0.0, %v7465
    %7467 = vmatmul.bf16.gmra.mxu0 %v7320
    %v7468 = vpop.f32.mrf.mxu0
    %v7469 = vadd.f32 0.0, %v7468
    %v7470 = vpop.f32.mrf.mxu0
    %v7471 = vadd.f32 0.0, %v7470
    %7472 = vmatmul.bf16.gmra.mxu0 %v7323
    %v7473 = vpop.f32.mrf.mxu0
    %v7474 = vadd.f32 0.0, %v7473
    %v7475 = vpop.f32.mrf.mxu0
    %v7476 = vadd.f32 0.0, %v7475
    %7477 = vmatmul.bf16.gmra.mxu0 %v7326
    %v7478 = vpop.f32.mrf.mxu0
    %v7479 = vadd.f32 0.0, %v7478
    %v7480 = vpop.f32.mrf.mxu0
    %v7481 = vadd.f32 0.0, %v7480
    %7482 = vmatmul.bf16.gmra.mxu0 %v7329
    %v7483 = vpop.f32.mrf.mxu0
    %v7484 = vadd.f32 0.0, %v7483
    %v7485 = vpop.f32.mrf.mxu0
    %v7486 = vadd.f32 0.0, %v7485
    %7487 = vmatmul.bf16.gmra.mxu0 %v7332
    %v7488 = vpop.f32.mrf.mxu0
    %v7489 = vadd.f32 0.0, %v7488
    %v7490 = vpop.f32.mrf.mxu0
    %v7491 = vadd.f32 0.0, %v7490
    %7492 = vmatmul.bf16.gmra.mxu0 %v7335
    %v7493 = vpop.f32.mrf.mxu0
    %v7494 = vadd.f32 0.0, %v7493
    %v7495 = vpop.f32.mrf.mxu0
    %v7496 = vadd.f32 0.0, %v7495
    %7497 = vmatmul.bf16.gmra.mxu0 %v7338
    %v7498 = vpop.f32.mrf.mxu0
    %v7499 = vadd.f32 0.0, %v7498
    %v7500 = vpop.f32.mrf.mxu0
    %v7501 = vadd.f32 0.0, %v7500
    %7502 = vmatmul.bf16.gmra.mxu0 %v7341
    %v7503 = vpop.f32.mrf.mxu0
    %v7504 = vadd.f32 0.0, %v7503
    %v7505 = vpop.f32.mrf.mxu0
    %v7506 = vadd.f32 0.0, %v7505
    %7507 = vmatmul.bf16.gmra.mxu0 %v7344
    %v7508 = vpop.f32.mrf.mxu0
    %v7509 = vadd.f32 0.0, %v7508
    %v7510 = vpop.f32.mrf.mxu0
    %v7511 = vadd.f32 0.0, %v7510
    %7512 = vmatmul.bf16.gmra.mxu0 %v7347
    %v7513 = vpop.f32.mrf.mxu0
    %v7514 = vadd.f32 0.0, %v7513
    %v7515 = vpop.f32.mrf.mxu0
    %v7516 = vadd.f32 0.0, %v7515
    %7517 = vdwg.mxu0
    %v7518 = vadd.f32 %v7076, %v7359
    %v7519 = vadd.f32 %v7077, %v7361
    %v7520 = vadd.f32 %v7078, %v7364
    %v7521 = vadd.f32 %v7079, %v7366
    %v7522 = vadd.f32 %v7080, %v7369
    %v7523 = vadd.f32 %v7081, %v7371
    %v7524 = vadd.f32 %v7082, %v7374
    %v7525 = vadd.f32 %v7083, %v7376
    %v7526 = vadd.f32 %v7084, %v7379
    %v7527 = vadd.f32 %v7085, %v7381
    %v7528 = vadd.f32 %v7086, %v7384
    %v7529 = vadd.f32 %v7087, %v7386
    %v7530 = vadd.f32 %v7088, %v7389
    %v7531 = vadd.f32 %v7089, %v7391
    %v7532 = vadd.f32 %v7090, %v7394
    %v7533 = vadd.f32 %v7091, %v7396
    %v7534 = vadd.f32 %v7092, %v7399
    %v7535 = vadd.f32 %v7093, %v7401
    %v7536 = vadd.f32 %v7094, %v7404
    %v7537 = vadd.f32 %v7095, %v7406
    %v7538 = vadd.f32 %v7096, %v7409
    %v7539 = vadd.f32 %v7097, %v7411
    %v7540 = vadd.f32 %v7098, %v7414
    %v7541 = vadd.f32 %v7099, %v7416
    %v7542 = vadd.f32 %v7100, %v7419
    %v7543 = vadd.f32 %v7101, %v7421
    %v7544 = vadd.f32 %v7102, %v7424
    %v7545 = vadd.f32 %v7103, %v7426
    %v7546 = vadd.f32 %v7104, %v7429
    %v7547 = vadd.f32 %v7105, %v7431
    %v7548 = vadd.f32 %v7106, %v7434
    %v7549 = vadd.f32 %v7107, %v7436
    %v7550 = vadd.f32 %v7108, %v7439
    %v7551 = vadd.f32 %v7109, %v7441
    %v7552 = vadd.f32 %v7110, %v7444
    %v7553 = vadd.f32 %v7111, %v7446
    %v7554 = vadd.f32 %v7112, %v7449
    %v7555 = vadd.f32 %v7113, %v7451
    %v7556 = vadd.f32 %v7114, %v7454
    %v7557 = vadd.f32 %v7115, %v7456
    %v7558 = vadd.f32 %v7116, %v7459
    %v7559 = vadd.f32 %v7117, %v7461
    %v7560 = vadd.f32 %v7118, %v7464
    %v7561 = vadd.f32 %v7119, %v7466
    %v7562 = vadd.f32 %v7120, %v7469
    %v7563 = vadd.f32 %v7121, %v7471
    %v7564 = vadd.f32 %v7122, %v7474
    %v7565 = vadd.f32 %v7123, %v7476
    %v7566 = vadd.f32 %v7124, %v7479
    %v7567 = vadd.f32 %v7125, %v7481
    %v7568 = vadd.f32 %v7126, %v7484
    %v7569 = vadd.f32 %v7127, %v7486
    %v7570 = vadd.f32 %v7128, %v7489
    %v7571 = vadd.f32 %v7129, %v7491
    %v7572 = vadd.f32 %v7130, %v7494
    %v7573 = vadd.f32 %v7131, %v7496
    %v7574 = vadd.f32 %v7132, %v7499
    %v7575 = vadd.f32 %v7133, %v7501
    %v7576 = vadd.f32 %v7134, %v7504
    %v7577 = vadd.f32 %v7135, %v7506
    %v7578 = vadd.f32 %v7136, %v7509
    %v7579 = vadd.f32 %v7137, %v7511
    %v7580 = vadd.f32 %v7138, %v7514
    %v7581 = vadd.f32 %v7139, %v7516
    %v7582 = vld [vmem:[%s4] sm:$0x1]
    %v7584 = vperm.slane %v7582, 0
    %v7586 = vadd.f32 %v7518, %v7584
    %v7587 = vadd.f32 %v7519, %v7584
    %v7588 = vadd.f32 %v7520, %v7584
    %v7589 = vadd.f32 %v7521, %v7584
    %v7590 = vadd.f32 %v7522, %v7584
    %v7591 = vadd.f32 %v7523, %v7584
    %v7592 = vadd.f32 %v7524, %v7584
    %v7593 = vadd.f32 %v7525, %v7584
    %v7594 = vadd.f32 %v7526, %v7584
    %v7595 = vadd.f32 %v7527, %v7584
    %v7596 = vadd.f32 %v7528, %v7584
    %v7597 = vadd.f32 %v7529, %v7584
    %v7598 = vadd.f32 %v7530, %v7584
    %v7599 = vadd.f32 %v7531, %v7584
    %v7600 = vadd.f32 %v7532, %v7584
    %v7601 = vadd.f32 %v7533, %v7584
    %v7602 = vadd.f32 %v7534, %v7584
    %v7603 = vadd.f32 %v7535, %v7584
    %v7604 = vadd.f32 %v7536, %v7584
    %v7605 = vadd.f32 %v7537, %v7584
    %v7606 = vadd.f32 %v7538, %v7584
    %v7607 = vadd.f32 %v7539, %v7584
    %v7608 = vadd.f32 %v7540, %v7584
    %v7609 = vadd.f32 %v7541, %v7584
    %v7610 = vadd.f32 %v7542, %v7584
    %v7611 = vadd.f32 %v7543, %v7584
    %v7612 = vadd.f32 %v7544, %v7584
    %v7613 = vadd.f32 %v7545, %v7584
    %v7614 = vadd.f32 %v7546, %v7584
    %v7615 = vadd.f32 %v7547, %v7584
    %v7616 = vadd.f32 %v7548, %v7584
    %v7617 = vadd.f32 %v7549, %v7584
    %v7618 = vadd.f32 %v7550, %v7584
    %v7619 = vadd.f32 %v7551, %v7584
    %v7620 = vadd.f32 %v7552, %v7584
    %v7621 = vadd.f32 %v7553, %v7584
    %v7622 = vadd.f32 %v7554, %v7584
    %v7623 = vadd.f32 %v7555, %v7584
    %v7624 = vadd.f32 %v7556, %v7584
    %v7625 = vadd.f32 %v7557, %v7584
    %v7626 = vadd.f32 %v7558, %v7584
    %v7627 = vadd.f32 %v7559, %v7584
    %v7628 = vadd.f32 %v7560, %v7584
    %v7629 = vadd.f32 %v7561, %v7584
    %v7630 = vadd.f32 %v7562, %v7584
    %v7631 = vadd.f32 %v7563, %v7584
    %v7632 = vadd.f32 %v7564, %v7584
    %v7633 = vadd.f32 %v7565, %v7584
    %v7634 = vadd.f32 %v7566, %v7584
    %v7635 = vadd.f32 %v7567, %v7584
    %v7636 = vadd.f32 %v7568, %v7584
    %v7637 = vadd.f32 %v7569, %v7584
    %v7638 = vadd.f32 %v7570, %v7584
    %v7639 = vadd.f32 %v7571, %v7584
    %v7640 = vadd.f32 %v7572, %v7584
    %v7641 = vadd.f32 %v7573, %v7584
    %v7642 = vadd.f32 %v7574, %v7584
    %v7643 = vadd.f32 %v7575, %v7584
    %v7644 = vadd.f32 %v7576, %v7584
    %v7645 = vadd.f32 %v7577, %v7584
    %v7646 = vadd.f32 %v7578, %v7584
    %v7647 = vadd.f32 %v7579, %v7584
    %v7648 = vadd.f32 %v7580, %v7584
    %v7649 = vadd.f32 %v7581, %v7584
    %v7650 = vmax.f32 %v7586, 0.0
    %v7651 = vmax.f32 %v7587, 0.0
    %v7652 = vmax.f32 %v7588, 0.0
    %v7653 = vmax.f32 %v7589, 0.0
    %v7654 = vmax.f32 %v7590, 0.0
    %v7655 = vmax.f32 %v7591, 0.0
    %v7656 = vmax.f32 %v7592, 0.0
    %v7657 = vmax.f32 %v7593, 0.0
    %v7658 = vmax.f32 %v7594, 0.0
    %v7659 = vmax.f32 %v7595, 0.0
    %v7660 = vmax.f32 %v7596, 0.0
    %v7661 = vmax.f32 %v7597, 0.0
    %v7662 = vmax.f32 %v7598, 0.0
    %v7663 = vmax.f32 %v7599, 0.0
    %v7664 = vmax.f32 %v7600, 0.0
    %v7665 = vmax.f32 %v7601, 0.0
    %v7666 = vmax.f32 %v7602, 0.0
    %v7667 = vmax.f32 %v7603, 0.0
    %v7668 = vmax.f32 %v7604, 0.0
    %v7669 = vmax.f32 %v7605, 0.0
    %v7670 = vmax.f32 %v7606, 0.0
    %v7671 = vmax.f32 %v7607, 0.0
    %v7672 = vmax.f32 %v7608, 0.0
    %v7673 = vmax.f32 %v7609, 0.0
    %v7674 = vmax.f32 %v7610, 0.0
    %v7675 = vmax.f32 %v7611, 0.0
    %v7676 = vmax.f32 %v7612, 0.0
    %v7677 = vmax.f32 %v7613, 0.0
    %v7678 = vmax.f32 %v7614, 0.0
    %v7679 = vmax.f32 %v7615, 0.0
    %v7680 = vmax.f32 %v7616, 0.0
    %v7681 = vmax.f32 %v7617, 0.0
    %v7682 = vmax.f32 %v7618, 0.0
    %v7683 = vmax.f32 %v7619, 0.0
    %v7684 = vmax.f32 %v7620, 0.0
    %v7685 = vmax.f32 %v7621, 0.0
    %v7686 = vmax.f32 %v7622, 0.0
    %v7687 = vmax.f32 %v7623, 0.0
    %v7688 = vmax.f32 %v7624, 0.0
    %v7689 = vmax.f32 %v7625, 0.0
    %v7690 = vmax.f32 %v7626, 0.0
    %v7691 = vmax.f32 %v7627, 0.0
    %v7692 = vmax.f32 %v7628, 0.0
    %v7693 = vmax.f32 %v7629, 0.0
    %v7694 = vmax.f32 %v7630, 0.0
    %v7695 = vmax.f32 %v7631, 0.0
    %v7696 = vmax.f32 %v7632, 0.0
    %v7697 = vmax.f32 %v7633, 0.0
    %v7698 = vmax.f32 %v7634, 0.0
    %v7699 = vmax.f32 %v7635, 0.0
    %v7700 = vmax.f32 %v7636, 0.0
    %v7701 = vmax.f32 %v7637, 0.0
    %v7702 = vmax.f32 %v7638, 0.0
    %v7703 = vmax.f32 %v7639, 0.0
    %v7704 = vmax.f32 %v7640, 0.0
    %v7705 = vmax.f32 %v7641, 0.0
    %v7706 = vmax.f32 %v7642, 0.0
    %v7707 = vmax.f32 %v7643, 0.0
    %v7708 = vmax.f32 %v7644, 0.0
    %v7709 = vmax.f32 %v7645, 0.0
    %v7710 = vmax.f32 %v7646, 0.0
    %v7711 = vmax.f32 %v7647, 0.0
    %v7712 = vmax.f32 %v7648, 0.0
    %v7713 = vmax.f32 %v7649, 0.0
    %vm7714 = vcmask 523264
    %v7715 = vsel %vm7714, %v7650, 0.0
    %v7716 = vsel %vm7714, %v7651, 0.0
    %v7717 = vadd.f32 %v7715, %v7716
    %v7718 = vsel %vm7714, %v7652, 0.0
    %v7719 = vadd.f32 %v7717, %v7718
    %v7720 = vsel %vm7714, %v7653, 0.0
    %v7721 = vadd.f32 %v7719, %v7720
    %v7722 = vsel %vm7714, %v7654, 0.0
    %v7723 = vadd.f32 %v7721, %v7722
    %v7724 = vsel %vm7714, %v7655, 0.0
    %v7725 = vadd.f32 %v7723, %v7724
    %v7726 = vsel %vm7714, %v7656, 0.0
    %v7727 = vadd.f32 %v7725, %v7726
    %v7728 = vsel %vm7714, %v7657, 0.0
    %v7729 = vadd.f32 %v7727, %v7728
    %v7730 = vsel %vm7714, %v7658, 0.0
    %v7731 = vadd.f32 %v7729, %v7730
    %v7732 = vsel %vm7714, %v7659, 0.0
    %v7733 = vadd.f32 %v7731, %v7732
    %v7734 = vsel %vm7714, %v7660, 0.0
    %v7735 = vadd.f32 %v7733, %v7734
    %v7736 = vsel %vm7714, %v7661, 0.0
    %v7737 = vadd.f32 %v7735, %v7736
    %v7738 = vsel %vm7714, %v7662, 0.0
    %v7739 = vadd.f32 %v7737, %v7738
    %v7740 = vsel %vm7714, %v7663, 0.0
    %v7741 = vadd.f32 %v7739, %v7740
    %v7742 = vsel %vm7714, %v7664, 0.0
    %v7743 = vadd.f32 %v7741, %v7742
    %v7744 = vsel %vm7714, %v7665, 0.0
    %v7745 = vadd.f32 %v7743, %v7744
    %v7746 = vsel %vm7714, %v7666, 0.0
    %v7747 = vadd.f32 %v7745, %v7746
    %v7748 = vsel %vm7714, %v7667, 0.0
    %v7749 = vadd.f32 %v7747, %v7748
    %v7750 = vsel %vm7714, %v7668, 0.0
    %v7751 = vadd.f32 %v7749, %v7750
    %v7752 = vsel %vm7714, %v7669, 0.0
    %v7753 = vadd.f32 %v7751, %v7752
    %v7754 = vsel %vm7714, %v7670, 0.0
    %v7755 = vadd.f32 %v7753, %v7754
    %v7756 = vsel %vm7714, %v7671, 0.0
    %v7757 = vadd.f32 %v7755, %v7756
    %v7758 = vsel %vm7714, %v7672, 0.0
    %v7759 = vadd.f32 %v7757, %v7758
    %v7760 = vsel %vm7714, %v7673, 0.0
    %v7761 = vadd.f32 %v7759, %v7760
    %v7762 = vsel %vm7714, %v7674, 0.0
    %v7763 = vadd.f32 %v7761, %v7762
    %v7764 = vsel %vm7714, %v7675, 0.0
    %v7765 = vadd.f32 %v7763, %v7764
    %v7766 = vsel %vm7714, %v7676, 0.0
    %v7767 = vadd.f32 %v7765, %v7766
    %v7768 = vsel %vm7714, %v7677, 0.0
    %v7769 = vadd.f32 %v7767, %v7768
    %v7770 = vsel %vm7714, %v7678, 0.0
    %v7771 = vadd.f32 %v7769, %v7770
    %v7772 = vsel %vm7714, %v7679, 0.0
    %v7773 = vadd.f32 %v7771, %v7772
    %v7774 = vsel %vm7714, %v7680, 0.0
    %v7775 = vadd.f32 %v7773, %v7774
    %v7776 = vsel %vm7714, %v7681, 0.0
    %v7777 = vadd.f32 %v7775, %v7776
    %v7778 = vrot.slane %v7777, 4
    %v7779 = vadd.f32 %v7777, %v7778
    %v7780 = vrot.slane %v7779, 2
    %v7781 = vadd.f32 %v7779, %v7780
    %v7782 = vrot.slane %v7781, 1
    %v7783 = vadd.f32 %v7781, %v7782
    %v7784 = vsel %vm7714, %v7682, 0.0
    %v7785 = vsel %vm7714, %v7683, 0.0
    %v7786 = vadd.f32 %v7784, %v7785
    %v7787 = vsel %vm7714, %v7684, 0.0
    %v7788 = vadd.f32 %v7786, %v7787
    %v7789 = vsel %vm7714, %v7685, 0.0
    %v7790 = vadd.f32 %v7788, %v7789
    %v7791 = vsel %vm7714, %v7686, 0.0
    %v7792 = vadd.f32 %v7790, %v7791
    %v7793 = vsel %vm7714, %v7687, 0.0
    %v7794 = vadd.f32 %v7792, %v7793
    %v7795 = vsel %vm7714, %v7688, 0.0
    %v7796 = vadd.f32 %v7794, %v7795
    %v7797 = vsel %vm7714, %v7689, 0.0
    %v7798 = vadd.f32 %v7796, %v7797
    %v7799 = vsel %vm7714, %v7690, 0.0
    %v7800 = vadd.f32 %v7798, %v7799
    %v7801 = vsel %vm7714, %v7691, 0.0
    %v7802 = vadd.f32 %v7800, %v7801
    %v7803 = vsel %vm7714, %v7692, 0.0
    %v7804 = vadd.f32 %v7802, %v7803
    %v7805 = vsel %vm7714, %v7693, 0.0
    %v7806 = vadd.f32 %v7804, %v7805
    %v7807 = vsel %vm7714, %v7694, 0.0
    %v7808 = vadd.f32 %v7806, %v7807
    %v7809 = vsel %vm7714, %v7695, 0.0
    %v7810 = vadd.f32 %v7808, %v7809
    %v7811 = vsel %vm7714, %v7696, 0.0
    %v7812 = vadd.f32 %v7810, %v7811
    %v7813 = vsel %vm7714, %v7697, 0.0
    %v7814 = vadd.f32 %v7812, %v7813
    %v7815 = vsel %vm7714, %v7698, 0.0
    %v7816 = vadd.f32 %v7814, %v7815
    %v7817 = vsel %vm7714, %v7699, 0.0
    %v7818 = vadd.f32 %v7816, %v7817
    %v7819 = vsel %vm7714, %v7700, 0.0
    %v7820 = vadd.f32 %v7818, %v7819
    %v7821 = vsel %vm7714, %v7701, 0.0
    %v7822 = vadd.f32 %v7820, %v7821
    %v7823 = vsel %vm7714, %v7702, 0.0
    %v7824 = vadd.f32 %v7822, %v7823
    %v7825 = vsel %vm7714, %v7703, 0.0
    %v7826 = vadd.f32 %v7824, %v7825
    %v7827 = vsel %vm7714, %v7704, 0.0
    %v7828 = vadd.f32 %v7826, %v7827
    %v7829 = vsel %vm7714, %v7705, 0.0
    %v7830 = vadd.f32 %v7828, %v7829
    %v7831 = vsel %vm7714, %v7706, 0.0
    %v7832 = vadd.f32 %v7830, %v7831
    %v7833 = vsel %vm7714, %v7707, 0.0
    %v7834 = vadd.f32 %v7832, %v7833
    %v7835 = vsel %vm7714, %v7708, 0.0
    %v7836 = vadd.f32 %v7834, %v7835
    %v7837 = vsel %vm7714, %v7709, 0.0
    %v7838 = vadd.f32 %v7836, %v7837
    %v7839 = vsel %vm7714, %v7710, 0.0
    %v7840 = vadd.f32 %v7838, %v7839
    %v7841 = vsel %vm7714, %v7711, 0.0
    %v7842 = vadd.f32 %v7840, %v7841
    %v7843 = vsel %vm7714, %v7712, 0.0
    %v7844 = vadd.f32 %v7842, %v7843
    %v7845 = vsel %vm7714, %v7713, 0.0
    %v7846 = vadd.f32 %v7844, %v7845
    %v7847 = vrot.slane %v7846, 4
    %v7848 = vadd.f32 %v7846, %v7847
    %v7849 = vrot.slane %v7848, 2
    %v7850 = vadd.f32 %v7848, %v7849
    %v7851 = vrot.slane %v7850, 1
    %v7852 = vadd.f32 %v7850, %v7851
    %v7853 = vmul.f32 %v7783, 0.00390625
    %v7854 = vmul.f32 %v7852, 0.00390625
    %vm7857 = vcmask 1041409
    %v7858 = vsel %vm7857, %v7854, %v7853
    %vm7860 = vcmask 517120
    %7861 = vst.msk [vmem:[#allocation3] sm:$0x3] %vm7860, %v7858
    // Predicated region
    $region22: #{feature_extractor_forward.1} parent=1 // pred_check
      _
    $region23: #{feature_extractor_forward.1} parent=1 // pred_check_branch
      %7863 = sbr.rel (0) target = $region25
    $region24: #{feature_extractor_forward.1} parent=1 // pred_region
      %7865 = vsyncadd [#allocation4], 0
      %s7867 = sshll.u32 [#allocation3], 4
      %s7868 = int_to_ptr.vmem [resolvable:$true] %s7867
      %s7869 = sshll.u32 %s5, 4
      %s7870 = int_to_ptr.hbm [resolvable:$true] %s7869
      %7872 = dma.vmem_to_hbm [thread:$0]  %s7868, 32, %s7870, [#allocation4]
    $region25: #{feature_extractor_forward.1} parent=1 // pred_fallthru
      _
    // Predicated region
    $region26: #{feature_extractor_forward.1} parent=1 // pred_check
      _
    $region27: #{feature_extractor_forward.1} parent=1 // pred_check_branch
      %7874 = sbr.rel (0) target = $region29
    $region28: #{feature_extractor_forward.1} parent=1 // pred_region
      %7876 = dma.done [#allocation4], 32
    $region29: #{feature_extractor_forward.1} parent=1 // pred_fallthru
      _
    %7877 = vsyncpa [#allocation4], 1

</llo_original>
